<compile_context>
chip_gen: v7x
topology: tpu7x:2x2x1
jax: 0.10.0
libtpu: 0.0.40
codegen_flags: <defaults>
</compile_context>

<pallas_src>
import functools

import numpy as np
import jax
import jax.numpy as jnp
from jax.experimental import pallas as pl
from jax.experimental.pallas import tpu as pltpu


# ----------------------------------------------------------------------------
# static geometry shared by the weight pre-packing and the kernel builder
# ----------------------------------------------------------------------------

def _geometry(k, s, p):
    assert k % s == 0, "kernel_size must be a multiple of stride"
    assert k - 2 * p == s, (
        "fused kernel assumes the classic up-projection geometry "
        "kernel_size - 2*padding == stride (e.g. 6/2/2, 8/4/2, 12/8/2)")
    kq = k // s
    # deconv: output phase r, tap t reads input row qy + d, d = (r+p)//s - t
    dec_d = sorted({(r + p) // s - t for r in range(s) for t in range(kq)})
    # conv2 (stride-s conv): tap kh reads hr phase (kh-p)%s at row y + (kh-p)//s
    c2_e = sorted({(kh - p) // s for kh in range(k)})
    pad = max([0] + [abs(d) for d in dec_d] + [abs(e) for e in c2_e])
    return kq, dec_d, c2_e, pad


# ----------------------------------------------------------------------------
# weight pre-packing (runs once, outside jit, on concrete torch-layout params)
# ----------------------------------------------------------------------------

def prepare_upblock(params, kernel_size, stride, padding):
    k, s, p = kernel_size, stride, padding
    kq, dec_d, c2_e, _ = _geometry(k, s, p)
    w1 = np.asarray(params["w1"], np.float32)            # (Ci, Co, k, k)
    w2 = np.asarray(params["w2"], np.float32)            # (Co, Co, k, k)
    w3 = np.asarray(params["w3"], np.float32)            # (Co, Co, k, k)
    ci, co = w1.shape[0], w1.shape[1]
    cip = ((ci + 7) // 8) * 8                            # sublane-align Cin
    ss = s * s

    def deconv_taps(w, cin, cinp):
        # w: (cin, cout, k, k) torch ConvTranspose2d layout -> per-offset
        # (ss*cout, cinp) blocks, phase-major rows (ry*s+rx)*cout + co.
        cout = w.shape[1]
        mats = []
        for dy in dec_d:
            for dx in dec_d:
                m = np.zeros((ss * cout, cinp), np.float32)
                for ry in range(s):
                    cy, my = (ry + p) // s, (ry + p) % s
                    ty = cy - dy
                    if not 0 <= ty < kq:
                        continue
                    for rx in range(s):
                        cx, mx = (rx + p) // s, (rx + p) % s
                        tx = cx - dx
                        if not 0 <= tx < kq:
                            continue
                        kh, kw = s * ty + my, s * tx + mx
                        r0 = (ry * s + rx) * cout
                        m[r0:r0 + cout, :cin] = w[:, :, kh, kw].T
                mats.append(m)
        return np.stack(mats)                            # (n_off, ss*cout, cinp)

    def conv2_taps(w):
        # w: (cout, cin, k, k) torch Conv2d layout; input is phase-major hr.
        cout, cin = w.shape[0], w.shape[1]
        mats = []
        for ey in c2_e:
            for ex in c2_e:
                m = np.zeros((cout, ss * cin), np.float32)
                for rh in range(s):
                    kh = s * ey + rh + p
                    if not 0 <= kh < k:
                        continue
                    for rw in range(s):
                        kw = s * ex + rw + p
                        if not 0 <= kw < k:
                            continue
                        c0 = (rh * s + rw) * cin
                        m[:, c0:c0 + cin] = w[:, :, kh, kw]
                mats.append(m)
        return np.stack(mats)                            # (n_off, cout, ss*cin)

    w4 = np.zeros((co, cip), np.float32)
    w4[:, :ci] = np.asarray(params["w4"], np.float32)[:, :, 0, 0]
    w5 = np.kron(np.eye(ss, dtype=np.float32),
                 np.asarray(params["w5"], np.float32)[:, :, 0, 0])

    def _tile_bias(b):
        return np.tile(np.asarray(b, np.float32), ss).reshape(ss * co, 1)

    prep = {
        "W1": deconv_taps(w1, ci, cip),
        "W2": conv2_taps(w2),
        "W3": deconv_taps(w3, co, co),
        "W4": w4,
        "W5": w5,
        "B1": _tile_bias(params["b1"]),
        "B2": np.asarray(params["b2"], np.float32).reshape(co, 1),
        "B3": _tile_bias(params["b3"]),
        "B4": np.asarray(params["b4"], np.float32).reshape(co, 1),
        "B5": _tile_bias(params["b5"]),
        "alphas": np.array([[params["a%d" % i] for i in range(1, 6)]],
                           np.float32),
    }
    return jax.tree_util.tree_map(jnp.asarray, prep)


# ----------------------------------------------------------------------------
# fused kernel
# ----------------------------------------------------------------------------

def _make_upblock_kernel(off_dec, off_c2, L, maxoff):

    def _prelu(y, a):
        return jnp.where(y > 0.0, y, a * y)

    def _tap_conv(src, w_ref, offsets):
        # grouped-tap conv: one small matmul per distinct spatial offset.
        if maxoff:
            z = jnp.zeros((src.shape[0], maxoff), src.dtype)
            ext = jnp.concatenate([z, src, z], axis=1)
        else:
            ext = src
        acc = None
        for j, d in enumerate(offsets):
            piece = ext[:, maxoff + d: maxoff + d + L]
            t = jnp.dot(w_ref[j], piece, preferred_element_type=jnp.float32)
            acc = t if acc is None else acc + t
        return acc

    def kernel(x_ref, w1_ref, w2_ref, w3_ref, w4_ref, w5_ref,
               b1_ref, b2_ref, b3_ref, b4_ref, b5_ref, m_ref, a_ref, o_ref):
        x = x_ref[0]                                      # (Cip, L) zero-padded
        mask = m_ref[...]                                 # (1, L) valid lanes

        # conv1 = DeconvBlock(x): phase-major hr, (s*s*Co, L)
        hr = _prelu(_tap_conv(x, w1_ref, off_dec) + b1_ref[...], a_ref[0, 0])
        hr = hr * mask                                    # zero canvas padding

        # conv2 = ConvBlock(hr): consumes hr phase-major directly, (Co, L)
        lr = _prelu(_tap_conv(hr, w2_ref, off_c2) + b2_ref[...], a_ref[0, 1])

        # local_weight1 = 1x1 ConvBlock(x), (Co, L)
        lw1 = _prelu(jnp.dot(w4_ref[...], x,
                             preferred_element_type=jnp.float32)
                     + b4_ref[...], a_ref[0, 3])

        residue = (lw1 - lr) * mask

        # conv3 = DeconvBlock(residue): phase-major, (s*s*Co, L)
        h_res = _prelu(_tap_conv(residue, w3_ref, off_dec) + b3_ref[...],
                       a_ref[0, 2])

        # local_weight2 = 1x1 ConvBlock(hr): block-diagonal weight, phase-major
        lw2 = _prelu(jnp.dot(w5_ref[...], hr,
                             preferred_element_type=jnp.float32)
                     + b5_ref[...], a_ref[0, 4])

        out = lw2 + h_res                                 # (s*s*Co, L)
        o_ref[...] = out.reshape((1,) + out.shape)

    return kernel


# ----------------------------------------------------------------------------
# wrapper
# ----------------------------------------------------------------------------

def upblock_forward(x_nchw, prep, kernel_size, stride, padding):
    """Fused Pallas forward of UpBlock.  x: (N, Ci, H, W) -> (N, Co, H2, W2)."""
    k, s, p = kernel_size, stride, padding
    _, dec_d, c2_e, pad = _geometry(k, s, p)
    N, Ci, H, W = x_nchw.shape
    Co = prep["B2"].shape[0]
    Cip = prep["W4"].shape[1]
    ss = s * s
    SSCo = ss * Co
    H2, W2 = s * H, s * W
    Hp, Wp = H + 2 * pad, W + 2 * pad
    hw = Hp * Wp
    maxoff = pad * Wp + pad
    L = ((hw + 127) // 128) * 128                         # lane-tile aligned

    off_dec = [dy * Wp + dx for dy in dec_d for dx in dec_d]
    off_c2 = [ey * Wp + ex for ey in c2_e for ex in c2_e]

    # channel-major zero-padded canvas input: (N, Cip, L); pure pads/reshape.
    xc = jnp.pad(x_nchw.astype(jnp.float32),
                 ((0, 0), (0, Cip - Ci), (pad, pad), (pad, pad)))
    xc = xc.reshape(N, Cip, hw)
    if L > hw:
        xc = jnp.pad(xc, ((0, 0), (0, 0), (0, L - hw)))

    # lane mask of valid canvas positions (trace-time constant).
    mnp = np.zeros((Hp, Wp), np.float32)
    mnp[pad:pad + H, pad:pad + W] = 1.0
    mvec = np.zeros((1, L), np.float32)
    mvec[0, :hw] = mnp.reshape(-1)
    mask = jnp.asarray(mvec)

    kernel = _make_upblock_kernel(off_dec, off_c2, L, maxoff)

    def _full(shape):
        nd = len(shape)
        return pl.BlockSpec(shape, lambda n, _nd=nd: (0,) * _nd)

    weight_names = ("W1", "W2", "W3", "W4", "W5", "B1", "B2", "B3", "B4", "B5")
    in_specs = [pl.BlockSpec((1, Cip, L), lambda n: (n, 0, 0))]
    in_specs += [_full(tuple(prep[w].shape)) for w in weight_names]
    in_specs += [_full((1, L))]                                   # mask
    in_specs += [pl.BlockSpec(memory_space=pltpu.MemorySpace.SMEM)]  # alphas

    out_pm = pl.pallas_call(
        kernel,
        out_shape=jax.ShapeDtypeStruct((N, SSCo, L), jnp.float32),
        grid=(N,),
        in_specs=in_specs,
        out_specs=pl.BlockSpec((1, SSCo, L), lambda n: (n, 0, 0)),
        compiler_params=pltpu.CompilerParams(
            dimension_semantics=("parallel",)),
    )(xc, *[prep[w] for w in weight_names], mask, prep["alphas"])

    # TODO(synk): tiny depth-to-space left to XLA (see header note).
    out = out_pm[:, :, :hw].reshape(N, s, s, Co, Hp, Wp)
    out = out[:, :, :, :, pad:pad + H, pad:pad + W]
    out = jnp.transpose(out, (0, 3, 4, 1, 5, 2)).reshape(N, Co, H2, W2)
    return out


# ----------------------------------------------------------------------------
# synthetic parameters (PyTorch layouts) + pure-JAX reference
# ----------------------------------------------------------------------------

def init_params(key, input_size, output_size, kernel_size):
    k = kernel_size
    ks = jax.random.split(key, 10)

    def w(key_, shape):
        return jax.random.normal(key_, shape, jnp.float32) * 0.1

    return {
        "w1": w(ks[0], (input_size, output_size, k, k)),   # ConvTranspose2d
        "b1": w(ks[1], (output_size,)), "a1": jnp.float32(0.25),
        "w2": w(ks[2], (output_size, output_size, k, k)),  # Conv2d
        "b2": w(ks[3], (output_size,)), "a2": jnp.float32(0.20),
        "w3": w(ks[4], (output_size, output_size, k, k)),  # ConvTranspose2d
        "b3": w(ks[5], (output_size,)), "a3": jnp.float32(0.30),
        "w4": w(ks[6], (output_size, input_size, 1, 1)),   # 1x1 Conv2d
        "b4": w(ks[7], (output_size,)), "a4": jnp.float32(0.15),
        "w5": w(ks[8], (output_size, output_size, 1, 1)),  # 1x1 Conv2d
        "b5": w(ks[9], (output_size,)), "a5": jnp.float32(0.10),
    }


def _ref_convblock(x, w, b, a, stride, pad):
    y = jax.lax.conv_general_dilated(
        x, w, (stride, stride), [(pad, pad), (pad, pad)],
        dimension_numbers=("NCHW", "OIHW", "NCHW"))
    y = y + b.reshape(1, -1, 1, 1)
    return jnp.where(y > 0, y, a * y)


def _ref_deconvblock(x, w, b, a, k, stride, pad):
    w_conv = jnp.flip(jnp.transpose(w, (1, 0, 2, 3)), axis=(2, 3))
    y = jax.lax.conv_general_dilated(
        x, w_conv, (1, 1), [(k - 1 - pad,) * 2] * 2,
        lhs_dilation=(stride, stride),
        dimension_numbers=("NCHW", "OIHW", "NCHW"))
    y = y + b.reshape(1, -1, 1, 1)
    return jnp.where(y > 0, y, a * y)


def upblock_ref(x, prm, k, s, p):
    hr = _ref_deconvblock(x, prm["w1"], prm["b1"], prm["a1"], k, s, p)
    lr = _ref_convblock(hr, prm["w2"], prm["b2"], prm["a2"], s, p)
    residue = _ref_convblock(x, prm["w4"], prm["b4"], prm["a4"], 1, 0) - lr
    h_residue = _ref_deconvblock(residue, prm["w3"], prm["b3"], prm["a3"], k, s, p)
    hr_weight = _ref_convblock(hr, prm["w5"], prm["b5"], prm["a5"], 1, 0)
    return hr_weight + h_residue


if __name__ == "__main__":
    # UpBlock(input_size=4, output_size=8, kernel_size=6, stride=2, padding=2)
    # (classic 2x up-projection config), x: (2, 4, 16, 16) -> (2, 8, 32, 32).
    input_size, output_size = 4, 8
    kernel_size, stride, padding = 6, 2, 2

    key = jax.random.PRNGKey(0)
    kx, kp = jax.random.split(key)
    x = jax.random.normal(kx, (2, input_size, 16, 16), jnp.float32)   # NCHW
    params = init_params(kp, input_size, output_size, kernel_size)

    prep = prepare_upblock(params, kernel_size, stride, padding)
    fwd = jax.jit(functools.partial(upblock_forward, kernel_size=kernel_size,
                                    stride=stride, padding=padding))
    out = jax.block_until_ready(fwd(x, prep))

    ref = upblock_ref(x, params, kernel_size, stride, padding)
    assert out.shape == (2, output_size, 32, 32), out.shape
    err = float(jnp.max(jnp.abs(out - ref)))
    # Loose-ish tolerance covers MXU vs XLA-conv precision differences.
    assert jnp.allclose(out, ref, atol=1e-2, rtol=1e-2), err

    print("KERNEL_OK")
</pallas_src>

<mosaic_0001>
module attributes {stable_mosaic.version = 11 : i64} {
  func.func @kernel(%arg0: i32, %arg1: memref<1x8x384xf32, #tpu.memory_space<vmem>>, %arg2: memref<9x32x8xf32, #tpu.memory_space<vmem>>, %arg3: memref<9x8x32xf32, #tpu.memory_space<vmem>>, %arg4: memref<9x32x8xf32, #tpu.memory_space<vmem>>, %arg5: memref<8x8xf32, #tpu.memory_space<vmem>>, %arg6: memref<32x32xf32, #tpu.memory_space<vmem>>, %arg7: memref<32x1xf32, #tpu.memory_space<vmem>>, %arg8: memref<8x1xf32, #tpu.memory_space<vmem>>, %arg9: memref<32x1xf32, #tpu.memory_space<vmem>>, %arg10: memref<8x1xf32, #tpu.memory_space<vmem>>, %arg11: memref<32x1xf32, #tpu.memory_space<vmem>>, %arg12: memref<1x384xf32, #tpu.memory_space<vmem>>, %arg13: memref<1x5xf32, #tpu.memory_space<smem>>, %arg14: memref<1x32x384xf32, #tpu.memory_space<vmem>>) attributes {dimension_semantics = [#tpu.dimension_semantics<parallel>], iteration_bounds = array<i64: 2>, scalar_prefetch = 0 : i64, scratch_operands = 0 : i64, tpu.core_type = #tpu.core_type<tc>, window_params = [{transform_indices = @transform_0, window_bounds = array<i64: 1, 8, 384>}, {pipeline_mode = #tpu.pipeline_mode<synchronous>, transform_indices = @transform_1, window_bounds = array<i64: 9, 32, 8>}, {pipeline_mode = #tpu.pipeline_mode<synchronous>, transform_indices = @transform_2, window_bounds = array<i64: 9, 8, 32>}, {pipeline_mode = #tpu.pipeline_mode<synchronous>, transform_indices = @transform_3, window_bounds = array<i64: 9, 32, 8>}, {pipeline_mode = #tpu.pipeline_mode<synchronous>, transform_indices = @transform_4, window_bounds = array<i64: 8, 8>}, {pipeline_mode = #tpu.pipeline_mode<synchronous>, transform_indices = @transform_5, window_bounds = array<i64: 32, 32>}, {pipeline_mode = #tpu.pipeline_mode<synchronous>, transform_indices = @transform_6, window_bounds = array<i64: 32, 1>}, {pipeline_mode = #tpu.pipeline_mode<synchronous>, transform_indices = @transform_7, window_bounds = array<i64: 8, 1>}, {pipeline_mode = #tpu.pipeline_mode<synchronous>, transform_indices = @transform_8, window_bounds = array<i64: 32, 1>}, {pipeline_mode = #tpu.pipeline_mode<synchronous>, transform_indices = @transform_9, window_bounds = array<i64: 8, 1>}, {pipeline_mode = #tpu.pipeline_mode<synchronous>, transform_indices = @transform_10, window_bounds = array<i64: 32, 1>}, {pipeline_mode = #tpu.pipeline_mode<synchronous>, transform_indices = @transform_11, window_bounds = array<i64: 1, 384>}, {transform_indices = @transform_12, window_bounds = array<i64: 1, 5>}, {transform_indices = @transform_13, window_bounds = array<i64: 1, 32, 384>}]} {
    %c0 = arith.constant 0 : index
    %c0_0 = arith.constant 0 : index
    %c0_1 = arith.constant 0 : index
    %0 = vector.load %arg1[%c0, %c0_0, %c0_1] : memref<1x8x384xf32, #tpu.memory_space<vmem>>, vector<1x8x384xf32>
    %1 = vector.shape_cast %0 : vector<1x8x384xf32> to vector<8x384xf32>
    %c0_2 = arith.constant 0 : index
    %c0_3 = arith.constant 0 : index
    %2 = vector.load %arg12[%c0_2, %c0_3] : memref<1x384xf32, #tpu.memory_space<vmem>>, vector<1x384xf32>
    %cst = arith.constant 0.000000e+00 : f32
    %3 = vector.broadcast %cst : f32 to vector<8x19xf32>
    %4 = tpu.concatenate %3, %1, %3 in 1 : vector<8x19xf32>, vector<8x384xf32>, vector<8x19xf32> -> vector<8x422xf32>
    %5 = vector.extract_strided_slice %4 {offsets = [0, 0], sizes = [8, 384], strides = [1, 1]} : vector<8x422xf32> to vector<8x384xf32>
    %c0_4 = arith.constant 0 : index
    %c0_5 = arith.constant 0 : index
    %c0_6 = arith.constant 0 : index
    %6 = vector.load %arg2[%c0_4, %c0_5, %c0_6] : memref<9x32x8xf32, #tpu.memory_space<vmem>>, vector<1x32x8xf32>
    %7 = vector.shape_cast %6 : vector<1x32x8xf32> to vector<32x8xf32>
    %cst_7 = arith.constant dense<0.000000e+00> : vector<32x384xf32>
    %8 = tpu.matmul %7, %5, %cst_7 {dimension_numbers = #tpu.dot_dimension_numbers<[1], [0], [0], [1], [0, 0, 1, 1], [], []>} : vector<32x8xf32>, vector<8x384xf32>, vector<32x384xf32> -> vector<32x384xf32>
    %9 = vector.extract_strided_slice %4 {offsets = [0, 1], sizes = [8, 384], strides = [1, 1]} : vector<8x422xf32> to vector<8x384xf32>
    %c1 = arith.constant 1 : index
    %c0_8 = arith.constant 0 : index
    %c0_9 = arith.constant 0 : index
    %10 = vector.load %arg2[%c1, %c0_8, %c0_9] : memref<9x32x8xf32, #tpu.memory_space<vmem>>, vector<1x32x8xf32>
    %11 = vector.shape_cast %10 : vector<1x32x8xf32> to vector<32x8xf32>
    %cst_10 = arith.constant dense<0.000000e+00> : vector<32x384xf32>
    %12 = tpu.matmul %11, %9, %cst_10 {dimension_numbers = #tpu.dot_dimension_numbers<[1], [0], [0], [1], [0, 0, 1, 1], [], []>} : vector<32x8xf32>, vector<8x384xf32>, vector<32x384xf32> -> vector<32x384xf32>
    %13 = arith.addf %8, %12 : vector<32x384xf32>
    %14 = vector.extract_strided_slice %4 {offsets = [0, 2], sizes = [8, 384], strides = [1, 1]} : vector<8x422xf32> to vector<8x384xf32>
    %c2 = arith.constant 2 : index
    %c0_11 = arith.constant 0 : index
    %c0_12 = arith.constant 0 : index
    %15 = vector.load %arg2[%c2, %c0_11, %c0_12] : memref<9x32x8xf32, #tpu.memory_space<vmem>>, vector<1x32x8xf32>
    %16 = vector.shape_cast %15 : vector<1x32x8xf32> to vector<32x8xf32>
    %cst_13 = arith.constant dense<0.000000e+00> : vector<32x384xf32>
    %17 = tpu.matmul %16, %14, %cst_13 {dimension_numbers = #tpu.dot_dimension_numbers<[1], [0], [0], [1], [0, 0, 1, 1], [], []>} : vector<32x8xf32>, vector<8x384xf32>, vector<32x384xf32> -> vector<32x384xf32>
    %18 = arith.addf %13, %17 : vector<32x384xf32>
    %19 = vector.extract_strided_slice %4 {offsets = [0, 18], sizes = [8, 384], strides = [1, 1]} : vector<8x422xf32> to vector<8x384xf32>
    %c3 = arith.constant 3 : index
    %c0_14 = arith.constant 0 : index
    %c0_15 = arith.constant 0 : index
    %20 = vector.load %arg2[%c3, %c0_14, %c0_15] : memref<9x32x8xf32, #tpu.memory_space<vmem>>, vector<1x32x8xf32>
    %21 = vector.shape_cast %20 : vector<1x32x8xf32> to vector<32x8xf32>
    %cst_16 = arith.constant dense<0.000000e+00> : vector<32x384xf32>
    %22 = tpu.matmul %21, %19, %cst_16 {dimension_numbers = #tpu.dot_dimension_numbers<[1], [0], [0], [1], [0, 0, 1, 1], [], []>} : vector<32x8xf32>, vector<8x384xf32>, vector<32x384xf32> -> vector<32x384xf32>
    %23 = arith.addf %18, %22 : vector<32x384xf32>
    %24 = vector.extract_strided_slice %4 {offsets = [0, 19], sizes = [8, 384], strides = [1, 1]} : vector<8x422xf32> to vector<8x384xf32>
    %c4 = arith.constant 4 : index
    %c0_17 = arith.constant 0 : index
    %c0_18 = arith.constant 0 : index
    %25 = vector.load %arg2[%c4, %c0_17, %c0_18] : memref<9x32x8xf32, #tpu.memory_space<vmem>>, vector<1x32x8xf32>
    %26 = vector.shape_cast %25 : vector<1x32x8xf32> to vector<32x8xf32>
    %cst_19 = arith.constant dense<0.000000e+00> : vector<32x384xf32>
    %27 = tpu.matmul %26, %24, %cst_19 {dimension_numbers = #tpu.dot_dimension_numbers<[1], [0], [0], [1], [0, 0, 1, 1], [], []>} : vector<32x8xf32>, vector<8x384xf32>, vector<32x384xf32> -> vector<32x384xf32>
    %28 = arith.addf %23, %27 : vector<32x384xf32>
    %29 = vector.extract_strided_slice %4 {offsets = [0, 20], sizes = [8, 384], strides = [1, 1]} : vector<8x422xf32> to vector<8x384xf32>
    %c5 = arith.constant 5 : index
    %c0_20 = arith.constant 0 : index
    %c0_21 = arith.constant 0 : index
    %30 = vector.load %arg2[%c5, %c0_20, %c0_21] : memref<9x32x8xf32, #tpu.memory_space<vmem>>, vector<1x32x8xf32>
    %31 = vector.shape_cast %30 : vector<1x32x8xf32> to vector<32x8xf32>
    %cst_22 = arith.constant dense<0.000000e+00> : vector<32x384xf32>
    %32 = tpu.matmul %31, %29, %cst_22 {dimension_numbers = #tpu.dot_dimension_numbers<[1], [0], [0], [1], [0, 0, 1, 1], [], []>} : vector<32x8xf32>, vector<8x384xf32>, vector<32x384xf32> -> vector<32x384xf32>
    %33 = arith.addf %28, %32 : vector<32x384xf32>
    %34 = vector.extract_strided_slice %4 {offsets = [0, 36], sizes = [8, 384], strides = [1, 1]} : vector<8x422xf32> to vector<8x384xf32>
    %c6 = arith.constant 6 : index
    %c0_23 = arith.constant 0 : index
    %c0_24 = arith.constant 0 : index
    %35 = vector.load %arg2[%c6, %c0_23, %c0_24] : memref<9x32x8xf32, #tpu.memory_space<vmem>>, vector<1x32x8xf32>
    %36 = vector.shape_cast %35 : vector<1x32x8xf32> to vector<32x8xf32>
    %cst_25 = arith.constant dense<0.000000e+00> : vector<32x384xf32>
    %37 = tpu.matmul %36, %34, %cst_25 {dimension_numbers = #tpu.dot_dimension_numbers<[1], [0], [0], [1], [0, 0, 1, 1], [], []>} : vector<32x8xf32>, vector<8x384xf32>, vector<32x384xf32> -> vector<32x384xf32>
    %38 = arith.addf %33, %37 : vector<32x384xf32>
    %39 = vector.extract_strided_slice %4 {offsets = [0, 37], sizes = [8, 384], strides = [1, 1]} : vector<8x422xf32> to vector<8x384xf32>
    %c7 = arith.constant 7 : index
    %c0_26 = arith.constant 0 : index
    %c0_27 = arith.constant 0 : index
    %40 = vector.load %arg2[%c7, %c0_26, %c0_27] : memref<9x32x8xf32, #tpu.memory_space<vmem>>, vector<1x32x8xf32>
    %41 = vector.shape_cast %40 : vector<1x32x8xf32> to vector<32x8xf32>
    %cst_28 = arith.constant dense<0.000000e+00> : vector<32x384xf32>
    %42 = tpu.matmul %41, %39, %cst_28 {dimension_numbers = #tpu.dot_dimension_numbers<[1], [0], [0], [1], [0, 0, 1, 1], [], []>} : vector<32x8xf32>, vector<8x384xf32>, vector<32x384xf32> -> vector<32x384xf32>
    %43 = arith.addf %38, %42 : vector<32x384xf32>
    %44 = vector.extract_strided_slice %4 {offsets = [0, 38], sizes = [8, 384], strides = [1, 1]} : vector<8x422xf32> to vector<8x384xf32>
    %c8 = arith.constant 8 : index
    %c0_29 = arith.constant 0 : index
    %c0_30 = arith.constant 0 : index
    %45 = vector.load %arg2[%c8, %c0_29, %c0_30] : memref<9x32x8xf32, #tpu.memory_space<vmem>>, vector<1x32x8xf32>
    %46 = vector.shape_cast %45 : vector<1x32x8xf32> to vector<32x8xf32>
    %cst_31 = arith.constant dense<0.000000e+00> : vector<32x384xf32>
    %47 = tpu.matmul %46, %44, %cst_31 {dimension_numbers = #tpu.dot_dimension_numbers<[1], [0], [0], [1], [0, 0, 1, 1], [], []>} : vector<32x8xf32>, vector<8x384xf32>, vector<32x384xf32> -> vector<32x384xf32>
    %48 = arith.addf %43, %47 : vector<32x384xf32>
    %c0_32 = arith.constant 0 : index
    %c0_33 = arith.constant 0 : index
    %49 = vector.load %arg7[%c0_32, %c0_33] : memref<32x1xf32, #tpu.memory_space<vmem>>, vector<32x1xf32>
    %50 = vector.broadcast %49 : vector<32x1xf32> to vector<32x384xf32>
    %51 = arith.addf %48, %50 : vector<32x384xf32>
    %c0_34 = arith.constant 0 : index
    %c0_35 = arith.constant 0 : index
    %52 = memref.load %arg13[%c0_34, %c0_35] : memref<1x5xf32, #tpu.memory_space<smem>>
    %cst_36 = arith.constant 0.000000e+00 : f32
    %53 = vector.broadcast %cst_36 : f32 to vector<32x384xf32>
    %54 = arith.cmpf ogt, %51, %53 : vector<32x384xf32>
    %55 = vector.broadcast %52 : f32 to vector<32x384xf32>
    %56 = arith.mulf %55, %51 : vector<32x384xf32>
    %57 = arith.select %54, %51, %56 : vector<32x384xi1>, vector<32x384xf32>
    %58 = vector.broadcast %2 : vector<1x384xf32> to vector<32x384xf32>
    %59 = arith.mulf %57, %58 : vector<32x384xf32>
    %cst_37 = arith.constant 0.000000e+00 : f32
    %60 = vector.broadcast %cst_37 : f32 to vector<32x19xf32>
    %61 = tpu.concatenate %60, %59, %60 in 1 : vector<32x19xf32>, vector<32x384xf32>, vector<32x19xf32> -> vector<32x422xf32>
    %62 = vector.extract_strided_slice %61 {offsets = [0, 0], sizes = [32, 384], strides = [1, 1]} : vector<32x422xf32> to vector<32x384xf32>
    %c0_38 = arith.constant 0 : index
    %c0_39 = arith.constant 0 : index
    %c0_40 = arith.constant 0 : index
    %63 = vector.load %arg3[%c0_38, %c0_39, %c0_40] : memref<9x8x32xf32, #tpu.memory_space<vmem>>, vector<1x8x32xf32>
    %64 = vector.shape_cast %63 : vector<1x8x32xf32> to vector<8x32xf32>
    %cst_41 = arith.constant dense<0.000000e+00> : vector<8x384xf32>
    %65 = tpu.matmul %64, %62, %cst_41 {dimension_numbers = #tpu.dot_dimension_numbers<[1], [0], [0], [1], [0, 0, 1, 1], [], []>} : vector<8x32xf32>, vector<32x384xf32>, vector<8x384xf32> -> vector<8x384xf32>
    %66 = vector.extract_strided_slice %61 {offsets = [0, 1], sizes = [32, 384], strides = [1, 1]} : vector<32x422xf32> to vector<32x384xf32>
    %c1_42 = arith.constant 1 : index
    %c0_43 = arith.constant 0 : index
    %c0_44 = arith.constant 0 : index
    %67 = vector.load %arg3[%c1_42, %c0_43, %c0_44] : memref<9x8x32xf32, #tpu.memory_space<vmem>>, vector<1x8x32xf32>
    %68 = vector.shape_cast %67 : vector<1x8x32xf32> to vector<8x32xf32>
    %cst_45 = arith.constant dense<0.000000e+00> : vector<8x384xf32>
    %69 = tpu.matmul %68, %66, %cst_45 {dimension_numbers = #tpu.dot_dimension_numbers<[1], [0], [0], [1], [0, 0, 1, 1], [], []>} : vector<8x32xf32>, vector<32x384xf32>, vector<8x384xf32> -> vector<8x384xf32>
    %70 = arith.addf %65, %69 : vector<8x384xf32>
    %71 = vector.extract_strided_slice %61 {offsets = [0, 2], sizes = [32, 384], strides = [1, 1]} : vector<32x422xf32> to vector<32x384xf32>
    %c2_46 = arith.constant 2 : index
    %c0_47 = arith.constant 0 : index
    %c0_48 = arith.constant 0 : index
    %72 = vector.load %arg3[%c2_46, %c0_47, %c0_48] : memref<9x8x32xf32, #tpu.memory_space<vmem>>, vector<1x8x32xf32>
    %73 = vector.shape_cast %72 : vector<1x8x32xf32> to vector<8x32xf32>
    %cst_49 = arith.constant dense<0.000000e+00> : vector<8x384xf32>
    %74 = tpu.matmul %73, %71, %cst_49 {dimension_numbers = #tpu.dot_dimension_numbers<[1], [0], [0], [1], [0, 0, 1, 1], [], []>} : vector<8x32xf32>, vector<32x384xf32>, vector<8x384xf32> -> vector<8x384xf32>
    %75 = arith.addf %70, %74 : vector<8x384xf32>
    %76 = vector.extract_strided_slice %61 {offsets = [0, 18], sizes = [32, 384], strides = [1, 1]} : vector<32x422xf32> to vector<32x384xf32>
    %c3_50 = arith.constant 3 : index
    %c0_51 = arith.constant 0 : index
    %c0_52 = arith.constant 0 : index
    %77 = vector.load %arg3[%c3_50, %c0_51, %c0_52] : memref<9x8x32xf32, #tpu.memory_space<vmem>>, vector<1x8x32xf32>
    %78 = vector.shape_cast %77 : vector<1x8x32xf32> to vector<8x32xf32>
    %cst_53 = arith.constant dense<0.000000e+00> : vector<8x384xf32>
    %79 = tpu.matmul %78, %76, %cst_53 {dimension_numbers = #tpu.dot_dimension_numbers<[1], [0], [0], [1], [0, 0, 1, 1], [], []>} : vector<8x32xf32>, vector<32x384xf32>, vector<8x384xf32> -> vector<8x384xf32>
    %80 = arith.addf %75, %79 : vector<8x384xf32>
    %81 = vector.extract_strided_slice %61 {offsets = [0, 19], sizes = [32, 384], strides = [1, 1]} : vector<32x422xf32> to vector<32x384xf32>
    %c4_54 = arith.constant 4 : index
    %c0_55 = arith.constant 0 : index
    %c0_56 = arith.constant 0 : index
    %82 = vector.load %arg3[%c4_54, %c0_55, %c0_56] : memref<9x8x32xf32, #tpu.memory_space<vmem>>, vector<1x8x32xf32>
    %83 = vector.shape_cast %82 : vector<1x8x32xf32> to vector<8x32xf32>
    %cst_57 = arith.constant dense<0.000000e+00> : vector<8x384xf32>
    %84 = tpu.matmul %83, %81, %cst_57 {dimension_numbers = #tpu.dot_dimension_numbers<[1], [0], [0], [1], [0, 0, 1, 1], [], []>} : vector<8x32xf32>, vector<32x384xf32>, vector<8x384xf32> -> vector<8x384xf32>
    %85 = arith.addf %80, %84 : vector<8x384xf32>
    %86 = vector.extract_strided_slice %61 {offsets = [0, 20], sizes = [32, 384], strides = [1, 1]} : vector<32x422xf32> to vector<32x384xf32>
    %c5_58 = arith.constant 5 : index
    %c0_59 = arith.constant 0 : index
    %c0_60 = arith.constant 0 : index
    %87 = vector.load %arg3[%c5_58, %c0_59, %c0_60] : memref<9x8x32xf32, #tpu.memory_space<vmem>>, vector<1x8x32xf32>
    %88 = vector.shape_cast %87 : vector<1x8x32xf32> to vector<8x32xf32>
    %cst_61 = arith.constant dense<0.000000e+00> : vector<8x384xf32>
    %89 = tpu.matmul %88, %86, %cst_61 {dimension_numbers = #tpu.dot_dimension_numbers<[1], [0], [0], [1], [0, 0, 1, 1], [], []>} : vector<8x32xf32>, vector<32x384xf32>, vector<8x384xf32> -> vector<8x384xf32>
    %90 = arith.addf %85, %89 : vector<8x384xf32>
    %91 = vector.extract_strided_slice %61 {offsets = [0, 36], sizes = [32, 384], strides = [1, 1]} : vector<32x422xf32> to vector<32x384xf32>
    %c6_62 = arith.constant 6 : index
    %c0_63 = arith.constant 0 : index
    %c0_64 = arith.constant 0 : index
    %92 = vector.load %arg3[%c6_62, %c0_63, %c0_64] : memref<9x8x32xf32, #tpu.memory_space<vmem>>, vector<1x8x32xf32>
    %93 = vector.shape_cast %92 : vector<1x8x32xf32> to vector<8x32xf32>
    %cst_65 = arith.constant dense<0.000000e+00> : vector<8x384xf32>
    %94 = tpu.matmul %93, %91, %cst_65 {dimension_numbers = #tpu.dot_dimension_numbers<[1], [0], [0], [1], [0, 0, 1, 1], [], []>} : vector<8x32xf32>, vector<32x384xf32>, vector<8x384xf32> -> vector<8x384xf32>
    %95 = arith.addf %90, %94 : vector<8x384xf32>
    %96 = vector.extract_strided_slice %61 {offsets = [0, 37], sizes = [32, 384], strides = [1, 1]} : vector<32x422xf32> to vector<32x384xf32>
    %c7_66 = arith.constant 7 : index
    %c0_67 = arith.constant 0 : index
    %c0_68 = arith.constant 0 : index
    %97 = vector.load %arg3[%c7_66, %c0_67, %c0_68] : memref<9x8x32xf32, #tpu.memory_space<vmem>>, vector<1x8x32xf32>
    %98 = vector.shape_cast %97 : vector<1x8x32xf32> to vector<8x32xf32>
    %cst_69 = arith.constant dense<0.000000e+00> : vector<8x384xf32>
    %99 = tpu.matmul %98, %96, %cst_69 {dimension_numbers = #tpu.dot_dimension_numbers<[1], [0], [0], [1], [0, 0, 1, 1], [], []>} : vector<8x32xf32>, vector<32x384xf32>, vector<8x384xf32> -> vector<8x384xf32>
    %100 = arith.addf %95, %99 : vector<8x384xf32>
    %101 = vector.extract_strided_slice %61 {offsets = [0, 38], sizes = [32, 384], strides = [1, 1]} : vector<32x422xf32> to vector<32x384xf32>
    %c8_70 = arith.constant 8 : index
    %c0_71 = arith.constant 0 : index
    %c0_72 = arith.constant 0 : index
    %102 = vector.load %arg3[%c8_70, %c0_71, %c0_72] : memref<9x8x32xf32, #tpu.memory_space<vmem>>, vector<1x8x32xf32>
    %103 = vector.shape_cast %102 : vector<1x8x32xf32> to vector<8x32xf32>
    %cst_73 = arith.constant dense<0.000000e+00> : vector<8x384xf32>
    %104 = tpu.matmul %103, %101, %cst_73 {dimension_numbers = #tpu.dot_dimension_numbers<[1], [0], [0], [1], [0, 0, 1, 1], [], []>} : vector<8x32xf32>, vector<32x384xf32>, vector<8x384xf32> -> vector<8x384xf32>
    %105 = arith.addf %100, %104 : vector<8x384xf32>
    %c0_74 = arith.constant 0 : index
    %c0_75 = arith.constant 0 : index
    %106 = vector.load %arg8[%c0_74, %c0_75] : memref<8x1xf32, #tpu.memory_space<vmem>>, vector<8x1xf32>
    %107 = vector.broadcast %106 : vector<8x1xf32> to vector<8x384xf32>
    %108 = arith.addf %105, %107 : vector<8x384xf32>
    %c0_76 = arith.constant 0 : index
    %c1_77 = arith.constant 1 : index
    %109 = memref.load %arg13[%c0_76, %c1_77] : memref<1x5xf32, #tpu.memory_space<smem>>
    %cst_78 = arith.constant 0.000000e+00 : f32
    %110 = vector.broadcast %cst_78 : f32 to vector<8x384xf32>
    %111 = arith.cmpf ogt, %108, %110 : vector<8x384xf32>
    %112 = vector.broadcast %109 : f32 to vector<8x384xf32>
    %113 = arith.mulf %112, %108 : vector<8x384xf32>
    %114 = arith.select %111, %108, %113 : vector<8x384xi1>, vector<8x384xf32>
    %c0_79 = arith.constant 0 : index
    %c0_80 = arith.constant 0 : index
    %115 = vector.load %arg5[%c0_79, %c0_80] : memref<8x8xf32, #tpu.memory_space<vmem>>, vector<8x8xf32>
    %cst_81 = arith.constant dense<0.000000e+00> : vector<8x384xf32>
    %116 = tpu.matmul %115, %1, %cst_81 {dimension_numbers = #tpu.dot_dimension_numbers<[1], [0], [0], [1], [0, 0, 1, 1], [], []>} : vector<8x8xf32>, vector<8x384xf32>, vector<8x384xf32> -> vector<8x384xf32>
    %c0_82 = arith.constant 0 : index
    %c0_83 = arith.constant 0 : index
    %117 = vector.load %arg10[%c0_82, %c0_83] : memref<8x1xf32, #tpu.memory_space<vmem>>, vector<8x1xf32>
    %118 = vector.broadcast %117 : vector<8x1xf32> to vector<8x384xf32>
    %119 = arith.addf %116, %118 : vector<8x384xf32>
    %c0_84 = arith.constant 0 : index
    %c3_85 = arith.constant 3 : index
    %120 = memref.load %arg13[%c0_84, %c3_85] : memref<1x5xf32, #tpu.memory_space<smem>>
    %cst_86 = arith.constant 0.000000e+00 : f32
    %121 = vector.broadcast %cst_86 : f32 to vector<8x384xf32>
    %122 = arith.cmpf ogt, %119, %121 : vector<8x384xf32>
    %123 = vector.broadcast %120 : f32 to vector<8x384xf32>
    %124 = arith.mulf %123, %119 : vector<8x384xf32>
    %125 = arith.select %122, %119, %124 : vector<8x384xi1>, vector<8x384xf32>
    %126 = arith.subf %125, %114 : vector<8x384xf32>
    %127 = vector.broadcast %2 : vector<1x384xf32> to vector<8x384xf32>
    %128 = arith.mulf %126, %127 : vector<8x384xf32>
    %cst_87 = arith.constant 0.000000e+00 : f32
    %129 = vector.broadcast %cst_87 : f32 to vector<8x19xf32>
    %130 = tpu.concatenate %129, %128, %129 in 1 : vector<8x19xf32>, vector<8x384xf32>, vector<8x19xf32> -> vector<8x422xf32>
    %131 = vector.extract_strided_slice %130 {offsets = [0, 0], sizes = [8, 384], strides = [1, 1]} : vector<8x422xf32> to vector<8x384xf32>
    %c0_88 = arith.constant 0 : index
    %c0_89 = arith.constant 0 : index
    %c0_90 = arith.constant 0 : index
    %132 = vector.load %arg4[%c0_88, %c0_89, %c0_90] : memref<9x32x8xf32, #tpu.memory_space<vmem>>, vector<1x32x8xf32>
    %133 = vector.shape_cast %132 : vector<1x32x8xf32> to vector<32x8xf32>
    %cst_91 = arith.constant dense<0.000000e+00> : vector<32x384xf32>
    %134 = tpu.matmul %133, %131, %cst_91 {dimension_numbers = #tpu.dot_dimension_numbers<[1], [0], [0], [1], [0, 0, 1, 1], [], []>} : vector<32x8xf32>, vector<8x384xf32>, vector<32x384xf32> -> vector<32x384xf32>
    %135 = vector.extract_strided_slice %130 {offsets = [0, 1], sizes = [8, 384], strides = [1, 1]} : vector<8x422xf32> to vector<8x384xf32>
    %c1_92 = arith.constant 1 : index
    %c0_93 = arith.constant 0 : index
    %c0_94 = arith.constant 0 : index
    %136 = vector.load %arg4[%c1_92, %c0_93, %c0_94] : memref<9x32x8xf32, #tpu.memory_space<vmem>>, vector<1x32x8xf32>
    %137 = vector.shape_cast %136 : vector<1x32x8xf32> to vector<32x8xf32>
    %cst_95 = arith.constant dense<0.000000e+00> : vector<32x384xf32>
    %138 = tpu.matmul %137, %135, %cst_95 {dimension_numbers = #tpu.dot_dimension_numbers<[1], [0], [0], [1], [0, 0, 1, 1], [], []>} : vector<32x8xf32>, vector<8x384xf32>, vector<32x384xf32> -> vector<32x384xf32>
    %139 = arith.addf %134, %138 : vector<32x384xf32>
    %140 = vector.extract_strided_slice %130 {offsets = [0, 2], sizes = [8, 384], strides = [1, 1]} : vector<8x422xf32> to vector<8x384xf32>
    %c2_96 = arith.constant 2 : index
    %c0_97 = arith.constant 0 : index
    %c0_98 = arith.constant 0 : index
    %141 = vector.load %arg4[%c2_96, %c0_97, %c0_98] : memref<9x32x8xf32, #tpu.memory_space<vmem>>, vector<1x32x8xf32>
    %142 = vector.shape_cast %141 : vector<1x32x8xf32> to vector<32x8xf32>
    %cst_99 = arith.constant dense<0.000000e+00> : vector<32x384xf32>
    %143 = tpu.matmul %142, %140, %cst_99 {dimension_numbers = #tpu.dot_dimension_numbers<[1], [0], [0], [1], [0, 0, 1, 1], [], []>} : vector<32x8xf32>, vector<8x384xf32>, vector<32x384xf32> -> vector<32x384xf32>
    %144 = arith.addf %139, %143 : vector<32x384xf32>
    %145 = vector.extract_strided_slice %130 {offsets = [0, 18], sizes = [8, 384], strides = [1, 1]} : vector<8x422xf32> to vector<8x384xf32>
    %c3_100 = arith.constant 3 : index
    %c0_101 = arith.constant 0 : index
    %c0_102 = arith.constant 0 : index
    %146 = vector.load %arg4[%c3_100, %c0_101, %c0_102] : memref<9x32x8xf32, #tpu.memory_space<vmem>>, vector<1x32x8xf32>
    %147 = vector.shape_cast %146 : vector<1x32x8xf32> to vector<32x8xf32>
    %cst_103 = arith.constant dense<0.000000e+00> : vector<32x384xf32>
    %148 = tpu.matmul %147, %145, %cst_103 {dimension_numbers = #tpu.dot_dimension_numbers<[1], [0], [0], [1], [0, 0, 1, 1], [], []>} : vector<32x8xf32>, vector<8x384xf32>, vector<32x384xf32> -> vector<32x384xf32>
    %149 = arith.addf %144, %148 : vector<32x384xf32>
    %150 = vector.extract_strided_slice %130 {offsets = [0, 19], sizes = [8, 384], strides = [1, 1]} : vector<8x422xf32> to vector<8x384xf32>
    %c4_104 = arith.constant 4 : index
    %c0_105 = arith.constant 0 : index
    %c0_106 = arith.constant 0 : index
    %151 = vector.load %arg4[%c4_104, %c0_105, %c0_106] : memref<9x32x8xf32, #tpu.memory_space<vmem>>, vector<1x32x8xf32>
    %152 = vector.shape_cast %151 : vector<1x32x8xf32> to vector<32x8xf32>
    %cst_107 = arith.constant dense<0.000000e+00> : vector<32x384xf32>
    %153 = tpu.matmul %152, %150, %cst_107 {dimension_numbers = #tpu.dot_dimension_numbers<[1], [0], [0], [1], [0, 0, 1, 1], [], []>} : vector<32x8xf32>, vector<8x384xf32>, vector<32x384xf32> -> vector<32x384xf32>
    %154 = arith.addf %149, %153 : vector<32x384xf32>
    %155 = vector.extract_strided_slice %130 {offsets = [0, 20], sizes = [8, 384], strides = [1, 1]} : vector<8x422xf32> to vector<8x384xf32>
    %c5_108 = arith.constant 5 : index
    %c0_109 = arith.constant 0 : index
    %c0_110 = arith.constant 0 : index
    %156 = vector.load %arg4[%c5_108, %c0_109, %c0_110] : memref<9x32x8xf32, #tpu.memory_space<vmem>>, vector<1x32x8xf32>
    %157 = vector.shape_cast %156 : vector<1x32x8xf32> to vector<32x8xf32>
    %cst_111 = arith.constant dense<0.000000e+00> : vector<32x384xf32>
    %158 = tpu.matmul %157, %155, %cst_111 {dimension_numbers = #tpu.dot_dimension_numbers<[1], [0], [0], [1], [0, 0, 1, 1], [], []>} : vector<32x8xf32>, vector<8x384xf32>, vector<32x384xf32> -> vector<32x384xf32>
    %159 = arith.addf %154, %158 : vector<32x384xf32>
    %160 = vector.extract_strided_slice %130 {offsets = [0, 36], sizes = [8, 384], strides = [1, 1]} : vector<8x422xf32> to vector<8x384xf32>
    %c6_112 = arith.constant 6 : index
    %c0_113 = arith.constant 0 : index
    %c0_114 = arith.constant 0 : index
    %161 = vector.load %arg4[%c6_112, %c0_113, %c0_114] : memref<9x32x8xf32, #tpu.memory_space<vmem>>, vector<1x32x8xf32>
    %162 = vector.shape_cast %161 : vector<1x32x8xf32> to vector<32x8xf32>
    %cst_115 = arith.constant dense<0.000000e+00> : vector<32x384xf32>
    %163 = tpu.matmul %162, %160, %cst_115 {dimension_numbers = #tpu.dot_dimension_numbers<[1], [0], [0], [1], [0, 0, 1, 1], [], []>} : vector<32x8xf32>, vector<8x384xf32>, vector<32x384xf32> -> vector<32x384xf32>
    %164 = arith.addf %159, %163 : vector<32x384xf32>
    %165 = vector.extract_strided_slice %130 {offsets = [0, 37], sizes = [8, 384], strides = [1, 1]} : vector<8x422xf32> to vector<8x384xf32>
    %c7_116 = arith.constant 7 : index
    %c0_117 = arith.constant 0 : index
    %c0_118 = arith.constant 0 : index
    %166 = vector.load %arg4[%c7_116, %c0_117, %c0_118] : memref<9x32x8xf32, #tpu.memory_space<vmem>>, vector<1x32x8xf32>
    %167 = vector.shape_cast %166 : vector<1x32x8xf32> to vector<32x8xf32>
    %cst_119 = arith.constant dense<0.000000e+00> : vector<32x384xf32>
    %168 = tpu.matmul %167, %165, %cst_119 {dimension_numbers = #tpu.dot_dimension_numbers<[1], [0], [0], [1], [0, 0, 1, 1], [], []>} : vector<32x8xf32>, vector<8x384xf32>, vector<32x384xf32> -> vector<32x384xf32>
    %169 = arith.addf %164, %168 : vector<32x384xf32>
    %170 = vector.extract_strided_slice %130 {offsets = [0, 38], sizes = [8, 384], strides = [1, 1]} : vector<8x422xf32> to vector<8x384xf32>
    %c8_120 = arith.constant 8 : index
    %c0_121 = arith.constant 0 : index
    %c0_122 = arith.constant 0 : index
    %171 = vector.load %arg4[%c8_120, %c0_121, %c0_122] : memref<9x32x8xf32, #tpu.memory_space<vmem>>, vector<1x32x8xf32>
    %172 = vector.shape_cast %171 : vector<1x32x8xf32> to vector<32x8xf32>
    %cst_123 = arith.constant dense<0.000000e+00> : vector<32x384xf32>
    %173 = tpu.matmul %172, %170, %cst_123 {dimension_numbers = #tpu.dot_dimension_numbers<[1], [0], [0], [1], [0, 0, 1, 1], [], []>} : vector<32x8xf32>, vector<8x384xf32>, vector<32x384xf32> -> vector<32x384xf32>
    %174 = arith.addf %169, %173 : vector<32x384xf32>
    %c0_124 = arith.constant 0 : index
    %c0_125 = arith.constant 0 : index
    %175 = vector.load %arg9[%c0_124, %c0_125] : memref<32x1xf32, #tpu.memory_space<vmem>>, vector<32x1xf32>
    %176 = vector.broadcast %175 : vector<32x1xf32> to vector<32x384xf32>
    %177 = arith.addf %174, %176 : vector<32x384xf32>
    %c0_126 = arith.constant 0 : index
    %c2_127 = arith.constant 2 : index
    %178 = memref.load %arg13[%c0_126, %c2_127] : memref<1x5xf32, #tpu.memory_space<smem>>
    %cst_128 = arith.constant 0.000000e+00 : f32
    %179 = vector.broadcast %cst_128 : f32 to vector<32x384xf32>
    %180 = arith.cmpf ogt, %177, %179 : vector<32x384xf32>
    %181 = vector.broadcast %178 : f32 to vector<32x384xf32>
    %182 = arith.mulf %181, %177 : vector<32x384xf32>
    %183 = arith.select %180, %177, %182 : vector<32x384xi1>, vector<32x384xf32>
    %c0_129 = arith.constant 0 : index
    %c0_130 = arith.constant 0 : index
    %184 = vector.load %arg6[%c0_129, %c0_130] : memref<32x32xf32, #tpu.memory_space<vmem>>, vector<32x32xf32>
    %cst_131 = arith.constant dense<0.000000e+00> : vector<32x384xf32>
    %185 = tpu.matmul %184, %59, %cst_131 {dimension_numbers = #tpu.dot_dimension_numbers<[1], [0], [0], [1], [0, 0, 1, 1], [], []>} : vector<32x32xf32>, vector<32x384xf32>, vector<32x384xf32> -> vector<32x384xf32>
    %c0_132 = arith.constant 0 : index
    %c0_133 = arith.constant 0 : index
    %186 = vector.load %arg11[%c0_132, %c0_133] : memref<32x1xf32, #tpu.memory_space<vmem>>, vector<32x1xf32>
    %187 = vector.broadcast %186 : vector<32x1xf32> to vector<32x384xf32>
    %188 = arith.addf %185, %187 : vector<32x384xf32>
    %c0_134 = arith.constant 0 : index
    %c4_135 = arith.constant 4 : index
    %189 = memref.load %arg13[%c0_134, %c4_135] : memref<1x5xf32, #tpu.memory_space<smem>>
    %cst_136 = arith.constant 0.000000e+00 : f32
    %190 = vector.broadcast %cst_136 : f32 to vector<32x384xf32>
    %191 = arith.cmpf ogt, %188, %190 : vector<32x384xf32>
    %192 = vector.broadcast %189 : f32 to vector<32x384xf32>
    %193 = arith.mulf %192, %188 : vector<32x384xf32>
    %194 = arith.select %191, %188, %193 : vector<32x384xi1>, vector<32x384xf32>
    %195 = arith.addf %194, %183 : vector<32x384xf32>
    %196 = vector.shape_cast %195 : vector<32x384xf32> to vector<1x32x384xf32>
    %c0_137 = arith.constant 0 : index
    %c0_138 = arith.constant 0 : index
    %c0_139 = arith.constant 0 : index
    %197 = vector.load %arg14[%c0_137, %c0_138, %c0_139] : memref<1x32x384xf32, #tpu.memory_space<vmem>>, vector<1x32x384xf32>
    tpu.vector_store %arg14[%c0_137, %c0_138, %c0_139], %196 {strides = array<i32>} : memref<1x32x384xf32, #tpu.memory_space<vmem>>, vector<1x32x384xf32>,
    return
  }
  func.func @transform_0(%arg0: i32) -> (i32, i32, i32) {
    %c0_i32 = arith.constant 0 : i32
    %c0_i32_0 = arith.constant 0 : i32
    %c0_i32_1 = arith.constant 0 : i32
    return %arg0, %c0_i32, %c0_i32_0 : i32, i32, i32
  }
  func.func @transform_1(%arg0: i32) -> (i32, i32, i32) {
    %c0_i32 = arith.constant 0 : i32
    %c0_i32_0 = arith.constant 0 : i32
    %c0_i32_1 = arith.constant 0 : i32
    %c0_i32_2 = arith.constant 0 : i32
    return %c0_i32, %c0_i32_0, %c0_i32_1 : i32, i32, i32
  }
  func.func @transform_2(%arg0: i32) -> (i32, i32, i32) {
    %c0_i32 = arith.constant 0 : i32
    %c0_i32_0 = arith.constant 0 : i32
    %c0_i32_1 = arith.constant 0 : i32
    %c0_i32_2 = arith.constant 0 : i32
    return %c0_i32, %c0_i32_0, %c0_i32_1 : i32, i32, i32
  }
  func.func @transform_3(%arg0: i32) -> (i32, i32, i32) {
    %c0_i32 = arith.constant 0 : i32
    %c0_i32_0 = arith.constant 0 : i32
    %c0_i32_1 = arith.constant 0 : i32
    %c0_i32_2 = arith.constant 0 : i32
    return %c0_i32, %c0_i32_0, %c0_i32_1 : i32, i32, i32
  }
  func.func @transform_4(%arg0: i32) -> (i32, i32) {
    %c0_i32 = arith.constant 0 : i32
    %c0_i32_0 = arith.constant 0 : i32
    %c0_i32_1 = arith.constant 0 : i32
    return %c0_i32, %c0_i32_0 : i32, i32
  }
  func.func @transform_5(%arg0: i32) -> (i32, i32) {
    %c0_i32 = arith.constant 0 : i32
    %c0_i32_0 = arith.constant 0 : i32
    %c0_i32_1 = arith.constant 0 : i32
    return %c0_i32, %c0_i32_0 : i32, i32
  }
  func.func @transform_6(%arg0: i32) -> (i32, i32) {
    %c0_i32 = arith.constant 0 : i32
    %c0_i32_0 = arith.constant 0 : i32
    %c0_i32_1 = arith.constant 0 : i32
    return %c0_i32, %c0_i32_0 : i32, i32
  }
  func.func @transform_7(%arg0: i32) -> (i32, i32) {
    %c0_i32 = arith.constant 0 : i32
    %c0_i32_0 = arith.constant 0 : i32
    %c0_i32_1 = arith.constant 0 : i32
    return %c0_i32, %c0_i32_0 : i32, i32
  }
  func.func @transform_8(%arg0: i32) -> (i32, i32) {
    %c0_i32 = arith.constant 0 : i32
    %c0_i32_0 = arith.constant 0 : i32
    %c0_i32_1 = arith.constant 0 : i32
    return %c0_i32, %c0_i32_0 : i32, i32
  }
  func.func @transform_9(%arg0: i32) -> (i32, i32) {
    %c0_i32 = arith.constant 0 : i32
    %c0_i32_0 = arith.constant 0 : i32
    %c0_i32_1 = arith.constant 0 : i32
    return %c0_i32, %c0_i32_0 : i32, i32
  }
  func.func @transform_10(%arg0: i32) -> (i32, i32) {
    %c0_i32 = arith.constant 0 : i32
    %c0_i32_0 = arith.constant 0 : i32
    %c0_i32_1 = arith.constant 0 : i32
    return %c0_i32, %c0_i32_0 : i32, i32
  }
  func.func @transform_11(%arg0: i32) -> (i32, i32) {
    %c0_i32 = arith.constant 0 : i32
    %c0_i32_0 = arith.constant 0 : i32
    %c0_i32_1 = arith.constant 0 : i32
    return %c0_i32, %c0_i32_0 : i32, i32
  }
  func.func @transform_12(%arg0: i32) -> (i32, i32) {
    %c0_i32 = arith.constant 0 : i32
    %c0_i32_0 = arith.constant 0 : i32
    %c0_i32_1 = arith.constant 0 : i32
    return %c0_i32, %c0_i32_0 : i32, i32
  }
  func.func @transform_13(%arg0: i32) -> (i32, i32, i32) {
    %c0_i32 = arith.constant 0 : i32
    %c0_i32_0 = arith.constant 0 : i32
    %c0_i32_1 = arith.constant 0 : i32
    return %arg0, %c0_i32, %c0_i32_0 : i32, i32, i32
  }
}

</mosaic_0001>

<llo_original>
// kernel: upblock_forward.1
$region0: #{upblock_forward.1}
  #allocation0 [shape = 'u32[]', space=smem, size = 0x4, offset = 0x4, fixed_abs, tag = 'smem constant byte address 0x4 - core index']
  #allocation1 [shape = 'u32[144,128]{1,0:T(1,128)}', space=vmem, size = 0x12000, scoped, tag = 'internal scratch']
  %s0 = inlined_call_operand.vmem [shape: f32[2,8,384], index: 0, kind: input, shape index: {}]
  %s1 = inlined_call_operand.vmem [shape: f32[9,32,8], index: 1, kind: input, shape index: {}]
  %s2 = inlined_call_operand.vmem [shape: f32[9,8,32], index: 2, kind: input, shape index: {}]
  %s3 = inlined_call_operand.vmem [shape: f32[9,32,8], index: 3, kind: input, shape index: {}]
  %s4 = inlined_call_operand.vmem [shape: f32[8,8], index: 4, kind: input, shape index: {}]
  %s5 = inlined_call_operand.vmem [shape: f32[32,32], index: 5, kind: input, shape index: {}]
  %s6 = inlined_call_operand.vmem [shape: f32[32,1], index: 6, kind: input, shape index: {}]
  %s7 = inlined_call_operand.vmem [shape: f32[8,1], index: 7, kind: input, shape index: {}]
  %s8 = inlined_call_operand.vmem [shape: f32[32,1], index: 8, kind: input, shape index: {}]
  %s9 = inlined_call_operand.vmem [shape: f32[8,1], index: 9, kind: input, shape index: {}]
  %s10 = inlined_call_operand.vmem [shape: f32[32,1], index: 10, kind: input, shape index: {}]
  %s11 = inlined_call_operand.vmem [shape: f32[1,384], index: 11, kind: input, shape index: {}]
  %s12 = inlined_call_operand.vmem [shape: f32[1,5], index: 12, kind: input, shape index: {}]
  %s13 = inlined_call_operand.vmem [shape: f32[2,32,384], index: 13, kind: output, shape index: {}]
  %s14 = sld [smem:[#allocation0]]
  $region89: #{upblock_forward.1} parent=0
    _
  %s16 = ssub.s32 1, %s14
  %s17 = scalar_select 0, %s16, %s14
  $region1: #{upblock_forward.1} parent=0
    #allocation2 [shape = 'u8[512]{0}', space=smem, size = 0x200, scoped, tag = 'input window, operand 12, single buffered']
    #allocation3 [shape = 's32[2]{0}', space=sflag, size = 0x8, scoped, tag = 'scoped memory for upblock_forward.1']
    %18 = vsyncpa [#allocation3], 0
    loop: start=0, step=1, limit=4
    $region2: #{upblock_forward.1} parent=1 // loop_pre_header
      _
    $region3: #{upblock_forward.1} parent=1 // loop_header
      %s20 = sphi 0, %s24
      %p21 = scmp.ge.s32.totalorder %s20, 4
      %s30 = sphi 0, %s32
      %s33 = sphi 0, %s30
      %s34 = sphi 0, %s33
      %s50 = sphi 0, %s34
      %s54 = sphi 0, %s54
      %s56 = sphi 0, %s54
      %s57 = sphi 0, %s56
      %s71 = sphi 0, %s57
      %s75 = sphi 0, %s75
      %s77 = sphi 0, %s75
      %s78 = sphi 0, %s77
      %s92 = sphi 0, %s78
      %s96 = sphi 0, %s96
      %s98 = sphi 0, %s96
      %s99 = sphi 0, %s98
      %s113 = sphi 0, %s99
      %s117 = sphi 0, %s117
      %s119 = sphi 0, %s117
      %s120 = sphi 0, %s119
      %s134 = sphi 0, %s120
      %s138 = sphi 0, %s138
      %s140 = sphi 0, %s138
      %s141 = sphi 0, %s140
      %s155 = sphi 0, %s141
      %s159 = sphi 0, %s159
      %s161 = sphi 0, %s159
      %s162 = sphi 0, %s161
      %s176 = sphi 0, %s162
      %s180 = sphi 0, %s180
      %s182 = sphi 0, %s180
      %s183 = sphi 0, %s182
      %s197 = sphi 0, %s183
      %s201 = sphi 0, %s201
      %s203 = sphi 0, %s201
      %s204 = sphi 0, %s203
      %s218 = sphi 0, %s204
      %s222 = sphi 0, %s222
      %s224 = sphi 0, %s222
      %s225 = sphi 0, %s224
      %s239 = sphi 0, %s225
      %s243 = sphi 0, %s243
      %s245 = sphi 0, %s243
      %s246 = sphi 0, %s245
      %s260 = sphi 0, %s246
      %s264 = sphi 0, %s264
      %s266 = sphi 0, %s264
      %s267 = sphi 0, %s266
      %s281 = sphi 0, %s267
      %s285 = sphi 0, %s285
      %s287 = sphi 0, %s285
      %s288 = sphi 0, %s287
      %s302 = sphi 0, %s288
      %s308 = sphi 0, %s310
      %s311 = sphi 0, %s308
      %s312 = sphi 0, %s311
      %s328 = sphi 0, %s312
    $region4: #{upblock_forward.1} parent=1 // loop_header_branch
      %23 = sbr.rel (%p21) target = $region8
    $region5: #{upblock_forward.1} parent=1 // loop_body
      %s25 = ssub.s32 %s20, 1
      %s26 = ssub.s32 %s20, 2
      %s27 = sadd.s32 %s20, 1
      %s28 = ssub.s32 %s20, %s27
      %p29 = scmp.eq.s32.totalorder %s28, 0
      %s31 = sadd.s32 %s30, 1
      %s32 = scalar_select %p29, %s30, %s31
      %p35 = pneg %p29
      %p36 = scmp.eq.s32.totalorder %s20, 1
      %p37 = por %p35, %p36
      %p38 = scmp.ne.s32.totalorder %s30, %s33
      %p39 = scmp.eq.s32.totalorder %s20, 0
      %p40 = por %p38, %p39
      %p41 = scmp.ne.s32.totalorder %s30, %s33
      %p42 = scmp.eq.s32.totalorder %s25, 1
      %p43 = por %p41, %p42
      %p44 = scmp.ne.s32.totalorder %s33, %s34
      %p45 = scmp.eq.s32.totalorder %s25, 0
      %p46 = por %p44, %p45
      %p47 = scmp.ne.s32.totalorder %s33, %s34
      %p48 = scmp.eq.s32.totalorder %s26, 1
      %p49 = por %p47, %p48
      %p51 = scmp.ne.s32.totalorder %s34, %s50
      %p52 = scmp.eq.s32.totalorder %s26, 0
      %p53 = por %p51, %p52
      %s55 = sadd.s32 %s54, 1
      %p58 = scmp.eq.s32.totalorder %s20, 1
      %p59 = scmp.ne.s32.totalorder %s54, %s56
      %p60 = scmp.eq.s32.totalorder %s20, 0
      %p61 = por %p59, %p60
      %p62 = scmp.ne.s32.totalorder %s54, %s56
      %p63 = scmp.eq.s32.totalorder %s25, 1
      %p64 = por %p62, %p63
      %p65 = scmp.ne.s32.totalorder %s56, %s57
      %p66 = scmp.eq.s32.totalorder %s25, 0
      %p67 = por %p65, %p66
      %p68 = scmp.ne.s32.totalorder %s56, %s57
      %p69 = scmp.eq.s32.totalorder %s26, 1
      %p70 = por %p68, %p69
      %p72 = scmp.ne.s32.totalorder %s57, %s71
      %p73 = scmp.eq.s32.totalorder %s26, 0
      %p74 = por %p72, %p73
      %s76 = sadd.s32 %s75, 1
      %p79 = scmp.eq.s32.totalorder %s20, 1
      %p80 = scmp.ne.s32.totalorder %s75, %s77
      %p81 = scmp.eq.s32.totalorder %s20, 0
      %p82 = por %p80, %p81
      %p83 = scmp.ne.s32.totalorder %s75, %s77
      %p84 = scmp.eq.s32.totalorder %s25, 1
      %p85 = por %p83, %p84
      %p86 = scmp.ne.s32.totalorder %s77, %s78
      %p87 = scmp.eq.s32.totalorder %s25, 0
      %p88 = por %p86, %p87
      %p89 = scmp.ne.s32.totalorder %s77, %s78
      %p90 = scmp.eq.s32.totalorder %s26, 1
      %p91 = por %p89, %p90
      %p93 = scmp.ne.s32.totalorder %s78, %s92
      %p94 = scmp.eq.s32.totalorder %s26, 0
      %p95 = por %p93, %p94
      %s97 = sadd.s32 %s96, 1
      %p100 = scmp.eq.s32.totalorder %s20, 1
      %p101 = scmp.ne.s32.totalorder %s96, %s98
      %p102 = scmp.eq.s32.totalorder %s20, 0
      %p103 = por %p101, %p102
      %p104 = scmp.ne.s32.totalorder %s96, %s98
      %p105 = scmp.eq.s32.totalorder %s25, 1
      %p106 = por %p104, %p105
      %p107 = scmp.ne.s32.totalorder %s98, %s99
      %p108 = scmp.eq.s32.totalorder %s25, 0
      %p109 = por %p107, %p108
      %p110 = scmp.ne.s32.totalorder %s98, %s99
      %p111 = scmp.eq.s32.totalorder %s26, 1
      %p112 = por %p110, %p111
      %p114 = scmp.ne.s32.totalorder %s99, %s113
      %p115 = scmp.eq.s32.totalorder %s26, 0
      %p116 = por %p114, %p115
      %s118 = sadd.s32 %s117, 1
      %p121 = scmp.eq.s32.totalorder %s20, 1
      %p122 = scmp.ne.s32.totalorder %s117, %s119
      %p123 = scmp.eq.s32.totalorder %s20, 0
      %p124 = por %p122, %p123
      %p125 = scmp.ne.s32.totalorder %s117, %s119
      %p126 = scmp.eq.s32.totalorder %s25, 1
      %p127 = por %p125, %p126
      %p128 = scmp.ne.s32.totalorder %s119, %s120
      %p129 = scmp.eq.s32.totalorder %s25, 0
      %p130 = por %p128, %p129
      %p131 = scmp.ne.s32.totalorder %s119, %s120
      %p132 = scmp.eq.s32.totalorder %s26, 1
      %p133 = por %p131, %p132
      %p135 = scmp.ne.s32.totalorder %s120, %s134
      %p136 = scmp.eq.s32.totalorder %s26, 0
      %p137 = por %p135, %p136
      %s139 = sadd.s32 %s138, 1
      %p142 = scmp.eq.s32.totalorder %s20, 1
      %p143 = scmp.ne.s32.totalorder %s138, %s140
      %p144 = scmp.eq.s32.totalorder %s20, 0
      %p145 = por %p143, %p144
      %p146 = scmp.ne.s32.totalorder %s138, %s140
      %p147 = scmp.eq.s32.totalorder %s25, 1
      %p148 = por %p146, %p147
      %p149 = scmp.ne.s32.totalorder %s140, %s141
      %p150 = scmp.eq.s32.totalorder %s25, 0
      %p151 = por %p149, %p150
      %p152 = scmp.ne.s32.totalorder %s140, %s141
      %p153 = scmp.eq.s32.totalorder %s26, 1
      %p154 = por %p152, %p153
      %p156 = scmp.ne.s32.totalorder %s141, %s155
      %p157 = scmp.eq.s32.totalorder %s26, 0
      %p158 = por %p156, %p157
      %s160 = sadd.s32 %s159, 1
      %p163 = scmp.eq.s32.totalorder %s20, 1
      %p164 = scmp.ne.s32.totalorder %s159, %s161
      %p165 = scmp.eq.s32.totalorder %s20, 0
      %p166 = por %p164, %p165
      %p167 = scmp.ne.s32.totalorder %s159, %s161
      %p168 = scmp.eq.s32.totalorder %s25, 1
      %p169 = por %p167, %p168
      %p170 = scmp.ne.s32.totalorder %s161, %s162
      %p171 = scmp.eq.s32.totalorder %s25, 0
      %p172 = por %p170, %p171
      %p173 = scmp.ne.s32.totalorder %s161, %s162
      %p174 = scmp.eq.s32.totalorder %s26, 1
      %p175 = por %p173, %p174
      %p177 = scmp.ne.s32.totalorder %s162, %s176
      %p178 = scmp.eq.s32.totalorder %s26, 0
      %p179 = por %p177, %p178
      %s181 = sadd.s32 %s180, 1
      %p184 = scmp.eq.s32.totalorder %s20, 1
      %p185 = scmp.ne.s32.totalorder %s180, %s182
      %p186 = scmp.eq.s32.totalorder %s20, 0
      %p187 = por %p185, %p186
      %p188 = scmp.ne.s32.totalorder %s180, %s182
      %p189 = scmp.eq.s32.totalorder %s25, 1
      %p190 = por %p188, %p189
      %p191 = scmp.ne.s32.totalorder %s182, %s183
      %p192 = scmp.eq.s32.totalorder %s25, 0
      %p193 = por %p191, %p192
      %p194 = scmp.ne.s32.totalorder %s182, %s183
      %p195 = scmp.eq.s32.totalorder %s26, 1
      %p196 = por %p194, %p195
      %p198 = scmp.ne.s32.totalorder %s183, %s197
      %p199 = scmp.eq.s32.totalorder %s26, 0
      %p200 = por %p198, %p199
      %s202 = sadd.s32 %s201, 1
      %p205 = scmp.eq.s32.totalorder %s20, 1
      %p206 = scmp.ne.s32.totalorder %s201, %s203
      %p207 = scmp.eq.s32.totalorder %s20, 0
      %p208 = por %p206, %p207
      %p209 = scmp.ne.s32.totalorder %s201, %s203
      %p210 = scmp.eq.s32.totalorder %s25, 1
      %p211 = por %p209, %p210
      %p212 = scmp.ne.s32.totalorder %s203, %s204
      %p213 = scmp.eq.s32.totalorder %s25, 0
      %p214 = por %p212, %p213
      %p215 = scmp.ne.s32.totalorder %s203, %s204
      %p216 = scmp.eq.s32.totalorder %s26, 1
      %p217 = por %p215, %p216
      %p219 = scmp.ne.s32.totalorder %s204, %s218
      %p220 = scmp.eq.s32.totalorder %s26, 0
      %p221 = por %p219, %p220
      %s223 = sadd.s32 %s222, 1
      %p226 = scmp.eq.s32.totalorder %s20, 1
      %p227 = scmp.ne.s32.totalorder %s222, %s224
      %p228 = scmp.eq.s32.totalorder %s20, 0
      %p229 = por %p227, %p228
      %p230 = scmp.ne.s32.totalorder %s222, %s224
      %p231 = scmp.eq.s32.totalorder %s25, 1
      %p232 = por %p230, %p231
      %p233 = scmp.ne.s32.totalorder %s224, %s225
      %p234 = scmp.eq.s32.totalorder %s25, 0
      %p235 = por %p233, %p234
      %p236 = scmp.ne.s32.totalorder %s224, %s225
      %p237 = scmp.eq.s32.totalorder %s26, 1
      %p238 = por %p236, %p237
      %p240 = scmp.ne.s32.totalorder %s225, %s239
      %p241 = scmp.eq.s32.totalorder %s26, 0
      %p242 = por %p240, %p241
      %s244 = sadd.s32 %s243, 1
      %p247 = scmp.eq.s32.totalorder %s20, 1
      %p248 = scmp.ne.s32.totalorder %s243, %s245
      %p249 = scmp.eq.s32.totalorder %s20, 0
      %p250 = por %p248, %p249
      %p251 = scmp.ne.s32.totalorder %s243, %s245
      %p252 = scmp.eq.s32.totalorder %s25, 1
      %p253 = por %p251, %p252
      %p254 = scmp.ne.s32.totalorder %s245, %s246
      %p255 = scmp.eq.s32.totalorder %s25, 0
      %p256 = por %p254, %p255
      %p257 = scmp.ne.s32.totalorder %s245, %s246
      %p258 = scmp.eq.s32.totalorder %s26, 1
      %p259 = por %p257, %p258
      %p261 = scmp.ne.s32.totalorder %s246, %s260
      %p262 = scmp.eq.s32.totalorder %s26, 0
      %p263 = por %p261, %p262
      %s265 = sadd.s32 %s264, 1
      %p268 = scmp.eq.s32.totalorder %s20, 1
      %p269 = scmp.ne.s32.totalorder %s264, %s266
      %p270 = scmp.eq.s32.totalorder %s20, 0
      %p271 = por %p269, %p270
      %p272 = scmp.ne.s32.totalorder %s264, %s266
      %p273 = scmp.eq.s32.totalorder %s25, 1
      %p274 = por %p272, %p273
      %p275 = scmp.ne.s32.totalorder %s266, %s267
      %p276 = scmp.eq.s32.totalorder %s25, 0
      %p277 = por %p275, %p276
      %p278 = scmp.ne.s32.totalorder %s266, %s267
      %p279 = scmp.eq.s32.totalorder %s26, 1
      %p280 = por %p278, %p279
      %p282 = scmp.ne.s32.totalorder %s267, %s281
      %p283 = scmp.eq.s32.totalorder %s26, 0
      %p284 = por %p282, %p283
      %s286 = sadd.s32 %s285, 1
      %p289 = scmp.eq.s32.totalorder %s20, 1
      %p290 = scmp.ne.s32.totalorder %s285, %s287
      %p291 = scmp.eq.s32.totalorder %s20, 0
      %p292 = por %p290, %p291
      %p293 = scmp.ne.s32.totalorder %s285, %s287
      %p294 = scmp.eq.s32.totalorder %s25, 1
      %p295 = por %p293, %p294
      %p296 = scmp.ne.s32.totalorder %s287, %s288
      %p297 = scmp.eq.s32.totalorder %s25, 0
      %p298 = por %p296, %p297
      %p299 = scmp.ne.s32.totalorder %s287, %s288
      %p300 = scmp.eq.s32.totalorder %s26, 1
      %p301 = por %p299, %p300
      %p303 = scmp.ne.s32.totalorder %s288, %s302
      %p304 = scmp.eq.s32.totalorder %s26, 0
      %p305 = por %p303, %p304
      %s306 = ssub.s32 %s20, %s27
      %p307 = scmp.eq.s32.totalorder %s306, 0
      %s309 = sadd.s32 %s308, 1
      %s310 = scalar_select %p307, %s308, %s309
      %p313 = pneg %p307
      %p314 = scmp.eq.s32.totalorder %s20, 1
      %p315 = por %p313, %p314
      %p316 = scmp.ne.s32.totalorder %s308, %s311
      %p317 = scmp.eq.s32.totalorder %s20, 0
      %p318 = por %p316, %p317
      %p319 = scmp.ne.s32.totalorder %s308, %s311
      %p320 = scmp.eq.s32.totalorder %s25, 1
      %p321 = por %p319, %p320
      %p322 = scmp.ne.s32.totalorder %s311, %s312
      %p323 = scmp.eq.s32.totalorder %s25, 0
      %p324 = por %p322, %p323
      %p325 = scmp.ne.s32.totalorder %s311, %s312
      %p326 = scmp.eq.s32.totalorder %s26, 1
      %p327 = por %p325, %p326
      %p329 = scmp.ne.s32.totalorder %s312, %s328
      %p330 = scmp.eq.s32.totalorder %s26, 0
      %p331 = por %p329, %p330
      %p332 = scmp.le.s32.totalorder 1, %s20
      %p333 = scmp.lt.s32.totalorder %s20, 3
      %p334 = pnand %p332, %p333
      %p335 = pneg %p334
      // Predicated region
      $region9: #{upblock_forward.1} parent=5 // pred_check
        _
      $region10: #{upblock_forward.1} parent=5 // pred_check_branch
        %337 = sbr.rel (%p334) target = $region12
      $region11: #{upblock_forward.1} parent=5 // pred_region
        %s338 = ssub.s32 %s20, 1
        // Predicated region
        $region13: #{upblock_forward.1} parent=11 // pred_check
          %p339 = pneg %p67
        $region14: #{upblock_forward.1} parent=11 // pred_check_branch
          %341 = sbr.rel (%p339) target = $region16
        $region15: #{upblock_forward.1} parent=11 // pred_region
          _
        $region16: #{upblock_forward.1} parent=11 // pred_fallthru
          _
        // Predicated region
        $region17: #{upblock_forward.1} parent=11 // pred_check
          %p342 = pneg %p88
        $region18: #{upblock_forward.1} parent=11 // pred_check_branch
          %344 = sbr.rel (%p342) target = $region20
        $region19: #{upblock_forward.1} parent=11 // pred_region
          _
        $region20: #{upblock_forward.1} parent=11 // pred_fallthru
          _
        // Predicated region
        $region21: #{upblock_forward.1} parent=11 // pred_check
          %p345 = pneg %p109
        $region22: #{upblock_forward.1} parent=11 // pred_check_branch
          %347 = sbr.rel (%p345) target = $region24
        $region23: #{upblock_forward.1} parent=11 // pred_region
          _
        $region24: #{upblock_forward.1} parent=11 // pred_fallthru
          _
        // Predicated region
        $region25: #{upblock_forward.1} parent=11 // pred_check
          %p348 = pneg %p130
        $region26: #{upblock_forward.1} parent=11 // pred_check_branch
          %350 = sbr.rel (%p348) target = $region28
        $region27: #{upblock_forward.1} parent=11 // pred_region
          _
        $region28: #{upblock_forward.1} parent=11 // pred_fallthru
          _
        // Predicated region
        $region29: #{upblock_forward.1} parent=11 // pred_check
          %p351 = pneg %p151
        $region30: #{upblock_forward.1} parent=11 // pred_check_branch
          %353 = sbr.rel (%p351) target = $region32
        $region31: #{upblock_forward.1} parent=11 // pred_region
          _
        $region32: #{upblock_forward.1} parent=11 // pred_fallthru
          _
        // Predicated region
        $region33: #{upblock_forward.1} parent=11 // pred_check
          %p354 = pneg %p172
        $region34: #{upblock_forward.1} parent=11 // pred_check_branch
          %356 = sbr.rel (%p354) target = $region36
        $region35: #{upblock_forward.1} parent=11 // pred_region
          _
        $region36: #{upblock_forward.1} parent=11 // pred_fallthru
          _
        // Predicated region
        $region37: #{upblock_forward.1} parent=11 // pred_check
          %p357 = pneg %p193
        $region38: #{upblock_forward.1} parent=11 // pred_check_branch
          %359 = sbr.rel (%p357) target = $region40
        $region39: #{upblock_forward.1} parent=11 // pred_region
          _
        $region40: #{upblock_forward.1} parent=11 // pred_fallthru
          _
        // Predicated region
        $region41: #{upblock_forward.1} parent=11 // pred_check
          %p360 = pneg %p214
        $region42: #{upblock_forward.1} parent=11 // pred_check_branch
          %362 = sbr.rel (%p360) target = $region44
        $region43: #{upblock_forward.1} parent=11 // pred_region
          _
        $region44: #{upblock_forward.1} parent=11 // pred_fallthru
          _
        // Predicated region
        $region45: #{upblock_forward.1} parent=11 // pred_check
          %p363 = pneg %p235
        $region46: #{upblock_forward.1} parent=11 // pred_check_branch
          %365 = sbr.rel (%p363) target = $region48
        $region47: #{upblock_forward.1} parent=11 // pred_region
          _
        $region48: #{upblock_forward.1} parent=11 // pred_fallthru
          _
        // Predicated region
        $region49: #{upblock_forward.1} parent=11 // pred_check
          %p366 = pneg %p256
        $region50: #{upblock_forward.1} parent=11 // pred_check_branch
          %368 = sbr.rel (%p366) target = $region52
        $region51: #{upblock_forward.1} parent=11 // pred_region
          _
        $region52: #{upblock_forward.1} parent=11 // pred_fallthru
          _
        // Predicated region
        $region53: #{upblock_forward.1} parent=11 // pred_check
          %p369 = pneg %p277
        $region54: #{upblock_forward.1} parent=11 // pred_check_branch
          %371 = sbr.rel (%p369) target = $region56
        $region55: #{upblock_forward.1} parent=11 // pred_region
          _
        $region56: #{upblock_forward.1} parent=11 // pred_fallthru
          _
        // Predicated region
        $region57: #{upblock_forward.1} parent=11 // pred_check
          %p372 = pneg %p298
        $region58: #{upblock_forward.1} parent=11 // pred_check_branch
          %374 = sbr.rel (%p372) target = $region60
        $region59: #{upblock_forward.1} parent=11 // pred_region
          %s376 = ssub.s32 16, 16
          %377 = vsyncadd [#allocation3], %s376
          %s379 = sshll.u32 %s12, 4
          %s380 = int_to_ptr.vmem [resolvable:$true] %s379
          %382 = dma.vmem_to_smem %s380, 16, [#allocation2], [#allocation3]
        $region60: #{upblock_forward.1} parent=11 // pred_fallthru
          _
      $region12: #{upblock_forward.1} parent=5 // pred_fallthru
        _
      %p383 = scmp.lt.s32.totalorder %s20, 2
      // Predicated region
      $region61: #{upblock_forward.1} parent=5 // pred_check
        %p384 = pneg %p383
      $region62: #{upblock_forward.1} parent=5 // pred_check_branch
        %386 = sbr.rel (%p384) target = $region64
      $region63: #{upblock_forward.1} parent=5 // pred_region
        // Predicated region
        $region65: #{upblock_forward.1} parent=63 // pred_check
          %p387 = pneg %p40
        $region66: #{upblock_forward.1} parent=63 // pred_check_branch
          %389 = sbr.rel (%p387) target = $region68
        $region67: #{upblock_forward.1} parent=63 // pred_region
          %p390 = scmp.lt.s32.totalorder %s20, 1
          %s391 = scalar_select %p390, %s20, 1
          %s392 = smul.addr %s391, 3
          %s393 = smul.addr %s392, 8
          %s394 = scalar_lea.vmem %s0, %s393
        $region68: #{upblock_forward.1} parent=63 // pred_fallthru
          _
      $region64: #{upblock_forward.1} parent=5 // pred_fallthru
        _
      %p395 = scmp.le.s32.totalorder 1, %s20
      %p396 = scmp.lt.s32.totalorder %s20, 3
      %p397 = pnand %p395, %p396
      %p398 = pneg %p397
      // Predicated region
      $region69: #{upblock_forward.1} parent=5 // pred_check
        _
      $region70: #{upblock_forward.1} parent=5 // pred_check_branch
        %400 = sbr.rel (%p397) target = $region72
      $region71: #{upblock_forward.1} parent=5 // pred_region
        %s401 = ssub.s32 %s20, 1
        // Predicated region
        $region73: #{upblock_forward.1} parent=71 // pred_check
          %p402 = pneg %p298
        $region74: #{upblock_forward.1} parent=71 // pred_check_branch
          %404 = sbr.rel (%p402) target = $region76
        $region75: #{upblock_forward.1} parent=71 // pred_region
          %405 = dma.done [#allocation3], 16
        $region76: #{upblock_forward.1} parent=71 // pred_fallthru
          _
        %406 = sfence
        %p407 = scmp.lt.s32.totalorder %s25, 1
        %s408 = scalar_select %p407, %s25, 1
        %s409 = smul.addr %s408, 3
        %s410 = smul.addr %s409, 8
        %s411 = scalar_lea.vmem %s0, %s410
        %p412 = pneg %p46
        %p413 = pneg %p43
        %p414 = pneg %p67
        %p415 = pneg %p64
        %p416 = pneg %p88
        %p417 = pneg %p85
        %p418 = pneg %p109
        %p419 = pneg %p106
        %p420 = pneg %p130
        %p421 = pneg %p127
        %p422 = pneg %p151
        %p423 = pneg %p148
        %p424 = pneg %p172
        %p425 = pneg %p169
        %p426 = pneg %p193
        %p427 = pneg %p190
        %p428 = pneg %p214
        %p429 = pneg %p211
        %p430 = pneg %p235
        %p431 = pneg %p232
        %p432 = pneg %p256
        %p433 = pneg %p253
        %p434 = pneg %p277
        %p435 = pneg %p274
        %p436 = pneg %p298
        %p437 = pneg %p295
        %p438 = pneg %p324
        %p439 = pneg %p321
        %p440 = scmp.lt.s32.totalorder %s25, 1
        %s441 = scalar_select %p440, %s25, 1
        %s442 = smul.addr %s441, 12
        %s443 = smul.addr %s442, 8
        %s444 = scalar_lea.vmem %s13, %s443
        %p445 = scmp.lt.s32.totalorder %s25, 1
        %s446 = scalar_select %p445, %s25, 1
        %s447 = smul.addr %s446, 3
        %s448 = smul.addr %s447, 8
        %s449 = scalar_lea.vmem %s0, %s448
        %p450 = scmp.lt.s32.totalorder %s25, 1
        %s451 = scalar_select %p450, %s25, 1
        %s452 = smul.addr %s451, 12
        %s453 = smul.addr %s452, 8
        %s454 = scalar_lea.vmem %s13, %s453
        %v455 = vld [vmem:[%s449] sm:$0xff]
        %v456 = vld [vmem:[%s449 + $0x8] sm:$0xff]
        %v457 = vld [vmem:[%s449 + $0x10] sm:$0xff]
        %v458 = vld [vmem:[%s11] sm:$0x7]
        %462 = vrot.lane.b32.xlu0 %v455, 19
        %v463 = vpop.permute.xlu0 %462
        %464 = vrot.lane.b32.xlu0 %v456, 19
        %v465 = vpop.permute.xlu0 %464
        %466 = vrot.lane.b32.xlu0 %v457, 19
        %v467 = vpop.permute.xlu0 %466
        %vm468 = vcmask 154624
        %v469 = vsel %vm468, %v463, %v465
        %v470 = vsel %vm468, %v465, %v467
        %v475 = vsel %vm468, 0.0, %v463
        %v476 = vsel %vm468, %v467, 0.0
        %v477 = vld [vmem:[%s1] sm:$0xff]
        %v478 = vld [vmem:[%s1 + $0x8] sm:$0xff]
        %v479 = vld [vmem:[%s1 + $0x10] sm:$0xff]
        %v480 = vld [vmem:[%s1 + $0x18] sm:$0xff]
        %s481 = scalar_lea.vmem %s1, 32
        %v482 = vld [vmem:[%s481] sm:$0xff]
        %v483 = vld [vmem:[%s481 + $0x8] sm:$0xff]
        %v484 = vld [vmem:[%s481 + $0x10] sm:$0xff]
        %v485 = vld [vmem:[%s481 + $0x18] sm:$0xff]
        %488 = vrot.lane.b32.xlu0 %v475, 127
        %v489 = vpop.permute.xlu0 %488
        %490 = vrot.lane.b32.xlu0 %v469, 127
        %v491 = vpop.permute.xlu0 %490
        %492 = vrot.lane.b32.xlu0 %v470, 127
        %v493 = vpop.permute.xlu0 %492
        %494 = vrot.lane.b32.xlu0 %v476, 127
        %v495 = vpop.permute.xlu0 %494
        %vm496 = vcmask 1039360
        %v497 = vsel %vm496, %v489, %v491
        %v498 = vsel %vm496, %v491, %v493
        %v499 = vsel %vm496, %v493, %v495
        %vm503 = vcmask 64512
        %v505 = vsel %vm503, %v482, 0
        %v508 = vsel %vm503, %v483, 0
        %v511 = vsel %vm503, %v484, 0
        %v514 = vsel %vm503, %v485, 0
        %516 = vmatprep.subr.mxu0 %v498
        %517 = vmatpush1.msra.mxu0 %v497
        %518 = vmatprep.subr.mxu0 0.0
        %519 = vmatpush1.msra.mxu0 0.0
        %520 = vmatprep.subr.mxu0 0.0
        %521 = vmatpush1.msra.mxu0 0.0
        %522 = vmatprep.subr.mxu0 0.0
        %523 = vmatpush1.msra.mxu0 0.0
        %524 = vmatprep.subr.mxu0 0.0
        %525 = vmatpush1.msra.mxu0 0.0
        %526 = vmatprep.subr.mxu0 0.0
        %527 = vmatpush1.msra.mxu0 0.0
        %528 = vmatprep.subr.mxu0 0.0
        %529 = vmatpush1.msra.mxu0 0.0
        %530 = vmatprep.subr.mxu0 0.0
        %531 = vmatpush1.msra.mxu0 0.0
        %532 = vmatprep.subr.mxu0 0.0
        %533 = vmatpush1.msra.mxu0 0.0
        %534 = vmatprep.subr.mxu0 0.0
        %535 = vmatpush1.msra.mxu0 0.0
        %536 = vmatprep.subr.mxu0 0.0
        %537 = vmatpush1.msra.mxu0 0.0
        %538 = vmatprep.subr.mxu0 0.0
        %539 = vmatpush1.msra.mxu0 0.0
        %540 = vmatprep.subr.mxu0 0.0
        %541 = vmatpush1.msra.mxu0 0.0
        %542 = vmatprep.subr.mxu0 0.0
        %543 = vmatpush1.msra.mxu0 0.0
        %544 = vmatprep.subr.mxu0 0.0
        %545 = vmatpush1.msra.mxu0 0.0
        %546 = vmatprep.subr.mxu0 0.0
        %547 = vmatpush1.msra.mxu0 0.0
        %548 = vmatprep.subr.mxu0 0.0
        %549 = vmatpush1.msra.mxu0 0.0
        %550 = vmatprep.subr.mxu0 0.0
        %551 = vmatpush1.msra.mxu0 0.0
        %552 = vmatprep.subr.mxu0 0.0
        %553 = vmatpush1.msra.mxu0 0.0
        %554 = vmatprep.subr.mxu0 0.0
        %555 = vmatpush1.msra.mxu0 0.0
        %556 = vmatprep.subr.mxu0 0.0
        %557 = vmatpush1.msra.mxu0 0.0
        %558 = vmatprep.subr.mxu0 0.0
        %559 = vmatpush1.msra.mxu0 0.0
        %560 = vmatprep.subr.mxu0 0.0
        %561 = vmatpush1.msra.mxu0 0.0
        %562 = vmatprep.subr.mxu0 0.0
        %563 = vmatpush1.msra.mxu0 0.0
        %564 = vmatprep.subr.mxu0 0.0
        %565 = vmatpush1.msra.mxu0 0.0
        %566 = vmatprep.subr.mxu0 0.0
        %567 = vmatpush1.msra.mxu0 0.0
        %568 = vmatprep.subr.mxu0 0.0
        %569 = vmatpush1.msra.mxu0 0.0
        %570 = vmatprep.subr.mxu0 0.0
        %571 = vmatpush1.msra.mxu0 0.0
        %572 = vmatprep.subr.mxu0 0.0
        %573 = vmatpush1.msra.mxu0 0.0
        %574 = vmatprep.subr.mxu0 0.0
        %575 = vmatpush1.msra.mxu0 0.0
        %576 = vmatprep.subr.mxu0 0.0
        %577 = vmatpush1.msra.mxu0 0.0
        %578 = vmatprep.subr.mxu0 0.0
        %579 = vmatpush1.msra.mxu0 0.0
        %580 = vmatprep.mubr.f32.mxu0 0.0
        %581 = vmatmul.mubr.f32.gmra.mrb[0].mxu0 %v505
        %v582 = vpop.f32.mrb[0].mxu0
        %v583 = vadd.f32 0.0, %v582
        %v584 = vpop.f32.mrb[0].mxu0
        %v585 = vadd.f32 0.0, %v584
        %586 = vmatprep.mubr.f32.mxu0 0.0
        %587 = vmatmul.mubr.f32.gmra.mrb[0].mxu0 %v508
        %v588 = vpop.f32.mrb[0].mxu0
        %v589 = vadd.f32 0.0, %v588
        %v590 = vpop.f32.mrb[0].mxu0
        %v591 = vadd.f32 0.0, %v590
        %592 = vmatprep.mubr.f32.mxu0 0.0
        %593 = vmatmul.mubr.f32.gmra.mrb[0].mxu0 %v511
        %v594 = vpop.f32.mrb[0].mxu0
        %v595 = vadd.f32 0.0, %v594
        %v596 = vpop.f32.mrb[0].mxu0
        %v597 = vadd.f32 0.0, %v596
        %598 = vmatprep.mubr.f32.mxu0 0.0
        %599 = vmatmul.mubr.f32.gmra.mrb[0].mxu0 %v514
        %v600 = vpop.f32.mrb[0].mxu0
        %v601 = vadd.f32 0.0, %v600
        %v602 = vpop.f32.mrb[0].mxu0
        %v603 = vadd.f32 0.0, %v602
        %604 = vdwg.mxu0
        %605 = vmatprep.subr.mxu0 0.0
        %606 = vmatpush1.msra.mxu0 %v499
        %607 = vmatprep.subr.mxu0 0.0
        %608 = vmatpush1.msra.mxu0 0.0
        %609 = vmatprep.subr.mxu0 0.0
        %610 = vmatpush1.msra.mxu0 0.0
        %611 = vmatprep.subr.mxu0 0.0
        %612 = vmatpush1.msra.mxu0 0.0
        %613 = vmatprep.subr.mxu0 0.0
        %614 = vmatpush1.msra.mxu0 0.0
        %615 = vmatprep.subr.mxu0 0.0
        %616 = vmatpush1.msra.mxu0 0.0
        %617 = vmatprep.subr.mxu0 0.0
        %618 = vmatpush1.msra.mxu0 0.0
        %619 = vmatprep.subr.mxu0 0.0
        %620 = vmatpush1.msra.mxu0 0.0
        %621 = vmatprep.subr.mxu0 0.0
        %622 = vmatpush1.msra.mxu0 0.0
        %623 = vmatprep.subr.mxu0 0.0
        %624 = vmatpush1.msra.mxu0 0.0
        %625 = vmatprep.subr.mxu0 0.0
        %626 = vmatpush1.msra.mxu0 0.0
        %627 = vmatprep.subr.mxu0 0.0
        %628 = vmatpush1.msra.mxu0 0.0
        %629 = vmatprep.subr.mxu0 0.0
        %630 = vmatpush1.msra.mxu0 0.0
        %631 = vmatprep.subr.mxu0 0.0
        %632 = vmatpush1.msra.mxu0 0.0
        %633 = vmatprep.subr.mxu0 0.0
        %634 = vmatpush1.msra.mxu0 0.0
        %635 = vmatprep.subr.mxu0 0.0
        %636 = vmatpush1.msra.mxu0 0.0
        %637 = vmatprep.subr.mxu0 0.0
        %638 = vmatpush1.msra.mxu0 0.0
        %639 = vmatprep.subr.mxu0 0.0
        %640 = vmatpush1.msra.mxu0 0.0
        %641 = vmatprep.subr.mxu0 0.0
        %642 = vmatpush1.msra.mxu0 0.0
        %643 = vmatprep.subr.mxu0 0.0
        %644 = vmatpush1.msra.mxu0 0.0
        %645 = vmatprep.subr.mxu0 0.0
        %646 = vmatpush1.msra.mxu0 0.0
        %647 = vmatprep.subr.mxu0 0.0
        %648 = vmatpush1.msra.mxu0 0.0
        %649 = vmatprep.subr.mxu0 0.0
        %650 = vmatpush1.msra.mxu0 0.0
        %651 = vmatprep.subr.mxu0 0.0
        %652 = vmatpush1.msra.mxu0 0.0
        %653 = vmatprep.subr.mxu0 0.0
        %654 = vmatpush1.msra.mxu0 0.0
        %655 = vmatprep.subr.mxu0 0.0
        %656 = vmatpush1.msra.mxu0 0.0
        %657 = vmatprep.subr.mxu0 0.0
        %658 = vmatpush1.msra.mxu0 0.0
        %659 = vmatprep.subr.mxu0 0.0
        %660 = vmatpush1.msra.mxu0 0.0
        %661 = vmatprep.subr.mxu0 0.0
        %662 = vmatpush1.msra.mxu0 0.0
        %663 = vmatprep.subr.mxu0 0.0
        %664 = vmatpush1.msra.mxu0 0.0
        %665 = vmatprep.subr.mxu0 0.0
        %666 = vmatpush1.msra.mxu0 0.0
        %667 = vmatprep.subr.mxu0 0.0
        %668 = vmatpush1.msra.mxu0 0.0
        %669 = vmatprep.mubr.f32.mxu0 0.0
        %670 = vmatmul.mubr.f32.gmra.mrb[0].mxu0 %v505
        %v671 = vpop.f32.mrb[0].mxu0
        %v672 = vadd.f32 0.0, %v671
        %v673 = vpop.f32.mrb[0].mxu0
        %674 = vmatprep.mubr.f32.mxu0 0.0
        %675 = vmatmul.mubr.f32.gmra.mrb[0].mxu0 %v508
        %v676 = vpop.f32.mrb[0].mxu0
        %v677 = vadd.f32 0.0, %v676
        %v678 = vpop.f32.mrb[0].mxu0
        %679 = vmatprep.mubr.f32.mxu0 0.0
        %680 = vmatmul.mubr.f32.gmra.mrb[0].mxu0 %v511
        %v681 = vpop.f32.mrb[0].mxu0
        %v682 = vadd.f32 0.0, %v681
        %v683 = vpop.f32.mrb[0].mxu0
        %684 = vmatprep.mubr.f32.mxu0 0.0
        %685 = vmatmul.mubr.f32.gmra.mrb[0].mxu0 %v514
        %v686 = vpop.f32.mrb[0].mxu0
        %v687 = vadd.f32 0.0, %v686
        %v688 = vpop.f32.mrb[0].mxu0
        %689 = vdwg.mxu0
        %v691 = vsel %vm503, %v477, 0
        %v694 = vsel %vm503, %v478, 0
        %v697 = vsel %vm503, %v479, 0
        %v700 = vsel %vm503, %v480, 0
        %702 = vmatprep.subr.mxu0 %v469
        %703 = vmatpush1.msra.mxu0 %v475
        %704 = vmatprep.subr.mxu0 0.0
        %705 = vmatpush1.msra.mxu0 0.0
        %706 = vmatprep.subr.mxu0 0.0
        %707 = vmatpush1.msra.mxu0 0.0
        %708 = vmatprep.subr.mxu0 0.0
        %709 = vmatpush1.msra.mxu0 0.0
        %710 = vmatprep.subr.mxu0 0.0
        %711 = vmatpush1.msra.mxu0 0.0
        %712 = vmatprep.subr.mxu0 0.0
        %713 = vmatpush1.msra.mxu0 0.0
        %714 = vmatprep.subr.mxu0 0.0
        %715 = vmatpush1.msra.mxu0 0.0
        %716 = vmatprep.subr.mxu0 0.0
        %717 = vmatpush1.msra.mxu0 0.0
        %718 = vmatprep.subr.mxu0 0.0
        %719 = vmatpush1.msra.mxu0 0.0
        %720 = vmatprep.subr.mxu0 0.0
        %721 = vmatpush1.msra.mxu0 0.0
        %722 = vmatprep.subr.mxu0 0.0
        %723 = vmatpush1.msra.mxu0 0.0
        %724 = vmatprep.subr.mxu0 0.0
        %725 = vmatpush1.msra.mxu0 0.0
        %726 = vmatprep.subr.mxu0 0.0
        %727 = vmatpush1.msra.mxu0 0.0
        %728 = vmatprep.subr.mxu0 0.0
        %729 = vmatpush1.msra.mxu0 0.0
        %730 = vmatprep.subr.mxu0 0.0
        %731 = vmatpush1.msra.mxu0 0.0
        %732 = vmatprep.subr.mxu0 0.0
        %733 = vmatpush1.msra.mxu0 0.0
        %734 = vmatprep.subr.mxu0 0.0
        %735 = vmatpush1.msra.mxu0 0.0
        %736 = vmatprep.subr.mxu0 0.0
        %737 = vmatpush1.msra.mxu0 0.0
        %738 = vmatprep.subr.mxu0 0.0
        %739 = vmatpush1.msra.mxu0 0.0
        %740 = vmatprep.subr.mxu0 0.0
        %741 = vmatpush1.msra.mxu0 0.0
        %742 = vmatprep.subr.mxu0 0.0
        %743 = vmatpush1.msra.mxu0 0.0
        %744 = vmatprep.subr.mxu0 0.0
        %745 = vmatpush1.msra.mxu0 0.0
        %746 = vmatprep.subr.mxu0 0.0
        %747 = vmatpush1.msra.mxu0 0.0
        %748 = vmatprep.subr.mxu0 0.0
        %749 = vmatpush1.msra.mxu0 0.0
        %750 = vmatprep.subr.mxu0 0.0
        %751 = vmatpush1.msra.mxu0 0.0
        %752 = vmatprep.subr.mxu0 0.0
        %753 = vmatpush1.msra.mxu0 0.0
        %754 = vmatprep.subr.mxu0 0.0
        %755 = vmatpush1.msra.mxu0 0.0
        %756 = vmatprep.subr.mxu0 0.0
        %757 = vmatpush1.msra.mxu0 0.0
        %758 = vmatprep.subr.mxu0 0.0
        %759 = vmatpush1.msra.mxu0 0.0
        %760 = vmatprep.subr.mxu0 0.0
        %761 = vmatpush1.msra.mxu0 0.0
        %762 = vmatprep.subr.mxu0 0.0
        %763 = vmatpush1.msra.mxu0 0.0
        %764 = vmatprep.subr.mxu0 0.0
        %765 = vmatpush1.msra.mxu0 0.0
        %766 = vmatprep.mubr.f32.mxu0 0.0
        %767 = vmatmul.mubr.f32.gmra.mrb[0].mxu0 %v691
        %v768 = vpop.f32.mrb[0].mxu0
        %v769 = vadd.f32 %v583, %v768
        %v770 = vpop.f32.mrb[0].mxu0
        %v771 = vadd.f32 %v585, %v770
        %772 = vmatprep.mubr.f32.mxu0 0.0
        %773 = vmatmul.mubr.f32.gmra.mrb[0].mxu0 %v694
        %v774 = vpop.f32.mrb[0].mxu0
        %v775 = vadd.f32 %v589, %v774
        %v776 = vpop.f32.mrb[0].mxu0
        %v777 = vadd.f32 %v591, %v776
        %778 = vmatprep.mubr.f32.mxu0 0.0
        %779 = vmatmul.mubr.f32.gmra.mrb[0].mxu0 %v697
        %v780 = vpop.f32.mrb[0].mxu0
        %v781 = vadd.f32 %v595, %v780
        %v782 = vpop.f32.mrb[0].mxu0
        %v783 = vadd.f32 %v597, %v782
        %784 = vmatprep.mubr.f32.mxu0 0.0
        %785 = vmatmul.mubr.f32.gmra.mrb[0].mxu0 %v700
        %v786 = vpop.f32.mrb[0].mxu0
        %v787 = vadd.f32 %v601, %v786
        %v788 = vpop.f32.mrb[0].mxu0
        %v789 = vadd.f32 %v603, %v788
        %790 = vdwg.mxu0
        %791 = vmatprep.subr.mxu0 0.0
        %792 = vmatpush1.msra.mxu0 %v470
        %793 = vmatprep.subr.mxu0 0.0
        %794 = vmatpush1.msra.mxu0 0.0
        %795 = vmatprep.subr.mxu0 0.0
        %796 = vmatpush1.msra.mxu0 0.0
        %797 = vmatprep.subr.mxu0 0.0
        %798 = vmatpush1.msra.mxu0 0.0
        %799 = vmatprep.subr.mxu0 0.0
        %800 = vmatpush1.msra.mxu0 0.0
        %801 = vmatprep.subr.mxu0 0.0
        %802 = vmatpush1.msra.mxu0 0.0
        %803 = vmatprep.subr.mxu0 0.0
        %804 = vmatpush1.msra.mxu0 0.0
        %805 = vmatprep.subr.mxu0 0.0
        %806 = vmatpush1.msra.mxu0 0.0
        %807 = vmatprep.subr.mxu0 0.0
        %808 = vmatpush1.msra.mxu0 0.0
        %809 = vmatprep.subr.mxu0 0.0
        %810 = vmatpush1.msra.mxu0 0.0
        %811 = vmatprep.subr.mxu0 0.0
        %812 = vmatpush1.msra.mxu0 0.0
        %813 = vmatprep.subr.mxu0 0.0
        %814 = vmatpush1.msra.mxu0 0.0
        %815 = vmatprep.subr.mxu0 0.0
        %816 = vmatpush1.msra.mxu0 0.0
        %817 = vmatprep.subr.mxu0 0.0
        %818 = vmatpush1.msra.mxu0 0.0
        %819 = vmatprep.subr.mxu0 0.0
        %820 = vmatpush1.msra.mxu0 0.0
        %821 = vmatprep.subr.mxu0 0.0
        %822 = vmatpush1.msra.mxu0 0.0
        %823 = vmatprep.subr.mxu0 0.0
        %824 = vmatpush1.msra.mxu0 0.0
        %825 = vmatprep.subr.mxu0 0.0
        %826 = vmatpush1.msra.mxu0 0.0
        %827 = vmatprep.subr.mxu0 0.0
        %828 = vmatpush1.msra.mxu0 0.0
        %829 = vmatprep.subr.mxu0 0.0
        %830 = vmatpush1.msra.mxu0 0.0
        %831 = vmatprep.subr.mxu0 0.0
        %832 = vmatpush1.msra.mxu0 0.0
        %833 = vmatprep.subr.mxu0 0.0
        %834 = vmatpush1.msra.mxu0 0.0
        %835 = vmatprep.subr.mxu0 0.0
        %836 = vmatpush1.msra.mxu0 0.0
        %837 = vmatprep.subr.mxu0 0.0
        %838 = vmatpush1.msra.mxu0 0.0
        %839 = vmatprep.subr.mxu0 0.0
        %840 = vmatpush1.msra.mxu0 0.0
        %841 = vmatprep.subr.mxu0 0.0
        %842 = vmatpush1.msra.mxu0 0.0
        %843 = vmatprep.subr.mxu0 0.0
        %844 = vmatpush1.msra.mxu0 0.0
        %845 = vmatprep.subr.mxu0 0.0
        %846 = vmatpush1.msra.mxu0 0.0
        %847 = vmatprep.subr.mxu0 0.0
        %848 = vmatpush1.msra.mxu0 0.0
        %849 = vmatprep.subr.mxu0 0.0
        %850 = vmatpush1.msra.mxu0 0.0
        %851 = vmatprep.subr.mxu0 0.0
        %852 = vmatpush1.msra.mxu0 0.0
        %853 = vmatprep.subr.mxu0 0.0
        %854 = vmatpush1.msra.mxu0 0.0
        %855 = vmatprep.mubr.f32.mxu0 0.0
        %856 = vmatmul.mubr.f32.gmra.mrb[0].mxu0 %v691
        %v857 = vpop.f32.mrb[0].mxu0
        %v858 = vadd.f32 %v672, %v857
        %v859 = vpop.f32.mrb[0].mxu0
        %860 = vmatprep.mubr.f32.mxu0 0.0
        %861 = vmatmul.mubr.f32.gmra.mrb[0].mxu0 %v694
        %v862 = vpop.f32.mrb[0].mxu0
        %v863 = vadd.f32 %v677, %v862
        %v864 = vpop.f32.mrb[0].mxu0
        %865 = vmatprep.mubr.f32.mxu0 0.0
        %866 = vmatmul.mubr.f32.gmra.mrb[0].mxu0 %v697
        %v867 = vpop.f32.mrb[0].mxu0
        %v868 = vadd.f32 %v682, %v867
        %v869 = vpop.f32.mrb[0].mxu0
        %870 = vmatprep.mubr.f32.mxu0 0.0
        %871 = vmatmul.mubr.f32.gmra.mrb[0].mxu0 %v700
        %v872 = vpop.f32.mrb[0].mxu0
        %v873 = vadd.f32 %v687, %v872
        %v874 = vpop.f32.mrb[0].mxu0
        %875 = vdwg.mxu0
        %s876 = scalar_lea.vmem %s1, 64
        %v877 = vld [vmem:[%s876] sm:$0xff]
        %v878 = vld [vmem:[%s876 + $0x8] sm:$0xff]
        %v879 = vld [vmem:[%s876 + $0x10] sm:$0xff]
        %v880 = vld [vmem:[%s876 + $0x18] sm:$0xff]
        %881 = vrot.lane.b32.xlu0 %v475, 126
        %v882 = vpop.permute.xlu0 %881
        %883 = vrot.lane.b32.xlu0 %v469, 126
        %v884 = vpop.permute.xlu0 %883
        %885 = vrot.lane.b32.xlu0 %v470, 126
        %v886 = vpop.permute.xlu0 %885
        %887 = vrot.lane.b32.xlu0 %v476, 126
        %v888 = vpop.permute.xlu0 %887
        %vm889 = vcmask 1031168
        %v890 = vsel %vm889, %v882, %v884
        %v891 = vsel %vm889, %v884, %v886
        %v892 = vsel %vm889, %v886, %v888
        %v897 = vsel %vm503, %v877, 0
        %v900 = vsel %vm503, %v878, 0
        %v903 = vsel %vm503, %v879, 0
        %v906 = vsel %vm503, %v880, 0
        %908 = vmatprep.subr.mxu0 %v891
        %909 = vmatpush1.msra.mxu0 %v890
        %910 = vmatprep.subr.mxu0 0.0
        %911 = vmatpush1.msra.mxu0 0.0
        %912 = vmatprep.subr.mxu0 0.0
        %913 = vmatpush1.msra.mxu0 0.0
        %914 = vmatprep.subr.mxu0 0.0
        %915 = vmatpush1.msra.mxu0 0.0
        %916 = vmatprep.subr.mxu0 0.0
        %917 = vmatpush1.msra.mxu0 0.0
        %918 = vmatprep.subr.mxu0 0.0
        %919 = vmatpush1.msra.mxu0 0.0
        %920 = vmatprep.subr.mxu0 0.0
        %921 = vmatpush1.msra.mxu0 0.0
        %922 = vmatprep.subr.mxu0 0.0
        %923 = vmatpush1.msra.mxu0 0.0
        %924 = vmatprep.subr.mxu0 0.0
        %925 = vmatpush1.msra.mxu0 0.0
        %926 = vmatprep.subr.mxu0 0.0
        %927 = vmatpush1.msra.mxu0 0.0
        %928 = vmatprep.subr.mxu0 0.0
        %929 = vmatpush1.msra.mxu0 0.0
        %930 = vmatprep.subr.mxu0 0.0
        %931 = vmatpush1.msra.mxu0 0.0
        %932 = vmatprep.subr.mxu0 0.0
        %933 = vmatpush1.msra.mxu0 0.0
        %934 = vmatprep.subr.mxu0 0.0
        %935 = vmatpush1.msra.mxu0 0.0
        %936 = vmatprep.subr.mxu0 0.0
        %937 = vmatpush1.msra.mxu0 0.0
        %938 = vmatprep.subr.mxu0 0.0
        %939 = vmatpush1.msra.mxu0 0.0
        %940 = vmatprep.subr.mxu0 0.0
        %941 = vmatpush1.msra.mxu0 0.0
        %942 = vmatprep.subr.mxu0 0.0
        %943 = vmatpush1.msra.mxu0 0.0
        %944 = vmatprep.subr.mxu0 0.0
        %945 = vmatpush1.msra.mxu0 0.0
        %946 = vmatprep.subr.mxu0 0.0
        %947 = vmatpush1.msra.mxu0 0.0
        %948 = vmatprep.subr.mxu0 0.0
        %949 = vmatpush1.msra.mxu0 0.0
        %950 = vmatprep.subr.mxu0 0.0
        %951 = vmatpush1.msra.mxu0 0.0
        %952 = vmatprep.subr.mxu0 0.0
        %953 = vmatpush1.msra.mxu0 0.0
        %954 = vmatprep.subr.mxu0 0.0
        %955 = vmatpush1.msra.mxu0 0.0
        %956 = vmatprep.subr.mxu0 0.0
        %957 = vmatpush1.msra.mxu0 0.0
        %958 = vmatprep.subr.mxu0 0.0
        %959 = vmatpush1.msra.mxu0 0.0
        %960 = vmatprep.subr.mxu0 0.0
        %961 = vmatpush1.msra.mxu0 0.0
        %962 = vmatprep.subr.mxu0 0.0
        %963 = vmatpush1.msra.mxu0 0.0
        %964 = vmatprep.subr.mxu0 0.0
        %965 = vmatpush1.msra.mxu0 0.0
        %966 = vmatprep.subr.mxu0 0.0
        %967 = vmatpush1.msra.mxu0 0.0
        %968 = vmatprep.subr.mxu0 0.0
        %969 = vmatpush1.msra.mxu0 0.0
        %970 = vmatprep.subr.mxu0 0.0
        %971 = vmatpush1.msra.mxu0 0.0
        %972 = vmatprep.mubr.f32.mxu0 0.0
        %973 = vmatmul.mubr.f32.gmra.mrb[0].mxu0 %v897
        %v974 = vpop.f32.mrb[0].mxu0
        %v975 = vadd.f32 0.0, %v974
        %v976 = vpop.f32.mrb[0].mxu0
        %v977 = vadd.f32 0.0, %v976
        %978 = vmatprep.mubr.f32.mxu0 0.0
        %979 = vmatmul.mubr.f32.gmra.mrb[0].mxu0 %v900
        %v980 = vpop.f32.mrb[0].mxu0
        %v981 = vadd.f32 0.0, %v980
        %v982 = vpop.f32.mrb[0].mxu0
        %v983 = vadd.f32 0.0, %v982
        %984 = vmatprep.mubr.f32.mxu0 0.0
        %985 = vmatmul.mubr.f32.gmra.mrb[0].mxu0 %v903
        %v986 = vpop.f32.mrb[0].mxu0
        %v987 = vadd.f32 0.0, %v986
        %v988 = vpop.f32.mrb[0].mxu0
        %v989 = vadd.f32 0.0, %v988
        %990 = vmatprep.mubr.f32.mxu0 0.0
        %991 = vmatmul.mubr.f32.gmra.mrb[0].mxu0 %v906
        %v992 = vpop.f32.mrb[0].mxu0
        %v993 = vadd.f32 0.0, %v992
        %v994 = vpop.f32.mrb[0].mxu0
        %v995 = vadd.f32 0.0, %v994
        %996 = vdwg.mxu0
        %997 = vmatprep.subr.mxu0 0.0
        %998 = vmatpush1.msra.mxu0 %v892
        %999 = vmatprep.subr.mxu0 0.0
        %1000 = vmatpush1.msra.mxu0 0.0
        %1001 = vmatprep.subr.mxu0 0.0
        %1002 = vmatpush1.msra.mxu0 0.0
        %1003 = vmatprep.subr.mxu0 0.0
        %1004 = vmatpush1.msra.mxu0 0.0
        %1005 = vmatprep.subr.mxu0 0.0
        %1006 = vmatpush1.msra.mxu0 0.0
        %1007 = vmatprep.subr.mxu0 0.0
        %1008 = vmatpush1.msra.mxu0 0.0
        %1009 = vmatprep.subr.mxu0 0.0
        %1010 = vmatpush1.msra.mxu0 0.0
        %1011 = vmatprep.subr.mxu0 0.0
        %1012 = vmatpush1.msra.mxu0 0.0
        %1013 = vmatprep.subr.mxu0 0.0
        %1014 = vmatpush1.msra.mxu0 0.0
        %1015 = vmatprep.subr.mxu0 0.0
        %1016 = vmatpush1.msra.mxu0 0.0
        %1017 = vmatprep.subr.mxu0 0.0
        %1018 = vmatpush1.msra.mxu0 0.0
        %1019 = vmatprep.subr.mxu0 0.0
        %1020 = vmatpush1.msra.mxu0 0.0
        %1021 = vmatprep.subr.mxu0 0.0
        %1022 = vmatpush1.msra.mxu0 0.0
        %1023 = vmatprep.subr.mxu0 0.0
        %1024 = vmatpush1.msra.mxu0 0.0
        %1025 = vmatprep.subr.mxu0 0.0
        %1026 = vmatpush1.msra.mxu0 0.0
        %1027 = vmatprep.subr.mxu0 0.0
        %1028 = vmatpush1.msra.mxu0 0.0
        %1029 = vmatprep.subr.mxu0 0.0
        %1030 = vmatpush1.msra.mxu0 0.0
        %1031 = vmatprep.subr.mxu0 0.0
        %1032 = vmatpush1.msra.mxu0 0.0
        %1033 = vmatprep.subr.mxu0 0.0
        %1034 = vmatpush1.msra.mxu0 0.0
        %1035 = vmatprep.subr.mxu0 0.0
        %1036 = vmatpush1.msra.mxu0 0.0
        %1037 = vmatprep.subr.mxu0 0.0
        %1038 = vmatpush1.msra.mxu0 0.0
        %1039 = vmatprep.subr.mxu0 0.0
        %1040 = vmatpush1.msra.mxu0 0.0
        %1041 = vmatprep.subr.mxu0 0.0
        %1042 = vmatpush1.msra.mxu0 0.0
        %1043 = vmatprep.subr.mxu0 0.0
        %1044 = vmatpush1.msra.mxu0 0.0
        %1045 = vmatprep.subr.mxu0 0.0
        %1046 = vmatpush1.msra.mxu0 0.0
        %1047 = vmatprep.subr.mxu0 0.0
        %1048 = vmatpush1.msra.mxu0 0.0
        %1049 = vmatprep.subr.mxu0 0.0
        %1050 = vmatpush1.msra.mxu0 0.0
        %1051 = vmatprep.subr.mxu0 0.0
        %1052 = vmatpush1.msra.mxu0 0.0
        %1053 = vmatprep.subr.mxu0 0.0
        %1054 = vmatpush1.msra.mxu0 0.0
        %1055 = vmatprep.subr.mxu0 0.0
        %1056 = vmatpush1.msra.mxu0 0.0
        %1057 = vmatprep.subr.mxu0 0.0
        %1058 = vmatpush1.msra.mxu0 0.0
        %1059 = vmatprep.subr.mxu0 0.0
        %1060 = vmatpush1.msra.mxu0 0.0
        %1061 = vmatprep.mubr.f32.mxu0 0.0
        %1062 = vmatmul.mubr.f32.gmra.mrb[0].mxu0 %v897
        %v1063 = vpop.f32.mrb[0].mxu0
        %v1064 = vadd.f32 0.0, %v1063
        %v1065 = vpop.f32.mrb[0].mxu0
        %1066 = vmatprep.mubr.f32.mxu0 0.0
        %1067 = vmatmul.mubr.f32.gmra.mrb[0].mxu0 %v900
        %v1068 = vpop.f32.mrb[0].mxu0
        %v1069 = vadd.f32 0.0, %v1068
        %v1070 = vpop.f32.mrb[0].mxu0
        %1071 = vmatprep.mubr.f32.mxu0 0.0
        %1072 = vmatmul.mubr.f32.gmra.mrb[0].mxu0 %v903
        %v1073 = vpop.f32.mrb[0].mxu0
        %v1074 = vadd.f32 0.0, %v1073
        %v1075 = vpop.f32.mrb[0].mxu0
        %1076 = vmatprep.mubr.f32.mxu0 0.0
        %1077 = vmatmul.mubr.f32.gmra.mrb[0].mxu0 %v906
        %v1078 = vpop.f32.mrb[0].mxu0
        %v1079 = vadd.f32 0.0, %v1078
        %v1080 = vpop.f32.mrb[0].mxu0
        %1081 = vdwg.mxu0
        %v1082 = vadd.f32 %v769, %v975
        %v1083 = vadd.f32 %v771, %v977
        %v1084 = vadd.f32 %v858, %v1064
        %v1085 = vadd.f32 %v775, %v981
        %v1086 = vadd.f32 %v777, %v983
        %v1087 = vadd.f32 %v863, %v1069
        %v1088 = vadd.f32 %v781, %v987
        %v1089 = vadd.f32 %v783, %v989
        %v1090 = vadd.f32 %v868, %v1074
        %v1091 = vadd.f32 %v787, %v993
        %v1092 = vadd.f32 %v789, %v995
        %v1093 = vadd.f32 %v873, %v1079
        %s1094 = scalar_lea.vmem %s1, 96
        %v1095 = vld [vmem:[%s1094] sm:$0xff]
        %v1096 = vld [vmem:[%s1094 + $0x8] sm:$0xff]
        %v1097 = vld [vmem:[%s1094 + $0x10] sm:$0xff]
        %v1098 = vld [vmem:[%s1094 + $0x18] sm:$0xff]
        %1099 = vrot.lane.b32.xlu0 %v475, 110
        %v1100 = vpop.permute.xlu0 %1099
        %1101 = vrot.lane.b32.xlu0 %v469, 110
        %v1102 = vpop.permute.xlu0 %1101
        %1103 = vrot.lane.b32.xlu0 %v470, 110
        %v1104 = vpop.permute.xlu0 %1103
        %1105 = vrot.lane.b32.xlu0 %v476, 110
        %v1106 = vpop.permute.xlu0 %1105
        %vm1107 = vcmask 900096
        %v1108 = vsel %vm1107, %v1100, %v1102
        %v1109 = vsel %vm1107, %v1102, %v1104
        %v1110 = vsel %vm1107, %v1104, %v1106
        %v1115 = vsel %vm503, %v1095, 0
        %v1118 = vsel %vm503, %v1096, 0
        %v1121 = vsel %vm503, %v1097, 0
        %v1124 = vsel %vm503, %v1098, 0
        %1126 = vmatprep.subr.mxu0 %v1109
        %1127 = vmatpush1.msra.mxu0 %v1108
        %1128 = vmatprep.subr.mxu0 0.0
        %1129 = vmatpush1.msra.mxu0 0.0
        %1130 = vmatprep.subr.mxu0 0.0
        %1131 = vmatpush1.msra.mxu0 0.0
        %1132 = vmatprep.subr.mxu0 0.0
        %1133 = vmatpush1.msra.mxu0 0.0
        %1134 = vmatprep.subr.mxu0 0.0
        %1135 = vmatpush1.msra.mxu0 0.0
        %1136 = vmatprep.subr.mxu0 0.0
        %1137 = vmatpush1.msra.mxu0 0.0
        %1138 = vmatprep.subr.mxu0 0.0
        %1139 = vmatpush1.msra.mxu0 0.0
        %1140 = vmatprep.subr.mxu0 0.0
        %1141 = vmatpush1.msra.mxu0 0.0
        %1142 = vmatprep.subr.mxu0 0.0
        %1143 = vmatpush1.msra.mxu0 0.0
        %1144 = vmatprep.subr.mxu0 0.0
        %1145 = vmatpush1.msra.mxu0 0.0
        %1146 = vmatprep.subr.mxu0 0.0
        %1147 = vmatpush1.msra.mxu0 0.0
        %1148 = vmatprep.subr.mxu0 0.0
        %1149 = vmatpush1.msra.mxu0 0.0
        %1150 = vmatprep.subr.mxu0 0.0
        %1151 = vmatpush1.msra.mxu0 0.0
        %1152 = vmatprep.subr.mxu0 0.0
        %1153 = vmatpush1.msra.mxu0 0.0
        %1154 = vmatprep.subr.mxu0 0.0
        %1155 = vmatpush1.msra.mxu0 0.0
        %1156 = vmatprep.subr.mxu0 0.0
        %1157 = vmatpush1.msra.mxu0 0.0
        %1158 = vmatprep.subr.mxu0 0.0
        %1159 = vmatpush1.msra.mxu0 0.0
        %1160 = vmatprep.subr.mxu0 0.0
        %1161 = vmatpush1.msra.mxu0 0.0
        %1162 = vmatprep.subr.mxu0 0.0
        %1163 = vmatpush1.msra.mxu0 0.0
        %1164 = vmatprep.subr.mxu0 0.0
        %1165 = vmatpush1.msra.mxu0 0.0
        %1166 = vmatprep.subr.mxu0 0.0
        %1167 = vmatpush1.msra.mxu0 0.0
        %1168 = vmatprep.subr.mxu0 0.0
        %1169 = vmatpush1.msra.mxu0 0.0
        %1170 = vmatprep.subr.mxu0 0.0
        %1171 = vmatpush1.msra.mxu0 0.0
        %1172 = vmatprep.subr.mxu0 0.0
        %1173 = vmatpush1.msra.mxu0 0.0
        %1174 = vmatprep.subr.mxu0 0.0
        %1175 = vmatpush1.msra.mxu0 0.0
        %1176 = vmatprep.subr.mxu0 0.0
        %1177 = vmatpush1.msra.mxu0 0.0
        %1178 = vmatprep.subr.mxu0 0.0
        %1179 = vmatpush1.msra.mxu0 0.0
        %1180 = vmatprep.subr.mxu0 0.0
        %1181 = vmatpush1.msra.mxu0 0.0
        %1182 = vmatprep.subr.mxu0 0.0
        %1183 = vmatpush1.msra.mxu0 0.0
        %1184 = vmatprep.subr.mxu0 0.0
        %1185 = vmatpush1.msra.mxu0 0.0
        %1186 = vmatprep.subr.mxu0 0.0
        %1187 = vmatpush1.msra.mxu0 0.0
        %1188 = vmatprep.subr.mxu0 0.0
        %1189 = vmatpush1.msra.mxu0 0.0
        %1190 = vmatprep.mubr.f32.mxu0 0.0
        %1191 = vmatmul.mubr.f32.gmra.mrb[0].mxu0 %v1115
        %v1192 = vpop.f32.mrb[0].mxu0
        %v1193 = vadd.f32 0.0, %v1192
        %v1194 = vpop.f32.mrb[0].mxu0
        %v1195 = vadd.f32 0.0, %v1194
        %1196 = vmatprep.mubr.f32.mxu0 0.0
        %1197 = vmatmul.mubr.f32.gmra.mrb[0].mxu0 %v1118
        %v1198 = vpop.f32.mrb[0].mxu0
        %v1199 = vadd.f32 0.0, %v1198
        %v1200 = vpop.f32.mrb[0].mxu0
        %v1201 = vadd.f32 0.0, %v1200
        %1202 = vmatprep.mubr.f32.mxu0 0.0
        %1203 = vmatmul.mubr.f32.gmra.mrb[0].mxu0 %v1121
        %v1204 = vpop.f32.mrb[0].mxu0
        %v1205 = vadd.f32 0.0, %v1204
        %v1206 = vpop.f32.mrb[0].mxu0
        %v1207 = vadd.f32 0.0, %v1206
        %1208 = vmatprep.mubr.f32.mxu0 0.0
        %1209 = vmatmul.mubr.f32.gmra.mrb[0].mxu0 %v1124
        %v1210 = vpop.f32.mrb[0].mxu0
        %v1211 = vadd.f32 0.0, %v1210
        %v1212 = vpop.f32.mrb[0].mxu0
        %v1213 = vadd.f32 0.0, %v1212
        %1214 = vdwg.mxu0
        %1215 = vmatprep.subr.mxu0 0.0
        %1216 = vmatpush1.msra.mxu0 %v1110
        %1217 = vmatprep.subr.mxu0 0.0
        %1218 = vmatpush1.msra.mxu0 0.0
        %1219 = vmatprep.subr.mxu0 0.0
        %1220 = vmatpush1.msra.mxu0 0.0
        %1221 = vmatprep.subr.mxu0 0.0
        %1222 = vmatpush1.msra.mxu0 0.0
        %1223 = vmatprep.subr.mxu0 0.0
        %1224 = vmatpush1.msra.mxu0 0.0
        %1225 = vmatprep.subr.mxu0 0.0
        %1226 = vmatpush1.msra.mxu0 0.0
        %1227 = vmatprep.subr.mxu0 0.0
        %1228 = vmatpush1.msra.mxu0 0.0
        %1229 = vmatprep.subr.mxu0 0.0
        %1230 = vmatpush1.msra.mxu0 0.0
        %1231 = vmatprep.subr.mxu0 0.0
        %1232 = vmatpush1.msra.mxu0 0.0
        %1233 = vmatprep.subr.mxu0 0.0
        %1234 = vmatpush1.msra.mxu0 0.0
        %1235 = vmatprep.subr.mxu0 0.0
        %1236 = vmatpush1.msra.mxu0 0.0
        %1237 = vmatprep.subr.mxu0 0.0
        %1238 = vmatpush1.msra.mxu0 0.0
        %1239 = vmatprep.subr.mxu0 0.0
        %1240 = vmatpush1.msra.mxu0 0.0
        %1241 = vmatprep.subr.mxu0 0.0
        %1242 = vmatpush1.msra.mxu0 0.0
        %1243 = vmatprep.subr.mxu0 0.0
        %1244 = vmatpush1.msra.mxu0 0.0
        %1245 = vmatprep.subr.mxu0 0.0
        %1246 = vmatpush1.msra.mxu0 0.0
        %1247 = vmatprep.subr.mxu0 0.0
        %1248 = vmatpush1.msra.mxu0 0.0
        %1249 = vmatprep.subr.mxu0 0.0
        %1250 = vmatpush1.msra.mxu0 0.0
        %1251 = vmatprep.subr.mxu0 0.0
        %1252 = vmatpush1.msra.mxu0 0.0
        %1253 = vmatprep.subr.mxu0 0.0
        %1254 = vmatpush1.msra.mxu0 0.0
        %1255 = vmatprep.subr.mxu0 0.0
        %1256 = vmatpush1.msra.mxu0 0.0
        %1257 = vmatprep.subr.mxu0 0.0
        %1258 = vmatpush1.msra.mxu0 0.0
        %1259 = vmatprep.subr.mxu0 0.0
        %1260 = vmatpush1.msra.mxu0 0.0
        %1261 = vmatprep.subr.mxu0 0.0
        %1262 = vmatpush1.msra.mxu0 0.0
        %1263 = vmatprep.subr.mxu0 0.0
        %1264 = vmatpush1.msra.mxu0 0.0
        %1265 = vmatprep.subr.mxu0 0.0
        %1266 = vmatpush1.msra.mxu0 0.0
        %1267 = vmatprep.subr.mxu0 0.0
        %1268 = vmatpush1.msra.mxu0 0.0
        %1269 = vmatprep.subr.mxu0 0.0
        %1270 = vmatpush1.msra.mxu0 0.0
        %1271 = vmatprep.subr.mxu0 0.0
        %1272 = vmatpush1.msra.mxu0 0.0
        %1273 = vmatprep.subr.mxu0 0.0
        %1274 = vmatpush1.msra.mxu0 0.0
        %1275 = vmatprep.subr.mxu0 0.0
        %1276 = vmatpush1.msra.mxu0 0.0
        %1277 = vmatprep.subr.mxu0 0.0
        %1278 = vmatpush1.msra.mxu0 0.0
        %1279 = vmatprep.mubr.f32.mxu0 0.0
        %1280 = vmatmul.mubr.f32.gmra.mrb[0].mxu0 %v1115
        %v1281 = vpop.f32.mrb[0].mxu0
        %v1282 = vadd.f32 0.0, %v1281
        %v1283 = vpop.f32.mrb[0].mxu0
        %1284 = vmatprep.mubr.f32.mxu0 0.0
        %1285 = vmatmul.mubr.f32.gmra.mrb[0].mxu0 %v1118
        %v1286 = vpop.f32.mrb[0].mxu0
        %v1287 = vadd.f32 0.0, %v1286
        %v1288 = vpop.f32.mrb[0].mxu0
        %1289 = vmatprep.mubr.f32.mxu0 0.0
        %1290 = vmatmul.mubr.f32.gmra.mrb[0].mxu0 %v1121
        %v1291 = vpop.f32.mrb[0].mxu0
        %v1292 = vadd.f32 0.0, %v1291
        %v1293 = vpop.f32.mrb[0].mxu0
        %1294 = vmatprep.mubr.f32.mxu0 0.0
        %1295 = vmatmul.mubr.f32.gmra.mrb[0].mxu0 %v1124
        %v1296 = vpop.f32.mrb[0].mxu0
        %v1297 = vadd.f32 0.0, %v1296
        %v1298 = vpop.f32.mrb[0].mxu0
        %1299 = vdwg.mxu0
        %v1300 = vadd.f32 %v1082, %v1193
        %v1301 = vadd.f32 %v1083, %v1195
        %v1302 = vadd.f32 %v1084, %v1282
        %v1303 = vadd.f32 %v1085, %v1199
        %v1304 = vadd.f32 %v1086, %v1201
        %v1305 = vadd.f32 %v1087, %v1287
        %v1306 = vadd.f32 %v1088, %v1205
        %v1307 = vadd.f32 %v1089, %v1207
        %v1308 = vadd.f32 %v1090, %v1292
        %v1309 = vadd.f32 %v1091, %v1211
        %v1310 = vadd.f32 %v1092, %v1213
        %v1311 = vadd.f32 %v1093, %v1297
        %s1312 = scalar_lea.vmem %s1, 128
        %v1313 = vld [vmem:[%s1312] sm:$0xff]
        %v1314 = vld [vmem:[%s1312 + $0x8] sm:$0xff]
        %v1315 = vld [vmem:[%s1312 + $0x10] sm:$0xff]
        %v1316 = vld [vmem:[%s1312 + $0x18] sm:$0xff]
        %1317 = vrot.lane.b32.xlu0 %v475, 109
        %v1318 = vpop.permute.xlu0 %1317
        %1319 = vrot.lane.b32.xlu0 %v469, 109
        %v1320 = vpop.permute.xlu0 %1319
        %1321 = vrot.lane.b32.xlu0 %v470, 109
        %v1322 = vpop.permute.xlu0 %1321
        %1323 = vrot.lane.b32.xlu0 %v476, 109
        %v1324 = vpop.permute.xlu0 %1323
        %vm1325 = vcmask 891904
        %v1326 = vsel %vm1325, %v1318, %v1320
        %v1327 = vsel %vm1325, %v1320, %v1322
        %v1328 = vsel %vm1325, %v1322, %v1324
        %v1333 = vsel %vm503, %v1313, 0
        %v1336 = vsel %vm503, %v1314, 0
        %v1339 = vsel %vm503, %v1315, 0
        %v1342 = vsel %vm503, %v1316, 0
        %1344 = vmatprep.subr.mxu0 %v1327
        %1345 = vmatpush1.msra.mxu0 %v1326
        %1346 = vmatprep.subr.mxu0 0.0
        %1347 = vmatpush1.msra.mxu0 0.0
        %1348 = vmatprep.subr.mxu0 0.0
        %1349 = vmatpush1.msra.mxu0 0.0
        %1350 = vmatprep.subr.mxu0 0.0
        %1351 = vmatpush1.msra.mxu0 0.0
        %1352 = vmatprep.subr.mxu0 0.0
        %1353 = vmatpush1.msra.mxu0 0.0
        %1354 = vmatprep.subr.mxu0 0.0
        %1355 = vmatpush1.msra.mxu0 0.0
        %1356 = vmatprep.subr.mxu0 0.0
        %1357 = vmatpush1.msra.mxu0 0.0
        %1358 = vmatprep.subr.mxu0 0.0
        %1359 = vmatpush1.msra.mxu0 0.0
        %1360 = vmatprep.subr.mxu0 0.0
        %1361 = vmatpush1.msra.mxu0 0.0
        %1362 = vmatprep.subr.mxu0 0.0
        %1363 = vmatpush1.msra.mxu0 0.0
        %1364 = vmatprep.subr.mxu0 0.0
        %1365 = vmatpush1.msra.mxu0 0.0
        %1366 = vmatprep.subr.mxu0 0.0
        %1367 = vmatpush1.msra.mxu0 0.0
        %1368 = vmatprep.subr.mxu0 0.0
        %1369 = vmatpush1.msra.mxu0 0.0
        %1370 = vmatprep.subr.mxu0 0.0
        %1371 = vmatpush1.msra.mxu0 0.0
        %1372 = vmatprep.subr.mxu0 0.0
        %1373 = vmatpush1.msra.mxu0 0.0
        %1374 = vmatprep.subr.mxu0 0.0
        %1375 = vmatpush1.msra.mxu0 0.0
        %1376 = vmatprep.subr.mxu0 0.0
        %1377 = vmatpush1.msra.mxu0 0.0
        %1378 = vmatprep.subr.mxu0 0.0
        %1379 = vmatpush1.msra.mxu0 0.0
        %1380 = vmatprep.subr.mxu0 0.0
        %1381 = vmatpush1.msra.mxu0 0.0
        %1382 = vmatprep.subr.mxu0 0.0
        %1383 = vmatpush1.msra.mxu0 0.0
        %1384 = vmatprep.subr.mxu0 0.0
        %1385 = vmatpush1.msra.mxu0 0.0
        %1386 = vmatprep.subr.mxu0 0.0
        %1387 = vmatpush1.msra.mxu0 0.0
        %1388 = vmatprep.subr.mxu0 0.0
        %1389 = vmatpush1.msra.mxu0 0.0
        %1390 = vmatprep.subr.mxu0 0.0
        %1391 = vmatpush1.msra.mxu0 0.0
        %1392 = vmatprep.subr.mxu0 0.0
        %1393 = vmatpush1.msra.mxu0 0.0
        %1394 = vmatprep.subr.mxu0 0.0
        %1395 = vmatpush1.msra.mxu0 0.0
        %1396 = vmatprep.subr.mxu0 0.0
        %1397 = vmatpush1.msra.mxu0 0.0
        %1398 = vmatprep.subr.mxu0 0.0
        %1399 = vmatpush1.msra.mxu0 0.0
        %1400 = vmatprep.subr.mxu0 0.0
        %1401 = vmatpush1.msra.mxu0 0.0
        %1402 = vmatprep.subr.mxu0 0.0
        %1403 = vmatpush1.msra.mxu0 0.0
        %1404 = vmatprep.subr.mxu0 0.0
        %1405 = vmatpush1.msra.mxu0 0.0
        %1406 = vmatprep.subr.mxu0 0.0
        %1407 = vmatpush1.msra.mxu0 0.0
        %1408 = vmatprep.mubr.f32.mxu0 0.0
        %1409 = vmatmul.mubr.f32.gmra.mrb[0].mxu0 %v1333
        %v1410 = vpop.f32.mrb[0].mxu0
        %v1411 = vadd.f32 0.0, %v1410
        %v1412 = vpop.f32.mrb[0].mxu0
        %v1413 = vadd.f32 0.0, %v1412
        %1414 = vmatprep.mubr.f32.mxu0 0.0
        %1415 = vmatmul.mubr.f32.gmra.mrb[0].mxu0 %v1336
        %v1416 = vpop.f32.mrb[0].mxu0
        %v1417 = vadd.f32 0.0, %v1416
        %v1418 = vpop.f32.mrb[0].mxu0
        %v1419 = vadd.f32 0.0, %v1418
        %1420 = vmatprep.mubr.f32.mxu0 0.0
        %1421 = vmatmul.mubr.f32.gmra.mrb[0].mxu0 %v1339
        %v1422 = vpop.f32.mrb[0].mxu0
        %v1423 = vadd.f32 0.0, %v1422
        %v1424 = vpop.f32.mrb[0].mxu0
        %v1425 = vadd.f32 0.0, %v1424
        %1426 = vmatprep.mubr.f32.mxu0 0.0
        %1427 = vmatmul.mubr.f32.gmra.mrb[0].mxu0 %v1342
        %v1428 = vpop.f32.mrb[0].mxu0
        %v1429 = vadd.f32 0.0, %v1428
        %v1430 = vpop.f32.mrb[0].mxu0
        %v1431 = vadd.f32 0.0, %v1430
        %1432 = vdwg.mxu0
        %1433 = vmatprep.subr.mxu0 0.0
        %1434 = vmatpush1.msra.mxu0 %v1328
        %1435 = vmatprep.subr.mxu0 0.0
        %1436 = vmatpush1.msra.mxu0 0.0
        %1437 = vmatprep.subr.mxu0 0.0
        %1438 = vmatpush1.msra.mxu0 0.0
        %1439 = vmatprep.subr.mxu0 0.0
        %1440 = vmatpush1.msra.mxu0 0.0
        %1441 = vmatprep.subr.mxu0 0.0
        %1442 = vmatpush1.msra.mxu0 0.0
        %1443 = vmatprep.subr.mxu0 0.0
        %1444 = vmatpush1.msra.mxu0 0.0
        %1445 = vmatprep.subr.mxu0 0.0
        %1446 = vmatpush1.msra.mxu0 0.0
        %1447 = vmatprep.subr.mxu0 0.0
        %1448 = vmatpush1.msra.mxu0 0.0
        %1449 = vmatprep.subr.mxu0 0.0
        %1450 = vmatpush1.msra.mxu0 0.0
        %1451 = vmatprep.subr.mxu0 0.0
        %1452 = vmatpush1.msra.mxu0 0.0
        %1453 = vmatprep.subr.mxu0 0.0
        %1454 = vmatpush1.msra.mxu0 0.0
        %1455 = vmatprep.subr.mxu0 0.0
        %1456 = vmatpush1.msra.mxu0 0.0
        %1457 = vmatprep.subr.mxu0 0.0
        %1458 = vmatpush1.msra.mxu0 0.0
        %1459 = vmatprep.subr.mxu0 0.0
        %1460 = vmatpush1.msra.mxu0 0.0
        %1461 = vmatprep.subr.mxu0 0.0
        %1462 = vmatpush1.msra.mxu0 0.0
        %1463 = vmatprep.subr.mxu0 0.0
        %1464 = vmatpush1.msra.mxu0 0.0
        %1465 = vmatprep.subr.mxu0 0.0
        %1466 = vmatpush1.msra.mxu0 0.0
        %1467 = vmatprep.subr.mxu0 0.0
        %1468 = vmatpush1.msra.mxu0 0.0
        %1469 = vmatprep.subr.mxu0 0.0
        %1470 = vmatpush1.msra.mxu0 0.0
        %1471 = vmatprep.subr.mxu0 0.0
        %1472 = vmatpush1.msra.mxu0 0.0
        %1473 = vmatprep.subr.mxu0 0.0
        %1474 = vmatpush1.msra.mxu0 0.0
        %1475 = vmatprep.subr.mxu0 0.0
        %1476 = vmatpush1.msra.mxu0 0.0
        %1477 = vmatprep.subr.mxu0 0.0
        %1478 = vmatpush1.msra.mxu0 0.0
        %1479 = vmatprep.subr.mxu0 0.0
        %1480 = vmatpush1.msra.mxu0 0.0
        %1481 = vmatprep.subr.mxu0 0.0
        %1482 = vmatpush1.msra.mxu0 0.0
        %1483 = vmatprep.subr.mxu0 0.0
        %1484 = vmatpush1.msra.mxu0 0.0
        %1485 = vmatprep.subr.mxu0 0.0
        %1486 = vmatpush1.msra.mxu0 0.0
        %1487 = vmatprep.subr.mxu0 0.0
        %1488 = vmatpush1.msra.mxu0 0.0
        %1489 = vmatprep.subr.mxu0 0.0
        %1490 = vmatpush1.msra.mxu0 0.0
        %1491 = vmatprep.subr.mxu0 0.0
        %1492 = vmatpush1.msra.mxu0 0.0
        %1493 = vmatprep.subr.mxu0 0.0
        %1494 = vmatpush1.msra.mxu0 0.0
        %1495 = vmatprep.subr.mxu0 0.0
        %1496 = vmatpush1.msra.mxu0 0.0
        %1497 = vmatprep.mubr.f32.mxu0 0.0
        %1498 = vmatmul.mubr.f32.gmra.mrb[0].mxu0 %v1333
        %v1499 = vpop.f32.mrb[0].mxu0
        %v1500 = vadd.f32 0.0, %v1499
        %v1501 = vpop.f32.mrb[0].mxu0
        %1502 = vmatprep.mubr.f32.mxu0 0.0
        %1503 = vmatmul.mubr.f32.gmra.mrb[0].mxu0 %v1336
        %v1504 = vpop.f32.mrb[0].mxu0
        %v1505 = vadd.f32 0.0, %v1504
        %v1506 = vpop.f32.mrb[0].mxu0
        %1507 = vmatprep.mubr.f32.mxu0 0.0
        %1508 = vmatmul.mubr.f32.gmra.mrb[0].mxu0 %v1339
        %v1509 = vpop.f32.mrb[0].mxu0
        %v1510 = vadd.f32 0.0, %v1509
        %v1511 = vpop.f32.mrb[0].mxu0
        %1512 = vmatprep.mubr.f32.mxu0 0.0
        %1513 = vmatmul.mubr.f32.gmra.mrb[0].mxu0 %v1342
        %v1514 = vpop.f32.mrb[0].mxu0
        %v1515 = vadd.f32 0.0, %v1514
        %v1516 = vpop.f32.mrb[0].mxu0
        %1517 = vdwg.mxu0
        %v1518 = vadd.f32 %v1300, %v1411
        %v1519 = vadd.f32 %v1301, %v1413
        %v1520 = vadd.f32 %v1302, %v1500
        %v1521 = vadd.f32 %v1303, %v1417
        %v1522 = vadd.f32 %v1304, %v1419
        %v1523 = vadd.f32 %v1305, %v1505
        %v1524 = vadd.f32 %v1306, %v1423
        %v1525 = vadd.f32 %v1307, %v1425
        %v1526 = vadd.f32 %v1308, %v1510
        %v1527 = vadd.f32 %v1309, %v1429
        %v1528 = vadd.f32 %v1310, %v1431
        %v1529 = vadd.f32 %v1311, %v1515
        %s1530 = scalar_lea.vmem %s1, 160
        %v1531 = vld [vmem:[%s1530] sm:$0xff]
        %v1532 = vld [vmem:[%s1530 + $0x8] sm:$0xff]
        %v1533 = vld [vmem:[%s1530 + $0x10] sm:$0xff]
        %v1534 = vld [vmem:[%s1530 + $0x18] sm:$0xff]
        %1535 = vrot.lane.b32.xlu0 %v475, 108
        %v1536 = vpop.permute.xlu0 %1535
        %1537 = vrot.lane.b32.xlu0 %v469, 108
        %v1538 = vpop.permute.xlu0 %1537
        %1539 = vrot.lane.b32.xlu0 %v470, 108
        %v1540 = vpop.permute.xlu0 %1539
        %1541 = vrot.lane.b32.xlu0 %v476, 108
        %v1542 = vpop.permute.xlu0 %1541
        %vm1543 = vcmask 883712
        %v1544 = vsel %vm1543, %v1536, %v1538
        %v1545 = vsel %vm1543, %v1538, %v1540
        %v1546 = vsel %vm1543, %v1540, %v1542
        %v1551 = vsel %vm503, %v1531, 0
        %v1554 = vsel %vm503, %v1532, 0
        %v1557 = vsel %vm503, %v1533, 0
        %v1560 = vsel %vm503, %v1534, 0
        %1562 = vmatprep.subr.mxu0 %v1545
        %1563 = vmatpush1.msra.mxu0 %v1544
        %1564 = vmatprep.subr.mxu0 0.0
        %1565 = vmatpush1.msra.mxu0 0.0
        %1566 = vmatprep.subr.mxu0 0.0
        %1567 = vmatpush1.msra.mxu0 0.0
        %1568 = vmatprep.subr.mxu0 0.0
        %1569 = vmatpush1.msra.mxu0 0.0
        %1570 = vmatprep.subr.mxu0 0.0
        %1571 = vmatpush1.msra.mxu0 0.0
        %1572 = vmatprep.subr.mxu0 0.0
        %1573 = vmatpush1.msra.mxu0 0.0
        %1574 = vmatprep.subr.mxu0 0.0
        %1575 = vmatpush1.msra.mxu0 0.0
        %1576 = vmatprep.subr.mxu0 0.0
        %1577 = vmatpush1.msra.mxu0 0.0
        %1578 = vmatprep.subr.mxu0 0.0
        %1579 = vmatpush1.msra.mxu0 0.0
        %1580 = vmatprep.subr.mxu0 0.0
        %1581 = vmatpush1.msra.mxu0 0.0
        %1582 = vmatprep.subr.mxu0 0.0
        %1583 = vmatpush1.msra.mxu0 0.0
        %1584 = vmatprep.subr.mxu0 0.0
        %1585 = vmatpush1.msra.mxu0 0.0
        %1586 = vmatprep.subr.mxu0 0.0
        %1587 = vmatpush1.msra.mxu0 0.0
        %1588 = vmatprep.subr.mxu0 0.0
        %1589 = vmatpush1.msra.mxu0 0.0
        %1590 = vmatprep.subr.mxu0 0.0
        %1591 = vmatpush1.msra.mxu0 0.0
        %1592 = vmatprep.subr.mxu0 0.0
        %1593 = vmatpush1.msra.mxu0 0.0
        %1594 = vmatprep.subr.mxu0 0.0
        %1595 = vmatpush1.msra.mxu0 0.0
        %1596 = vmatprep.subr.mxu0 0.0
        %1597 = vmatpush1.msra.mxu0 0.0
        %1598 = vmatprep.subr.mxu0 0.0
        %1599 = vmatpush1.msra.mxu0 0.0
        %1600 = vmatprep.subr.mxu0 0.0
        %1601 = vmatpush1.msra.mxu0 0.0
        %1602 = vmatprep.subr.mxu0 0.0
        %1603 = vmatpush1.msra.mxu0 0.0
        %1604 = vmatprep.subr.mxu0 0.0
        %1605 = vmatpush1.msra.mxu0 0.0
        %1606 = vmatprep.subr.mxu0 0.0
        %1607 = vmatpush1.msra.mxu0 0.0
        %1608 = vmatprep.subr.mxu0 0.0
        %1609 = vmatpush1.msra.mxu0 0.0
        %1610 = vmatprep.subr.mxu0 0.0
        %1611 = vmatpush1.msra.mxu0 0.0
        %1612 = vmatprep.subr.mxu0 0.0
        %1613 = vmatpush1.msra.mxu0 0.0
        %1614 = vmatprep.subr.mxu0 0.0
        %1615 = vmatpush1.msra.mxu0 0.0
        %1616 = vmatprep.subr.mxu0 0.0
        %1617 = vmatpush1.msra.mxu0 0.0
        %1618 = vmatprep.subr.mxu0 0.0
        %1619 = vmatpush1.msra.mxu0 0.0
        %1620 = vmatprep.subr.mxu0 0.0
        %1621 = vmatpush1.msra.mxu0 0.0
        %1622 = vmatprep.subr.mxu0 0.0
        %1623 = vmatpush1.msra.mxu0 0.0
        %1624 = vmatprep.subr.mxu0 0.0
        %1625 = vmatpush1.msra.mxu0 0.0
        %1626 = vmatprep.mubr.f32.mxu0 0.0
        %1627 = vmatmul.mubr.f32.gmra.mrb[0].mxu0 %v1551
        %v1628 = vpop.f32.mrb[0].mxu0
        %v1629 = vadd.f32 0.0, %v1628
        %v1630 = vpop.f32.mrb[0].mxu0
        %v1631 = vadd.f32 0.0, %v1630
        %1632 = vmatprep.mubr.f32.mxu0 0.0
        %1633 = vmatmul.mubr.f32.gmra.mrb[0].mxu0 %v1554
        %v1634 = vpop.f32.mrb[0].mxu0
        %v1635 = vadd.f32 0.0, %v1634
        %v1636 = vpop.f32.mrb[0].mxu0
        %v1637 = vadd.f32 0.0, %v1636
        %1638 = vmatprep.mubr.f32.mxu0 0.0
        %1639 = vmatmul.mubr.f32.gmra.mrb[0].mxu0 %v1557
        %v1640 = vpop.f32.mrb[0].mxu0
        %v1641 = vadd.f32 0.0, %v1640
        %v1642 = vpop.f32.mrb[0].mxu0
        %v1643 = vadd.f32 0.0, %v1642
        %1644 = vmatprep.mubr.f32.mxu0 0.0
        %1645 = vmatmul.mubr.f32.gmra.mrb[0].mxu0 %v1560
        %v1646 = vpop.f32.mrb[0].mxu0
        %v1647 = vadd.f32 0.0, %v1646
        %v1648 = vpop.f32.mrb[0].mxu0
        %v1649 = vadd.f32 0.0, %v1648
        %1650 = vdwg.mxu0
        %1651 = vmatprep.subr.mxu0 0.0
        %1652 = vmatpush1.msra.mxu0 %v1546
        %1653 = vmatprep.subr.mxu0 0.0
        %1654 = vmatpush1.msra.mxu0 0.0
        %1655 = vmatprep.subr.mxu0 0.0
        %1656 = vmatpush1.msra.mxu0 0.0
        %1657 = vmatprep.subr.mxu0 0.0
        %1658 = vmatpush1.msra.mxu0 0.0
        %1659 = vmatprep.subr.mxu0 0.0
        %1660 = vmatpush1.msra.mxu0 0.0
        %1661 = vmatprep.subr.mxu0 0.0
        %1662 = vmatpush1.msra.mxu0 0.0
        %1663 = vmatprep.subr.mxu0 0.0
        %1664 = vmatpush1.msra.mxu0 0.0
        %1665 = vmatprep.subr.mxu0 0.0
        %1666 = vmatpush1.msra.mxu0 0.0
        %1667 = vmatprep.subr.mxu0 0.0
        %1668 = vmatpush1.msra.mxu0 0.0
        %1669 = vmatprep.subr.mxu0 0.0
        %1670 = vmatpush1.msra.mxu0 0.0
        %1671 = vmatprep.subr.mxu0 0.0
        %1672 = vmatpush1.msra.mxu0 0.0
        %1673 = vmatprep.subr.mxu0 0.0
        %1674 = vmatpush1.msra.mxu0 0.0
        %1675 = vmatprep.subr.mxu0 0.0
        %1676 = vmatpush1.msra.mxu0 0.0
        %1677 = vmatprep.subr.mxu0 0.0
        %1678 = vmatpush1.msra.mxu0 0.0
        %1679 = vmatprep.subr.mxu0 0.0
        %1680 = vmatpush1.msra.mxu0 0.0
        %1681 = vmatprep.subr.mxu0 0.0
        %1682 = vmatpush1.msra.mxu0 0.0
        %1683 = vmatprep.subr.mxu0 0.0
        %1684 = vmatpush1.msra.mxu0 0.0
        %1685 = vmatprep.subr.mxu0 0.0
        %1686 = vmatpush1.msra.mxu0 0.0
        %1687 = vmatprep.subr.mxu0 0.0
        %1688 = vmatpush1.msra.mxu0 0.0
        %1689 = vmatprep.subr.mxu0 0.0
        %1690 = vmatpush1.msra.mxu0 0.0
        %1691 = vmatprep.subr.mxu0 0.0
        %1692 = vmatpush1.msra.mxu0 0.0
        %1693 = vmatprep.subr.mxu0 0.0
        %1694 = vmatpush1.msra.mxu0 0.0
        %1695 = vmatprep.subr.mxu0 0.0
        %1696 = vmatpush1.msra.mxu0 0.0
        %1697 = vmatprep.subr.mxu0 0.0
        %1698 = vmatpush1.msra.mxu0 0.0
        %1699 = vmatprep.subr.mxu0 0.0
        %1700 = vmatpush1.msra.mxu0 0.0
        %1701 = vmatprep.subr.mxu0 0.0
        %1702 = vmatpush1.msra.mxu0 0.0
        %1703 = vmatprep.subr.mxu0 0.0
        %1704 = vmatpush1.msra.mxu0 0.0
        %1705 = vmatprep.subr.mxu0 0.0
        %1706 = vmatpush1.msra.mxu0 0.0
        %1707 = vmatprep.subr.mxu0 0.0
        %1708 = vmatpush1.msra.mxu0 0.0
        %1709 = vmatprep.subr.mxu0 0.0
        %1710 = vmatpush1.msra.mxu0 0.0
        %1711 = vmatprep.subr.mxu0 0.0
        %1712 = vmatpush1.msra.mxu0 0.0
        %1713 = vmatprep.subr.mxu0 0.0
        %1714 = vmatpush1.msra.mxu0 0.0
        %1715 = vmatprep.mubr.f32.mxu0 0.0
        %1716 = vmatmul.mubr.f32.gmra.mrb[0].mxu0 %v1551
        %v1717 = vpop.f32.mrb[0].mxu0
        %v1718 = vadd.f32 0.0, %v1717
        %v1719 = vpop.f32.mrb[0].mxu0
        %1720 = vmatprep.mubr.f32.mxu0 0.0
        %1721 = vmatmul.mubr.f32.gmra.mrb[0].mxu0 %v1554
        %v1722 = vpop.f32.mrb[0].mxu0
        %v1723 = vadd.f32 0.0, %v1722
        %v1724 = vpop.f32.mrb[0].mxu0
        %1725 = vmatprep.mubr.f32.mxu0 0.0
        %1726 = vmatmul.mubr.f32.gmra.mrb[0].mxu0 %v1557
        %v1727 = vpop.f32.mrb[0].mxu0
        %v1728 = vadd.f32 0.0, %v1727
        %v1729 = vpop.f32.mrb[0].mxu0
        %1730 = vmatprep.mubr.f32.mxu0 0.0
        %1731 = vmatmul.mubr.f32.gmra.mrb[0].mxu0 %v1560
        %v1732 = vpop.f32.mrb[0].mxu0
        %v1733 = vadd.f32 0.0, %v1732
        %v1734 = vpop.f32.mrb[0].mxu0
        %1735 = vdwg.mxu0
        %v1736 = vadd.f32 %v1518, %v1629
        %v1737 = vadd.f32 %v1519, %v1631
        %v1738 = vadd.f32 %v1520, %v1718
        %v1739 = vadd.f32 %v1521, %v1635
        %v1740 = vadd.f32 %v1522, %v1637
        %v1741 = vadd.f32 %v1523, %v1723
        %v1742 = vadd.f32 %v1524, %v1641
        %v1743 = vadd.f32 %v1525, %v1643
        %v1744 = vadd.f32 %v1526, %v1728
        %v1745 = vadd.f32 %v1527, %v1647
        %v1746 = vadd.f32 %v1528, %v1649
        %v1747 = vadd.f32 %v1529, %v1733
        %s1748 = scalar_lea.vmem %s1, 192
        %v1749 = vld [vmem:[%s1748] sm:$0xff]
        %v1750 = vld [vmem:[%s1748 + $0x8] sm:$0xff]
        %v1751 = vld [vmem:[%s1748 + $0x10] sm:$0xff]
        %v1752 = vld [vmem:[%s1748 + $0x18] sm:$0xff]
        %1753 = vrot.lane.b32.xlu0 %v475, 92
        %v1754 = vpop.permute.xlu0 %1753
        %1755 = vrot.lane.b32.xlu0 %v469, 92
        %v1756 = vpop.permute.xlu0 %1755
        %1757 = vrot.lane.b32.xlu0 %v470, 92
        %v1758 = vpop.permute.xlu0 %1757
        %1759 = vrot.lane.b32.xlu0 %v476, 92
        %v1760 = vpop.permute.xlu0 %1759
        %vm1761 = vcmask 752640
        %v1762 = vsel %vm1761, %v1754, %v1756
        %v1763 = vsel %vm1761, %v1756, %v1758
        %v1764 = vsel %vm1761, %v1758, %v1760
        %v1769 = vsel %vm503, %v1749, 0
        %v1772 = vsel %vm503, %v1750, 0
        %v1775 = vsel %vm503, %v1751, 0
        %v1778 = vsel %vm503, %v1752, 0
        %1780 = vmatprep.subr.mxu0 %v1763
        %1781 = vmatpush1.msra.mxu0 %v1762
        %1782 = vmatprep.subr.mxu0 0.0
        %1783 = vmatpush1.msra.mxu0 0.0
        %1784 = vmatprep.subr.mxu0 0.0
        %1785 = vmatpush1.msra.mxu0 0.0
        %1786 = vmatprep.subr.mxu0 0.0
        %1787 = vmatpush1.msra.mxu0 0.0
        %1788 = vmatprep.subr.mxu0 0.0
        %1789 = vmatpush1.msra.mxu0 0.0
        %1790 = vmatprep.subr.mxu0 0.0
        %1791 = vmatpush1.msra.mxu0 0.0
        %1792 = vmatprep.subr.mxu0 0.0
        %1793 = vmatpush1.msra.mxu0 0.0
        %1794 = vmatprep.subr.mxu0 0.0
        %1795 = vmatpush1.msra.mxu0 0.0
        %1796 = vmatprep.subr.mxu0 0.0
        %1797 = vmatpush1.msra.mxu0 0.0
        %1798 = vmatprep.subr.mxu0 0.0
        %1799 = vmatpush1.msra.mxu0 0.0
        %1800 = vmatprep.subr.mxu0 0.0
        %1801 = vmatpush1.msra.mxu0 0.0
        %1802 = vmatprep.subr.mxu0 0.0
        %1803 = vmatpush1.msra.mxu0 0.0
        %1804 = vmatprep.subr.mxu0 0.0
        %1805 = vmatpush1.msra.mxu0 0.0
        %1806 = vmatprep.subr.mxu0 0.0
        %1807 = vmatpush1.msra.mxu0 0.0
        %1808 = vmatprep.subr.mxu0 0.0
        %1809 = vmatpush1.msra.mxu0 0.0
        %1810 = vmatprep.subr.mxu0 0.0
        %1811 = vmatpush1.msra.mxu0 0.0
        %1812 = vmatprep.subr.mxu0 0.0
        %1813 = vmatpush1.msra.mxu0 0.0
        %1814 = vmatprep.subr.mxu0 0.0
        %1815 = vmatpush1.msra.mxu0 0.0
        %1816 = vmatprep.subr.mxu0 0.0
        %1817 = vmatpush1.msra.mxu0 0.0
        %1818 = vmatprep.subr.mxu0 0.0
        %1819 = vmatpush1.msra.mxu0 0.0
        %1820 = vmatprep.subr.mxu0 0.0
        %1821 = vmatpush1.msra.mxu0 0.0
        %1822 = vmatprep.subr.mxu0 0.0
        %1823 = vmatpush1.msra.mxu0 0.0
        %1824 = vmatprep.subr.mxu0 0.0
        %1825 = vmatpush1.msra.mxu0 0.0
        %1826 = vmatprep.subr.mxu0 0.0
        %1827 = vmatpush1.msra.mxu0 0.0
        %1828 = vmatprep.subr.mxu0 0.0
        %1829 = vmatpush1.msra.mxu0 0.0
        %1830 = vmatprep.subr.mxu0 0.0
        %1831 = vmatpush1.msra.mxu0 0.0
        %1832 = vmatprep.subr.mxu0 0.0
        %1833 = vmatpush1.msra.mxu0 0.0
        %1834 = vmatprep.subr.mxu0 0.0
        %1835 = vmatpush1.msra.mxu0 0.0
        %1836 = vmatprep.subr.mxu0 0.0
        %1837 = vmatpush1.msra.mxu0 0.0
        %1838 = vmatprep.subr.mxu0 0.0
        %1839 = vmatpush1.msra.mxu0 0.0
        %1840 = vmatprep.subr.mxu0 0.0
        %1841 = vmatpush1.msra.mxu0 0.0
        %1842 = vmatprep.subr.mxu0 0.0
        %1843 = vmatpush1.msra.mxu0 0.0
        %1844 = vmatprep.mubr.f32.mxu0 0.0
        %1845 = vmatmul.mubr.f32.gmra.mrb[0].mxu0 %v1769
        %v1846 = vpop.f32.mrb[0].mxu0
        %v1847 = vadd.f32 0.0, %v1846
        %v1848 = vpop.f32.mrb[0].mxu0
        %v1849 = vadd.f32 0.0, %v1848
        %1850 = vmatprep.mubr.f32.mxu0 0.0
        %1851 = vmatmul.mubr.f32.gmra.mrb[0].mxu0 %v1772
        %v1852 = vpop.f32.mrb[0].mxu0
        %v1853 = vadd.f32 0.0, %v1852
        %v1854 = vpop.f32.mrb[0].mxu0
        %v1855 = vadd.f32 0.0, %v1854
        %1856 = vmatprep.mubr.f32.mxu0 0.0
        %1857 = vmatmul.mubr.f32.gmra.mrb[0].mxu0 %v1775
        %v1858 = vpop.f32.mrb[0].mxu0
        %v1859 = vadd.f32 0.0, %v1858
        %v1860 = vpop.f32.mrb[0].mxu0
        %v1861 = vadd.f32 0.0, %v1860
        %1862 = vmatprep.mubr.f32.mxu0 0.0
        %1863 = vmatmul.mubr.f32.gmra.mrb[0].mxu0 %v1778
        %v1864 = vpop.f32.mrb[0].mxu0
        %v1865 = vadd.f32 0.0, %v1864
        %v1866 = vpop.f32.mrb[0].mxu0
        %v1867 = vadd.f32 0.0, %v1866
        %1868 = vdwg.mxu0
        %1869 = vmatprep.subr.mxu0 0.0
        %1870 = vmatpush1.msra.mxu0 %v1764
        %1871 = vmatprep.subr.mxu0 0.0
        %1872 = vmatpush1.msra.mxu0 0.0
        %1873 = vmatprep.subr.mxu0 0.0
        %1874 = vmatpush1.msra.mxu0 0.0
        %1875 = vmatprep.subr.mxu0 0.0
        %1876 = vmatpush1.msra.mxu0 0.0
        %1877 = vmatprep.subr.mxu0 0.0
        %1878 = vmatpush1.msra.mxu0 0.0
        %1879 = vmatprep.subr.mxu0 0.0
        %1880 = vmatpush1.msra.mxu0 0.0
        %1881 = vmatprep.subr.mxu0 0.0
        %1882 = vmatpush1.msra.mxu0 0.0
        %1883 = vmatprep.subr.mxu0 0.0
        %1884 = vmatpush1.msra.mxu0 0.0
        %1885 = vmatprep.subr.mxu0 0.0
        %1886 = vmatpush1.msra.mxu0 0.0
        %1887 = vmatprep.subr.mxu0 0.0
        %1888 = vmatpush1.msra.mxu0 0.0
        %1889 = vmatprep.subr.mxu0 0.0
        %1890 = vmatpush1.msra.mxu0 0.0
        %1891 = vmatprep.subr.mxu0 0.0
        %1892 = vmatpush1.msra.mxu0 0.0
        %1893 = vmatprep.subr.mxu0 0.0
        %1894 = vmatpush1.msra.mxu0 0.0
        %1895 = vmatprep.subr.mxu0 0.0
        %1896 = vmatpush1.msra.mxu0 0.0
        %1897 = vmatprep.subr.mxu0 0.0
        %1898 = vmatpush1.msra.mxu0 0.0
        %1899 = vmatprep.subr.mxu0 0.0
        %1900 = vmatpush1.msra.mxu0 0.0
        %1901 = vmatprep.subr.mxu0 0.0
        %1902 = vmatpush1.msra.mxu0 0.0
        %1903 = vmatprep.subr.mxu0 0.0
        %1904 = vmatpush1.msra.mxu0 0.0
        %1905 = vmatprep.subr.mxu0 0.0
        %1906 = vmatpush1.msra.mxu0 0.0
        %1907 = vmatprep.subr.mxu0 0.0
        %1908 = vmatpush1.msra.mxu0 0.0
        %1909 = vmatprep.subr.mxu0 0.0
        %1910 = vmatpush1.msra.mxu0 0.0
        %1911 = vmatprep.subr.mxu0 0.0
        %1912 = vmatpush1.msra.mxu0 0.0
        %1913 = vmatprep.subr.mxu0 0.0
        %1914 = vmatpush1.msra.mxu0 0.0
        %1915 = vmatprep.subr.mxu0 0.0
        %1916 = vmatpush1.msra.mxu0 0.0
        %1917 = vmatprep.subr.mxu0 0.0
        %1918 = vmatpush1.msra.mxu0 0.0
        %1919 = vmatprep.subr.mxu0 0.0
        %1920 = vmatpush1.msra.mxu0 0.0
        %1921 = vmatprep.subr.mxu0 0.0
        %1922 = vmatpush1.msra.mxu0 0.0
        %1923 = vmatprep.subr.mxu0 0.0
        %1924 = vmatpush1.msra.mxu0 0.0
        %1925 = vmatprep.subr.mxu0 0.0
        %1926 = vmatpush1.msra.mxu0 0.0
        %1927 = vmatprep.subr.mxu0 0.0
        %1928 = vmatpush1.msra.mxu0 0.0
        %1929 = vmatprep.subr.mxu0 0.0
        %1930 = vmatpush1.msra.mxu0 0.0
        %1931 = vmatprep.subr.mxu0 0.0
        %1932 = vmatpush1.msra.mxu0 0.0
        %1933 = vmatprep.mubr.f32.mxu0 0.0
        %1934 = vmatmul.mubr.f32.gmra.mrb[0].mxu0 %v1769
        %v1935 = vpop.f32.mrb[0].mxu0
        %v1936 = vadd.f32 0.0, %v1935
        %v1937 = vpop.f32.mrb[0].mxu0
        %1938 = vmatprep.mubr.f32.mxu0 0.0
        %1939 = vmatmul.mubr.f32.gmra.mrb[0].mxu0 %v1772
        %v1940 = vpop.f32.mrb[0].mxu0
        %v1941 = vadd.f32 0.0, %v1940
        %v1942 = vpop.f32.mrb[0].mxu0
        %1943 = vmatprep.mubr.f32.mxu0 0.0
        %1944 = vmatmul.mubr.f32.gmra.mrb[0].mxu0 %v1775
        %v1945 = vpop.f32.mrb[0].mxu0
        %v1946 = vadd.f32 0.0, %v1945
        %v1947 = vpop.f32.mrb[0].mxu0
        %1948 = vmatprep.mubr.f32.mxu0 0.0
        %1949 = vmatmul.mubr.f32.gmra.mrb[0].mxu0 %v1778
        %v1950 = vpop.f32.mrb[0].mxu0
        %v1951 = vadd.f32 0.0, %v1950
        %v1952 = vpop.f32.mrb[0].mxu0
        %1953 = vdwg.mxu0
        %v1954 = vadd.f32 %v1736, %v1847
        %v1955 = vadd.f32 %v1737, %v1849
        %v1956 = vadd.f32 %v1738, %v1936
        %v1957 = vadd.f32 %v1739, %v1853
        %v1958 = vadd.f32 %v1740, %v1855
        %v1959 = vadd.f32 %v1741, %v1941
        %v1960 = vadd.f32 %v1742, %v1859
        %v1961 = vadd.f32 %v1743, %v1861
        %v1962 = vadd.f32 %v1744, %v1946
        %v1963 = vadd.f32 %v1745, %v1865
        %v1964 = vadd.f32 %v1746, %v1867
        %v1965 = vadd.f32 %v1747, %v1951
        %s1966 = scalar_lea.vmem %s1, 224
        %v1967 = vld [vmem:[%s1966] sm:$0xff]
        %v1968 = vld [vmem:[%s1966 + $0x8] sm:$0xff]
        %v1969 = vld [vmem:[%s1966 + $0x10] sm:$0xff]
        %v1970 = vld [vmem:[%s1966 + $0x18] sm:$0xff]
        %1971 = vrot.lane.b32.xlu0 %v475, 91
        %v1972 = vpop.permute.xlu0 %1971
        %1973 = vrot.lane.b32.xlu0 %v469, 91
        %v1974 = vpop.permute.xlu0 %1973
        %1975 = vrot.lane.b32.xlu0 %v470, 91
        %v1976 = vpop.permute.xlu0 %1975
        %1977 = vrot.lane.b32.xlu0 %v476, 91
        %v1978 = vpop.permute.xlu0 %1977
        %vm1979 = vcmask 744448
        %v1980 = vsel %vm1979, %v1972, %v1974
        %v1981 = vsel %vm1979, %v1974, %v1976
        %v1982 = vsel %vm1979, %v1976, %v1978
        %v1987 = vsel %vm503, %v1967, 0
        %v1990 = vsel %vm503, %v1968, 0
        %v1993 = vsel %vm503, %v1969, 0
        %v1996 = vsel %vm503, %v1970, 0
        %1998 = vmatprep.subr.mxu0 %v1981
        %1999 = vmatpush1.msra.mxu0 %v1980
        %2000 = vmatprep.subr.mxu0 0.0
        %2001 = vmatpush1.msra.mxu0 0.0
        %2002 = vmatprep.subr.mxu0 0.0
        %2003 = vmatpush1.msra.mxu0 0.0
        %2004 = vmatprep.subr.mxu0 0.0
        %2005 = vmatpush1.msra.mxu0 0.0
        %2006 = vmatprep.subr.mxu0 0.0
        %2007 = vmatpush1.msra.mxu0 0.0
        %2008 = vmatprep.subr.mxu0 0.0
        %2009 = vmatpush1.msra.mxu0 0.0
        %2010 = vmatprep.subr.mxu0 0.0
        %2011 = vmatpush1.msra.mxu0 0.0
        %2012 = vmatprep.subr.mxu0 0.0
        %2013 = vmatpush1.msra.mxu0 0.0
        %2014 = vmatprep.subr.mxu0 0.0
        %2015 = vmatpush1.msra.mxu0 0.0
        %2016 = vmatprep.subr.mxu0 0.0
        %2017 = vmatpush1.msra.mxu0 0.0
        %2018 = vmatprep.subr.mxu0 0.0
        %2019 = vmatpush1.msra.mxu0 0.0
        %2020 = vmatprep.subr.mxu0 0.0
        %2021 = vmatpush1.msra.mxu0 0.0
        %2022 = vmatprep.subr.mxu0 0.0
        %2023 = vmatpush1.msra.mxu0 0.0
        %2024 = vmatprep.subr.mxu0 0.0
        %2025 = vmatpush1.msra.mxu0 0.0
        %2026 = vmatprep.subr.mxu0 0.0
        %2027 = vmatpush1.msra.mxu0 0.0
        %2028 = vmatprep.subr.mxu0 0.0
        %2029 = vmatpush1.msra.mxu0 0.0
        %2030 = vmatprep.subr.mxu0 0.0
        %2031 = vmatpush1.msra.mxu0 0.0
        %2032 = vmatprep.subr.mxu0 0.0
        %2033 = vmatpush1.msra.mxu0 0.0
        %2034 = vmatprep.subr.mxu0 0.0
        %2035 = vmatpush1.msra.mxu0 0.0
        %2036 = vmatprep.subr.mxu0 0.0
        %2037 = vmatpush1.msra.mxu0 0.0
        %2038 = vmatprep.subr.mxu0 0.0
        %2039 = vmatpush1.msra.mxu0 0.0
        %2040 = vmatprep.subr.mxu0 0.0
        %2041 = vmatpush1.msra.mxu0 0.0
        %2042 = vmatprep.subr.mxu0 0.0
        %2043 = vmatpush1.msra.mxu0 0.0
        %2044 = vmatprep.subr.mxu0 0.0
        %2045 = vmatpush1.msra.mxu0 0.0
        %2046 = vmatprep.subr.mxu0 0.0
        %2047 = vmatpush1.msra.mxu0 0.0
        %2048 = vmatprep.subr.mxu0 0.0
        %2049 = vmatpush1.msra.mxu0 0.0
        %2050 = vmatprep.subr.mxu0 0.0
        %2051 = vmatpush1.msra.mxu0 0.0
        %2052 = vmatprep.subr.mxu0 0.0
        %2053 = vmatpush1.msra.mxu0 0.0
        %2054 = vmatprep.subr.mxu0 0.0
        %2055 = vmatpush1.msra.mxu0 0.0
        %2056 = vmatprep.subr.mxu0 0.0
        %2057 = vmatpush1.msra.mxu0 0.0
        %2058 = vmatprep.subr.mxu0 0.0
        %2059 = vmatpush1.msra.mxu0 0.0
        %2060 = vmatprep.subr.mxu0 0.0
        %2061 = vmatpush1.msra.mxu0 0.0
        %2062 = vmatprep.mubr.f32.mxu0 0.0
        %2063 = vmatmul.mubr.f32.gmra.mrb[0].mxu0 %v1987
        %v2064 = vpop.f32.mrb[0].mxu0
        %v2065 = vadd.f32 0.0, %v2064
        %v2066 = vpop.f32.mrb[0].mxu0
        %v2067 = vadd.f32 0.0, %v2066
        %2068 = vmatprep.mubr.f32.mxu0 0.0
        %2069 = vmatmul.mubr.f32.gmra.mrb[0].mxu0 %v1990
        %v2070 = vpop.f32.mrb[0].mxu0
        %v2071 = vadd.f32 0.0, %v2070
        %v2072 = vpop.f32.mrb[0].mxu0
        %v2073 = vadd.f32 0.0, %v2072
        %2074 = vmatprep.mubr.f32.mxu0 0.0
        %2075 = vmatmul.mubr.f32.gmra.mrb[0].mxu0 %v1993
        %v2076 = vpop.f32.mrb[0].mxu0
        %v2077 = vadd.f32 0.0, %v2076
        %v2078 = vpop.f32.mrb[0].mxu0
        %v2079 = vadd.f32 0.0, %v2078
        %2080 = vmatprep.mubr.f32.mxu0 0.0
        %2081 = vmatmul.mubr.f32.gmra.mrb[0].mxu0 %v1996
        %v2082 = vpop.f32.mrb[0].mxu0
        %v2083 = vadd.f32 0.0, %v2082
        %v2084 = vpop.f32.mrb[0].mxu0
        %v2085 = vadd.f32 0.0, %v2084
        %2086 = vdwg.mxu0
        %2087 = vmatprep.subr.mxu0 0.0
        %2088 = vmatpush1.msra.mxu0 %v1982
        %2089 = vmatprep.subr.mxu0 0.0
        %2090 = vmatpush1.msra.mxu0 0.0
        %2091 = vmatprep.subr.mxu0 0.0
        %2092 = vmatpush1.msra.mxu0 0.0
        %2093 = vmatprep.subr.mxu0 0.0
        %2094 = vmatpush1.msra.mxu0 0.0
        %2095 = vmatprep.subr.mxu0 0.0
        %2096 = vmatpush1.msra.mxu0 0.0
        %2097 = vmatprep.subr.mxu0 0.0
        %2098 = vmatpush1.msra.mxu0 0.0
        %2099 = vmatprep.subr.mxu0 0.0
        %2100 = vmatpush1.msra.mxu0 0.0
        %2101 = vmatprep.subr.mxu0 0.0
        %2102 = vmatpush1.msra.mxu0 0.0
        %2103 = vmatprep.subr.mxu0 0.0
        %2104 = vmatpush1.msra.mxu0 0.0
        %2105 = vmatprep.subr.mxu0 0.0
        %2106 = vmatpush1.msra.mxu0 0.0
        %2107 = vmatprep.subr.mxu0 0.0
        %2108 = vmatpush1.msra.mxu0 0.0
        %2109 = vmatprep.subr.mxu0 0.0
        %2110 = vmatpush1.msra.mxu0 0.0
        %2111 = vmatprep.subr.mxu0 0.0
        %2112 = vmatpush1.msra.mxu0 0.0
        %2113 = vmatprep.subr.mxu0 0.0
        %2114 = vmatpush1.msra.mxu0 0.0
        %2115 = vmatprep.subr.mxu0 0.0
        %2116 = vmatpush1.msra.mxu0 0.0
        %2117 = vmatprep.subr.mxu0 0.0
        %2118 = vmatpush1.msra.mxu0 0.0
        %2119 = vmatprep.subr.mxu0 0.0
        %2120 = vmatpush1.msra.mxu0 0.0
        %2121 = vmatprep.subr.mxu0 0.0
        %2122 = vmatpush1.msra.mxu0 0.0
        %2123 = vmatprep.subr.mxu0 0.0
        %2124 = vmatpush1.msra.mxu0 0.0
        %2125 = vmatprep.subr.mxu0 0.0
        %2126 = vmatpush1.msra.mxu0 0.0
        %2127 = vmatprep.subr.mxu0 0.0
        %2128 = vmatpush1.msra.mxu0 0.0
        %2129 = vmatprep.subr.mxu0 0.0
        %2130 = vmatpush1.msra.mxu0 0.0
        %2131 = vmatprep.subr.mxu0 0.0
        %2132 = vmatpush1.msra.mxu0 0.0
        %2133 = vmatprep.subr.mxu0 0.0
        %2134 = vmatpush1.msra.mxu0 0.0
        %2135 = vmatprep.subr.mxu0 0.0
        %2136 = vmatpush1.msra.mxu0 0.0
        %2137 = vmatprep.subr.mxu0 0.0
        %2138 = vmatpush1.msra.mxu0 0.0
        %2139 = vmatprep.subr.mxu0 0.0
        %2140 = vmatpush1.msra.mxu0 0.0
        %2141 = vmatprep.subr.mxu0 0.0
        %2142 = vmatpush1.msra.mxu0 0.0
        %2143 = vmatprep.subr.mxu0 0.0
        %2144 = vmatpush1.msra.mxu0 0.0
        %2145 = vmatprep.subr.mxu0 0.0
        %2146 = vmatpush1.msra.mxu0 0.0
        %2147 = vmatprep.subr.mxu0 0.0
        %2148 = vmatpush1.msra.mxu0 0.0
        %2149 = vmatprep.subr.mxu0 0.0
        %2150 = vmatpush1.msra.mxu0 0.0
        %2151 = vmatprep.mubr.f32.mxu0 0.0
        %2152 = vmatmul.mubr.f32.gmra.mrb[0].mxu0 %v1987
        %v2153 = vpop.f32.mrb[0].mxu0
        %v2154 = vadd.f32 0.0, %v2153
        %v2155 = vpop.f32.mrb[0].mxu0
        %2156 = vmatprep.mubr.f32.mxu0 0.0
        %2157 = vmatmul.mubr.f32.gmra.mrb[0].mxu0 %v1990
        %v2158 = vpop.f32.mrb[0].mxu0
        %v2159 = vadd.f32 0.0, %v2158
        %v2160 = vpop.f32.mrb[0].mxu0
        %2161 = vmatprep.mubr.f32.mxu0 0.0
        %2162 = vmatmul.mubr.f32.gmra.mrb[0].mxu0 %v1993
        %v2163 = vpop.f32.mrb[0].mxu0
        %v2164 = vadd.f32 0.0, %v2163
        %v2165 = vpop.f32.mrb[0].mxu0
        %2166 = vmatprep.mubr.f32.mxu0 0.0
        %2167 = vmatmul.mubr.f32.gmra.mrb[0].mxu0 %v1996
        %v2168 = vpop.f32.mrb[0].mxu0
        %v2169 = vadd.f32 0.0, %v2168
        %v2170 = vpop.f32.mrb[0].mxu0
        %2171 = vdwg.mxu0
        %v2172 = vadd.f32 %v1954, %v2065
        %v2173 = vadd.f32 %v1955, %v2067
        %v2174 = vadd.f32 %v1956, %v2154
        %v2175 = vadd.f32 %v1957, %v2071
        %v2176 = vadd.f32 %v1958, %v2073
        %v2177 = vadd.f32 %v1959, %v2159
        %v2178 = vadd.f32 %v1960, %v2077
        %v2179 = vadd.f32 %v1961, %v2079
        %v2180 = vadd.f32 %v1962, %v2164
        %v2181 = vadd.f32 %v1963, %v2083
        %v2182 = vadd.f32 %v1964, %v2085
        %v2183 = vadd.f32 %v1965, %v2169
        %s2184 = scalar_lea.vmem %s1, 256
        %v2185 = vld [vmem:[%s2184] sm:$0xff]
        %v2186 = vld [vmem:[%s2184 + $0x8] sm:$0xff]
        %v2187 = vld [vmem:[%s2184 + $0x10] sm:$0xff]
        %v2188 = vld [vmem:[%s2184 + $0x18] sm:$0xff]
        %2189 = vrot.lane.b32.xlu0 %v475, 90
        %v2190 = vpop.permute.xlu0 %2189
        %2191 = vrot.lane.b32.xlu0 %v469, 90
        %v2192 = vpop.permute.xlu0 %2191
        %2193 = vrot.lane.b32.xlu0 %v470, 90
        %v2194 = vpop.permute.xlu0 %2193
        %2195 = vrot.lane.b32.xlu0 %v476, 90
        %v2196 = vpop.permute.xlu0 %2195
        %vm2197 = vcmask 736256
        %v2198 = vsel %vm2197, %v2190, %v2192
        %v2199 = vsel %vm2197, %v2192, %v2194
        %v2200 = vsel %vm2197, %v2194, %v2196
        %v2205 = vsel %vm503, %v2185, 0
        %v2208 = vsel %vm503, %v2186, 0
        %v2211 = vsel %vm503, %v2187, 0
        %v2214 = vsel %vm503, %v2188, 0
        %2216 = vmatprep.subr.mxu0 %v2199
        %2217 = vmatpush1.msra.mxu0 %v2198
        %2218 = vmatprep.subr.mxu0 0.0
        %2219 = vmatpush1.msra.mxu0 0.0
        %2220 = vmatprep.subr.mxu0 0.0
        %2221 = vmatpush1.msra.mxu0 0.0
        %2222 = vmatprep.subr.mxu0 0.0
        %2223 = vmatpush1.msra.mxu0 0.0
        %2224 = vmatprep.subr.mxu0 0.0
        %2225 = vmatpush1.msra.mxu0 0.0
        %2226 = vmatprep.subr.mxu0 0.0
        %2227 = vmatpush1.msra.mxu0 0.0
        %2228 = vmatprep.subr.mxu0 0.0
        %2229 = vmatpush1.msra.mxu0 0.0
        %2230 = vmatprep.subr.mxu0 0.0
        %2231 = vmatpush1.msra.mxu0 0.0
        %2232 = vmatprep.subr.mxu0 0.0
        %2233 = vmatpush1.msra.mxu0 0.0
        %2234 = vmatprep.subr.mxu0 0.0
        %2235 = vmatpush1.msra.mxu0 0.0
        %2236 = vmatprep.subr.mxu0 0.0
        %2237 = vmatpush1.msra.mxu0 0.0
        %2238 = vmatprep.subr.mxu0 0.0
        %2239 = vmatpush1.msra.mxu0 0.0
        %2240 = vmatprep.subr.mxu0 0.0
        %2241 = vmatpush1.msra.mxu0 0.0
        %2242 = vmatprep.subr.mxu0 0.0
        %2243 = vmatpush1.msra.mxu0 0.0
        %2244 = vmatprep.subr.mxu0 0.0
        %2245 = vmatpush1.msra.mxu0 0.0
        %2246 = vmatprep.subr.mxu0 0.0
        %2247 = vmatpush1.msra.mxu0 0.0
        %2248 = vmatprep.subr.mxu0 0.0
        %2249 = vmatpush1.msra.mxu0 0.0
        %2250 = vmatprep.subr.mxu0 0.0
        %2251 = vmatpush1.msra.mxu0 0.0
        %2252 = vmatprep.subr.mxu0 0.0
        %2253 = vmatpush1.msra.mxu0 0.0
        %2254 = vmatprep.subr.mxu0 0.0
        %2255 = vmatpush1.msra.mxu0 0.0
        %2256 = vmatprep.subr.mxu0 0.0
        %2257 = vmatpush1.msra.mxu0 0.0
        %2258 = vmatprep.subr.mxu0 0.0
        %2259 = vmatpush1.msra.mxu0 0.0
        %2260 = vmatprep.subr.mxu0 0.0
        %2261 = vmatpush1.msra.mxu0 0.0
        %2262 = vmatprep.subr.mxu0 0.0
        %2263 = vmatpush1.msra.mxu0 0.0
        %2264 = vmatprep.subr.mxu0 0.0
        %2265 = vmatpush1.msra.mxu0 0.0
        %2266 = vmatprep.subr.mxu0 0.0
        %2267 = vmatpush1.msra.mxu0 0.0
        %2268 = vmatprep.subr.mxu0 0.0
        %2269 = vmatpush1.msra.mxu0 0.0
        %2270 = vmatprep.subr.mxu0 0.0
        %2271 = vmatpush1.msra.mxu0 0.0
        %2272 = vmatprep.subr.mxu0 0.0
        %2273 = vmatpush1.msra.mxu0 0.0
        %2274 = vmatprep.subr.mxu0 0.0
        %2275 = vmatpush1.msra.mxu0 0.0
        %2276 = vmatprep.subr.mxu0 0.0
        %2277 = vmatpush1.msra.mxu0 0.0
        %2278 = vmatprep.subr.mxu0 0.0
        %2279 = vmatpush1.msra.mxu0 0.0
        %2280 = vmatprep.mubr.f32.mxu0 0.0
        %2281 = vmatmul.mubr.f32.gmra.mrb[0].mxu0 %v2205
        %v2282 = vpop.f32.mrb[0].mxu0
        %v2283 = vadd.f32 0.0, %v2282
        %v2284 = vpop.f32.mrb[0].mxu0
        %v2285 = vadd.f32 0.0, %v2284
        %2286 = vmatprep.mubr.f32.mxu0 0.0
        %2287 = vmatmul.mubr.f32.gmra.mrb[0].mxu0 %v2208
        %v2288 = vpop.f32.mrb[0].mxu0
        %v2289 = vadd.f32 0.0, %v2288
        %v2290 = vpop.f32.mrb[0].mxu0
        %v2291 = vadd.f32 0.0, %v2290
        %2292 = vmatprep.mubr.f32.mxu0 0.0
        %2293 = vmatmul.mubr.f32.gmra.mrb[0].mxu0 %v2211
        %v2294 = vpop.f32.mrb[0].mxu0
        %v2295 = vadd.f32 0.0, %v2294
        %v2296 = vpop.f32.mrb[0].mxu0
        %v2297 = vadd.f32 0.0, %v2296
        %2298 = vmatprep.mubr.f32.mxu0 0.0
        %2299 = vmatmul.mubr.f32.gmra.mrb[0].mxu0 %v2214
        %v2300 = vpop.f32.mrb[0].mxu0
        %v2301 = vadd.f32 0.0, %v2300
        %v2302 = vpop.f32.mrb[0].mxu0
        %v2303 = vadd.f32 0.0, %v2302
        %2304 = vdwg.mxu0
        %2305 = vmatprep.subr.mxu0 0.0
        %2306 = vmatpush1.msra.mxu0 %v2200
        %2307 = vmatprep.subr.mxu0 0.0
        %2308 = vmatpush1.msra.mxu0 0.0
        %2309 = vmatprep.subr.mxu0 0.0
        %2310 = vmatpush1.msra.mxu0 0.0
        %2311 = vmatprep.subr.mxu0 0.0
        %2312 = vmatpush1.msra.mxu0 0.0
        %2313 = vmatprep.subr.mxu0 0.0
        %2314 = vmatpush1.msra.mxu0 0.0
        %2315 = vmatprep.subr.mxu0 0.0
        %2316 = vmatpush1.msra.mxu0 0.0
        %2317 = vmatprep.subr.mxu0 0.0
        %2318 = vmatpush1.msra.mxu0 0.0
        %2319 = vmatprep.subr.mxu0 0.0
        %2320 = vmatpush1.msra.mxu0 0.0
        %2321 = vmatprep.subr.mxu0 0.0
        %2322 = vmatpush1.msra.mxu0 0.0
        %2323 = vmatprep.subr.mxu0 0.0
        %2324 = vmatpush1.msra.mxu0 0.0
        %2325 = vmatprep.subr.mxu0 0.0
        %2326 = vmatpush1.msra.mxu0 0.0
        %2327 = vmatprep.subr.mxu0 0.0
        %2328 = vmatpush1.msra.mxu0 0.0
        %2329 = vmatprep.subr.mxu0 0.0
        %2330 = vmatpush1.msra.mxu0 0.0
        %2331 = vmatprep.subr.mxu0 0.0
        %2332 = vmatpush1.msra.mxu0 0.0
        %2333 = vmatprep.subr.mxu0 0.0
        %2334 = vmatpush1.msra.mxu0 0.0
        %2335 = vmatprep.subr.mxu0 0.0
        %2336 = vmatpush1.msra.mxu0 0.0
        %2337 = vmatprep.subr.mxu0 0.0
        %2338 = vmatpush1.msra.mxu0 0.0
        %2339 = vmatprep.subr.mxu0 0.0
        %2340 = vmatpush1.msra.mxu0 0.0
        %2341 = vmatprep.subr.mxu0 0.0
        %2342 = vmatpush1.msra.mxu0 0.0
        %2343 = vmatprep.subr.mxu0 0.0
        %2344 = vmatpush1.msra.mxu0 0.0
        %2345 = vmatprep.subr.mxu0 0.0
        %2346 = vmatpush1.msra.mxu0 0.0
        %2347 = vmatprep.subr.mxu0 0.0
        %2348 = vmatpush1.msra.mxu0 0.0
        %2349 = vmatprep.subr.mxu0 0.0
        %2350 = vmatpush1.msra.mxu0 0.0
        %2351 = vmatprep.subr.mxu0 0.0
        %2352 = vmatpush1.msra.mxu0 0.0
        %2353 = vmatprep.subr.mxu0 0.0
        %2354 = vmatpush1.msra.mxu0 0.0
        %2355 = vmatprep.subr.mxu0 0.0
        %2356 = vmatpush1.msra.mxu0 0.0
        %2357 = vmatprep.subr.mxu0 0.0
        %2358 = vmatpush1.msra.mxu0 0.0
        %2359 = vmatprep.subr.mxu0 0.0
        %2360 = vmatpush1.msra.mxu0 0.0
        %2361 = vmatprep.subr.mxu0 0.0
        %2362 = vmatpush1.msra.mxu0 0.0
        %2363 = vmatprep.subr.mxu0 0.0
        %2364 = vmatpush1.msra.mxu0 0.0
        %2365 = vmatprep.subr.mxu0 0.0
        %2366 = vmatpush1.msra.mxu0 0.0
        %2367 = vmatprep.subr.mxu0 0.0
        %2368 = vmatpush1.msra.mxu0 0.0
        %2369 = vmatprep.mubr.f32.mxu0 0.0
        %2370 = vmatmul.mubr.f32.gmra.mrb[0].mxu0 %v2205
        %v2371 = vpop.f32.mrb[0].mxu0
        %v2372 = vadd.f32 0.0, %v2371
        %v2373 = vpop.f32.mrb[0].mxu0
        %2374 = vmatprep.mubr.f32.mxu0 0.0
        %2375 = vmatmul.mubr.f32.gmra.mrb[0].mxu0 %v2208
        %v2376 = vpop.f32.mrb[0].mxu0
        %v2377 = vadd.f32 0.0, %v2376
        %v2378 = vpop.f32.mrb[0].mxu0
        %2379 = vmatprep.mubr.f32.mxu0 0.0
        %2380 = vmatmul.mubr.f32.gmra.mrb[0].mxu0 %v2211
        %v2381 = vpop.f32.mrb[0].mxu0
        %v2382 = vadd.f32 0.0, %v2381
        %v2383 = vpop.f32.mrb[0].mxu0
        %2384 = vmatprep.mubr.f32.mxu0 0.0
        %2385 = vmatmul.mubr.f32.gmra.mrb[0].mxu0 %v2214
        %v2386 = vpop.f32.mrb[0].mxu0
        %v2387 = vadd.f32 0.0, %v2386
        %v2388 = vpop.f32.mrb[0].mxu0
        %2389 = vdwg.mxu0
        %v2390 = vadd.f32 %v2172, %v2283
        %v2391 = vadd.f32 %v2173, %v2285
        %v2392 = vadd.f32 %v2174, %v2372
        %v2393 = vadd.f32 %v2175, %v2289
        %v2394 = vadd.f32 %v2176, %v2291
        %v2395 = vadd.f32 %v2177, %v2377
        %v2396 = vadd.f32 %v2178, %v2295
        %v2397 = vadd.f32 %v2179, %v2297
        %v2398 = vadd.f32 %v2180, %v2382
        %v2399 = vadd.f32 %v2181, %v2301
        %v2400 = vadd.f32 %v2182, %v2303
        %v2401 = vadd.f32 %v2183, %v2387
        %v2402 = vld [vmem:[%s6] sm:$0xff]
        %v2403 = vld [vmem:[%s6 + $0x8] sm:$0xff]
        %v2404 = vld [vmem:[%s6 + $0x10] sm:$0xff]
        %v2405 = vld [vmem:[%s6 + $0x18] sm:$0xff]
        %2407 = vset.pattern.permute.xlu0 0
        %2408 = vperm.xlu0 %2407, %v2402
        %v2409 = vpop.permute.xlu0 %2408
        %2412 = vset.pattern.permute.xlu0 0
        %2413 = vperm.xlu0 %2412, %v2403
        %v2414 = vpop.permute.xlu0 %2413
        %2417 = vset.pattern.permute.xlu0 0
        %2418 = vperm.xlu0 %2417, %v2404
        %v2419 = vpop.permute.xlu0 %2418
        %2422 = vset.pattern.permute.xlu0 0
        %2423 = vperm.xlu0 %2422, %v2405
        %v2424 = vpop.permute.xlu0 %2423
        %v2426 = vadd.f32 %v2390, %v2409
        %v2427 = vadd.f32 %v2391, %v2409
        %v2428 = vadd.f32 %v2392, %v2409
        %v2429 = vadd.f32 %v2393, %v2414
        %v2430 = vadd.f32 %v2394, %v2414
        %v2431 = vadd.f32 %v2395, %v2414
        %v2432 = vadd.f32 %v2396, %v2419
        %v2433 = vadd.f32 %v2397, %v2419
        %v2434 = vadd.f32 %v2398, %v2419
        %v2435 = vadd.f32 %v2399, %v2424
        %v2436 = vadd.f32 %v2400, %v2424
        %v2437 = vadd.f32 %v2401, %v2424
        %s2438 = sld [smem:[#allocation2]]
        %vm2439 = vcmp.gt.f32.partialorder %v2426, 0.0
        %vm2440 = vcmp.gt.f32.partialorder %v2427, 0.0
        %vm2441 = vcmp.gt.f32.partialorder %v2428, 0.0
        %vm2442 = vcmp.gt.f32.partialorder %v2429, 0.0
        %vm2443 = vcmp.gt.f32.partialorder %v2430, 0.0
        %vm2444 = vcmp.gt.f32.partialorder %v2431, 0.0
        %vm2445 = vcmp.gt.f32.partialorder %v2432, 0.0
        %vm2446 = vcmp.gt.f32.partialorder %v2433, 0.0
        %vm2447 = vcmp.gt.f32.partialorder %v2434, 0.0
        %vm2448 = vcmp.gt.f32.partialorder %v2435, 0.0
        %vm2449 = vcmp.gt.f32.partialorder %v2436, 0.0
        %vm2450 = vcmp.gt.f32.partialorder %v2437, 0.0
        %v2451 = vstv %s2438
        %v2452 = vmul.f32 %v2451, %v2426
        %v2453 = vmul.f32 %v2451, %v2427
        %v2454 = vmul.f32 %v2451, %v2428
        %v2455 = vmul.f32 %v2451, %v2429
        %v2456 = vmul.f32 %v2451, %v2430
        %v2457 = vmul.f32 %v2451, %v2431
        %v2458 = vmul.f32 %v2451, %v2432
        %v2459 = vmul.f32 %v2451, %v2433
        %v2460 = vmul.f32 %v2451, %v2434
        %v2461 = vmul.f32 %v2451, %v2435
        %v2462 = vmul.f32 %v2451, %v2436
        %v2463 = vmul.f32 %v2451, %v2437
        %v2464 = vsel %vm2439, %v2426, %v2452
        %v2465 = vsel %vm2440, %v2427, %v2453
        %v2466 = vsel %vm2441, %v2428, %v2454
        %v2467 = vsel %vm2442, %v2429, %v2455
        %v2468 = vsel %vm2443, %v2430, %v2456
        %v2469 = vsel %vm2444, %v2431, %v2457
        %v2470 = vsel %vm2445, %v2432, %v2458
        %v2471 = vsel %vm2446, %v2433, %v2459
        %v2472 = vsel %vm2447, %v2434, %v2460
        %v2473 = vsel %vm2448, %v2435, %v2461
        %v2474 = vsel %vm2449, %v2436, %v2462
        %v2475 = vsel %vm2450, %v2437, %v2463
        %v2477 = vlaneseq
        %v2478 = vshrl.u32 %v2477, 7
        %v2479 = vsub.s32 0, %v2478
        %v2480 = vrot.slane %v458, %v2479
        %v2481 = vlaneseq
        %v2482 = vshrl.u32 %v2481, 7
        %v2483 = vsub.s32 1, %v2482
        %v2484 = vrot.slane %v458, %v2483
        %v2485 = vlaneseq
        %v2486 = vshrl.u32 %v2485, 7
        %v2487 = vsub.s32 2, %v2486
        %v2488 = vrot.slane %v458, %v2487
        %v2492 = vmul.f32 %v2464, %v2480
        %v2493 = vmul.f32 %v2465, %v2484
        %v2494 = vmul.f32 %v2466, %v2488
        %v2495 = vmul.f32 %v2467, %v2480
        %v2496 = vmul.f32 %v2468, %v2484
        %v2497 = vmul.f32 %v2469, %v2488
        %v2498 = vmul.f32 %v2470, %v2480
        %v2499 = vmul.f32 %v2471, %v2484
        %v2500 = vmul.f32 %v2472, %v2488
        %v2501 = vmul.f32 %v2473, %v2480
        %v2502 = vmul.f32 %v2474, %v2484
        %v2503 = vmul.f32 %v2475, %v2488
        %2516 = vrot.lane.b32.xlu0 %v2492, 19
        %v2517 = vpop.permute.xlu0 %2516
        %2518 = vrot.lane.b32.xlu0 %v2493, 19
        %v2519 = vpop.permute.xlu0 %2518
        %2520 = vrot.lane.b32.xlu0 %v2494, 19
        %v2521 = vpop.permute.xlu0 %2520
        %2522 = vrot.lane.b32.xlu0 %v2495, 19
        %v2523 = vpop.permute.xlu0 %2522
        %2524 = vrot.lane.b32.xlu0 %v2496, 19
        %v2525 = vpop.permute.xlu0 %2524
        %2526 = vrot.lane.b32.xlu0 %v2497, 19
        %v2527 = vpop.permute.xlu0 %2526
        %2528 = vrot.lane.b32.xlu0 %v2498, 19
        %v2529 = vpop.permute.xlu0 %2528
        %2530 = vrot.lane.b32.xlu0 %v2499, 19
        %v2531 = vpop.permute.xlu0 %2530
        %2532 = vrot.lane.b32.xlu0 %v2500, 19
        %v2533 = vpop.permute.xlu0 %2532
        %2534 = vrot.lane.b32.xlu0 %v2501, 19
        %v2535 = vpop.permute.xlu0 %2534
        %2536 = vrot.lane.b32.xlu0 %v2502, 19
        %v2537 = vpop.permute.xlu0 %2536
        %2538 = vrot.lane.b32.xlu0 %v2503, 19
        %v2539 = vpop.permute.xlu0 %2538
        %v2540 = vsel %vm468, %v2517, %v2519
        %v2541 = vsel %vm468, %v2519, %v2521
        %v2542 = vsel %vm468, %v2523, %v2525
        %v2543 = vsel %vm468, %v2525, %v2527
        %v2544 = vsel %vm468, %v2529, %v2531
        %v2545 = vsel %vm468, %v2531, %v2533
        %v2546 = vsel %vm468, %v2535, %v2537
        %v2547 = vsel %vm468, %v2537, %v2539
        %v2564 = vsel %vm468, 0.0, %v2517
        %v2565 = vsel %vm468, 0.0, %v2523
        %v2566 = vsel %vm468, 0.0, %v2529
        %v2567 = vsel %vm468, 0.0, %v2535
        %v2568 = vsel %vm468, %v2521, 0.0
        %v2569 = vsel %vm468, %v2527, 0.0
        %v2570 = vsel %vm468, %v2533, 0.0
        %v2571 = vsel %vm468, %v2539, 0.0
        %v2572 = vld [vmem:[%s2] sm:$0xff]
        %s2573 = scalar_lea.vmem %s2, 8
        %v2574 = vld [vmem:[%s2573] sm:$0xff]
        %2583 = vrot.lane.b32.xlu0 %v2564, 127
        %v2584 = vpop.permute.xlu0 %2583
        %2585 = vrot.lane.b32.xlu0 %v2540, 127
        %v2586 = vpop.permute.xlu0 %2585
        %2587 = vrot.lane.b32.xlu0 %v2541, 127
        %v2588 = vpop.permute.xlu0 %2587
        %2589 = vrot.lane.b32.xlu0 %v2568, 127
        %v2590 = vpop.permute.xlu0 %2589
        %2591 = vrot.lane.b32.xlu0 %v2565, 127
        %v2592 = vpop.permute.xlu0 %2591
        %2593 = vrot.lane.b32.xlu0 %v2542, 127
        %v2594 = vpop.permute.xlu0 %2593
        %2595 = vrot.lane.b32.xlu0 %v2543, 127
        %v2596 = vpop.permute.xlu0 %2595
        %2597 = vrot.lane.b32.xlu0 %v2569, 127
        %v2598 = vpop.permute.xlu0 %2597
        %2599 = vrot.lane.b32.xlu0 %v2566, 127
        %v2600 = vpop.permute.xlu0 %2599
        %2601 = vrot.lane.b32.xlu0 %v2544, 127
        %v2602 = vpop.permute.xlu0 %2601
        %2603 = vrot.lane.b32.xlu0 %v2545, 127
        %v2604 = vpop.permute.xlu0 %2603
        %2605 = vrot.lane.b32.xlu0 %v2570, 127
        %v2606 = vpop.permute.xlu0 %2605
        %2607 = vrot.lane.b32.xlu0 %v2567, 127
        %v2608 = vpop.permute.xlu0 %2607
        %2609 = vrot.lane.b32.xlu0 %v2546, 127
        %v2610 = vpop.permute.xlu0 %2609
        %2611 = vrot.lane.b32.xlu0 %v2547, 127
        %v2612 = vpop.permute.xlu0 %2611
        %2613 = vrot.lane.b32.xlu0 %v2571, 127
        %v2614 = vpop.permute.xlu0 %2613
        %v2615 = vsel %vm496, %v2584, %v2586
        %v2616 = vsel %vm496, %v2586, %v2588
        %v2617 = vsel %vm496, %v2588, %v2590
        %v2618 = vsel %vm496, %v2592, %v2594
        %v2619 = vsel %vm496, %v2594, %v2596
        %v2620 = vsel %vm496, %v2596, %v2598
        %v2621 = vsel %vm496, %v2600, %v2602
        %v2622 = vsel %vm496, %v2602, %v2604
        %v2623 = vsel %vm496, %v2604, %v2606
        %v2624 = vsel %vm496, %v2608, %v2610
        %v2625 = vsel %vm496, %v2610, %v2612
        %v2626 = vsel %vm496, %v2612, %v2614
        %vm2639 = vcmask 261120
        %v2641 = vsel %vm2639, %v2574, 0
        %2643 = vmatprep.subr.mxu0 %v2616
        %2644 = vmatpush1.msra.mxu0 %v2615
        %2645 = vmatprep.subr.mxu0 %v2619
        %2646 = vmatpush1.msra.mxu0 %v2618
        %2647 = vmatprep.subr.mxu0 %v2622
        %2648 = vmatpush1.msra.mxu0 %v2621
        %2649 = vmatprep.subr.mxu0 %v2625
        %2650 = vmatpush1.msra.mxu0 %v2624
        %2651 = vmatprep.subr.mxu0 0.0
        %2652 = vmatpush1.msra.mxu0 0.0
        %2653 = vmatprep.subr.mxu0 0.0
        %2654 = vmatpush1.msra.mxu0 0.0
        %2655 = vmatprep.subr.mxu0 0.0
        %2656 = vmatpush1.msra.mxu0 0.0
        %2657 = vmatprep.subr.mxu0 0.0
        %2658 = vmatpush1.msra.mxu0 0.0
        %2659 = vmatprep.subr.mxu0 0.0
        %2660 = vmatpush1.msra.mxu0 0.0
        %2661 = vmatprep.subr.mxu0 0.0
        %2662 = vmatpush1.msra.mxu0 0.0
        %2663 = vmatprep.subr.mxu0 0.0
        %2664 = vmatpush1.msra.mxu0 0.0
        %2665 = vmatprep.subr.mxu0 0.0
        %2666 = vmatpush1.msra.mxu0 0.0
        %2667 = vmatprep.subr.mxu0 0.0
        %2668 = vmatpush1.msra.mxu0 0.0
        %2669 = vmatprep.subr.mxu0 0.0
        %2670 = vmatpush1.msra.mxu0 0.0
        %2671 = vmatprep.subr.mxu0 0.0
        %2672 = vmatpush1.msra.mxu0 0.0
        %2673 = vmatprep.subr.mxu0 0.0
        %2674 = vmatpush1.msra.mxu0 0.0
        %2675 = vmatprep.subr.mxu0 0.0
        %2676 = vmatpush1.msra.mxu0 0.0
        %2677 = vmatprep.subr.mxu0 0.0
        %2678 = vmatpush1.msra.mxu0 0.0
        %2679 = vmatprep.subr.mxu0 0.0
        %2680 = vmatpush1.msra.mxu0 0.0
        %2681 = vmatprep.subr.mxu0 0.0
        %2682 = vmatpush1.msra.mxu0 0.0
        %2683 = vmatprep.subr.mxu0 0.0
        %2684 = vmatpush1.msra.mxu0 0.0
        %2685 = vmatprep.subr.mxu0 0.0
        %2686 = vmatpush1.msra.mxu0 0.0
        %2687 = vmatprep.subr.mxu0 0.0
        %2688 = vmatpush1.msra.mxu0 0.0
        %2689 = vmatprep.subr.mxu0 0.0
        %2690 = vmatpush1.msra.mxu0 0.0
        %2691 = vmatprep.subr.mxu0 0.0
        %2692 = vmatpush1.msra.mxu0 0.0
        %2693 = vmatprep.subr.mxu0 0.0
        %2694 = vmatpush1.msra.mxu0 0.0
        %2695 = vmatprep.subr.mxu0 0.0
        %2696 = vmatpush1.msra.mxu0 0.0
        %2697 = vmatprep.subr.mxu0 0.0
        %2698 = vmatpush1.msra.mxu0 0.0
        %2699 = vmatprep.subr.mxu0 0.0
        %2700 = vmatpush1.msra.mxu0 0.0
        %2701 = vmatprep.subr.mxu0 0.0
        %2702 = vmatpush1.msra.mxu0 0.0
        %2703 = vmatprep.subr.mxu0 0.0
        %2704 = vmatpush1.msra.mxu0 0.0
        %2705 = vmatprep.subr.mxu0 0.0
        %2706 = vmatpush1.msra.mxu0 0.0
        %2707 = vmatprep.mubr.f32.mxu0 0.0
        %2708 = vmatmul.mubr.f32.gmra.mrb[0].mxu0 %v2641
        %v2709 = vpop.f32.mrb[0].mxu0
        %v2710 = vadd.f32 0.0, %v2709
        %v2711 = vpop.f32.mrb[0].mxu0
        %v2712 = vadd.f32 0.0, %v2711
        %2713 = vdwg.mxu0
        %2714 = vmatprep.subr.mxu0 0.0
        %2715 = vmatpush1.msra.mxu0 %v2617
        %2716 = vmatprep.subr.mxu0 0.0
        %2717 = vmatpush1.msra.mxu0 %v2620
        %2718 = vmatprep.subr.mxu0 0.0
        %2719 = vmatpush1.msra.mxu0 %v2623
        %2720 = vmatprep.subr.mxu0 0.0
        %2721 = vmatpush1.msra.mxu0 %v2626
        %2722 = vmatprep.subr.mxu0 0.0
        %2723 = vmatpush1.msra.mxu0 0.0
        %2724 = vmatprep.subr.mxu0 0.0
        %2725 = vmatpush1.msra.mxu0 0.0
        %2726 = vmatprep.subr.mxu0 0.0
        %2727 = vmatpush1.msra.mxu0 0.0
        %2728 = vmatprep.subr.mxu0 0.0
        %2729 = vmatpush1.msra.mxu0 0.0
        %2730 = vmatprep.subr.mxu0 0.0
        %2731 = vmatpush1.msra.mxu0 0.0
        %2732 = vmatprep.subr.mxu0 0.0
        %2733 = vmatpush1.msra.mxu0 0.0
        %2734 = vmatprep.subr.mxu0 0.0
        %2735 = vmatpush1.msra.mxu0 0.0
        %2736 = vmatprep.subr.mxu0 0.0
        %2737 = vmatpush1.msra.mxu0 0.0
        %2738 = vmatprep.subr.mxu0 0.0
        %2739 = vmatpush1.msra.mxu0 0.0
        %2740 = vmatprep.subr.mxu0 0.0
        %2741 = vmatpush1.msra.mxu0 0.0
        %2742 = vmatprep.subr.mxu0 0.0
        %2743 = vmatpush1.msra.mxu0 0.0
        %2744 = vmatprep.subr.mxu0 0.0
        %2745 = vmatpush1.msra.mxu0 0.0
        %2746 = vmatprep.subr.mxu0 0.0
        %2747 = vmatpush1.msra.mxu0 0.0
        %2748 = vmatprep.subr.mxu0 0.0
        %2749 = vmatpush1.msra.mxu0 0.0
        %2750 = vmatprep.subr.mxu0 0.0
        %2751 = vmatpush1.msra.mxu0 0.0
        %2752 = vmatprep.subr.mxu0 0.0
        %2753 = vmatpush1.msra.mxu0 0.0
        %2754 = vmatprep.subr.mxu0 0.0
        %2755 = vmatpush1.msra.mxu0 0.0
        %2756 = vmatprep.subr.mxu0 0.0
        %2757 = vmatpush1.msra.mxu0 0.0
        %2758 = vmatprep.subr.mxu0 0.0
        %2759 = vmatpush1.msra.mxu0 0.0
        %2760 = vmatprep.subr.mxu0 0.0
        %2761 = vmatpush1.msra.mxu0 0.0
        %2762 = vmatprep.subr.mxu0 0.0
        %2763 = vmatpush1.msra.mxu0 0.0
        %2764 = vmatprep.subr.mxu0 0.0
        %2765 = vmatpush1.msra.mxu0 0.0
        %2766 = vmatprep.subr.mxu0 0.0
        %2767 = vmatpush1.msra.mxu0 0.0
        %2768 = vmatprep.subr.mxu0 0.0
        %2769 = vmatpush1.msra.mxu0 0.0
        %2770 = vmatprep.subr.mxu0 0.0
        %2771 = vmatpush1.msra.mxu0 0.0
        %2772 = vmatprep.subr.mxu0 0.0
        %2773 = vmatpush1.msra.mxu0 0.0
        %2774 = vmatprep.subr.mxu0 0.0
        %2775 = vmatpush1.msra.mxu0 0.0
        %2776 = vmatprep.subr.mxu0 0.0
        %2777 = vmatpush1.msra.mxu0 0.0
        %2778 = vmatprep.mubr.f32.mxu0 0.0
        %2779 = vmatmul.mubr.f32.gmra.mrb[0].mxu0 %v2641
        %v2780 = vpop.f32.mrb[0].mxu0
        %v2781 = vadd.f32 0.0, %v2780
        %v2782 = vpop.f32.mrb[0].mxu0
        %2783 = vdwg.mxu0
        %v2785 = vsel %vm2639, %v2572, 0
        %2787 = vmatprep.subr.mxu0 %v2540
        %2788 = vmatpush1.msra.mxu0 %v2564
        %2789 = vmatprep.subr.mxu0 %v2542
        %2790 = vmatpush1.msra.mxu0 %v2565
        %2791 = vmatprep.subr.mxu0 %v2544
        %2792 = vmatpush1.msra.mxu0 %v2566
        %2793 = vmatprep.subr.mxu0 %v2546
        %2794 = vmatpush1.msra.mxu0 %v2567
        %2795 = vmatprep.subr.mxu0 0.0
        %2796 = vmatpush1.msra.mxu0 0.0
        %2797 = vmatprep.subr.mxu0 0.0
        %2798 = vmatpush1.msra.mxu0 0.0
        %2799 = vmatprep.subr.mxu0 0.0
        %2800 = vmatpush1.msra.mxu0 0.0
        %2801 = vmatprep.subr.mxu0 0.0
        %2802 = vmatpush1.msra.mxu0 0.0
        %2803 = vmatprep.subr.mxu0 0.0
        %2804 = vmatpush1.msra.mxu0 0.0
        %2805 = vmatprep.subr.mxu0 0.0
        %2806 = vmatpush1.msra.mxu0 0.0
        %2807 = vmatprep.subr.mxu0 0.0
        %2808 = vmatpush1.msra.mxu0 0.0
        %2809 = vmatprep.subr.mxu0 0.0
        %2810 = vmatpush1.msra.mxu0 0.0
        %2811 = vmatprep.subr.mxu0 0.0
        %2812 = vmatpush1.msra.mxu0 0.0
        %2813 = vmatprep.subr.mxu0 0.0
        %2814 = vmatpush1.msra.mxu0 0.0
        %2815 = vmatprep.subr.mxu0 0.0
        %2816 = vmatpush1.msra.mxu0 0.0
        %2817 = vmatprep.subr.mxu0 0.0
        %2818 = vmatpush1.msra.mxu0 0.0
        %2819 = vmatprep.subr.mxu0 0.0
        %2820 = vmatpush1.msra.mxu0 0.0
        %2821 = vmatprep.subr.mxu0 0.0
        %2822 = vmatpush1.msra.mxu0 0.0
        %2823 = vmatprep.subr.mxu0 0.0
        %2824 = vmatpush1.msra.mxu0 0.0
        %2825 = vmatprep.subr.mxu0 0.0
        %2826 = vmatpush1.msra.mxu0 0.0
        %2827 = vmatprep.subr.mxu0 0.0
        %2828 = vmatpush1.msra.mxu0 0.0
        %2829 = vmatprep.subr.mxu0 0.0
        %2830 = vmatpush1.msra.mxu0 0.0
        %2831 = vmatprep.subr.mxu0 0.0
        %2832 = vmatpush1.msra.mxu0 0.0
        %2833 = vmatprep.subr.mxu0 0.0
        %2834 = vmatpush1.msra.mxu0 0.0
        %2835 = vmatprep.subr.mxu0 0.0
        %2836 = vmatpush1.msra.mxu0 0.0
        %2837 = vmatprep.subr.mxu0 0.0
        %2838 = vmatpush1.msra.mxu0 0.0
        %2839 = vmatprep.subr.mxu0 0.0
        %2840 = vmatpush1.msra.mxu0 0.0
        %2841 = vmatprep.subr.mxu0 0.0
        %2842 = vmatpush1.msra.mxu0 0.0
        %2843 = vmatprep.subr.mxu0 0.0
        %2844 = vmatpush1.msra.mxu0 0.0
        %2845 = vmatprep.subr.mxu0 0.0
        %2846 = vmatpush1.msra.mxu0 0.0
        %2847 = vmatprep.subr.mxu0 0.0
        %2848 = vmatpush1.msra.mxu0 0.0
        %2849 = vmatprep.subr.mxu0 0.0
        %2850 = vmatpush1.msra.mxu0 0.0
        %2851 = vmatprep.mubr.f32.mxu0 0.0
        %2852 = vmatmul.mubr.f32.gmra.mrb[0].mxu0 %v2785
        %v2853 = vpop.f32.mrb[0].mxu0
        %v2854 = vadd.f32 %v2710, %v2853
        %v2855 = vpop.f32.mrb[0].mxu0
        %v2856 = vadd.f32 %v2712, %v2855
        %2857 = vdwg.mxu0
        %2858 = vmatprep.subr.mxu0 0.0
        %2859 = vmatpush1.msra.mxu0 %v2541
        %2860 = vmatprep.subr.mxu0 0.0
        %2861 = vmatpush1.msra.mxu0 %v2543
        %2862 = vmatprep.subr.mxu0 0.0
        %2863 = vmatpush1.msra.mxu0 %v2545
        %2864 = vmatprep.subr.mxu0 0.0
        %2865 = vmatpush1.msra.mxu0 %v2547
        %2866 = vmatprep.subr.mxu0 0.0
        %2867 = vmatpush1.msra.mxu0 0.0
        %2868 = vmatprep.subr.mxu0 0.0
        %2869 = vmatpush1.msra.mxu0 0.0
        %2870 = vmatprep.subr.mxu0 0.0
        %2871 = vmatpush1.msra.mxu0 0.0
        %2872 = vmatprep.subr.mxu0 0.0
        %2873 = vmatpush1.msra.mxu0 0.0
        %2874 = vmatprep.subr.mxu0 0.0
        %2875 = vmatpush1.msra.mxu0 0.0
        %2876 = vmatprep.subr.mxu0 0.0
        %2877 = vmatpush1.msra.mxu0 0.0
        %2878 = vmatprep.subr.mxu0 0.0
        %2879 = vmatpush1.msra.mxu0 0.0
        %2880 = vmatprep.subr.mxu0 0.0
        %2881 = vmatpush1.msra.mxu0 0.0
        %2882 = vmatprep.subr.mxu0 0.0
        %2883 = vmatpush1.msra.mxu0 0.0
        %2884 = vmatprep.subr.mxu0 0.0
        %2885 = vmatpush1.msra.mxu0 0.0
        %2886 = vmatprep.subr.mxu0 0.0
        %2887 = vmatpush1.msra.mxu0 0.0
        %2888 = vmatprep.subr.mxu0 0.0
        %2889 = vmatpush1.msra.mxu0 0.0
        %2890 = vmatprep.subr.mxu0 0.0
        %2891 = vmatpush1.msra.mxu0 0.0
        %2892 = vmatprep.subr.mxu0 0.0
        %2893 = vmatpush1.msra.mxu0 0.0
        %2894 = vmatprep.subr.mxu0 0.0
        %2895 = vmatpush1.msra.mxu0 0.0
        %2896 = vmatprep.subr.mxu0 0.0
        %2897 = vmatpush1.msra.mxu0 0.0
        %2898 = vmatprep.subr.mxu0 0.0
        %2899 = vmatpush1.msra.mxu0 0.0
        %2900 = vmatprep.subr.mxu0 0.0
        %2901 = vmatpush1.msra.mxu0 0.0
        %2902 = vmatprep.subr.mxu0 0.0
        %2903 = vmatpush1.msra.mxu0 0.0
        %2904 = vmatprep.subr.mxu0 0.0
        %2905 = vmatpush1.msra.mxu0 0.0
        %2906 = vmatprep.subr.mxu0 0.0
        %2907 = vmatpush1.msra.mxu0 0.0
        %2908 = vmatprep.subr.mxu0 0.0
        %2909 = vmatpush1.msra.mxu0 0.0
        %2910 = vmatprep.subr.mxu0 0.0
        %2911 = vmatpush1.msra.mxu0 0.0
        %2912 = vmatprep.subr.mxu0 0.0
        %2913 = vmatpush1.msra.mxu0 0.0
        %2914 = vmatprep.subr.mxu0 0.0
        %2915 = vmatpush1.msra.mxu0 0.0
        %2916 = vmatprep.subr.mxu0 0.0
        %2917 = vmatpush1.msra.mxu0 0.0
        %2918 = vmatprep.subr.mxu0 0.0
        %2919 = vmatpush1.msra.mxu0 0.0
        %2920 = vmatprep.subr.mxu0 0.0
        %2921 = vmatpush1.msra.mxu0 0.0
        %2922 = vmatprep.mubr.f32.mxu0 0.0
        %2923 = vmatmul.mubr.f32.gmra.mrb[0].mxu0 %v2785
        %v2924 = vpop.f32.mrb[0].mxu0
        %v2925 = vadd.f32 %v2781, %v2924
        %v2926 = vpop.f32.mrb[0].mxu0
        %2927 = vdwg.mxu0
        %s2928 = scalar_lea.vmem %s2, 16
        %v2929 = vld [vmem:[%s2928] sm:$0xff]
        %2930 = vrot.lane.b32.xlu0 %v2564, 126
        %v2931 = vpop.permute.xlu0 %2930
        %2932 = vrot.lane.b32.xlu0 %v2540, 126
        %v2933 = vpop.permute.xlu0 %2932
        %2934 = vrot.lane.b32.xlu0 %v2541, 126
        %v2935 = vpop.permute.xlu0 %2934
        %2936 = vrot.lane.b32.xlu0 %v2568, 126
        %v2937 = vpop.permute.xlu0 %2936
        %2938 = vrot.lane.b32.xlu0 %v2565, 126
        %v2939 = vpop.permute.xlu0 %2938
        %2940 = vrot.lane.b32.xlu0 %v2542, 126
        %v2941 = vpop.permute.xlu0 %2940
        %2942 = vrot.lane.b32.xlu0 %v2543, 126
        %v2943 = vpop.permute.xlu0 %2942
        %2944 = vrot.lane.b32.xlu0 %v2569, 126
        %v2945 = vpop.permute.xlu0 %2944
        %2946 = vrot.lane.b32.xlu0 %v2566, 126
        %v2947 = vpop.permute.xlu0 %2946
        %2948 = vrot.lane.b32.xlu0 %v2544, 126
        %v2949 = vpop.permute.xlu0 %2948
        %2950 = vrot.lane.b32.xlu0 %v2545, 126
        %v2951 = vpop.permute.xlu0 %2950
        %2952 = vrot.lane.b32.xlu0 %v2570, 126
        %v2953 = vpop.permute.xlu0 %2952
        %2954 = vrot.lane.b32.xlu0 %v2567, 126
        %v2955 = vpop.permute.xlu0 %2954
        %2956 = vrot.lane.b32.xlu0 %v2546, 126
        %v2957 = vpop.permute.xlu0 %2956
        %2958 = vrot.lane.b32.xlu0 %v2547, 126
        %v2959 = vpop.permute.xlu0 %2958
        %2960 = vrot.lane.b32.xlu0 %v2571, 126
        %v2961 = vpop.permute.xlu0 %2960
        %v2962 = vsel %vm889, %v2931, %v2933
        %v2963 = vsel %vm889, %v2933, %v2935
        %v2964 = vsel %vm889, %v2935, %v2937
        %v2965 = vsel %vm889, %v2939, %v2941
        %v2966 = vsel %vm889, %v2941, %v2943
        %v2967 = vsel %vm889, %v2943, %v2945
        %v2968 = vsel %vm889, %v2947, %v2949
        %v2969 = vsel %vm889, %v2949, %v2951
        %v2970 = vsel %vm889, %v2951, %v2953
        %v2971 = vsel %vm889, %v2955, %v2957
        %v2972 = vsel %vm889, %v2957, %v2959
        %v2973 = vsel %vm889, %v2959, %v2961
        %v2987 = vsel %vm2639, %v2929, 0
        %2989 = vmatprep.subr.mxu0 %v2963
        %2990 = vmatpush1.msra.mxu0 %v2962
        %2991 = vmatprep.subr.mxu0 %v2966
        %2992 = vmatpush1.msra.mxu0 %v2965
        %2993 = vmatprep.subr.mxu0 %v2969
        %2994 = vmatpush1.msra.mxu0 %v2968
        %2995 = vmatprep.subr.mxu0 %v2972
        %2996 = vmatpush1.msra.mxu0 %v2971
        %2997 = vmatprep.subr.mxu0 0.0
        %2998 = vmatpush1.msra.mxu0 0.0
        %2999 = vmatprep.subr.mxu0 0.0
        %3000 = vmatpush1.msra.mxu0 0.0
        %3001 = vmatprep.subr.mxu0 0.0
        %3002 = vmatpush1.msra.mxu0 0.0
        %3003 = vmatprep.subr.mxu0 0.0
        %3004 = vmatpush1.msra.mxu0 0.0
        %3005 = vmatprep.subr.mxu0 0.0
        %3006 = vmatpush1.msra.mxu0 0.0
        %3007 = vmatprep.subr.mxu0 0.0
        %3008 = vmatpush1.msra.mxu0 0.0
        %3009 = vmatprep.subr.mxu0 0.0
        %3010 = vmatpush1.msra.mxu0 0.0
        %3011 = vmatprep.subr.mxu0 0.0
        %3012 = vmatpush1.msra.mxu0 0.0
        %3013 = vmatprep.subr.mxu0 0.0
        %3014 = vmatpush1.msra.mxu0 0.0
        %3015 = vmatprep.subr.mxu0 0.0
        %3016 = vmatpush1.msra.mxu0 0.0
        %3017 = vmatprep.subr.mxu0 0.0
        %3018 = vmatpush1.msra.mxu0 0.0
        %3019 = vmatprep.subr.mxu0 0.0
        %3020 = vmatpush1.msra.mxu0 0.0
        %3021 = vmatprep.subr.mxu0 0.0
        %3022 = vmatpush1.msra.mxu0 0.0
        %3023 = vmatprep.subr.mxu0 0.0
        %3024 = vmatpush1.msra.mxu0 0.0
        %3025 = vmatprep.subr.mxu0 0.0
        %3026 = vmatpush1.msra.mxu0 0.0
        %3027 = vmatprep.subr.mxu0 0.0
        %3028 = vmatpush1.msra.mxu0 0.0
        %3029 = vmatprep.subr.mxu0 0.0
        %3030 = vmatpush1.msra.mxu0 0.0
        %3031 = vmatprep.subr.mxu0 0.0
        %3032 = vmatpush1.msra.mxu0 0.0
        %3033 = vmatprep.subr.mxu0 0.0
        %3034 = vmatpush1.msra.mxu0 0.0
        %3035 = vmatprep.subr.mxu0 0.0
        %3036 = vmatpush1.msra.mxu0 0.0
        %3037 = vmatprep.subr.mxu0 0.0
        %3038 = vmatpush1.msra.mxu0 0.0
        %3039 = vmatprep.subr.mxu0 0.0
        %3040 = vmatpush1.msra.mxu0 0.0
        %3041 = vmatprep.subr.mxu0 0.0
        %3042 = vmatpush1.msra.mxu0 0.0
        %3043 = vmatprep.subr.mxu0 0.0
        %3044 = vmatpush1.msra.mxu0 0.0
        %3045 = vmatprep.subr.mxu0 0.0
        %3046 = vmatpush1.msra.mxu0 0.0
        %3047 = vmatprep.subr.mxu0 0.0
        %3048 = vmatpush1.msra.mxu0 0.0
        %3049 = vmatprep.subr.mxu0 0.0
        %3050 = vmatpush1.msra.mxu0 0.0
        %3051 = vmatprep.subr.mxu0 0.0
        %3052 = vmatpush1.msra.mxu0 0.0
        %3053 = vmatprep.mubr.f32.mxu0 0.0
        %3054 = vmatmul.mubr.f32.gmra.mrb[0].mxu0 %v2987
        %v3055 = vpop.f32.mrb[0].mxu0
        %v3056 = vadd.f32 0.0, %v3055
        %v3057 = vpop.f32.mrb[0].mxu0
        %v3058 = vadd.f32 0.0, %v3057
        %3059 = vdwg.mxu0
        %3060 = vmatprep.subr.mxu0 0.0
        %3061 = vmatpush1.msra.mxu0 %v2964
        %3062 = vmatprep.subr.mxu0 0.0
        %3063 = vmatpush1.msra.mxu0 %v2967
        %3064 = vmatprep.subr.mxu0 0.0
        %3065 = vmatpush1.msra.mxu0 %v2970
        %3066 = vmatprep.subr.mxu0 0.0
        %3067 = vmatpush1.msra.mxu0 %v2973
        %3068 = vmatprep.subr.mxu0 0.0
        %3069 = vmatpush1.msra.mxu0 0.0
        %3070 = vmatprep.subr.mxu0 0.0
        %3071 = vmatpush1.msra.mxu0 0.0
        %3072 = vmatprep.subr.mxu0 0.0
        %3073 = vmatpush1.msra.mxu0 0.0
        %3074 = vmatprep.subr.mxu0 0.0
        %3075 = vmatpush1.msra.mxu0 0.0
        %3076 = vmatprep.subr.mxu0 0.0
        %3077 = vmatpush1.msra.mxu0 0.0
        %3078 = vmatprep.subr.mxu0 0.0
        %3079 = vmatpush1.msra.mxu0 0.0
        %3080 = vmatprep.subr.mxu0 0.0
        %3081 = vmatpush1.msra.mxu0 0.0
        %3082 = vmatprep.subr.mxu0 0.0
        %3083 = vmatpush1.msra.mxu0 0.0
        %3084 = vmatprep.subr.mxu0 0.0
        %3085 = vmatpush1.msra.mxu0 0.0
        %3086 = vmatprep.subr.mxu0 0.0
        %3087 = vmatpush1.msra.mxu0 0.0
        %3088 = vmatprep.subr.mxu0 0.0
        %3089 = vmatpush1.msra.mxu0 0.0
        %3090 = vmatprep.subr.mxu0 0.0
        %3091 = vmatpush1.msra.mxu0 0.0
        %3092 = vmatprep.subr.mxu0 0.0
        %3093 = vmatpush1.msra.mxu0 0.0
        %3094 = vmatprep.subr.mxu0 0.0
        %3095 = vmatpush1.msra.mxu0 0.0
        %3096 = vmatprep.subr.mxu0 0.0
        %3097 = vmatpush1.msra.mxu0 0.0
        %3098 = vmatprep.subr.mxu0 0.0
        %3099 = vmatpush1.msra.mxu0 0.0
        %3100 = vmatprep.subr.mxu0 0.0
        %3101 = vmatpush1.msra.mxu0 0.0
        %3102 = vmatprep.subr.mxu0 0.0
        %3103 = vmatpush1.msra.mxu0 0.0
        %3104 = vmatprep.subr.mxu0 0.0
        %3105 = vmatpush1.msra.mxu0 0.0
        %3106 = vmatprep.subr.mxu0 0.0
        %3107 = vmatpush1.msra.mxu0 0.0
        %3108 = vmatprep.subr.mxu0 0.0
        %3109 = vmatpush1.msra.mxu0 0.0
        %3110 = vmatprep.subr.mxu0 0.0
        %3111 = vmatpush1.msra.mxu0 0.0
        %3112 = vmatprep.subr.mxu0 0.0
        %3113 = vmatpush1.msra.mxu0 0.0
        %3114 = vmatprep.subr.mxu0 0.0
        %3115 = vmatpush1.msra.mxu0 0.0
        %3116 = vmatprep.subr.mxu0 0.0
        %3117 = vmatpush1.msra.mxu0 0.0
        %3118 = vmatprep.subr.mxu0 0.0
        %3119 = vmatpush1.msra.mxu0 0.0
        %3120 = vmatprep.subr.mxu0 0.0
        %3121 = vmatpush1.msra.mxu0 0.0
        %3122 = vmatprep.subr.mxu0 0.0
        %3123 = vmatpush1.msra.mxu0 0.0
        %3124 = vmatprep.mubr.f32.mxu0 0.0
        %3125 = vmatmul.mubr.f32.gmra.mrb[0].mxu0 %v2987
        %v3126 = vpop.f32.mrb[0].mxu0
        %v3127 = vadd.f32 0.0, %v3126
        %v3128 = vpop.f32.mrb[0].mxu0
        %3129 = vdwg.mxu0
        %v3130 = vadd.f32 %v2854, %v3056
        %v3131 = vadd.f32 %v2856, %v3058
        %v3132 = vadd.f32 %v2925, %v3127
        %s3133 = scalar_lea.vmem %s2, 24
        %v3134 = vld [vmem:[%s3133] sm:$0xff]
        %3135 = vrot.lane.b32.xlu0 %v2564, 110
        %v3136 = vpop.permute.xlu0 %3135
        %3137 = vrot.lane.b32.xlu0 %v2540, 110
        %v3138 = vpop.permute.xlu0 %3137
        %3139 = vrot.lane.b32.xlu0 %v2541, 110
        %v3140 = vpop.permute.xlu0 %3139
        %3141 = vrot.lane.b32.xlu0 %v2568, 110
        %v3142 = vpop.permute.xlu0 %3141
        %3143 = vrot.lane.b32.xlu0 %v2565, 110
        %v3144 = vpop.permute.xlu0 %3143
        %3145 = vrot.lane.b32.xlu0 %v2542, 110
        %v3146 = vpop.permute.xlu0 %3145
        %3147 = vrot.lane.b32.xlu0 %v2543, 110
        %v3148 = vpop.permute.xlu0 %3147
        %3149 = vrot.lane.b32.xlu0 %v2569, 110
        %v3150 = vpop.permute.xlu0 %3149
        %3151 = vrot.lane.b32.xlu0 %v2566, 110
        %v3152 = vpop.permute.xlu0 %3151
        %3153 = vrot.lane.b32.xlu0 %v2544, 110
        %v3154 = vpop.permute.xlu0 %3153
        %3155 = vrot.lane.b32.xlu0 %v2545, 110
        %v3156 = vpop.permute.xlu0 %3155
        %3157 = vrot.lane.b32.xlu0 %v2570, 110
        %v3158 = vpop.permute.xlu0 %3157
        %3159 = vrot.lane.b32.xlu0 %v2567, 110
        %v3160 = vpop.permute.xlu0 %3159
        %3161 = vrot.lane.b32.xlu0 %v2546, 110
        %v3162 = vpop.permute.xlu0 %3161
        %3163 = vrot.lane.b32.xlu0 %v2547, 110
        %v3164 = vpop.permute.xlu0 %3163
        %3165 = vrot.lane.b32.xlu0 %v2571, 110
        %v3166 = vpop.permute.xlu0 %3165
        %v3167 = vsel %vm1107, %v3136, %v3138
        %v3168 = vsel %vm1107, %v3138, %v3140
        %v3169 = vsel %vm1107, %v3140, %v3142
        %v3170 = vsel %vm1107, %v3144, %v3146
        %v3171 = vsel %vm1107, %v3146, %v3148
        %v3172 = vsel %vm1107, %v3148, %v3150
        %v3173 = vsel %vm1107, %v3152, %v3154
        %v3174 = vsel %vm1107, %v3154, %v3156
        %v3175 = vsel %vm1107, %v3156, %v3158
        %v3176 = vsel %vm1107, %v3160, %v3162
        %v3177 = vsel %vm1107, %v3162, %v3164
        %v3178 = vsel %vm1107, %v3164, %v3166
        %v3192 = vsel %vm2639, %v3134, 0
        %3194 = vmatprep.subr.mxu0 %v3168
        %3195 = vmatpush1.msra.mxu0 %v3167
        %3196 = vmatprep.subr.mxu0 %v3171
        %3197 = vmatpush1.msra.mxu0 %v3170
        %3198 = vmatprep.subr.mxu0 %v3174
        %3199 = vmatpush1.msra.mxu0 %v3173
        %3200 = vmatprep.subr.mxu0 %v3177
        %3201 = vmatpush1.msra.mxu0 %v3176
        %3202 = vmatprep.subr.mxu0 0.0
        %3203 = vmatpush1.msra.mxu0 0.0
        %3204 = vmatprep.subr.mxu0 0.0
        %3205 = vmatpush1.msra.mxu0 0.0
        %3206 = vmatprep.subr.mxu0 0.0
        %3207 = vmatpush1.msra.mxu0 0.0
        %3208 = vmatprep.subr.mxu0 0.0
        %3209 = vmatpush1.msra.mxu0 0.0
        %3210 = vmatprep.subr.mxu0 0.0
        %3211 = vmatpush1.msra.mxu0 0.0
        %3212 = vmatprep.subr.mxu0 0.0
        %3213 = vmatpush1.msra.mxu0 0.0
        %3214 = vmatprep.subr.mxu0 0.0
        %3215 = vmatpush1.msra.mxu0 0.0
        %3216 = vmatprep.subr.mxu0 0.0
        %3217 = vmatpush1.msra.mxu0 0.0
        %3218 = vmatprep.subr.mxu0 0.0
        %3219 = vmatpush1.msra.mxu0 0.0
        %3220 = vmatprep.subr.mxu0 0.0
        %3221 = vmatpush1.msra.mxu0 0.0
        %3222 = vmatprep.subr.mxu0 0.0
        %3223 = vmatpush1.msra.mxu0 0.0
        %3224 = vmatprep.subr.mxu0 0.0
        %3225 = vmatpush1.msra.mxu0 0.0
        %3226 = vmatprep.subr.mxu0 0.0
        %3227 = vmatpush1.msra.mxu0 0.0
        %3228 = vmatprep.subr.mxu0 0.0
        %3229 = vmatpush1.msra.mxu0 0.0
        %3230 = vmatprep.subr.mxu0 0.0
        %3231 = vmatpush1.msra.mxu0 0.0
        %3232 = vmatprep.subr.mxu0 0.0
        %3233 = vmatpush1.msra.mxu0 0.0
        %3234 = vmatprep.subr.mxu0 0.0
        %3235 = vmatpush1.msra.mxu0 0.0
        %3236 = vmatprep.subr.mxu0 0.0
        %3237 = vmatpush1.msra.mxu0 0.0
        %3238 = vmatprep.subr.mxu0 0.0
        %3239 = vmatpush1.msra.mxu0 0.0
        %3240 = vmatprep.subr.mxu0 0.0
        %3241 = vmatpush1.msra.mxu0 0.0
        %3242 = vmatprep.subr.mxu0 0.0
        %3243 = vmatpush1.msra.mxu0 0.0
        %3244 = vmatprep.subr.mxu0 0.0
        %3245 = vmatpush1.msra.mxu0 0.0
        %3246 = vmatprep.subr.mxu0 0.0
        %3247 = vmatpush1.msra.mxu0 0.0
        %3248 = vmatprep.subr.mxu0 0.0
        %3249 = vmatpush1.msra.mxu0 0.0
        %3250 = vmatprep.subr.mxu0 0.0
        %3251 = vmatpush1.msra.mxu0 0.0
        %3252 = vmatprep.subr.mxu0 0.0
        %3253 = vmatpush1.msra.mxu0 0.0
        %3254 = vmatprep.subr.mxu0 0.0
        %3255 = vmatpush1.msra.mxu0 0.0
        %3256 = vmatprep.subr.mxu0 0.0
        %3257 = vmatpush1.msra.mxu0 0.0
        %3258 = vmatprep.mubr.f32.mxu0 0.0
        %3259 = vmatmul.mubr.f32.gmra.mrb[0].mxu0 %v3192
        %v3260 = vpop.f32.mrb[0].mxu0
        %v3261 = vadd.f32 0.0, %v3260
        %v3262 = vpop.f32.mrb[0].mxu0
        %v3263 = vadd.f32 0.0, %v3262
        %3264 = vdwg.mxu0
        %3265 = vmatprep.subr.mxu0 0.0
        %3266 = vmatpush1.msra.mxu0 %v3169
        %3267 = vmatprep.subr.mxu0 0.0
        %3268 = vmatpush1.msra.mxu0 %v3172
        %3269 = vmatprep.subr.mxu0 0.0
        %3270 = vmatpush1.msra.mxu0 %v3175
        %3271 = vmatprep.subr.mxu0 0.0
        %3272 = vmatpush1.msra.mxu0 %v3178
        %3273 = vmatprep.subr.mxu0 0.0
        %3274 = vmatpush1.msra.mxu0 0.0
        %3275 = vmatprep.subr.mxu0 0.0
        %3276 = vmatpush1.msra.mxu0 0.0
        %3277 = vmatprep.subr.mxu0 0.0
        %3278 = vmatpush1.msra.mxu0 0.0
        %3279 = vmatprep.subr.mxu0 0.0
        %3280 = vmatpush1.msra.mxu0 0.0
        %3281 = vmatprep.subr.mxu0 0.0
        %3282 = vmatpush1.msra.mxu0 0.0
        %3283 = vmatprep.subr.mxu0 0.0
        %3284 = vmatpush1.msra.mxu0 0.0
        %3285 = vmatprep.subr.mxu0 0.0
        %3286 = vmatpush1.msra.mxu0 0.0
        %3287 = vmatprep.subr.mxu0 0.0
        %3288 = vmatpush1.msra.mxu0 0.0
        %3289 = vmatprep.subr.mxu0 0.0
        %3290 = vmatpush1.msra.mxu0 0.0
        %3291 = vmatprep.subr.mxu0 0.0
        %3292 = vmatpush1.msra.mxu0 0.0
        %3293 = vmatprep.subr.mxu0 0.0
        %3294 = vmatpush1.msra.mxu0 0.0
        %3295 = vmatprep.subr.mxu0 0.0
        %3296 = vmatpush1.msra.mxu0 0.0
        %3297 = vmatprep.subr.mxu0 0.0
        %3298 = vmatpush1.msra.mxu0 0.0
        %3299 = vmatprep.subr.mxu0 0.0
        %3300 = vmatpush1.msra.mxu0 0.0
        %3301 = vmatprep.subr.mxu0 0.0
        %3302 = vmatpush1.msra.mxu0 0.0
        %3303 = vmatprep.subr.mxu0 0.0
        %3304 = vmatpush1.msra.mxu0 0.0
        %3305 = vmatprep.subr.mxu0 0.0
        %3306 = vmatpush1.msra.mxu0 0.0
        %3307 = vmatprep.subr.mxu0 0.0
        %3308 = vmatpush1.msra.mxu0 0.0
        %3309 = vmatprep.subr.mxu0 0.0
        %3310 = vmatpush1.msra.mxu0 0.0
        %3311 = vmatprep.subr.mxu0 0.0
        %3312 = vmatpush1.msra.mxu0 0.0
        %3313 = vmatprep.subr.mxu0 0.0
        %3314 = vmatpush1.msra.mxu0 0.0
        %3315 = vmatprep.subr.mxu0 0.0
        %3316 = vmatpush1.msra.mxu0 0.0
        %3317 = vmatprep.subr.mxu0 0.0
        %3318 = vmatpush1.msra.mxu0 0.0
        %3319 = vmatprep.subr.mxu0 0.0
        %3320 = vmatpush1.msra.mxu0 0.0
        %3321 = vmatprep.subr.mxu0 0.0
        %3322 = vmatpush1.msra.mxu0 0.0
        %3323 = vmatprep.subr.mxu0 0.0
        %3324 = vmatpush1.msra.mxu0 0.0
        %3325 = vmatprep.subr.mxu0 0.0
        %3326 = vmatpush1.msra.mxu0 0.0
        %3327 = vmatprep.subr.mxu0 0.0
        %3328 = vmatpush1.msra.mxu0 0.0
        %3329 = vmatprep.mubr.f32.mxu0 0.0
        %3330 = vmatmul.mubr.f32.gmra.mrb[0].mxu0 %v3192
        %v3331 = vpop.f32.mrb[0].mxu0
        %v3332 = vadd.f32 0.0, %v3331
        %v3333 = vpop.f32.mrb[0].mxu0
        %3334 = vdwg.mxu0
        %v3335 = vadd.f32 %v3130, %v3261
        %v3336 = vadd.f32 %v3131, %v3263
        %v3337 = vadd.f32 %v3132, %v3332
        %s3338 = scalar_lea.vmem %s2, 32
        %v3339 = vld [vmem:[%s3338] sm:$0xff]
        %3340 = vrot.lane.b32.xlu0 %v2564, 109
        %v3341 = vpop.permute.xlu0 %3340
        %3342 = vrot.lane.b32.xlu0 %v2540, 109
        %v3343 = vpop.permute.xlu0 %3342
        %3344 = vrot.lane.b32.xlu0 %v2541, 109
        %v3345 = vpop.permute.xlu0 %3344
        %3346 = vrot.lane.b32.xlu0 %v2568, 109
        %v3347 = vpop.permute.xlu0 %3346
        %3348 = vrot.lane.b32.xlu0 %v2565, 109
        %v3349 = vpop.permute.xlu0 %3348
        %3350 = vrot.lane.b32.xlu0 %v2542, 109
        %v3351 = vpop.permute.xlu0 %3350
        %3352 = vrot.lane.b32.xlu0 %v2543, 109
        %v3353 = vpop.permute.xlu0 %3352
        %3354 = vrot.lane.b32.xlu0 %v2569, 109
        %v3355 = vpop.permute.xlu0 %3354
        %3356 = vrot.lane.b32.xlu0 %v2566, 109
        %v3357 = vpop.permute.xlu0 %3356
        %3358 = vrot.lane.b32.xlu0 %v2544, 109
        %v3359 = vpop.permute.xlu0 %3358
        %3360 = vrot.lane.b32.xlu0 %v2545, 109
        %v3361 = vpop.permute.xlu0 %3360
        %3362 = vrot.lane.b32.xlu0 %v2570, 109
        %v3363 = vpop.permute.xlu0 %3362
        %3364 = vrot.lane.b32.xlu0 %v2567, 109
        %v3365 = vpop.permute.xlu0 %3364
        %3366 = vrot.lane.b32.xlu0 %v2546, 109
        %v3367 = vpop.permute.xlu0 %3366
        %3368 = vrot.lane.b32.xlu0 %v2547, 109
        %v3369 = vpop.permute.xlu0 %3368
        %3370 = vrot.lane.b32.xlu0 %v2571, 109
        %v3371 = vpop.permute.xlu0 %3370
        %v3372 = vsel %vm1325, %v3341, %v3343
        %v3373 = vsel %vm1325, %v3343, %v3345
        %v3374 = vsel %vm1325, %v3345, %v3347
        %v3375 = vsel %vm1325, %v3349, %v3351
        %v3376 = vsel %vm1325, %v3351, %v3353
        %v3377 = vsel %vm1325, %v3353, %v3355
        %v3378 = vsel %vm1325, %v3357, %v3359
        %v3379 = vsel %vm1325, %v3359, %v3361
        %v3380 = vsel %vm1325, %v3361, %v3363
        %v3381 = vsel %vm1325, %v3365, %v3367
        %v3382 = vsel %vm1325, %v3367, %v3369
        %v3383 = vsel %vm1325, %v3369, %v3371
        %v3397 = vsel %vm2639, %v3339, 0
        %3399 = vmatprep.subr.mxu0 %v3373
        %3400 = vmatpush1.msra.mxu0 %v3372
        %3401 = vmatprep.subr.mxu0 %v3376
        %3402 = vmatpush1.msra.mxu0 %v3375
        %3403 = vmatprep.subr.mxu0 %v3379
        %3404 = vmatpush1.msra.mxu0 %v3378
        %3405 = vmatprep.subr.mxu0 %v3382
        %3406 = vmatpush1.msra.mxu0 %v3381
        %3407 = vmatprep.subr.mxu0 0.0
        %3408 = vmatpush1.msra.mxu0 0.0
        %3409 = vmatprep.subr.mxu0 0.0
        %3410 = vmatpush1.msra.mxu0 0.0
        %3411 = vmatprep.subr.mxu0 0.0
        %3412 = vmatpush1.msra.mxu0 0.0
        %3413 = vmatprep.subr.mxu0 0.0
        %3414 = vmatpush1.msra.mxu0 0.0
        %3415 = vmatprep.subr.mxu0 0.0
        %3416 = vmatpush1.msra.mxu0 0.0
        %3417 = vmatprep.subr.mxu0 0.0
        %3418 = vmatpush1.msra.mxu0 0.0
        %3419 = vmatprep.subr.mxu0 0.0
        %3420 = vmatpush1.msra.mxu0 0.0
        %3421 = vmatprep.subr.mxu0 0.0
        %3422 = vmatpush1.msra.mxu0 0.0
        %3423 = vmatprep.subr.mxu0 0.0
        %3424 = vmatpush1.msra.mxu0 0.0
        %3425 = vmatprep.subr.mxu0 0.0
        %3426 = vmatpush1.msra.mxu0 0.0
        %3427 = vmatprep.subr.mxu0 0.0
        %3428 = vmatpush1.msra.mxu0 0.0
        %3429 = vmatprep.subr.mxu0 0.0
        %3430 = vmatpush1.msra.mxu0 0.0
        %3431 = vmatprep.subr.mxu0 0.0
        %3432 = vmatpush1.msra.mxu0 0.0
        %3433 = vmatprep.subr.mxu0 0.0
        %3434 = vmatpush1.msra.mxu0 0.0
        %3435 = vmatprep.subr.mxu0 0.0
        %3436 = vmatpush1.msra.mxu0 0.0
        %3437 = vmatprep.subr.mxu0 0.0
        %3438 = vmatpush1.msra.mxu0 0.0
        %3439 = vmatprep.subr.mxu0 0.0
        %3440 = vmatpush1.msra.mxu0 0.0
        %3441 = vmatprep.subr.mxu0 0.0
        %3442 = vmatpush1.msra.mxu0 0.0
        %3443 = vmatprep.subr.mxu0 0.0
        %3444 = vmatpush1.msra.mxu0 0.0
        %3445 = vmatprep.subr.mxu0 0.0
        %3446 = vmatpush1.msra.mxu0 0.0
        %3447 = vmatprep.subr.mxu0 0.0
        %3448 = vmatpush1.msra.mxu0 0.0
        %3449 = vmatprep.subr.mxu0 0.0
        %3450 = vmatpush1.msra.mxu0 0.0
        %3451 = vmatprep.subr.mxu0 0.0
        %3452 = vmatpush1.msra.mxu0 0.0
        %3453 = vmatprep.subr.mxu0 0.0
        %3454 = vmatpush1.msra.mxu0 0.0
        %3455 = vmatprep.subr.mxu0 0.0
        %3456 = vmatpush1.msra.mxu0 0.0
        %3457 = vmatprep.subr.mxu0 0.0
        %3458 = vmatpush1.msra.mxu0 0.0
        %3459 = vmatprep.subr.mxu0 0.0
        %3460 = vmatpush1.msra.mxu0 0.0
        %3461 = vmatprep.subr.mxu0 0.0
        %3462 = vmatpush1.msra.mxu0 0.0
        %3463 = vmatprep.mubr.f32.mxu0 0.0
        %3464 = vmatmul.mubr.f32.gmra.mrb[0].mxu0 %v3397
        %v3465 = vpop.f32.mrb[0].mxu0
        %v3466 = vadd.f32 0.0, %v3465
        %v3467 = vpop.f32.mrb[0].mxu0
        %v3468 = vadd.f32 0.0, %v3467
        %3469 = vdwg.mxu0
        %3470 = vmatprep.subr.mxu0 0.0
        %3471 = vmatpush1.msra.mxu0 %v3374
        %3472 = vmatprep.subr.mxu0 0.0
        %3473 = vmatpush1.msra.mxu0 %v3377
        %3474 = vmatprep.subr.mxu0 0.0
        %3475 = vmatpush1.msra.mxu0 %v3380
        %3476 = vmatprep.subr.mxu0 0.0
        %3477 = vmatpush1.msra.mxu0 %v3383
        %3478 = vmatprep.subr.mxu0 0.0
        %3479 = vmatpush1.msra.mxu0 0.0
        %3480 = vmatprep.subr.mxu0 0.0
        %3481 = vmatpush1.msra.mxu0 0.0
        %3482 = vmatprep.subr.mxu0 0.0
        %3483 = vmatpush1.msra.mxu0 0.0
        %3484 = vmatprep.subr.mxu0 0.0
        %3485 = vmatpush1.msra.mxu0 0.0
        %3486 = vmatprep.subr.mxu0 0.0
        %3487 = vmatpush1.msra.mxu0 0.0
        %3488 = vmatprep.subr.mxu0 0.0
        %3489 = vmatpush1.msra.mxu0 0.0
        %3490 = vmatprep.subr.mxu0 0.0
        %3491 = vmatpush1.msra.mxu0 0.0
        %3492 = vmatprep.subr.mxu0 0.0
        %3493 = vmatpush1.msra.mxu0 0.0
        %3494 = vmatprep.subr.mxu0 0.0
        %3495 = vmatpush1.msra.mxu0 0.0
        %3496 = vmatprep.subr.mxu0 0.0
        %3497 = vmatpush1.msra.mxu0 0.0
        %3498 = vmatprep.subr.mxu0 0.0
        %3499 = vmatpush1.msra.mxu0 0.0
        %3500 = vmatprep.subr.mxu0 0.0
        %3501 = vmatpush1.msra.mxu0 0.0
        %3502 = vmatprep.subr.mxu0 0.0
        %3503 = vmatpush1.msra.mxu0 0.0
        %3504 = vmatprep.subr.mxu0 0.0
        %3505 = vmatpush1.msra.mxu0 0.0
        %3506 = vmatprep.subr.mxu0 0.0
        %3507 = vmatpush1.msra.mxu0 0.0
        %3508 = vmatprep.subr.mxu0 0.0
        %3509 = vmatpush1.msra.mxu0 0.0
        %3510 = vmatprep.subr.mxu0 0.0
        %3511 = vmatpush1.msra.mxu0 0.0
        %3512 = vmatprep.subr.mxu0 0.0
        %3513 = vmatpush1.msra.mxu0 0.0
        %3514 = vmatprep.subr.mxu0 0.0
        %3515 = vmatpush1.msra.mxu0 0.0
        %3516 = vmatprep.subr.mxu0 0.0
        %3517 = vmatpush1.msra.mxu0 0.0
        %3518 = vmatprep.subr.mxu0 0.0
        %3519 = vmatpush1.msra.mxu0 0.0
        %3520 = vmatprep.subr.mxu0 0.0
        %3521 = vmatpush1.msra.mxu0 0.0
        %3522 = vmatprep.subr.mxu0 0.0
        %3523 = vmatpush1.msra.mxu0 0.0
        %3524 = vmatprep.subr.mxu0 0.0
        %3525 = vmatpush1.msra.mxu0 0.0
        %3526 = vmatprep.subr.mxu0 0.0
        %3527 = vmatpush1.msra.mxu0 0.0
        %3528 = vmatprep.subr.mxu0 0.0
        %3529 = vmatpush1.msra.mxu0 0.0
        %3530 = vmatprep.subr.mxu0 0.0
        %3531 = vmatpush1.msra.mxu0 0.0
        %3532 = vmatprep.subr.mxu0 0.0
        %3533 = vmatpush1.msra.mxu0 0.0
        %3534 = vmatprep.mubr.f32.mxu0 0.0
        %3535 = vmatmul.mubr.f32.gmra.mrb[0].mxu0 %v3397
        %v3536 = vpop.f32.mrb[0].mxu0
        %v3537 = vadd.f32 0.0, %v3536
        %v3538 = vpop.f32.mrb[0].mxu0
        %3539 = vdwg.mxu0
        %v3540 = vadd.f32 %v3335, %v3466
        %v3541 = vadd.f32 %v3336, %v3468
        %v3542 = vadd.f32 %v3337, %v3537
        %s3543 = scalar_lea.vmem %s2, 40
        %v3544 = vld [vmem:[%s3543] sm:$0xff]
        %3545 = vrot.lane.b32.xlu0 %v2564, 108
        %v3546 = vpop.permute.xlu0 %3545
        %3547 = vrot.lane.b32.xlu0 %v2540, 108
        %v3548 = vpop.permute.xlu0 %3547
        %3549 = vrot.lane.b32.xlu0 %v2541, 108
        %v3550 = vpop.permute.xlu0 %3549
        %3551 = vrot.lane.b32.xlu0 %v2568, 108
        %v3552 = vpop.permute.xlu0 %3551
        %3553 = vrot.lane.b32.xlu0 %v2565, 108
        %v3554 = vpop.permute.xlu0 %3553
        %3555 = vrot.lane.b32.xlu0 %v2542, 108
        %v3556 = vpop.permute.xlu0 %3555
        %3557 = vrot.lane.b32.xlu0 %v2543, 108
        %v3558 = vpop.permute.xlu0 %3557
        %3559 = vrot.lane.b32.xlu0 %v2569, 108
        %v3560 = vpop.permute.xlu0 %3559
        %3561 = vrot.lane.b32.xlu0 %v2566, 108
        %v3562 = vpop.permute.xlu0 %3561
        %3563 = vrot.lane.b32.xlu0 %v2544, 108
        %v3564 = vpop.permute.xlu0 %3563
        %3565 = vrot.lane.b32.xlu0 %v2545, 108
        %v3566 = vpop.permute.xlu0 %3565
        %3567 = vrot.lane.b32.xlu0 %v2570, 108
        %v3568 = vpop.permute.xlu0 %3567
        %3569 = vrot.lane.b32.xlu0 %v2567, 108
        %v3570 = vpop.permute.xlu0 %3569
        %3571 = vrot.lane.b32.xlu0 %v2546, 108
        %v3572 = vpop.permute.xlu0 %3571
        %3573 = vrot.lane.b32.xlu0 %v2547, 108
        %v3574 = vpop.permute.xlu0 %3573
        %3575 = vrot.lane.b32.xlu0 %v2571, 108
        %v3576 = vpop.permute.xlu0 %3575
        %v3577 = vsel %vm1543, %v3546, %v3548
        %v3578 = vsel %vm1543, %v3548, %v3550
        %v3579 = vsel %vm1543, %v3550, %v3552
        %v3580 = vsel %vm1543, %v3554, %v3556
        %v3581 = vsel %vm1543, %v3556, %v3558
        %v3582 = vsel %vm1543, %v3558, %v3560
        %v3583 = vsel %vm1543, %v3562, %v3564
        %v3584 = vsel %vm1543, %v3564, %v3566
        %v3585 = vsel %vm1543, %v3566, %v3568
        %v3586 = vsel %vm1543, %v3570, %v3572
        %v3587 = vsel %vm1543, %v3572, %v3574
        %v3588 = vsel %vm1543, %v3574, %v3576
        %v3602 = vsel %vm2639, %v3544, 0
        %3604 = vmatprep.subr.mxu0 %v3578
        %3605 = vmatpush1.msra.mxu0 %v3577
        %3606 = vmatprep.subr.mxu0 %v3581
        %3607 = vmatpush1.msra.mxu0 %v3580
        %3608 = vmatprep.subr.mxu0 %v3584
        %3609 = vmatpush1.msra.mxu0 %v3583
        %3610 = vmatprep.subr.mxu0 %v3587
        %3611 = vmatpush1.msra.mxu0 %v3586
        %3612 = vmatprep.subr.mxu0 0.0
        %3613 = vmatpush1.msra.mxu0 0.0
        %3614 = vmatprep.subr.mxu0 0.0
        %3615 = vmatpush1.msra.mxu0 0.0
        %3616 = vmatprep.subr.mxu0 0.0
        %3617 = vmatpush1.msra.mxu0 0.0
        %3618 = vmatprep.subr.mxu0 0.0
        %3619 = vmatpush1.msra.mxu0 0.0
        %3620 = vmatprep.subr.mxu0 0.0
        %3621 = vmatpush1.msra.mxu0 0.0
        %3622 = vmatprep.subr.mxu0 0.0
        %3623 = vmatpush1.msra.mxu0 0.0
        %3624 = vmatprep.subr.mxu0 0.0
        %3625 = vmatpush1.msra.mxu0 0.0
        %3626 = vmatprep.subr.mxu0 0.0
        %3627 = vmatpush1.msra.mxu0 0.0
        %3628 = vmatprep.subr.mxu0 0.0
        %3629 = vmatpush1.msra.mxu0 0.0
        %3630 = vmatprep.subr.mxu0 0.0
        %3631 = vmatpush1.msra.mxu0 0.0
        %3632 = vmatprep.subr.mxu0 0.0
        %3633 = vmatpush1.msra.mxu0 0.0
        %3634 = vmatprep.subr.mxu0 0.0
        %3635 = vmatpush1.msra.mxu0 0.0
        %3636 = vmatprep.subr.mxu0 0.0
        %3637 = vmatpush1.msra.mxu0 0.0
        %3638 = vmatprep.subr.mxu0 0.0
        %3639 = vmatpush1.msra.mxu0 0.0
        %3640 = vmatprep.subr.mxu0 0.0
        %3641 = vmatpush1.msra.mxu0 0.0
        %3642 = vmatprep.subr.mxu0 0.0
        %3643 = vmatpush1.msra.mxu0 0.0
        %3644 = vmatprep.subr.mxu0 0.0
        %3645 = vmatpush1.msra.mxu0 0.0
        %3646 = vmatprep.subr.mxu0 0.0
        %3647 = vmatpush1.msra.mxu0 0.0
        %3648 = vmatprep.subr.mxu0 0.0
        %3649 = vmatpush1.msra.mxu0 0.0
        %3650 = vmatprep.subr.mxu0 0.0
        %3651 = vmatpush1.msra.mxu0 0.0
        %3652 = vmatprep.subr.mxu0 0.0
        %3653 = vmatpush1.msra.mxu0 0.0
        %3654 = vmatprep.subr.mxu0 0.0
        %3655 = vmatpush1.msra.mxu0 0.0
        %3656 = vmatprep.subr.mxu0 0.0
        %3657 = vmatpush1.msra.mxu0 0.0
        %3658 = vmatprep.subr.mxu0 0.0
        %3659 = vmatpush1.msra.mxu0 0.0
        %3660 = vmatprep.subr.mxu0 0.0
        %3661 = vmatpush1.msra.mxu0 0.0
        %3662 = vmatprep.subr.mxu0 0.0
        %3663 = vmatpush1.msra.mxu0 0.0
        %3664 = vmatprep.subr.mxu0 0.0
        %3665 = vmatpush1.msra.mxu0 0.0
        %3666 = vmatprep.subr.mxu0 0.0
        %3667 = vmatpush1.msra.mxu0 0.0
        %3668 = vmatprep.mubr.f32.mxu0 0.0
        %3669 = vmatmul.mubr.f32.gmra.mrb[0].mxu0 %v3602
        %v3670 = vpop.f32.mrb[0].mxu0
        %v3671 = vadd.f32 0.0, %v3670
        %v3672 = vpop.f32.mrb[0].mxu0
        %v3673 = vadd.f32 0.0, %v3672
        %3674 = vdwg.mxu0
        %3675 = vmatprep.subr.mxu0 0.0
        %3676 = vmatpush1.msra.mxu0 %v3579
        %3677 = vmatprep.subr.mxu0 0.0
        %3678 = vmatpush1.msra.mxu0 %v3582
        %3679 = vmatprep.subr.mxu0 0.0
        %3680 = vmatpush1.msra.mxu0 %v3585
        %3681 = vmatprep.subr.mxu0 0.0
        %3682 = vmatpush1.msra.mxu0 %v3588
        %3683 = vmatprep.subr.mxu0 0.0
        %3684 = vmatpush1.msra.mxu0 0.0
        %3685 = vmatprep.subr.mxu0 0.0
        %3686 = vmatpush1.msra.mxu0 0.0
        %3687 = vmatprep.subr.mxu0 0.0
        %3688 = vmatpush1.msra.mxu0 0.0
        %3689 = vmatprep.subr.mxu0 0.0
        %3690 = vmatpush1.msra.mxu0 0.0
        %3691 = vmatprep.subr.mxu0 0.0
        %3692 = vmatpush1.msra.mxu0 0.0
        %3693 = vmatprep.subr.mxu0 0.0
        %3694 = vmatpush1.msra.mxu0 0.0
        %3695 = vmatprep.subr.mxu0 0.0
        %3696 = vmatpush1.msra.mxu0 0.0
        %3697 = vmatprep.subr.mxu0 0.0
        %3698 = vmatpush1.msra.mxu0 0.0
        %3699 = vmatprep.subr.mxu0 0.0
        %3700 = vmatpush1.msra.mxu0 0.0
        %3701 = vmatprep.subr.mxu0 0.0
        %3702 = vmatpush1.msra.mxu0 0.0
        %3703 = vmatprep.subr.mxu0 0.0
        %3704 = vmatpush1.msra.mxu0 0.0
        %3705 = vmatprep.subr.mxu0 0.0
        %3706 = vmatpush1.msra.mxu0 0.0
        %3707 = vmatprep.subr.mxu0 0.0
        %3708 = vmatpush1.msra.mxu0 0.0
        %3709 = vmatprep.subr.mxu0 0.0
        %3710 = vmatpush1.msra.mxu0 0.0
        %3711 = vmatprep.subr.mxu0 0.0
        %3712 = vmatpush1.msra.mxu0 0.0
        %3713 = vmatprep.subr.mxu0 0.0
        %3714 = vmatpush1.msra.mxu0 0.0
        %3715 = vmatprep.subr.mxu0 0.0
        %3716 = vmatpush1.msra.mxu0 0.0
        %3717 = vmatprep.subr.mxu0 0.0
        %3718 = vmatpush1.msra.mxu0 0.0
        %3719 = vmatprep.subr.mxu0 0.0
        %3720 = vmatpush1.msra.mxu0 0.0
        %3721 = vmatprep.subr.mxu0 0.0
        %3722 = vmatpush1.msra.mxu0 0.0
        %3723 = vmatprep.subr.mxu0 0.0
        %3724 = vmatpush1.msra.mxu0 0.0
        %3725 = vmatprep.subr.mxu0 0.0
        %3726 = vmatpush1.msra.mxu0 0.0
        %3727 = vmatprep.subr.mxu0 0.0
        %3728 = vmatpush1.msra.mxu0 0.0
        %3729 = vmatprep.subr.mxu0 0.0
        %3730 = vmatpush1.msra.mxu0 0.0
        %3731 = vmatprep.subr.mxu0 0.0
        %3732 = vmatpush1.msra.mxu0 0.0
        %3733 = vmatprep.subr.mxu0 0.0
        %3734 = vmatpush1.msra.mxu0 0.0
        %3735 = vmatprep.subr.mxu0 0.0
        %3736 = vmatpush1.msra.mxu0 0.0
        %3737 = vmatprep.subr.mxu0 0.0
        %3738 = vmatpush1.msra.mxu0 0.0
        %3739 = vmatprep.mubr.f32.mxu0 0.0
        %3740 = vmatmul.mubr.f32.gmra.mrb[0].mxu0 %v3602
        %v3741 = vpop.f32.mrb[0].mxu0
        %v3742 = vadd.f32 0.0, %v3741
        %v3743 = vpop.f32.mrb[0].mxu0
        %3744 = vdwg.mxu0
        %v3745 = vadd.f32 %v3540, %v3671
        %v3746 = vadd.f32 %v3541, %v3673
        %v3747 = vadd.f32 %v3542, %v3742
        %s3748 = scalar_lea.vmem %s2, 48
        %v3749 = vld [vmem:[%s3748] sm:$0xff]
        %3750 = vrot.lane.b32.xlu0 %v2564, 92
        %v3751 = vpop.permute.xlu0 %3750
        %3752 = vrot.lane.b32.xlu0 %v2540, 92
        %v3753 = vpop.permute.xlu0 %3752
        %3754 = vrot.lane.b32.xlu0 %v2541, 92
        %v3755 = vpop.permute.xlu0 %3754
        %3756 = vrot.lane.b32.xlu0 %v2568, 92
        %v3757 = vpop.permute.xlu0 %3756
        %3758 = vrot.lane.b32.xlu0 %v2565, 92
        %v3759 = vpop.permute.xlu0 %3758
        %3760 = vrot.lane.b32.xlu0 %v2542, 92
        %v3761 = vpop.permute.xlu0 %3760
        %3762 = vrot.lane.b32.xlu0 %v2543, 92
        %v3763 = vpop.permute.xlu0 %3762
        %3764 = vrot.lane.b32.xlu0 %v2569, 92
        %v3765 = vpop.permute.xlu0 %3764
        %3766 = vrot.lane.b32.xlu0 %v2566, 92
        %v3767 = vpop.permute.xlu0 %3766
        %3768 = vrot.lane.b32.xlu0 %v2544, 92
        %v3769 = vpop.permute.xlu0 %3768
        %3770 = vrot.lane.b32.xlu0 %v2545, 92
        %v3771 = vpop.permute.xlu0 %3770
        %3772 = vrot.lane.b32.xlu0 %v2570, 92
        %v3773 = vpop.permute.xlu0 %3772
        %3774 = vrot.lane.b32.xlu0 %v2567, 92
        %v3775 = vpop.permute.xlu0 %3774
        %3776 = vrot.lane.b32.xlu0 %v2546, 92
        %v3777 = vpop.permute.xlu0 %3776
        %3778 = vrot.lane.b32.xlu0 %v2547, 92
        %v3779 = vpop.permute.xlu0 %3778
        %3780 = vrot.lane.b32.xlu0 %v2571, 92
        %v3781 = vpop.permute.xlu0 %3780
        %v3782 = vsel %vm1761, %v3751, %v3753
        %v3783 = vsel %vm1761, %v3753, %v3755
        %v3784 = vsel %vm1761, %v3755, %v3757
        %v3785 = vsel %vm1761, %v3759, %v3761
        %v3786 = vsel %vm1761, %v3761, %v3763
        %v3787 = vsel %vm1761, %v3763, %v3765
        %v3788 = vsel %vm1761, %v3767, %v3769
        %v3789 = vsel %vm1761, %v3769, %v3771
        %v3790 = vsel %vm1761, %v3771, %v3773
        %v3791 = vsel %vm1761, %v3775, %v3777
        %v3792 = vsel %vm1761, %v3777, %v3779
        %v3793 = vsel %vm1761, %v3779, %v3781
        %v3807 = vsel %vm2639, %v3749, 0
        %3809 = vmatprep.subr.mxu0 %v3783
        %3810 = vmatpush1.msra.mxu0 %v3782
        %3811 = vmatprep.subr.mxu0 %v3786
        %3812 = vmatpush1.msra.mxu0 %v3785
        %3813 = vmatprep.subr.mxu0 %v3789
        %3814 = vmatpush1.msra.mxu0 %v3788
        %3815 = vmatprep.subr.mxu0 %v3792
        %3816 = vmatpush1.msra.mxu0 %v3791
        %3817 = vmatprep.subr.mxu0 0.0
        %3818 = vmatpush1.msra.mxu0 0.0
        %3819 = vmatprep.subr.mxu0 0.0
        %3820 = vmatpush1.msra.mxu0 0.0
        %3821 = vmatprep.subr.mxu0 0.0
        %3822 = vmatpush1.msra.mxu0 0.0
        %3823 = vmatprep.subr.mxu0 0.0
        %3824 = vmatpush1.msra.mxu0 0.0
        %3825 = vmatprep.subr.mxu0 0.0
        %3826 = vmatpush1.msra.mxu0 0.0
        %3827 = vmatprep.subr.mxu0 0.0
        %3828 = vmatpush1.msra.mxu0 0.0
        %3829 = vmatprep.subr.mxu0 0.0
        %3830 = vmatpush1.msra.mxu0 0.0
        %3831 = vmatprep.subr.mxu0 0.0
        %3832 = vmatpush1.msra.mxu0 0.0
        %3833 = vmatprep.subr.mxu0 0.0
        %3834 = vmatpush1.msra.mxu0 0.0
        %3835 = vmatprep.subr.mxu0 0.0
        %3836 = vmatpush1.msra.mxu0 0.0
        %3837 = vmatprep.subr.mxu0 0.0
        %3838 = vmatpush1.msra.mxu0 0.0
        %3839 = vmatprep.subr.mxu0 0.0
        %3840 = vmatpush1.msra.mxu0 0.0
        %3841 = vmatprep.subr.mxu0 0.0
        %3842 = vmatpush1.msra.mxu0 0.0
        %3843 = vmatprep.subr.mxu0 0.0
        %3844 = vmatpush1.msra.mxu0 0.0
        %3845 = vmatprep.subr.mxu0 0.0
        %3846 = vmatpush1.msra.mxu0 0.0
        %3847 = vmatprep.subr.mxu0 0.0
        %3848 = vmatpush1.msra.mxu0 0.0
        %3849 = vmatprep.subr.mxu0 0.0
        %3850 = vmatpush1.msra.mxu0 0.0
        %3851 = vmatprep.subr.mxu0 0.0
        %3852 = vmatpush1.msra.mxu0 0.0
        %3853 = vmatprep.subr.mxu0 0.0
        %3854 = vmatpush1.msra.mxu0 0.0
        %3855 = vmatprep.subr.mxu0 0.0
        %3856 = vmatpush1.msra.mxu0 0.0
        %3857 = vmatprep.subr.mxu0 0.0
        %3858 = vmatpush1.msra.mxu0 0.0
        %3859 = vmatprep.subr.mxu0 0.0
        %3860 = vmatpush1.msra.mxu0 0.0
        %3861 = vmatprep.subr.mxu0 0.0
        %3862 = vmatpush1.msra.mxu0 0.0
        %3863 = vmatprep.subr.mxu0 0.0
        %3864 = vmatpush1.msra.mxu0 0.0
        %3865 = vmatprep.subr.mxu0 0.0
        %3866 = vmatpush1.msra.mxu0 0.0
        %3867 = vmatprep.subr.mxu0 0.0
        %3868 = vmatpush1.msra.mxu0 0.0
        %3869 = vmatprep.subr.mxu0 0.0
        %3870 = vmatpush1.msra.mxu0 0.0
        %3871 = vmatprep.subr.mxu0 0.0
        %3872 = vmatpush1.msra.mxu0 0.0
        %3873 = vmatprep.mubr.f32.mxu0 0.0
        %3874 = vmatmul.mubr.f32.gmra.mrb[0].mxu0 %v3807
        %v3875 = vpop.f32.mrb[0].mxu0
        %v3876 = vadd.f32 0.0, %v3875
        %v3877 = vpop.f32.mrb[0].mxu0
        %v3878 = vadd.f32 0.0, %v3877
        %3879 = vdwg.mxu0
        %3880 = vmatprep.subr.mxu0 0.0
        %3881 = vmatpush1.msra.mxu0 %v3784
        %3882 = vmatprep.subr.mxu0 0.0
        %3883 = vmatpush1.msra.mxu0 %v3787
        %3884 = vmatprep.subr.mxu0 0.0
        %3885 = vmatpush1.msra.mxu0 %v3790
        %3886 = vmatprep.subr.mxu0 0.0
        %3887 = vmatpush1.msra.mxu0 %v3793
        %3888 = vmatprep.subr.mxu0 0.0
        %3889 = vmatpush1.msra.mxu0 0.0
        %3890 = vmatprep.subr.mxu0 0.0
        %3891 = vmatpush1.msra.mxu0 0.0
        %3892 = vmatprep.subr.mxu0 0.0
        %3893 = vmatpush1.msra.mxu0 0.0
        %3894 = vmatprep.subr.mxu0 0.0
        %3895 = vmatpush1.msra.mxu0 0.0
        %3896 = vmatprep.subr.mxu0 0.0
        %3897 = vmatpush1.msra.mxu0 0.0
        %3898 = vmatprep.subr.mxu0 0.0
        %3899 = vmatpush1.msra.mxu0 0.0
        %3900 = vmatprep.subr.mxu0 0.0
        %3901 = vmatpush1.msra.mxu0 0.0
        %3902 = vmatprep.subr.mxu0 0.0
        %3903 = vmatpush1.msra.mxu0 0.0
        %3904 = vmatprep.subr.mxu0 0.0
        %3905 = vmatpush1.msra.mxu0 0.0
        %3906 = vmatprep.subr.mxu0 0.0
        %3907 = vmatpush1.msra.mxu0 0.0
        %3908 = vmatprep.subr.mxu0 0.0
        %3909 = vmatpush1.msra.mxu0 0.0
        %3910 = vmatprep.subr.mxu0 0.0
        %3911 = vmatpush1.msra.mxu0 0.0
        %3912 = vmatprep.subr.mxu0 0.0
        %3913 = vmatpush1.msra.mxu0 0.0
        %3914 = vmatprep.subr.mxu0 0.0
        %3915 = vmatpush1.msra.mxu0 0.0
        %3916 = vmatprep.subr.mxu0 0.0
        %3917 = vmatpush1.msra.mxu0 0.0
        %3918 = vmatprep.subr.mxu0 0.0
        %3919 = vmatpush1.msra.mxu0 0.0
        %3920 = vmatprep.subr.mxu0 0.0
        %3921 = vmatpush1.msra.mxu0 0.0
        %3922 = vmatprep.subr.mxu0 0.0
        %3923 = vmatpush1.msra.mxu0 0.0
        %3924 = vmatprep.subr.mxu0 0.0
        %3925 = vmatpush1.msra.mxu0 0.0
        %3926 = vmatprep.subr.mxu0 0.0
        %3927 = vmatpush1.msra.mxu0 0.0
        %3928 = vmatprep.subr.mxu0 0.0
        %3929 = vmatpush1.msra.mxu0 0.0
        %3930 = vmatprep.subr.mxu0 0.0
        %3931 = vmatpush1.msra.mxu0 0.0
        %3932 = vmatprep.subr.mxu0 0.0
        %3933 = vmatpush1.msra.mxu0 0.0
        %3934 = vmatprep.subr.mxu0 0.0
        %3935 = vmatpush1.msra.mxu0 0.0
        %3936 = vmatprep.subr.mxu0 0.0
        %3937 = vmatpush1.msra.mxu0 0.0
        %3938 = vmatprep.subr.mxu0 0.0
        %3939 = vmatpush1.msra.mxu0 0.0
        %3940 = vmatprep.subr.mxu0 0.0
        %3941 = vmatpush1.msra.mxu0 0.0
        %3942 = vmatprep.subr.mxu0 0.0
        %3943 = vmatpush1.msra.mxu0 0.0
        %3944 = vmatprep.mubr.f32.mxu0 0.0
        %3945 = vmatmul.mubr.f32.gmra.mrb[0].mxu0 %v3807
        %v3946 = vpop.f32.mrb[0].mxu0
        %v3947 = vadd.f32 0.0, %v3946
        %v3948 = vpop.f32.mrb[0].mxu0
        %3949 = vdwg.mxu0
        %v3950 = vadd.f32 %v3745, %v3876
        %v3951 = vadd.f32 %v3746, %v3878
        %v3952 = vadd.f32 %v3747, %v3947
        %s3953 = scalar_lea.vmem %s2, 56
        %v3954 = vld [vmem:[%s3953] sm:$0xff]
        %3955 = vrot.lane.b32.xlu0 %v2564, 91
        %v3956 = vpop.permute.xlu0 %3955
        %3957 = vrot.lane.b32.xlu0 %v2540, 91
        %v3958 = vpop.permute.xlu0 %3957
        %3959 = vrot.lane.b32.xlu0 %v2541, 91
        %v3960 = vpop.permute.xlu0 %3959
        %3961 = vrot.lane.b32.xlu0 %v2568, 91
        %v3962 = vpop.permute.xlu0 %3961
        %3963 = vrot.lane.b32.xlu0 %v2565, 91
        %v3964 = vpop.permute.xlu0 %3963
        %3965 = vrot.lane.b32.xlu0 %v2542, 91
        %v3966 = vpop.permute.xlu0 %3965
        %3967 = vrot.lane.b32.xlu0 %v2543, 91
        %v3968 = vpop.permute.xlu0 %3967
        %3969 = vrot.lane.b32.xlu0 %v2569, 91
        %v3970 = vpop.permute.xlu0 %3969
        %3971 = vrot.lane.b32.xlu0 %v2566, 91
        %v3972 = vpop.permute.xlu0 %3971
        %3973 = vrot.lane.b32.xlu0 %v2544, 91
        %v3974 = vpop.permute.xlu0 %3973
        %3975 = vrot.lane.b32.xlu0 %v2545, 91
        %v3976 = vpop.permute.xlu0 %3975
        %3977 = vrot.lane.b32.xlu0 %v2570, 91
        %v3978 = vpop.permute.xlu0 %3977
        %3979 = vrot.lane.b32.xlu0 %v2567, 91
        %v3980 = vpop.permute.xlu0 %3979
        %3981 = vrot.lane.b32.xlu0 %v2546, 91
        %v3982 = vpop.permute.xlu0 %3981
        %3983 = vrot.lane.b32.xlu0 %v2547, 91
        %v3984 = vpop.permute.xlu0 %3983
        %3985 = vrot.lane.b32.xlu0 %v2571, 91
        %v3986 = vpop.permute.xlu0 %3985
        %v3987 = vsel %vm1979, %v3956, %v3958
        %v3988 = vsel %vm1979, %v3958, %v3960
        %v3989 = vsel %vm1979, %v3960, %v3962
        %v3990 = vsel %vm1979, %v3964, %v3966
        %v3991 = vsel %vm1979, %v3966, %v3968
        %v3992 = vsel %vm1979, %v3968, %v3970
        %v3993 = vsel %vm1979, %v3972, %v3974
        %v3994 = vsel %vm1979, %v3974, %v3976
        %v3995 = vsel %vm1979, %v3976, %v3978
        %v3996 = vsel %vm1979, %v3980, %v3982
        %v3997 = vsel %vm1979, %v3982, %v3984
        %v3998 = vsel %vm1979, %v3984, %v3986
        %v4012 = vsel %vm2639, %v3954, 0
        %4014 = vmatprep.subr.mxu0 %v3988
        %4015 = vmatpush1.msra.mxu0 %v3987
        %4016 = vmatprep.subr.mxu0 %v3991
        %4017 = vmatpush1.msra.mxu0 %v3990
        %4018 = vmatprep.subr.mxu0 %v3994
        %4019 = vmatpush1.msra.mxu0 %v3993
        %4020 = vmatprep.subr.mxu0 %v3997
        %4021 = vmatpush1.msra.mxu0 %v3996
        %4022 = vmatprep.subr.mxu0 0.0
        %4023 = vmatpush1.msra.mxu0 0.0
        %4024 = vmatprep.subr.mxu0 0.0
        %4025 = vmatpush1.msra.mxu0 0.0
        %4026 = vmatprep.subr.mxu0 0.0
        %4027 = vmatpush1.msra.mxu0 0.0
        %4028 = vmatprep.subr.mxu0 0.0
        %4029 = vmatpush1.msra.mxu0 0.0
        %4030 = vmatprep.subr.mxu0 0.0
        %4031 = vmatpush1.msra.mxu0 0.0
        %4032 = vmatprep.subr.mxu0 0.0
        %4033 = vmatpush1.msra.mxu0 0.0
        %4034 = vmatprep.subr.mxu0 0.0
        %4035 = vmatpush1.msra.mxu0 0.0
        %4036 = vmatprep.subr.mxu0 0.0
        %4037 = vmatpush1.msra.mxu0 0.0
        %4038 = vmatprep.subr.mxu0 0.0
        %4039 = vmatpush1.msra.mxu0 0.0
        %4040 = vmatprep.subr.mxu0 0.0
        %4041 = vmatpush1.msra.mxu0 0.0
        %4042 = vmatprep.subr.mxu0 0.0
        %4043 = vmatpush1.msra.mxu0 0.0
        %4044 = vmatprep.subr.mxu0 0.0
        %4045 = vmatpush1.msra.mxu0 0.0
        %4046 = vmatprep.subr.mxu0 0.0
        %4047 = vmatpush1.msra.mxu0 0.0
        %4048 = vmatprep.subr.mxu0 0.0
        %4049 = vmatpush1.msra.mxu0 0.0
        %4050 = vmatprep.subr.mxu0 0.0
        %4051 = vmatpush1.msra.mxu0 0.0
        %4052 = vmatprep.subr.mxu0 0.0
        %4053 = vmatpush1.msra.mxu0 0.0
        %4054 = vmatprep.subr.mxu0 0.0
        %4055 = vmatpush1.msra.mxu0 0.0
        %4056 = vmatprep.subr.mxu0 0.0
        %4057 = vmatpush1.msra.mxu0 0.0
        %4058 = vmatprep.subr.mxu0 0.0
        %4059 = vmatpush1.msra.mxu0 0.0
        %4060 = vmatprep.subr.mxu0 0.0
        %4061 = vmatpush1.msra.mxu0 0.0
        %4062 = vmatprep.subr.mxu0 0.0
        %4063 = vmatpush1.msra.mxu0 0.0
        %4064 = vmatprep.subr.mxu0 0.0
        %4065 = vmatpush1.msra.mxu0 0.0
        %4066 = vmatprep.subr.mxu0 0.0
        %4067 = vmatpush1.msra.mxu0 0.0
        %4068 = vmatprep.subr.mxu0 0.0
        %4069 = vmatpush1.msra.mxu0 0.0
        %4070 = vmatprep.subr.mxu0 0.0
        %4071 = vmatpush1.msra.mxu0 0.0
        %4072 = vmatprep.subr.mxu0 0.0
        %4073 = vmatpush1.msra.mxu0 0.0
        %4074 = vmatprep.subr.mxu0 0.0
        %4075 = vmatpush1.msra.mxu0 0.0
        %4076 = vmatprep.subr.mxu0 0.0
        %4077 = vmatpush1.msra.mxu0 0.0
        %4078 = vmatprep.mubr.f32.mxu0 0.0
        %4079 = vmatmul.mubr.f32.gmra.mrb[0].mxu0 %v4012
        %v4080 = vpop.f32.mrb[0].mxu0
        %v4081 = vadd.f32 0.0, %v4080
        %v4082 = vpop.f32.mrb[0].mxu0
        %v4083 = vadd.f32 0.0, %v4082
        %4084 = vdwg.mxu0
        %4085 = vmatprep.subr.mxu0 0.0
        %4086 = vmatpush1.msra.mxu0 %v3989
        %4087 = vmatprep.subr.mxu0 0.0
        %4088 = vmatpush1.msra.mxu0 %v3992
        %4089 = vmatprep.subr.mxu0 0.0
        %4090 = vmatpush1.msra.mxu0 %v3995
        %4091 = vmatprep.subr.mxu0 0.0
        %4092 = vmatpush1.msra.mxu0 %v3998
        %4093 = vmatprep.subr.mxu0 0.0
        %4094 = vmatpush1.msra.mxu0 0.0
        %4095 = vmatprep.subr.mxu0 0.0
        %4096 = vmatpush1.msra.mxu0 0.0
        %4097 = vmatprep.subr.mxu0 0.0
        %4098 = vmatpush1.msra.mxu0 0.0
        %4099 = vmatprep.subr.mxu0 0.0
        %4100 = vmatpush1.msra.mxu0 0.0
        %4101 = vmatprep.subr.mxu0 0.0
        %4102 = vmatpush1.msra.mxu0 0.0
        %4103 = vmatprep.subr.mxu0 0.0
        %4104 = vmatpush1.msra.mxu0 0.0
        %4105 = vmatprep.subr.mxu0 0.0
        %4106 = vmatpush1.msra.mxu0 0.0
        %4107 = vmatprep.subr.mxu0 0.0
        %4108 = vmatpush1.msra.mxu0 0.0
        %4109 = vmatprep.subr.mxu0 0.0
        %4110 = vmatpush1.msra.mxu0 0.0
        %4111 = vmatprep.subr.mxu0 0.0
        %4112 = vmatpush1.msra.mxu0 0.0
        %4113 = vmatprep.subr.mxu0 0.0
        %4114 = vmatpush1.msra.mxu0 0.0
        %4115 = vmatprep.subr.mxu0 0.0
        %4116 = vmatpush1.msra.mxu0 0.0
        %4117 = vmatprep.subr.mxu0 0.0
        %4118 = vmatpush1.msra.mxu0 0.0
        %4119 = vmatprep.subr.mxu0 0.0
        %4120 = vmatpush1.msra.mxu0 0.0
        %4121 = vmatprep.subr.mxu0 0.0
        %4122 = vmatpush1.msra.mxu0 0.0
        %4123 = vmatprep.subr.mxu0 0.0
        %4124 = vmatpush1.msra.mxu0 0.0
        %4125 = vmatprep.subr.mxu0 0.0
        %4126 = vmatpush1.msra.mxu0 0.0
        %4127 = vmatprep.subr.mxu0 0.0
        %4128 = vmatpush1.msra.mxu0 0.0
        %4129 = vmatprep.subr.mxu0 0.0
        %4130 = vmatpush1.msra.mxu0 0.0
        %4131 = vmatprep.subr.mxu0 0.0
        %4132 = vmatpush1.msra.mxu0 0.0
        %4133 = vmatprep.subr.mxu0 0.0
        %4134 = vmatpush1.msra.mxu0 0.0
        %4135 = vmatprep.subr.mxu0 0.0
        %4136 = vmatpush1.msra.mxu0 0.0
        %4137 = vmatprep.subr.mxu0 0.0
        %4138 = vmatpush1.msra.mxu0 0.0
        %4139 = vmatprep.subr.mxu0 0.0
        %4140 = vmatpush1.msra.mxu0 0.0
        %4141 = vmatprep.subr.mxu0 0.0
        %4142 = vmatpush1.msra.mxu0 0.0
        %4143 = vmatprep.subr.mxu0 0.0
        %4144 = vmatpush1.msra.mxu0 0.0
        %4145 = vmatprep.subr.mxu0 0.0
        %4146 = vmatpush1.msra.mxu0 0.0
        %4147 = vmatprep.subr.mxu0 0.0
        %4148 = vmatpush1.msra.mxu0 0.0
        %4149 = vmatprep.mubr.f32.mxu0 0.0
        %4150 = vmatmul.mubr.f32.gmra.mrb[0].mxu0 %v4012
        %v4151 = vpop.f32.mrb[0].mxu0
        %v4152 = vadd.f32 0.0, %v4151
        %v4153 = vpop.f32.mrb[0].mxu0
        %4154 = vdwg.mxu0
        %v4155 = vadd.f32 %v3950, %v4081
        %v4156 = vadd.f32 %v3951, %v4083
        %v4157 = vadd.f32 %v3952, %v4152
        %s4158 = scalar_lea.vmem %s2, 64
        %v4159 = vld [vmem:[%s4158] sm:$0xff]
        %4160 = vrot.lane.b32.xlu0 %v2564, 90
        %v4161 = vpop.permute.xlu0 %4160
        %4162 = vrot.lane.b32.xlu0 %v2540, 90
        %v4163 = vpop.permute.xlu0 %4162
        %4164 = vrot.lane.b32.xlu0 %v2541, 90
        %v4165 = vpop.permute.xlu0 %4164
        %4166 = vrot.lane.b32.xlu0 %v2568, 90
        %v4167 = vpop.permute.xlu0 %4166
        %4168 = vrot.lane.b32.xlu0 %v2565, 90
        %v4169 = vpop.permute.xlu0 %4168
        %4170 = vrot.lane.b32.xlu0 %v2542, 90
        %v4171 = vpop.permute.xlu0 %4170
        %4172 = vrot.lane.b32.xlu0 %v2543, 90
        %v4173 = vpop.permute.xlu0 %4172
        %4174 = vrot.lane.b32.xlu0 %v2569, 90
        %v4175 = vpop.permute.xlu0 %4174
        %4176 = vrot.lane.b32.xlu0 %v2566, 90
        %v4177 = vpop.permute.xlu0 %4176
        %4178 = vrot.lane.b32.xlu0 %v2544, 90
        %v4179 = vpop.permute.xlu0 %4178
        %4180 = vrot.lane.b32.xlu0 %v2545, 90
        %v4181 = vpop.permute.xlu0 %4180
        %4182 = vrot.lane.b32.xlu0 %v2570, 90
        %v4183 = vpop.permute.xlu0 %4182
        %4184 = vrot.lane.b32.xlu0 %v2567, 90
        %v4185 = vpop.permute.xlu0 %4184
        %4186 = vrot.lane.b32.xlu0 %v2546, 90
        %v4187 = vpop.permute.xlu0 %4186
        %4188 = vrot.lane.b32.xlu0 %v2547, 90
        %v4189 = vpop.permute.xlu0 %4188
        %4190 = vrot.lane.b32.xlu0 %v2571, 90
        %v4191 = vpop.permute.xlu0 %4190
        %v4192 = vsel %vm2197, %v4161, %v4163
        %v4193 = vsel %vm2197, %v4163, %v4165
        %v4194 = vsel %vm2197, %v4165, %v4167
        %v4195 = vsel %vm2197, %v4169, %v4171
        %v4196 = vsel %vm2197, %v4171, %v4173
        %v4197 = vsel %vm2197, %v4173, %v4175
        %v4198 = vsel %vm2197, %v4177, %v4179
        %v4199 = vsel %vm2197, %v4179, %v4181
        %v4200 = vsel %vm2197, %v4181, %v4183
        %v4201 = vsel %vm2197, %v4185, %v4187
        %v4202 = vsel %vm2197, %v4187, %v4189
        %v4203 = vsel %vm2197, %v4189, %v4191
        %v4217 = vsel %vm2639, %v4159, 0
        %4219 = vmatprep.subr.mxu0 %v4193
        %4220 = vmatpush1.msra.mxu0 %v4192
        %4221 = vmatprep.subr.mxu0 %v4196
        %4222 = vmatpush1.msra.mxu0 %v4195
        %4223 = vmatprep.subr.mxu0 %v4199
        %4224 = vmatpush1.msra.mxu0 %v4198
        %4225 = vmatprep.subr.mxu0 %v4202
        %4226 = vmatpush1.msra.mxu0 %v4201
        %4227 = vmatprep.subr.mxu0 0.0
        %4228 = vmatpush1.msra.mxu0 0.0
        %4229 = vmatprep.subr.mxu0 0.0
        %4230 = vmatpush1.msra.mxu0 0.0
        %4231 = vmatprep.subr.mxu0 0.0
        %4232 = vmatpush1.msra.mxu0 0.0
        %4233 = vmatprep.subr.mxu0 0.0
        %4234 = vmatpush1.msra.mxu0 0.0
        %4235 = vmatprep.subr.mxu0 0.0
        %4236 = vmatpush1.msra.mxu0 0.0
        %4237 = vmatprep.subr.mxu0 0.0
        %4238 = vmatpush1.msra.mxu0 0.0
        %4239 = vmatprep.subr.mxu0 0.0
        %4240 = vmatpush1.msra.mxu0 0.0
        %4241 = vmatprep.subr.mxu0 0.0
        %4242 = vmatpush1.msra.mxu0 0.0
        %4243 = vmatprep.subr.mxu0 0.0
        %4244 = vmatpush1.msra.mxu0 0.0
        %4245 = vmatprep.subr.mxu0 0.0
        %4246 = vmatpush1.msra.mxu0 0.0
        %4247 = vmatprep.subr.mxu0 0.0
        %4248 = vmatpush1.msra.mxu0 0.0
        %4249 = vmatprep.subr.mxu0 0.0
        %4250 = vmatpush1.msra.mxu0 0.0
        %4251 = vmatprep.subr.mxu0 0.0
        %4252 = vmatpush1.msra.mxu0 0.0
        %4253 = vmatprep.subr.mxu0 0.0
        %4254 = vmatpush1.msra.mxu0 0.0
        %4255 = vmatprep.subr.mxu0 0.0
        %4256 = vmatpush1.msra.mxu0 0.0
        %4257 = vmatprep.subr.mxu0 0.0
        %4258 = vmatpush1.msra.mxu0 0.0
        %4259 = vmatprep.subr.mxu0 0.0
        %4260 = vmatpush1.msra.mxu0 0.0
        %4261 = vmatprep.subr.mxu0 0.0
        %4262 = vmatpush1.msra.mxu0 0.0
        %4263 = vmatprep.subr.mxu0 0.0
        %4264 = vmatpush1.msra.mxu0 0.0
        %4265 = vmatprep.subr.mxu0 0.0
        %4266 = vmatpush1.msra.mxu0 0.0
        %4267 = vmatprep.subr.mxu0 0.0
        %4268 = vmatpush1.msra.mxu0 0.0
        %4269 = vmatprep.subr.mxu0 0.0
        %4270 = vmatpush1.msra.mxu0 0.0
        %4271 = vmatprep.subr.mxu0 0.0
        %4272 = vmatpush1.msra.mxu0 0.0
        %4273 = vmatprep.subr.mxu0 0.0
        %4274 = vmatpush1.msra.mxu0 0.0
        %4275 = vmatprep.subr.mxu0 0.0
        %4276 = vmatpush1.msra.mxu0 0.0
        %4277 = vmatprep.subr.mxu0 0.0
        %4278 = vmatpush1.msra.mxu0 0.0
        %4279 = vmatprep.subr.mxu0 0.0
        %4280 = vmatpush1.msra.mxu0 0.0
        %4281 = vmatprep.subr.mxu0 0.0
        %4282 = vmatpush1.msra.mxu0 0.0
        %4283 = vmatprep.mubr.f32.mxu0 0.0
        %4284 = vmatmul.mubr.f32.gmra.mrb[0].mxu0 %v4217
        %v4285 = vpop.f32.mrb[0].mxu0
        %v4286 = vadd.f32 0.0, %v4285
        %v4287 = vpop.f32.mrb[0].mxu0
        %v4288 = vadd.f32 0.0, %v4287
        %4289 = vdwg.mxu0
        %4290 = vmatprep.subr.mxu0 0.0
        %4291 = vmatpush1.msra.mxu0 %v4194
        %4292 = vmatprep.subr.mxu0 0.0
        %4293 = vmatpush1.msra.mxu0 %v4197
        %4294 = vmatprep.subr.mxu0 0.0
        %4295 = vmatpush1.msra.mxu0 %v4200
        %4296 = vmatprep.subr.mxu0 0.0
        %4297 = vmatpush1.msra.mxu0 %v4203
        %4298 = vmatprep.subr.mxu0 0.0
        %4299 = vmatpush1.msra.mxu0 0.0
        %4300 = vmatprep.subr.mxu0 0.0
        %4301 = vmatpush1.msra.mxu0 0.0
        %4302 = vmatprep.subr.mxu0 0.0
        %4303 = vmatpush1.msra.mxu0 0.0
        %4304 = vmatprep.subr.mxu0 0.0
        %4305 = vmatpush1.msra.mxu0 0.0
        %4306 = vmatprep.subr.mxu0 0.0
        %4307 = vmatpush1.msra.mxu0 0.0
        %4308 = vmatprep.subr.mxu0 0.0
        %4309 = vmatpush1.msra.mxu0 0.0
        %4310 = vmatprep.subr.mxu0 0.0
        %4311 = vmatpush1.msra.mxu0 0.0
        %4312 = vmatprep.subr.mxu0 0.0
        %4313 = vmatpush1.msra.mxu0 0.0
        %4314 = vmatprep.subr.mxu0 0.0
        %4315 = vmatpush1.msra.mxu0 0.0
        %4316 = vmatprep.subr.mxu0 0.0
        %4317 = vmatpush1.msra.mxu0 0.0
        %4318 = vmatprep.subr.mxu0 0.0
        %4319 = vmatpush1.msra.mxu0 0.0
        %4320 = vmatprep.subr.mxu0 0.0
        %4321 = vmatpush1.msra.mxu0 0.0
        %4322 = vmatprep.subr.mxu0 0.0
        %4323 = vmatpush1.msra.mxu0 0.0
        %4324 = vmatprep.subr.mxu0 0.0
        %4325 = vmatpush1.msra.mxu0 0.0
        %4326 = vmatprep.subr.mxu0 0.0
        %4327 = vmatpush1.msra.mxu0 0.0
        %4328 = vmatprep.subr.mxu0 0.0
        %4329 = vmatpush1.msra.mxu0 0.0
        %4330 = vmatprep.subr.mxu0 0.0
        %4331 = vmatpush1.msra.mxu0 0.0
        %4332 = vmatprep.subr.mxu0 0.0
        %4333 = vmatpush1.msra.mxu0 0.0
        %4334 = vmatprep.subr.mxu0 0.0
        %4335 = vmatpush1.msra.mxu0 0.0
        %4336 = vmatprep.subr.mxu0 0.0
        %4337 = vmatpush1.msra.mxu0 0.0
        %4338 = vmatprep.subr.mxu0 0.0
        %4339 = vmatpush1.msra.mxu0 0.0
        %4340 = vmatprep.subr.mxu0 0.0
        %4341 = vmatpush1.msra.mxu0 0.0
        %4342 = vmatprep.subr.mxu0 0.0
        %4343 = vmatpush1.msra.mxu0 0.0
        %4344 = vmatprep.subr.mxu0 0.0
        %4345 = vmatpush1.msra.mxu0 0.0
        %4346 = vmatprep.subr.mxu0 0.0
        %4347 = vmatpush1.msra.mxu0 0.0
        %4348 = vmatprep.subr.mxu0 0.0
        %4349 = vmatpush1.msra.mxu0 0.0
        %4350 = vmatprep.subr.mxu0 0.0
        %4351 = vmatpush1.msra.mxu0 0.0
        %4352 = vmatprep.subr.mxu0 0.0
        %4353 = vmatpush1.msra.mxu0 0.0
        %4354 = vmatprep.mubr.f32.mxu0 0.0
        %4355 = vmatmul.mubr.f32.gmra.mrb[0].mxu0 %v4217
        %v4356 = vpop.f32.mrb[0].mxu0
        %v4357 = vadd.f32 0.0, %v4356
        %v4358 = vpop.f32.mrb[0].mxu0
        %4359 = vdwg.mxu0
        %v4360 = vadd.f32 %v4155, %v4286
        %v4361 = vadd.f32 %v4156, %v4288
        %v4362 = vadd.f32 %v4157, %v4357
        %v4363 = vld [vmem:[%s7] sm:$0xff]
        %4365 = vset.pattern.permute.xlu0 0
        %4366 = vperm.xlu0 %4365, %v4363
        %v4367 = vpop.permute.xlu0 %4366
        %v4369 = vadd.f32 %v4360, %v4367
        %v4370 = vadd.f32 %v4361, %v4367
        %v4371 = vadd.f32 %v4362, %v4367
        %s4372 = sld [smem:[#allocation2 + $0x1]]
        %vm4373 = vcmp.gt.f32.partialorder %v4369, 0.0
        %vm4374 = vcmp.gt.f32.partialorder %v4370, 0.0
        %vm4375 = vcmp.gt.f32.partialorder %v4371, 0.0
        %v4376 = vstv %s4372
        %v4377 = vmul.f32 %v4376, %v4369
        %v4378 = vmul.f32 %v4376, %v4370
        %v4379 = vmul.f32 %v4376, %v4371
        %v4380 = vsel %vm4373, %v4369, %v4377
        %v4381 = vsel %vm4374, %v4370, %v4378
        %v4382 = vsel %vm4375, %v4371, %v4379
        %v4383 = vld [vmem:[%s4] sm:$0xff]
        %v4384 = vld [vmem:[%s9] sm:$0xff]
        %4386 = vset.pattern.permute.xlu0 0
        %4387 = vperm.xlu0 %4386, %v4384
        %v4388 = vpop.permute.xlu0 %4387
        %v4391 = vsel %vm503, %v4383, 0
        %4393 = vmatprep.subr.mxu0 %v456
        %4394 = vmatpush1.msra.mxu0 %v455
        %4395 = vmatprep.subr.mxu0 0.0
        %4396 = vmatpush1.msra.mxu0 0.0
        %4397 = vmatprep.subr.mxu0 0.0
        %4398 = vmatpush1.msra.mxu0 0.0
        %4399 = vmatprep.subr.mxu0 0.0
        %4400 = vmatpush1.msra.mxu0 0.0
        %4401 = vmatprep.subr.mxu0 0.0
        %4402 = vmatpush1.msra.mxu0 0.0
        %4403 = vmatprep.subr.mxu0 0.0
        %4404 = vmatpush1.msra.mxu0 0.0
        %4405 = vmatprep.subr.mxu0 0.0
        %4406 = vmatpush1.msra.mxu0 0.0
        %4407 = vmatprep.subr.mxu0 0.0
        %4408 = vmatpush1.msra.mxu0 0.0
        %4409 = vmatprep.subr.mxu0 0.0
        %4410 = vmatpush1.msra.mxu0 0.0
        %4411 = vmatprep.subr.mxu0 0.0
        %4412 = vmatpush1.msra.mxu0 0.0
        %4413 = vmatprep.subr.mxu0 0.0
        %4414 = vmatpush1.msra.mxu0 0.0
        %4415 = vmatprep.subr.mxu0 0.0
        %4416 = vmatpush1.msra.mxu0 0.0
        %4417 = vmatprep.subr.mxu0 0.0
        %4418 = vmatpush1.msra.mxu0 0.0
        %4419 = vmatprep.subr.mxu0 0.0
        %4420 = vmatpush1.msra.mxu0 0.0
        %4421 = vmatprep.subr.mxu0 0.0
        %4422 = vmatpush1.msra.mxu0 0.0
        %4423 = vmatprep.subr.mxu0 0.0
        %4424 = vmatpush1.msra.mxu0 0.0
        %4425 = vmatprep.subr.mxu0 0.0
        %4426 = vmatpush1.msra.mxu0 0.0
        %4427 = vmatprep.subr.mxu0 0.0
        %4428 = vmatpush1.msra.mxu0 0.0
        %4429 = vmatprep.subr.mxu0 0.0
        %4430 = vmatpush1.msra.mxu0 0.0
        %4431 = vmatprep.subr.mxu0 0.0
        %4432 = vmatpush1.msra.mxu0 0.0
        %4433 = vmatprep.subr.mxu0 0.0
        %4434 = vmatpush1.msra.mxu0 0.0
        %4435 = vmatprep.subr.mxu0 0.0
        %4436 = vmatpush1.msra.mxu0 0.0
        %4437 = vmatprep.subr.mxu0 0.0
        %4438 = vmatpush1.msra.mxu0 0.0
        %4439 = vmatprep.subr.mxu0 0.0
        %4440 = vmatpush1.msra.mxu0 0.0
        %4441 = vmatprep.subr.mxu0 0.0
        %4442 = vmatpush1.msra.mxu0 0.0
        %4443 = vmatprep.subr.mxu0 0.0
        %4444 = vmatpush1.msra.mxu0 0.0
        %4445 = vmatprep.subr.mxu0 0.0
        %4446 = vmatpush1.msra.mxu0 0.0
        %4447 = vmatprep.subr.mxu0 0.0
        %4448 = vmatpush1.msra.mxu0 0.0
        %4449 = vmatprep.subr.mxu0 0.0
        %4450 = vmatpush1.msra.mxu0 0.0
        %4451 = vmatprep.subr.mxu0 0.0
        %4452 = vmatpush1.msra.mxu0 0.0
        %4453 = vmatprep.subr.mxu0 0.0
        %4454 = vmatpush1.msra.mxu0 0.0
        %4455 = vmatprep.subr.mxu0 0.0
        %4456 = vmatpush1.msra.mxu0 0.0
        %4457 = vmatprep.mubr.f32.mxu0 0.0
        %4458 = vmatmul.mubr.f32.gmra.mrb[0].mxu0 %v4391
        %v4459 = vpop.f32.mrb[0].mxu0
        %v4460 = vadd.f32 %v4388, %v4459
        %v4461 = vpop.f32.mrb[0].mxu0
        %v4462 = vadd.f32 %v4388, %v4461
        %4463 = vdwg.mxu0
        %4464 = vmatprep.subr.mxu0 0.0
        %4465 = vmatpush1.msra.mxu0 %v457
        %4466 = vmatprep.subr.mxu0 0.0
        %4467 = vmatpush1.msra.mxu0 0.0
        %4468 = vmatprep.subr.mxu0 0.0
        %4469 = vmatpush1.msra.mxu0 0.0
        %4470 = vmatprep.subr.mxu0 0.0
        %4471 = vmatpush1.msra.mxu0 0.0
        %4472 = vmatprep.subr.mxu0 0.0
        %4473 = vmatpush1.msra.mxu0 0.0
        %4474 = vmatprep.subr.mxu0 0.0
        %4475 = vmatpush1.msra.mxu0 0.0
        %4476 = vmatprep.subr.mxu0 0.0
        %4477 = vmatpush1.msra.mxu0 0.0
        %4478 = vmatprep.subr.mxu0 0.0
        %4479 = vmatpush1.msra.mxu0 0.0
        %4480 = vmatprep.subr.mxu0 0.0
        %4481 = vmatpush1.msra.mxu0 0.0
        %4482 = vmatprep.subr.mxu0 0.0
        %4483 = vmatpush1.msra.mxu0 0.0
        %4484 = vmatprep.subr.mxu0 0.0
        %4485 = vmatpush1.msra.mxu0 0.0
        %4486 = vmatprep.subr.mxu0 0.0
        %4487 = vmatpush1.msra.mxu0 0.0
        %4488 = vmatprep.subr.mxu0 0.0
        %4489 = vmatpush1.msra.mxu0 0.0
        %4490 = vmatprep.subr.mxu0 0.0
        %4491 = vmatpush1.msra.mxu0 0.0
        %4492 = vmatprep.subr.mxu0 0.0
        %4493 = vmatpush1.msra.mxu0 0.0
        %4494 = vmatprep.subr.mxu0 0.0
        %4495 = vmatpush1.msra.mxu0 0.0
        %4496 = vmatprep.subr.mxu0 0.0
        %4497 = vmatpush1.msra.mxu0 0.0
        %4498 = vmatprep.subr.mxu0 0.0
        %4499 = vmatpush1.msra.mxu0 0.0
        %4500 = vmatprep.subr.mxu0 0.0
        %4501 = vmatpush1.msra.mxu0 0.0
        %4502 = vmatprep.subr.mxu0 0.0
        %4503 = vmatpush1.msra.mxu0 0.0
        %4504 = vmatprep.subr.mxu0 0.0
        %4505 = vmatpush1.msra.mxu0 0.0
        %4506 = vmatprep.subr.mxu0 0.0
        %4507 = vmatpush1.msra.mxu0 0.0
        %4508 = vmatprep.subr.mxu0 0.0
        %4509 = vmatpush1.msra.mxu0 0.0
        %4510 = vmatprep.subr.mxu0 0.0
        %4511 = vmatpush1.msra.mxu0 0.0
        %4512 = vmatprep.subr.mxu0 0.0
        %4513 = vmatpush1.msra.mxu0 0.0
        %4514 = vmatprep.subr.mxu0 0.0
        %4515 = vmatpush1.msra.mxu0 0.0
        %4516 = vmatprep.subr.mxu0 0.0
        %4517 = vmatpush1.msra.mxu0 0.0
        %4518 = vmatprep.subr.mxu0 0.0
        %4519 = vmatpush1.msra.mxu0 0.0
        %4520 = vmatprep.subr.mxu0 0.0
        %4521 = vmatpush1.msra.mxu0 0.0
        %4522 = vmatprep.subr.mxu0 0.0
        %4523 = vmatpush1.msra.mxu0 0.0
        %4524 = vmatprep.subr.mxu0 0.0
        %4525 = vmatpush1.msra.mxu0 0.0
        %4526 = vmatprep.subr.mxu0 0.0
        %4527 = vmatpush1.msra.mxu0 0.0
        %4528 = vmatprep.mubr.f32.mxu0 0.0
        %4529 = vmatmul.mubr.f32.gmra.mrb[0].mxu0 %v4391
        %v4530 = vpop.f32.mrb[0].mxu0
        %v4531 = vadd.f32 %v4388, %v4530
        %v4532 = vpop.f32.mrb[0].mxu0
        %4533 = vdwg.mxu0
        %s4534 = sld [smem:[#allocation2 + $0x3]]
        %vm4535 = vcmp.gt.f32.partialorder %v4460, 0.0
        %vm4536 = vcmp.gt.f32.partialorder %v4462, 0.0
        %vm4537 = vcmp.gt.f32.partialorder %v4531, 0.0
        %v4538 = vstv %s4534
        %v4539 = vmul.f32 %v4538, %v4460
        %v4540 = vmul.f32 %v4538, %v4462
        %v4541 = vmul.f32 %v4538, %v4531
        %v4542 = vsel %vm4535, %v4460, %v4539
        %v4543 = vsel %vm4536, %v4462, %v4540
        %v4544 = vsel %vm4537, %v4531, %v4541
        %v4545 = vsub.f32 %v4542, %v4380
        %v4546 = vsub.f32 %v4543, %v4381
        %v4547 = vsub.f32 %v4544, %v4382
        %v4548 = vmul.f32 %v4545, %v2480
        %v4549 = vmul.f32 %v4546, %v2484
        %v4550 = vmul.f32 %v4547, %v2488
        %4554 = vrot.lane.b32.xlu0 %v4548, 19
        %v4555 = vpop.permute.xlu0 %4554
        %4556 = vrot.lane.b32.xlu0 %v4549, 19
        %v4557 = vpop.permute.xlu0 %4556
        %4558 = vrot.lane.b32.xlu0 %v4550, 19
        %v4559 = vpop.permute.xlu0 %4558
        %v4560 = vsel %vm468, %v4555, %v4557
        %v4561 = vsel %vm468, %v4557, %v4559
        %v4566 = vsel %vm468, 0.0, %v4555
        %v4567 = vsel %vm468, %v4559, 0.0
        %v4568 = vld [vmem:[%s3] sm:$0xff]
        %v4569 = vld [vmem:[%s3 + $0x8] sm:$0xff]
        %v4570 = vld [vmem:[%s3 + $0x10] sm:$0xff]
        %v4571 = vld [vmem:[%s3 + $0x18] sm:$0xff]
        %s4572 = scalar_lea.vmem %s3, 32
        %v4573 = vld [vmem:[%s4572] sm:$0xff]
        %v4574 = vld [vmem:[%s4572 + $0x8] sm:$0xff]
        %v4575 = vld [vmem:[%s4572 + $0x10] sm:$0xff]
        %v4576 = vld [vmem:[%s4572 + $0x18] sm:$0xff]
        %4579 = vrot.lane.b32.xlu0 %v4566, 127
        %v4580 = vpop.permute.xlu0 %4579
        %4581 = vrot.lane.b32.xlu0 %v4560, 127
        %v4582 = vpop.permute.xlu0 %4581
        %4583 = vrot.lane.b32.xlu0 %v4561, 127
        %v4584 = vpop.permute.xlu0 %4583
        %4585 = vrot.lane.b32.xlu0 %v4567, 127
        %v4586 = vpop.permute.xlu0 %4585
        %v4587 = vsel %vm496, %v4580, %v4582
        %v4588 = vsel %vm496, %v4582, %v4584
        %v4589 = vsel %vm496, %v4584, %v4586
        %v4594 = vsel %vm503, %v4573, 0
        %v4597 = vsel %vm503, %v4574, 0
        %v4600 = vsel %vm503, %v4575, 0
        %v4603 = vsel %vm503, %v4576, 0
        %4605 = vmatprep.subr.mxu0 %v4588
        %4606 = vmatpush1.msra.mxu0 %v4587
        %4607 = vmatprep.subr.mxu0 0.0
        %4608 = vmatpush1.msra.mxu0 0.0
        %4609 = vmatprep.subr.mxu0 0.0
        %4610 = vmatpush1.msra.mxu0 0.0
        %4611 = vmatprep.subr.mxu0 0.0
        %4612 = vmatpush1.msra.mxu0 0.0
        %4613 = vmatprep.subr.mxu0 0.0
        %4614 = vmatpush1.msra.mxu0 0.0
        %4615 = vmatprep.subr.mxu0 0.0
        %4616 = vmatpush1.msra.mxu0 0.0
        %4617 = vmatprep.subr.mxu0 0.0
        %4618 = vmatpush1.msra.mxu0 0.0
        %4619 = vmatprep.subr.mxu0 0.0
        %4620 = vmatpush1.msra.mxu0 0.0
        %4621 = vmatprep.subr.mxu0 0.0
        %4622 = vmatpush1.msra.mxu0 0.0
        %4623 = vmatprep.subr.mxu0 0.0
        %4624 = vmatpush1.msra.mxu0 0.0
        %4625 = vmatprep.subr.mxu0 0.0
        %4626 = vmatpush1.msra.mxu0 0.0
        %4627 = vmatprep.subr.mxu0 0.0
        %4628 = vmatpush1.msra.mxu0 0.0
        %4629 = vmatprep.subr.mxu0 0.0
        %4630 = vmatpush1.msra.mxu0 0.0
        %4631 = vmatprep.subr.mxu0 0.0
        %4632 = vmatpush1.msra.mxu0 0.0
        %4633 = vmatprep.subr.mxu0 0.0
        %4634 = vmatpush1.msra.mxu0 0.0
        %4635 = vmatprep.subr.mxu0 0.0
        %4636 = vmatpush1.msra.mxu0 0.0
        %4637 = vmatprep.subr.mxu0 0.0
        %4638 = vmatpush1.msra.mxu0 0.0
        %4639 = vmatprep.subr.mxu0 0.0
        %4640 = vmatpush1.msra.mxu0 0.0
        %4641 = vmatprep.subr.mxu0 0.0
        %4642 = vmatpush1.msra.mxu0 0.0
        %4643 = vmatprep.subr.mxu0 0.0
        %4644 = vmatpush1.msra.mxu0 0.0
        %4645 = vmatprep.subr.mxu0 0.0
        %4646 = vmatpush1.msra.mxu0 0.0
        %4647 = vmatprep.subr.mxu0 0.0
        %4648 = vmatpush1.msra.mxu0 0.0
        %4649 = vmatprep.subr.mxu0 0.0
        %4650 = vmatpush1.msra.mxu0 0.0
        %4651 = vmatprep.subr.mxu0 0.0
        %4652 = vmatpush1.msra.mxu0 0.0
        %4653 = vmatprep.subr.mxu0 0.0
        %4654 = vmatpush1.msra.mxu0 0.0
        %4655 = vmatprep.subr.mxu0 0.0
        %4656 = vmatpush1.msra.mxu0 0.0
        %4657 = vmatprep.subr.mxu0 0.0
        %4658 = vmatpush1.msra.mxu0 0.0
        %4659 = vmatprep.subr.mxu0 0.0
        %4660 = vmatpush1.msra.mxu0 0.0
        %4661 = vmatprep.subr.mxu0 0.0
        %4662 = vmatpush1.msra.mxu0 0.0
        %4663 = vmatprep.subr.mxu0 0.0
        %4664 = vmatpush1.msra.mxu0 0.0
        %4665 = vmatprep.subr.mxu0 0.0
        %4666 = vmatpush1.msra.mxu0 0.0
        %4667 = vmatprep.subr.mxu0 0.0
        %4668 = vmatpush1.msra.mxu0 0.0
        %4669 = vmatprep.mubr.f32.mxu0 0.0
        %4670 = vmatmul.mubr.f32.gmra.mrb[0].mxu0 %v4594
        %v4671 = vpop.f32.mrb[0].mxu0
        %v4672 = vadd.f32 0.0, %v4671
        %v4673 = vpop.f32.mrb[0].mxu0
        %v4674 = vadd.f32 0.0, %v4673
        %4675 = vmatprep.mubr.f32.mxu0 0.0
        %4676 = vmatmul.mubr.f32.gmra.mrb[0].mxu0 %v4597
        %v4677 = vpop.f32.mrb[0].mxu0
        %v4678 = vadd.f32 0.0, %v4677
        %v4679 = vpop.f32.mrb[0].mxu0
        %v4680 = vadd.f32 0.0, %v4679
        %4681 = vmatprep.mubr.f32.mxu0 0.0
        %4682 = vmatmul.mubr.f32.gmra.mrb[0].mxu0 %v4600
        %v4683 = vpop.f32.mrb[0].mxu0
        %v4684 = vadd.f32 0.0, %v4683
        %v4685 = vpop.f32.mrb[0].mxu0
        %v4686 = vadd.f32 0.0, %v4685
        %4687 = vmatprep.mubr.f32.mxu0 0.0
        %4688 = vmatmul.mubr.f32.gmra.mrb[0].mxu0 %v4603
        %v4689 = vpop.f32.mrb[0].mxu0
        %v4690 = vadd.f32 0.0, %v4689
        %v4691 = vpop.f32.mrb[0].mxu0
        %v4692 = vadd.f32 0.0, %v4691
        %4693 = vdwg.mxu0
        %4694 = vmatprep.subr.mxu0 0.0
        %4695 = vmatpush1.msra.mxu0 %v4589
        %4696 = vmatprep.subr.mxu0 0.0
        %4697 = vmatpush1.msra.mxu0 0.0
        %4698 = vmatprep.subr.mxu0 0.0
        %4699 = vmatpush1.msra.mxu0 0.0
        %4700 = vmatprep.subr.mxu0 0.0
        %4701 = vmatpush1.msra.mxu0 0.0
        %4702 = vmatprep.subr.mxu0 0.0
        %4703 = vmatpush1.msra.mxu0 0.0
        %4704 = vmatprep.subr.mxu0 0.0
        %4705 = vmatpush1.msra.mxu0 0.0
        %4706 = vmatprep.subr.mxu0 0.0
        %4707 = vmatpush1.msra.mxu0 0.0
        %4708 = vmatprep.subr.mxu0 0.0
        %4709 = vmatpush1.msra.mxu0 0.0
        %4710 = vmatprep.subr.mxu0 0.0
        %4711 = vmatpush1.msra.mxu0 0.0
        %4712 = vmatprep.subr.mxu0 0.0
        %4713 = vmatpush1.msra.mxu0 0.0
        %4714 = vmatprep.subr.mxu0 0.0
        %4715 = vmatpush1.msra.mxu0 0.0
        %4716 = vmatprep.subr.mxu0 0.0
        %4717 = vmatpush1.msra.mxu0 0.0
        %4718 = vmatprep.subr.mxu0 0.0
        %4719 = vmatpush1.msra.mxu0 0.0
        %4720 = vmatprep.subr.mxu0 0.0
        %4721 = vmatpush1.msra.mxu0 0.0
        %4722 = vmatprep.subr.mxu0 0.0
        %4723 = vmatpush1.msra.mxu0 0.0
        %4724 = vmatprep.subr.mxu0 0.0
        %4725 = vmatpush1.msra.mxu0 0.0
        %4726 = vmatprep.subr.mxu0 0.0
        %4727 = vmatpush1.msra.mxu0 0.0
        %4728 = vmatprep.subr.mxu0 0.0
        %4729 = vmatpush1.msra.mxu0 0.0
        %4730 = vmatprep.subr.mxu0 0.0
        %4731 = vmatpush1.msra.mxu0 0.0
        %4732 = vmatprep.subr.mxu0 0.0
        %4733 = vmatpush1.msra.mxu0 0.0
        %4734 = vmatprep.subr.mxu0 0.0
        %4735 = vmatpush1.msra.mxu0 0.0
        %4736 = vmatprep.subr.mxu0 0.0
        %4737 = vmatpush1.msra.mxu0 0.0
        %4738 = vmatprep.subr.mxu0 0.0
        %4739 = vmatpush1.msra.mxu0 0.0
        %4740 = vmatprep.subr.mxu0 0.0
        %4741 = vmatpush1.msra.mxu0 0.0
        %4742 = vmatprep.subr.mxu0 0.0
        %4743 = vmatpush1.msra.mxu0 0.0
        %4744 = vmatprep.subr.mxu0 0.0
        %4745 = vmatpush1.msra.mxu0 0.0
        %4746 = vmatprep.subr.mxu0 0.0
        %4747 = vmatpush1.msra.mxu0 0.0
        %4748 = vmatprep.subr.mxu0 0.0
        %4749 = vmatpush1.msra.mxu0 0.0
        %4750 = vmatprep.subr.mxu0 0.0
        %4751 = vmatpush1.msra.mxu0 0.0
        %4752 = vmatprep.subr.mxu0 0.0
        %4753 = vmatpush1.msra.mxu0 0.0
        %4754 = vmatprep.subr.mxu0 0.0
        %4755 = vmatpush1.msra.mxu0 0.0
        %4756 = vmatprep.subr.mxu0 0.0
        %4757 = vmatpush1.msra.mxu0 0.0
        %4758 = vmatprep.mubr.f32.mxu0 0.0
        %4759 = vmatmul.mubr.f32.gmra.mrb[0].mxu0 %v4594
        %v4760 = vpop.f32.mrb[0].mxu0
        %v4761 = vadd.f32 0.0, %v4760
        %v4762 = vpop.f32.mrb[0].mxu0
        %4763 = vmatprep.mubr.f32.mxu0 0.0
        %4764 = vmatmul.mubr.f32.gmra.mrb[0].mxu0 %v4597
        %v4765 = vpop.f32.mrb[0].mxu0
        %v4766 = vadd.f32 0.0, %v4765
        %v4767 = vpop.f32.mrb[0].mxu0
        %4768 = vmatprep.mubr.f32.mxu0 0.0
        %4769 = vmatmul.mubr.f32.gmra.mrb[0].mxu0 %v4600
        %v4770 = vpop.f32.mrb[0].mxu0
        %v4771 = vadd.f32 0.0, %v4770
        %v4772 = vpop.f32.mrb[0].mxu0
        %4773 = vmatprep.mubr.f32.mxu0 0.0
        %4774 = vmatmul.mubr.f32.gmra.mrb[0].mxu0 %v4603
        %v4775 = vpop.f32.mrb[0].mxu0
        %v4776 = vadd.f32 0.0, %v4775
        %v4777 = vpop.f32.mrb[0].mxu0
        %4778 = vdwg.mxu0
        %v4780 = vsel %vm503, %v4568, 0
        %v4783 = vsel %vm503, %v4569, 0
        %v4786 = vsel %vm503, %v4570, 0
        %v4789 = vsel %vm503, %v4571, 0
        %4791 = vmatprep.subr.mxu0 %v4560
        %4792 = vmatpush1.msra.mxu0 %v4566
        %4793 = vmatprep.subr.mxu0 0.0
        %4794 = vmatpush1.msra.mxu0 0.0
        %4795 = vmatprep.subr.mxu0 0.0
        %4796 = vmatpush1.msra.mxu0 0.0
        %4797 = vmatprep.subr.mxu0 0.0
        %4798 = vmatpush1.msra.mxu0 0.0
        %4799 = vmatprep.subr.mxu0 0.0
        %4800 = vmatpush1.msra.mxu0 0.0
        %4801 = vmatprep.subr.mxu0 0.0
        %4802 = vmatpush1.msra.mxu0 0.0
        %4803 = vmatprep.subr.mxu0 0.0
        %4804 = vmatpush1.msra.mxu0 0.0
        %4805 = vmatprep.subr.mxu0 0.0
        %4806 = vmatpush1.msra.mxu0 0.0
        %4807 = vmatprep.subr.mxu0 0.0
        %4808 = vmatpush1.msra.mxu0 0.0
        %4809 = vmatprep.subr.mxu0 0.0
        %4810 = vmatpush1.msra.mxu0 0.0
        %4811 = vmatprep.subr.mxu0 0.0
        %4812 = vmatpush1.msra.mxu0 0.0
        %4813 = vmatprep.subr.mxu0 0.0
        %4814 = vmatpush1.msra.mxu0 0.0
        %4815 = vmatprep.subr.mxu0 0.0
        %4816 = vmatpush1.msra.mxu0 0.0
        %4817 = vmatprep.subr.mxu0 0.0
        %4818 = vmatpush1.msra.mxu0 0.0
        %4819 = vmatprep.subr.mxu0 0.0
        %4820 = vmatpush1.msra.mxu0 0.0
        %4821 = vmatprep.subr.mxu0 0.0
        %4822 = vmatpush1.msra.mxu0 0.0
        %4823 = vmatprep.subr.mxu0 0.0
        %4824 = vmatpush1.msra.mxu0 0.0
        %4825 = vmatprep.subr.mxu0 0.0
        %4826 = vmatpush1.msra.mxu0 0.0
        %4827 = vmatprep.subr.mxu0 0.0
        %4828 = vmatpush1.msra.mxu0 0.0
        %4829 = vmatprep.subr.mxu0 0.0
        %4830 = vmatpush1.msra.mxu0 0.0
        %4831 = vmatprep.subr.mxu0 0.0
        %4832 = vmatpush1.msra.mxu0 0.0
        %4833 = vmatprep.subr.mxu0 0.0
        %4834 = vmatpush1.msra.mxu0 0.0
        %4835 = vmatprep.subr.mxu0 0.0
        %4836 = vmatpush1.msra.mxu0 0.0
        %4837 = vmatprep.subr.mxu0 0.0
        %4838 = vmatpush1.msra.mxu0 0.0
        %4839 = vmatprep.subr.mxu0 0.0
        %4840 = vmatpush1.msra.mxu0 0.0
        %4841 = vmatprep.subr.mxu0 0.0
        %4842 = vmatpush1.msra.mxu0 0.0
        %4843 = vmatprep.subr.mxu0 0.0
        %4844 = vmatpush1.msra.mxu0 0.0
        %4845 = vmatprep.subr.mxu0 0.0
        %4846 = vmatpush1.msra.mxu0 0.0
        %4847 = vmatprep.subr.mxu0 0.0
        %4848 = vmatpush1.msra.mxu0 0.0
        %4849 = vmatprep.subr.mxu0 0.0
        %4850 = vmatpush1.msra.mxu0 0.0
        %4851 = vmatprep.subr.mxu0 0.0
        %4852 = vmatpush1.msra.mxu0 0.0
        %4853 = vmatprep.subr.mxu0 0.0
        %4854 = vmatpush1.msra.mxu0 0.0
        %4855 = vmatprep.mubr.f32.mxu0 0.0
        %4856 = vmatmul.mubr.f32.gmra.mrb[0].mxu0 %v4780
        %v4857 = vpop.f32.mrb[0].mxu0
        %v4858 = vadd.f32 %v4672, %v4857
        %v4859 = vpop.f32.mrb[0].mxu0
        %v4860 = vadd.f32 %v4674, %v4859
        %4861 = vmatprep.mubr.f32.mxu0 0.0
        %4862 = vmatmul.mubr.f32.gmra.mrb[0].mxu0 %v4783
        %v4863 = vpop.f32.mrb[0].mxu0
        %v4864 = vadd.f32 %v4678, %v4863
        %v4865 = vpop.f32.mrb[0].mxu0
        %v4866 = vadd.f32 %v4680, %v4865
        %4867 = vmatprep.mubr.f32.mxu0 0.0
        %4868 = vmatmul.mubr.f32.gmra.mrb[0].mxu0 %v4786
        %v4869 = vpop.f32.mrb[0].mxu0
        %v4870 = vadd.f32 %v4684, %v4869
        %v4871 = vpop.f32.mrb[0].mxu0
        %v4872 = vadd.f32 %v4686, %v4871
        %4873 = vmatprep.mubr.f32.mxu0 0.0
        %4874 = vmatmul.mubr.f32.gmra.mrb[0].mxu0 %v4789
        %v4875 = vpop.f32.mrb[0].mxu0
        %v4876 = vadd.f32 %v4690, %v4875
        %v4877 = vpop.f32.mrb[0].mxu0
        %v4878 = vadd.f32 %v4692, %v4877
        %4879 = vdwg.mxu0
        %4880 = vmatprep.subr.mxu0 0.0
        %4881 = vmatpush1.msra.mxu0 %v4561
        %4882 = vmatprep.subr.mxu0 0.0
        %4883 = vmatpush1.msra.mxu0 0.0
        %4884 = vmatprep.subr.mxu0 0.0
        %4885 = vmatpush1.msra.mxu0 0.0
        %4886 = vmatprep.subr.mxu0 0.0
        %4887 = vmatpush1.msra.mxu0 0.0
        %4888 = vmatprep.subr.mxu0 0.0
        %4889 = vmatpush1.msra.mxu0 0.0
        %4890 = vmatprep.subr.mxu0 0.0
        %4891 = vmatpush1.msra.mxu0 0.0
        %4892 = vmatprep.subr.mxu0 0.0
        %4893 = vmatpush1.msra.mxu0 0.0
        %4894 = vmatprep.subr.mxu0 0.0
        %4895 = vmatpush1.msra.mxu0 0.0
        %4896 = vmatprep.subr.mxu0 0.0
        %4897 = vmatpush1.msra.mxu0 0.0
        %4898 = vmatprep.subr.mxu0 0.0
        %4899 = vmatpush1.msra.mxu0 0.0
        %4900 = vmatprep.subr.mxu0 0.0
        %4901 = vmatpush1.msra.mxu0 0.0
        %4902 = vmatprep.subr.mxu0 0.0
        %4903 = vmatpush1.msra.mxu0 0.0
        %4904 = vmatprep.subr.mxu0 0.0
        %4905 = vmatpush1.msra.mxu0 0.0
        %4906 = vmatprep.subr.mxu0 0.0
        %4907 = vmatpush1.msra.mxu0 0.0
        %4908 = vmatprep.subr.mxu0 0.0
        %4909 = vmatpush1.msra.mxu0 0.0
        %4910 = vmatprep.subr.mxu0 0.0
        %4911 = vmatpush1.msra.mxu0 0.0
        %4912 = vmatprep.subr.mxu0 0.0
        %4913 = vmatpush1.msra.mxu0 0.0
        %4914 = vmatprep.subr.mxu0 0.0
        %4915 = vmatpush1.msra.mxu0 0.0
        %4916 = vmatprep.subr.mxu0 0.0
        %4917 = vmatpush1.msra.mxu0 0.0
        %4918 = vmatprep.subr.mxu0 0.0
        %4919 = vmatpush1.msra.mxu0 0.0
        %4920 = vmatprep.subr.mxu0 0.0
        %4921 = vmatpush1.msra.mxu0 0.0
        %4922 = vmatprep.subr.mxu0 0.0
        %4923 = vmatpush1.msra.mxu0 0.0
        %4924 = vmatprep.subr.mxu0 0.0
        %4925 = vmatpush1.msra.mxu0 0.0
        %4926 = vmatprep.subr.mxu0 0.0
        %4927 = vmatpush1.msra.mxu0 0.0
        %4928 = vmatprep.subr.mxu0 0.0
        %4929 = vmatpush1.msra.mxu0 0.0
        %4930 = vmatprep.subr.mxu0 0.0
        %4931 = vmatpush1.msra.mxu0 0.0
        %4932 = vmatprep.subr.mxu0 0.0
        %4933 = vmatpush1.msra.mxu0 0.0
        %4934 = vmatprep.subr.mxu0 0.0
        %4935 = vmatpush1.msra.mxu0 0.0
        %4936 = vmatprep.subr.mxu0 0.0
        %4937 = vmatpush1.msra.mxu0 0.0
        %4938 = vmatprep.subr.mxu0 0.0
        %4939 = vmatpush1.msra.mxu0 0.0
        %4940 = vmatprep.subr.mxu0 0.0
        %4941 = vmatpush1.msra.mxu0 0.0
        %4942 = vmatprep.subr.mxu0 0.0
        %4943 = vmatpush1.msra.mxu0 0.0
        %4944 = vmatprep.mubr.f32.mxu0 0.0
        %4945 = vmatmul.mubr.f32.gmra.mrb[0].mxu0 %v4780
        %v4946 = vpop.f32.mrb[0].mxu0
        %v4947 = vadd.f32 %v4761, %v4946
        %v4948 = vpop.f32.mrb[0].mxu0
        %4949 = vmatprep.mubr.f32.mxu0 0.0
        %4950 = vmatmul.mubr.f32.gmra.mrb[0].mxu0 %v4783
        %v4951 = vpop.f32.mrb[0].mxu0
        %v4952 = vadd.f32 %v4766, %v4951
        %v4953 = vpop.f32.mrb[0].mxu0
        %4954 = vmatprep.mubr.f32.mxu0 0.0
        %4955 = vmatmul.mubr.f32.gmra.mrb[0].mxu0 %v4786
        %v4956 = vpop.f32.mrb[0].mxu0
        %v4957 = vadd.f32 %v4771, %v4956
        %v4958 = vpop.f32.mrb[0].mxu0
        %4959 = vmatprep.mubr.f32.mxu0 0.0
        %4960 = vmatmul.mubr.f32.gmra.mrb[0].mxu0 %v4789
        %v4961 = vpop.f32.mrb[0].mxu0
        %v4962 = vadd.f32 %v4776, %v4961
        %v4963 = vpop.f32.mrb[0].mxu0
        %4964 = vdwg.mxu0
        %s4965 = scalar_lea.vmem %s3, 64
        %v4966 = vld [vmem:[%s4965] sm:$0xff]
        %v4967 = vld [vmem:[%s4965 + $0x8] sm:$0xff]
        %v4968 = vld [vmem:[%s4965 + $0x10] sm:$0xff]
        %v4969 = vld [vmem:[%s4965 + $0x18] sm:$0xff]
        %4970 = vrot.lane.b32.xlu0 %v4566, 126
        %v4971 = vpop.permute.xlu0 %4970
        %4972 = vrot.lane.b32.xlu0 %v4560, 126
        %v4973 = vpop.permute.xlu0 %4972
        %4974 = vrot.lane.b32.xlu0 %v4561, 126
        %v4975 = vpop.permute.xlu0 %4974
        %4976 = vrot.lane.b32.xlu0 %v4567, 126
        %v4977 = vpop.permute.xlu0 %4976
        %v4978 = vsel %vm889, %v4971, %v4973
        %v4979 = vsel %vm889, %v4973, %v4975
        %v4980 = vsel %vm889, %v4975, %v4977
        %v4985 = vsel %vm503, %v4966, 0
        %v4988 = vsel %vm503, %v4967, 0
        %v4991 = vsel %vm503, %v4968, 0
        %v4994 = vsel %vm503, %v4969, 0
        %4996 = vmatprep.subr.mxu0 %v4979
        %4997 = vmatpush1.msra.mxu0 %v4978
        %4998 = vmatprep.subr.mxu0 0.0
        %4999 = vmatpush1.msra.mxu0 0.0
        %5000 = vmatprep.subr.mxu0 0.0
        %5001 = vmatpush1.msra.mxu0 0.0
        %5002 = vmatprep.subr.mxu0 0.0
        %5003 = vmatpush1.msra.mxu0 0.0
        %5004 = vmatprep.subr.mxu0 0.0
        %5005 = vmatpush1.msra.mxu0 0.0
        %5006 = vmatprep.subr.mxu0 0.0
        %5007 = vmatpush1.msra.mxu0 0.0
        %5008 = vmatprep.subr.mxu0 0.0
        %5009 = vmatpush1.msra.mxu0 0.0
        %5010 = vmatprep.subr.mxu0 0.0
        %5011 = vmatpush1.msra.mxu0 0.0
        %5012 = vmatprep.subr.mxu0 0.0
        %5013 = vmatpush1.msra.mxu0 0.0
        %5014 = vmatprep.subr.mxu0 0.0
        %5015 = vmatpush1.msra.mxu0 0.0
        %5016 = vmatprep.subr.mxu0 0.0
        %5017 = vmatpush1.msra.mxu0 0.0
        %5018 = vmatprep.subr.mxu0 0.0
        %5019 = vmatpush1.msra.mxu0 0.0
        %5020 = vmatprep.subr.mxu0 0.0
        %5021 = vmatpush1.msra.mxu0 0.0
        %5022 = vmatprep.subr.mxu0 0.0
        %5023 = vmatpush1.msra.mxu0 0.0
        %5024 = vmatprep.subr.mxu0 0.0
        %5025 = vmatpush1.msra.mxu0 0.0
        %5026 = vmatprep.subr.mxu0 0.0
        %5027 = vmatpush1.msra.mxu0 0.0
        %5028 = vmatprep.subr.mxu0 0.0
        %5029 = vmatpush1.msra.mxu0 0.0
        %5030 = vmatprep.subr.mxu0 0.0
        %5031 = vmatpush1.msra.mxu0 0.0
        %5032 = vmatprep.subr.mxu0 0.0
        %5033 = vmatpush1.msra.mxu0 0.0
        %5034 = vmatprep.subr.mxu0 0.0
        %5035 = vmatpush1.msra.mxu0 0.0
        %5036 = vmatprep.subr.mxu0 0.0
        %5037 = vmatpush1.msra.mxu0 0.0
        %5038 = vmatprep.subr.mxu0 0.0
        %5039 = vmatpush1.msra.mxu0 0.0
        %5040 = vmatprep.subr.mxu0 0.0
        %5041 = vmatpush1.msra.mxu0 0.0
        %5042 = vmatprep.subr.mxu0 0.0
        %5043 = vmatpush1.msra.mxu0 0.0
        %5044 = vmatprep.subr.mxu0 0.0
        %5045 = vmatpush1.msra.mxu0 0.0
        %5046 = vmatprep.subr.mxu0 0.0
        %5047 = vmatpush1.msra.mxu0 0.0
        %5048 = vmatprep.subr.mxu0 0.0
        %5049 = vmatpush1.msra.mxu0 0.0
        %5050 = vmatprep.subr.mxu0 0.0
        %5051 = vmatpush1.msra.mxu0 0.0
        %5052 = vmatprep.subr.mxu0 0.0
        %5053 = vmatpush1.msra.mxu0 0.0
        %5054 = vmatprep.subr.mxu0 0.0
        %5055 = vmatpush1.msra.mxu0 0.0
        %5056 = vmatprep.subr.mxu0 0.0
        %5057 = vmatpush1.msra.mxu0 0.0
        %5058 = vmatprep.subr.mxu0 0.0
        %5059 = vmatpush1.msra.mxu0 0.0
        %5060 = vmatprep.mubr.f32.mxu0 0.0
        %5061 = vmatmul.mubr.f32.gmra.mrb[0].mxu0 %v4985
        %v5062 = vpop.f32.mrb[0].mxu0
        %v5063 = vadd.f32 0.0, %v5062
        %v5064 = vpop.f32.mrb[0].mxu0
        %v5065 = vadd.f32 0.0, %v5064
        %5066 = vmatprep.mubr.f32.mxu0 0.0
        %5067 = vmatmul.mubr.f32.gmra.mrb[0].mxu0 %v4988
        %v5068 = vpop.f32.mrb[0].mxu0
        %v5069 = vadd.f32 0.0, %v5068
        %v5070 = vpop.f32.mrb[0].mxu0
        %v5071 = vadd.f32 0.0, %v5070
        %5072 = vmatprep.mubr.f32.mxu0 0.0
        %5073 = vmatmul.mubr.f32.gmra.mrb[0].mxu0 %v4991
        %v5074 = vpop.f32.mrb[0].mxu0
        %v5075 = vadd.f32 0.0, %v5074
        %v5076 = vpop.f32.mrb[0].mxu0
        %v5077 = vadd.f32 0.0, %v5076
        %5078 = vmatprep.mubr.f32.mxu0 0.0
        %5079 = vmatmul.mubr.f32.gmra.mrb[0].mxu0 %v4994
        %v5080 = vpop.f32.mrb[0].mxu0
        %v5081 = vadd.f32 0.0, %v5080
        %v5082 = vpop.f32.mrb[0].mxu0
        %v5083 = vadd.f32 0.0, %v5082
        %5084 = vdwg.mxu0
        %5085 = vmatprep.subr.mxu0 0.0
        %5086 = vmatpush1.msra.mxu0 %v4980
        %5087 = vmatprep.subr.mxu0 0.0
        %5088 = vmatpush1.msra.mxu0 0.0
        %5089 = vmatprep.subr.mxu0 0.0
        %5090 = vmatpush1.msra.mxu0 0.0
        %5091 = vmatprep.subr.mxu0 0.0
        %5092 = vmatpush1.msra.mxu0 0.0
        %5093 = vmatprep.subr.mxu0 0.0
        %5094 = vmatpush1.msra.mxu0 0.0
        %5095 = vmatprep.subr.mxu0 0.0
        %5096 = vmatpush1.msra.mxu0 0.0
        %5097 = vmatprep.subr.mxu0 0.0
        %5098 = vmatpush1.msra.mxu0 0.0
        %5099 = vmatprep.subr.mxu0 0.0
        %5100 = vmatpush1.msra.mxu0 0.0
        %5101 = vmatprep.subr.mxu0 0.0
        %5102 = vmatpush1.msra.mxu0 0.0
        %5103 = vmatprep.subr.mxu0 0.0
        %5104 = vmatpush1.msra.mxu0 0.0
        %5105 = vmatprep.subr.mxu0 0.0
        %5106 = vmatpush1.msra.mxu0 0.0
        %5107 = vmatprep.subr.mxu0 0.0
        %5108 = vmatpush1.msra.mxu0 0.0
        %5109 = vmatprep.subr.mxu0 0.0
        %5110 = vmatpush1.msra.mxu0 0.0
        %5111 = vmatprep.subr.mxu0 0.0
        %5112 = vmatpush1.msra.mxu0 0.0
        %5113 = vmatprep.subr.mxu0 0.0
        %5114 = vmatpush1.msra.mxu0 0.0
        %5115 = vmatprep.subr.mxu0 0.0
        %5116 = vmatpush1.msra.mxu0 0.0
        %5117 = vmatprep.subr.mxu0 0.0
        %5118 = vmatpush1.msra.mxu0 0.0
        %5119 = vmatprep.subr.mxu0 0.0
        %5120 = vmatpush1.msra.mxu0 0.0
        %5121 = vmatprep.subr.mxu0 0.0
        %5122 = vmatpush1.msra.mxu0 0.0
        %5123 = vmatprep.subr.mxu0 0.0
        %5124 = vmatpush1.msra.mxu0 0.0
        %5125 = vmatprep.subr.mxu0 0.0
        %5126 = vmatpush1.msra.mxu0 0.0
        %5127 = vmatprep.subr.mxu0 0.0
        %5128 = vmatpush1.msra.mxu0 0.0
        %5129 = vmatprep.subr.mxu0 0.0
        %5130 = vmatpush1.msra.mxu0 0.0
        %5131 = vmatprep.subr.mxu0 0.0
        %5132 = vmatpush1.msra.mxu0 0.0
        %5133 = vmatprep.subr.mxu0 0.0
        %5134 = vmatpush1.msra.mxu0 0.0
        %5135 = vmatprep.subr.mxu0 0.0
        %5136 = vmatpush1.msra.mxu0 0.0
        %5137 = vmatprep.subr.mxu0 0.0
        %5138 = vmatpush1.msra.mxu0 0.0
        %5139 = vmatprep.subr.mxu0 0.0
        %5140 = vmatpush1.msra.mxu0 0.0
        %5141 = vmatprep.subr.mxu0 0.0
        %5142 = vmatpush1.msra.mxu0 0.0
        %5143 = vmatprep.subr.mxu0 0.0
        %5144 = vmatpush1.msra.mxu0 0.0
        %5145 = vmatprep.subr.mxu0 0.0
        %5146 = vmatpush1.msra.mxu0 0.0
        %5147 = vmatprep.subr.mxu0 0.0
        %5148 = vmatpush1.msra.mxu0 0.0
        %5149 = vmatprep.mubr.f32.mxu0 0.0
        %5150 = vmatmul.mubr.f32.gmra.mrb[0].mxu0 %v4985
        %v5151 = vpop.f32.mrb[0].mxu0
        %v5152 = vadd.f32 0.0, %v5151
        %v5153 = vpop.f32.mrb[0].mxu0
        %5154 = vmatprep.mubr.f32.mxu0 0.0
        %5155 = vmatmul.mubr.f32.gmra.mrb[0].mxu0 %v4988
        %v5156 = vpop.f32.mrb[0].mxu0
        %v5157 = vadd.f32 0.0, %v5156
        %v5158 = vpop.f32.mrb[0].mxu0
        %5159 = vmatprep.mubr.f32.mxu0 0.0
        %5160 = vmatmul.mubr.f32.gmra.mrb[0].mxu0 %v4991
        %v5161 = vpop.f32.mrb[0].mxu0
        %v5162 = vadd.f32 0.0, %v5161
        %v5163 = vpop.f32.mrb[0].mxu0
        %5164 = vmatprep.mubr.f32.mxu0 0.0
        %5165 = vmatmul.mubr.f32.gmra.mrb[0].mxu0 %v4994
        %v5166 = vpop.f32.mrb[0].mxu0
        %v5167 = vadd.f32 0.0, %v5166
        %v5168 = vpop.f32.mrb[0].mxu0
        %5169 = vdwg.mxu0
        %v5170 = vadd.f32 %v4858, %v5063
        %v5171 = vadd.f32 %v4860, %v5065
        %v5172 = vadd.f32 %v4947, %v5152
        %v5173 = vadd.f32 %v4864, %v5069
        %v5174 = vadd.f32 %v4866, %v5071
        %v5175 = vadd.f32 %v4952, %v5157
        %v5176 = vadd.f32 %v4870, %v5075
        %v5177 = vadd.f32 %v4872, %v5077
        %v5178 = vadd.f32 %v4957, %v5162
        %v5179 = vadd.f32 %v4876, %v5081
        %v5180 = vadd.f32 %v4878, %v5083
        %v5181 = vadd.f32 %v4962, %v5167
        %s5182 = scalar_lea.vmem %s3, 96
        %v5183 = vld [vmem:[%s5182] sm:$0xff]
        %v5184 = vld [vmem:[%s5182 + $0x8] sm:$0xff]
        %v5185 = vld [vmem:[%s5182 + $0x10] sm:$0xff]
        %v5186 = vld [vmem:[%s5182 + $0x18] sm:$0xff]
        %5187 = vrot.lane.b32.xlu0 %v4566, 110
        %v5188 = vpop.permute.xlu0 %5187
        %5189 = vrot.lane.b32.xlu0 %v4560, 110
        %v5190 = vpop.permute.xlu0 %5189
        %5191 = vrot.lane.b32.xlu0 %v4561, 110
        %v5192 = vpop.permute.xlu0 %5191
        %5193 = vrot.lane.b32.xlu0 %v4567, 110
        %v5194 = vpop.permute.xlu0 %5193
        %v5195 = vsel %vm1107, %v5188, %v5190
        %v5196 = vsel %vm1107, %v5190, %v5192
        %v5197 = vsel %vm1107, %v5192, %v5194
        %v5202 = vsel %vm503, %v5183, 0
        %v5205 = vsel %vm503, %v5184, 0
        %v5208 = vsel %vm503, %v5185, 0
        %v5211 = vsel %vm503, %v5186, 0
        %5213 = vmatprep.subr.mxu0 %v5196
        %5214 = vmatpush1.msra.mxu0 %v5195
        %5215 = vmatprep.subr.mxu0 0.0
        %5216 = vmatpush1.msra.mxu0 0.0
        %5217 = vmatprep.subr.mxu0 0.0
        %5218 = vmatpush1.msra.mxu0 0.0
        %5219 = vmatprep.subr.mxu0 0.0
        %5220 = vmatpush1.msra.mxu0 0.0
        %5221 = vmatprep.subr.mxu0 0.0
        %5222 = vmatpush1.msra.mxu0 0.0
        %5223 = vmatprep.subr.mxu0 0.0
        %5224 = vmatpush1.msra.mxu0 0.0
        %5225 = vmatprep.subr.mxu0 0.0
        %5226 = vmatpush1.msra.mxu0 0.0
        %5227 = vmatprep.subr.mxu0 0.0
        %5228 = vmatpush1.msra.mxu0 0.0
        %5229 = vmatprep.subr.mxu0 0.0
        %5230 = vmatpush1.msra.mxu0 0.0
        %5231 = vmatprep.subr.mxu0 0.0
        %5232 = vmatpush1.msra.mxu0 0.0
        %5233 = vmatprep.subr.mxu0 0.0
        %5234 = vmatpush1.msra.mxu0 0.0
        %5235 = vmatprep.subr.mxu0 0.0
        %5236 = vmatpush1.msra.mxu0 0.0
        %5237 = vmatprep.subr.mxu0 0.0
        %5238 = vmatpush1.msra.mxu0 0.0
        %5239 = vmatprep.subr.mxu0 0.0
        %5240 = vmatpush1.msra.mxu0 0.0
        %5241 = vmatprep.subr.mxu0 0.0
        %5242 = vmatpush1.msra.mxu0 0.0
        %5243 = vmatprep.subr.mxu0 0.0
        %5244 = vmatpush1.msra.mxu0 0.0
        %5245 = vmatprep.subr.mxu0 0.0
        %5246 = vmatpush1.msra.mxu0 0.0
        %5247 = vmatprep.subr.mxu0 0.0
        %5248 = vmatpush1.msra.mxu0 0.0
        %5249 = vmatprep.subr.mxu0 0.0
        %5250 = vmatpush1.msra.mxu0 0.0
        %5251 = vmatprep.subr.mxu0 0.0
        %5252 = vmatpush1.msra.mxu0 0.0
        %5253 = vmatprep.subr.mxu0 0.0
        %5254 = vmatpush1.msra.mxu0 0.0
        %5255 = vmatprep.subr.mxu0 0.0
        %5256 = vmatpush1.msra.mxu0 0.0
        %5257 = vmatprep.subr.mxu0 0.0
        %5258 = vmatpush1.msra.mxu0 0.0
        %5259 = vmatprep.subr.mxu0 0.0
        %5260 = vmatpush1.msra.mxu0 0.0
        %5261 = vmatprep.subr.mxu0 0.0
        %5262 = vmatpush1.msra.mxu0 0.0
        %5263 = vmatprep.subr.mxu0 0.0
        %5264 = vmatpush1.msra.mxu0 0.0
        %5265 = vmatprep.subr.mxu0 0.0
        %5266 = vmatpush1.msra.mxu0 0.0
        %5267 = vmatprep.subr.mxu0 0.0
        %5268 = vmatpush1.msra.mxu0 0.0
        %5269 = vmatprep.subr.mxu0 0.0
        %5270 = vmatpush1.msra.mxu0 0.0
        %5271 = vmatprep.subr.mxu0 0.0
        %5272 = vmatpush1.msra.mxu0 0.0
        %5273 = vmatprep.subr.mxu0 0.0
        %5274 = vmatpush1.msra.mxu0 0.0
        %5275 = vmatprep.subr.mxu0 0.0
        %5276 = vmatpush1.msra.mxu0 0.0
        %5277 = vmatprep.mubr.f32.mxu0 0.0
        %5278 = vmatmul.mubr.f32.gmra.mrb[0].mxu0 %v5202
        %v5279 = vpop.f32.mrb[0].mxu0
        %v5280 = vadd.f32 0.0, %v5279
        %v5281 = vpop.f32.mrb[0].mxu0
        %v5282 = vadd.f32 0.0, %v5281
        %5283 = vmatprep.mubr.f32.mxu0 0.0
        %5284 = vmatmul.mubr.f32.gmra.mrb[0].mxu0 %v5205
        %v5285 = vpop.f32.mrb[0].mxu0
        %v5286 = vadd.f32 0.0, %v5285
        %v5287 = vpop.f32.mrb[0].mxu0
        %v5288 = vadd.f32 0.0, %v5287
        %5289 = vmatprep.mubr.f32.mxu0 0.0
        %5290 = vmatmul.mubr.f32.gmra.mrb[0].mxu0 %v5208
        %v5291 = vpop.f32.mrb[0].mxu0
        %v5292 = vadd.f32 0.0, %v5291
        %v5293 = vpop.f32.mrb[0].mxu0
        %v5294 = vadd.f32 0.0, %v5293
        %5295 = vmatprep.mubr.f32.mxu0 0.0
        %5296 = vmatmul.mubr.f32.gmra.mrb[0].mxu0 %v5211
        %v5297 = vpop.f32.mrb[0].mxu0
        %v5298 = vadd.f32 0.0, %v5297
        %v5299 = vpop.f32.mrb[0].mxu0
        %v5300 = vadd.f32 0.0, %v5299
        %5301 = vdwg.mxu0
        %5302 = vmatprep.subr.mxu0 0.0
        %5303 = vmatpush1.msra.mxu0 %v5197
        %5304 = vmatprep.subr.mxu0 0.0
        %5305 = vmatpush1.msra.mxu0 0.0
        %5306 = vmatprep.subr.mxu0 0.0
        %5307 = vmatpush1.msra.mxu0 0.0
        %5308 = vmatprep.subr.mxu0 0.0
        %5309 = vmatpush1.msra.mxu0 0.0
        %5310 = vmatprep.subr.mxu0 0.0
        %5311 = vmatpush1.msra.mxu0 0.0
        %5312 = vmatprep.subr.mxu0 0.0
        %5313 = vmatpush1.msra.mxu0 0.0
        %5314 = vmatprep.subr.mxu0 0.0
        %5315 = vmatpush1.msra.mxu0 0.0
        %5316 = vmatprep.subr.mxu0 0.0
        %5317 = vmatpush1.msra.mxu0 0.0
        %5318 = vmatprep.subr.mxu0 0.0
        %5319 = vmatpush1.msra.mxu0 0.0
        %5320 = vmatprep.subr.mxu0 0.0
        %5321 = vmatpush1.msra.mxu0 0.0
        %5322 = vmatprep.subr.mxu0 0.0
        %5323 = vmatpush1.msra.mxu0 0.0
        %5324 = vmatprep.subr.mxu0 0.0
        %5325 = vmatpush1.msra.mxu0 0.0
        %5326 = vmatprep.subr.mxu0 0.0
        %5327 = vmatpush1.msra.mxu0 0.0
        %5328 = vmatprep.subr.mxu0 0.0
        %5329 = vmatpush1.msra.mxu0 0.0
        %5330 = vmatprep.subr.mxu0 0.0
        %5331 = vmatpush1.msra.mxu0 0.0
        %5332 = vmatprep.subr.mxu0 0.0
        %5333 = vmatpush1.msra.mxu0 0.0
        %5334 = vmatprep.subr.mxu0 0.0
        %5335 = vmatpush1.msra.mxu0 0.0
        %5336 = vmatprep.subr.mxu0 0.0
        %5337 = vmatpush1.msra.mxu0 0.0
        %5338 = vmatprep.subr.mxu0 0.0
        %5339 = vmatpush1.msra.mxu0 0.0
        %5340 = vmatprep.subr.mxu0 0.0
        %5341 = vmatpush1.msra.mxu0 0.0
        %5342 = vmatprep.subr.mxu0 0.0
        %5343 = vmatpush1.msra.mxu0 0.0
        %5344 = vmatprep.subr.mxu0 0.0
        %5345 = vmatpush1.msra.mxu0 0.0
        %5346 = vmatprep.subr.mxu0 0.0
        %5347 = vmatpush1.msra.mxu0 0.0
        %5348 = vmatprep.subr.mxu0 0.0
        %5349 = vmatpush1.msra.mxu0 0.0
        %5350 = vmatprep.subr.mxu0 0.0
        %5351 = vmatpush1.msra.mxu0 0.0
        %5352 = vmatprep.subr.mxu0 0.0
        %5353 = vmatpush1.msra.mxu0 0.0
        %5354 = vmatprep.subr.mxu0 0.0
        %5355 = vmatpush1.msra.mxu0 0.0
        %5356 = vmatprep.subr.mxu0 0.0
        %5357 = vmatpush1.msra.mxu0 0.0
        %5358 = vmatprep.subr.mxu0 0.0
        %5359 = vmatpush1.msra.mxu0 0.0
        %5360 = vmatprep.subr.mxu0 0.0
        %5361 = vmatpush1.msra.mxu0 0.0
        %5362 = vmatprep.subr.mxu0 0.0
        %5363 = vmatpush1.msra.mxu0 0.0
        %5364 = vmatprep.subr.mxu0 0.0
        %5365 = vmatpush1.msra.mxu0 0.0
        %5366 = vmatprep.mubr.f32.mxu0 0.0
        %5367 = vmatmul.mubr.f32.gmra.mrb[0].mxu0 %v5202
        %v5368 = vpop.f32.mrb[0].mxu0
        %v5369 = vadd.f32 0.0, %v5368
        %v5370 = vpop.f32.mrb[0].mxu0
        %5371 = vmatprep.mubr.f32.mxu0 0.0
        %5372 = vmatmul.mubr.f32.gmra.mrb[0].mxu0 %v5205
        %v5373 = vpop.f32.mrb[0].mxu0
        %v5374 = vadd.f32 0.0, %v5373
        %v5375 = vpop.f32.mrb[0].mxu0
        %5376 = vmatprep.mubr.f32.mxu0 0.0
        %5377 = vmatmul.mubr.f32.gmra.mrb[0].mxu0 %v5208
        %v5378 = vpop.f32.mrb[0].mxu0
        %v5379 = vadd.f32 0.0, %v5378
        %v5380 = vpop.f32.mrb[0].mxu0
        %5381 = vmatprep.mubr.f32.mxu0 0.0
        %5382 = vmatmul.mubr.f32.gmra.mrb[0].mxu0 %v5211
        %v5383 = vpop.f32.mrb[0].mxu0
        %v5384 = vadd.f32 0.0, %v5383
        %v5385 = vpop.f32.mrb[0].mxu0
        %5386 = vdwg.mxu0
        %v5387 = vadd.f32 %v5170, %v5280
        %v5388 = vadd.f32 %v5171, %v5282
        %v5389 = vadd.f32 %v5172, %v5369
        %v5390 = vadd.f32 %v5173, %v5286
        %v5391 = vadd.f32 %v5174, %v5288
        %v5392 = vadd.f32 %v5175, %v5374
        %v5393 = vadd.f32 %v5176, %v5292
        %v5394 = vadd.f32 %v5177, %v5294
        %v5395 = vadd.f32 %v5178, %v5379
        %v5396 = vadd.f32 %v5179, %v5298
        %v5397 = vadd.f32 %v5180, %v5300
        %v5398 = vadd.f32 %v5181, %v5384
        %s5399 = scalar_lea.vmem %s3, 128
        %v5400 = vld [vmem:[%s5399] sm:$0xff]
        %v5401 = vld [vmem:[%s5399 + $0x8] sm:$0xff]
        %v5402 = vld [vmem:[%s5399 + $0x10] sm:$0xff]
        %v5403 = vld [vmem:[%s5399 + $0x18] sm:$0xff]
        %5404 = vrot.lane.b32.xlu0 %v4566, 109
        %v5405 = vpop.permute.xlu0 %5404
        %5406 = vrot.lane.b32.xlu0 %v4560, 109
        %v5407 = vpop.permute.xlu0 %5406
        %5408 = vrot.lane.b32.xlu0 %v4561, 109
        %v5409 = vpop.permute.xlu0 %5408
        %5410 = vrot.lane.b32.xlu0 %v4567, 109
        %v5411 = vpop.permute.xlu0 %5410
        %v5412 = vsel %vm1325, %v5405, %v5407
        %v5413 = vsel %vm1325, %v5407, %v5409
        %v5414 = vsel %vm1325, %v5409, %v5411
        %v5419 = vsel %vm503, %v5400, 0
        %v5422 = vsel %vm503, %v5401, 0
        %v5425 = vsel %vm503, %v5402, 0
        %v5428 = vsel %vm503, %v5403, 0
        %5430 = vmatprep.subr.mxu0 %v5413
        %5431 = vmatpush1.msra.mxu0 %v5412
        %5432 = vmatprep.subr.mxu0 0.0
        %5433 = vmatpush1.msra.mxu0 0.0
        %5434 = vmatprep.subr.mxu0 0.0
        %5435 = vmatpush1.msra.mxu0 0.0
        %5436 = vmatprep.subr.mxu0 0.0
        %5437 = vmatpush1.msra.mxu0 0.0
        %5438 = vmatprep.subr.mxu0 0.0
        %5439 = vmatpush1.msra.mxu0 0.0
        %5440 = vmatprep.subr.mxu0 0.0
        %5441 = vmatpush1.msra.mxu0 0.0
        %5442 = vmatprep.subr.mxu0 0.0
        %5443 = vmatpush1.msra.mxu0 0.0
        %5444 = vmatprep.subr.mxu0 0.0
        %5445 = vmatpush1.msra.mxu0 0.0
        %5446 = vmatprep.subr.mxu0 0.0
        %5447 = vmatpush1.msra.mxu0 0.0
        %5448 = vmatprep.subr.mxu0 0.0
        %5449 = vmatpush1.msra.mxu0 0.0
        %5450 = vmatprep.subr.mxu0 0.0
        %5451 = vmatpush1.msra.mxu0 0.0
        %5452 = vmatprep.subr.mxu0 0.0
        %5453 = vmatpush1.msra.mxu0 0.0
        %5454 = vmatprep.subr.mxu0 0.0
        %5455 = vmatpush1.msra.mxu0 0.0
        %5456 = vmatprep.subr.mxu0 0.0
        %5457 = vmatpush1.msra.mxu0 0.0
        %5458 = vmatprep.subr.mxu0 0.0
        %5459 = vmatpush1.msra.mxu0 0.0
        %5460 = vmatprep.subr.mxu0 0.0
        %5461 = vmatpush1.msra.mxu0 0.0
        %5462 = vmatprep.subr.mxu0 0.0
        %5463 = vmatpush1.msra.mxu0 0.0
        %5464 = vmatprep.subr.mxu0 0.0
        %5465 = vmatpush1.msra.mxu0 0.0
        %5466 = vmatprep.subr.mxu0 0.0
        %5467 = vmatpush1.msra.mxu0 0.0
        %5468 = vmatprep.subr.mxu0 0.0
        %5469 = vmatpush1.msra.mxu0 0.0
        %5470 = vmatprep.subr.mxu0 0.0
        %5471 = vmatpush1.msra.mxu0 0.0
        %5472 = vmatprep.subr.mxu0 0.0
        %5473 = vmatpush1.msra.mxu0 0.0
        %5474 = vmatprep.subr.mxu0 0.0
        %5475 = vmatpush1.msra.mxu0 0.0
        %5476 = vmatprep.subr.mxu0 0.0
        %5477 = vmatpush1.msra.mxu0 0.0
        %5478 = vmatprep.subr.mxu0 0.0
        %5479 = vmatpush1.msra.mxu0 0.0
        %5480 = vmatprep.subr.mxu0 0.0
        %5481 = vmatpush1.msra.mxu0 0.0
        %5482 = vmatprep.subr.mxu0 0.0
        %5483 = vmatpush1.msra.mxu0 0.0
        %5484 = vmatprep.subr.mxu0 0.0
        %5485 = vmatpush1.msra.mxu0 0.0
        %5486 = vmatprep.subr.mxu0 0.0
        %5487 = vmatpush1.msra.mxu0 0.0
        %5488 = vmatprep.subr.mxu0 0.0
        %5489 = vmatpush1.msra.mxu0 0.0
        %5490 = vmatprep.subr.mxu0 0.0
        %5491 = vmatpush1.msra.mxu0 0.0
        %5492 = vmatprep.subr.mxu0 0.0
        %5493 = vmatpush1.msra.mxu0 0.0
        %5494 = vmatprep.mubr.f32.mxu0 0.0
        %5495 = vmatmul.mubr.f32.gmra.mrb[0].mxu0 %v5419
        %v5496 = vpop.f32.mrb[0].mxu0
        %v5497 = vadd.f32 0.0, %v5496
        %v5498 = vpop.f32.mrb[0].mxu0
        %v5499 = vadd.f32 0.0, %v5498
        %5500 = vmatprep.mubr.f32.mxu0 0.0
        %5501 = vmatmul.mubr.f32.gmra.mrb[0].mxu0 %v5422
        %v5502 = vpop.f32.mrb[0].mxu0
        %v5503 = vadd.f32 0.0, %v5502
        %v5504 = vpop.f32.mrb[0].mxu0
        %v5505 = vadd.f32 0.0, %v5504
        %5506 = vmatprep.mubr.f32.mxu0 0.0
        %5507 = vmatmul.mubr.f32.gmra.mrb[0].mxu0 %v5425
        %v5508 = vpop.f32.mrb[0].mxu0
        %v5509 = vadd.f32 0.0, %v5508
        %v5510 = vpop.f32.mrb[0].mxu0
        %v5511 = vadd.f32 0.0, %v5510
        %5512 = vmatprep.mubr.f32.mxu0 0.0
        %5513 = vmatmul.mubr.f32.gmra.mrb[0].mxu0 %v5428
        %v5514 = vpop.f32.mrb[0].mxu0
        %v5515 = vadd.f32 0.0, %v5514
        %v5516 = vpop.f32.mrb[0].mxu0
        %v5517 = vadd.f32 0.0, %v5516
        %5518 = vdwg.mxu0
        %5519 = vmatprep.subr.mxu0 0.0
        %5520 = vmatpush1.msra.mxu0 %v5414
        %5521 = vmatprep.subr.mxu0 0.0
        %5522 = vmatpush1.msra.mxu0 0.0
        %5523 = vmatprep.subr.mxu0 0.0
        %5524 = vmatpush1.msra.mxu0 0.0
        %5525 = vmatprep.subr.mxu0 0.0
        %5526 = vmatpush1.msra.mxu0 0.0
        %5527 = vmatprep.subr.mxu0 0.0
        %5528 = vmatpush1.msra.mxu0 0.0
        %5529 = vmatprep.subr.mxu0 0.0
        %5530 = vmatpush1.msra.mxu0 0.0
        %5531 = vmatprep.subr.mxu0 0.0
        %5532 = vmatpush1.msra.mxu0 0.0
        %5533 = vmatprep.subr.mxu0 0.0
        %5534 = vmatpush1.msra.mxu0 0.0
        %5535 = vmatprep.subr.mxu0 0.0
        %5536 = vmatpush1.msra.mxu0 0.0
        %5537 = vmatprep.subr.mxu0 0.0
        %5538 = vmatpush1.msra.mxu0 0.0
        %5539 = vmatprep.subr.mxu0 0.0
        %5540 = vmatpush1.msra.mxu0 0.0
        %5541 = vmatprep.subr.mxu0 0.0
        %5542 = vmatpush1.msra.mxu0 0.0
        %5543 = vmatprep.subr.mxu0 0.0
        %5544 = vmatpush1.msra.mxu0 0.0
        %5545 = vmatprep.subr.mxu0 0.0
        %5546 = vmatpush1.msra.mxu0 0.0
        %5547 = vmatprep.subr.mxu0 0.0
        %5548 = vmatpush1.msra.mxu0 0.0
        %5549 = vmatprep.subr.mxu0 0.0
        %5550 = vmatpush1.msra.mxu0 0.0
        %5551 = vmatprep.subr.mxu0 0.0
        %5552 = vmatpush1.msra.mxu0 0.0
        %5553 = vmatprep.subr.mxu0 0.0
        %5554 = vmatpush1.msra.mxu0 0.0
        %5555 = vmatprep.subr.mxu0 0.0
        %5556 = vmatpush1.msra.mxu0 0.0
        %5557 = vmatprep.subr.mxu0 0.0
        %5558 = vmatpush1.msra.mxu0 0.0
        %5559 = vmatprep.subr.mxu0 0.0
        %5560 = vmatpush1.msra.mxu0 0.0
        %5561 = vmatprep.subr.mxu0 0.0
        %5562 = vmatpush1.msra.mxu0 0.0
        %5563 = vmatprep.subr.mxu0 0.0
        %5564 = vmatpush1.msra.mxu0 0.0
        %5565 = vmatprep.subr.mxu0 0.0
        %5566 = vmatpush1.msra.mxu0 0.0
        %5567 = vmatprep.subr.mxu0 0.0
        %5568 = vmatpush1.msra.mxu0 0.0
        %5569 = vmatprep.subr.mxu0 0.0
        %5570 = vmatpush1.msra.mxu0 0.0
        %5571 = vmatprep.subr.mxu0 0.0
        %5572 = vmatpush1.msra.mxu0 0.0
        %5573 = vmatprep.subr.mxu0 0.0
        %5574 = vmatpush1.msra.mxu0 0.0
        %5575 = vmatprep.subr.mxu0 0.0
        %5576 = vmatpush1.msra.mxu0 0.0
        %5577 = vmatprep.subr.mxu0 0.0
        %5578 = vmatpush1.msra.mxu0 0.0
        %5579 = vmatprep.subr.mxu0 0.0
        %5580 = vmatpush1.msra.mxu0 0.0
        %5581 = vmatprep.subr.mxu0 0.0
        %5582 = vmatpush1.msra.mxu0 0.0
        %5583 = vmatprep.mubr.f32.mxu0 0.0
        %5584 = vmatmul.mubr.f32.gmra.mrb[0].mxu0 %v5419
        %v5585 = vpop.f32.mrb[0].mxu0
        %v5586 = vadd.f32 0.0, %v5585
        %v5587 = vpop.f32.mrb[0].mxu0
        %5588 = vmatprep.mubr.f32.mxu0 0.0
        %5589 = vmatmul.mubr.f32.gmra.mrb[0].mxu0 %v5422
        %v5590 = vpop.f32.mrb[0].mxu0
        %v5591 = vadd.f32 0.0, %v5590
        %v5592 = vpop.f32.mrb[0].mxu0
        %5593 = vmatprep.mubr.f32.mxu0 0.0
        %5594 = vmatmul.mubr.f32.gmra.mrb[0].mxu0 %v5425
        %v5595 = vpop.f32.mrb[0].mxu0
        %v5596 = vadd.f32 0.0, %v5595
        %v5597 = vpop.f32.mrb[0].mxu0
        %5598 = vmatprep.mubr.f32.mxu0 0.0
        %5599 = vmatmul.mubr.f32.gmra.mrb[0].mxu0 %v5428
        %v5600 = vpop.f32.mrb[0].mxu0
        %v5601 = vadd.f32 0.0, %v5600
        %v5602 = vpop.f32.mrb[0].mxu0
        %5603 = vdwg.mxu0
        %v5604 = vadd.f32 %v5387, %v5497
        %v5605 = vadd.f32 %v5388, %v5499
        %v5606 = vadd.f32 %v5389, %v5586
        %v5607 = vadd.f32 %v5390, %v5503
        %v5608 = vadd.f32 %v5391, %v5505
        %v5609 = vadd.f32 %v5392, %v5591
        %v5610 = vadd.f32 %v5393, %v5509
        %v5611 = vadd.f32 %v5394, %v5511
        %v5612 = vadd.f32 %v5395, %v5596
        %v5613 = vadd.f32 %v5396, %v5515
        %v5614 = vadd.f32 %v5397, %v5517
        %v5615 = vadd.f32 %v5398, %v5601
        %s5616 = scalar_lea.vmem %s3, 160
        %v5617 = vld [vmem:[%s5616] sm:$0xff]
        %v5618 = vld [vmem:[%s5616 + $0x8] sm:$0xff]
        %v5619 = vld [vmem:[%s5616 + $0x10] sm:$0xff]
        %v5620 = vld [vmem:[%s5616 + $0x18] sm:$0xff]
        %5621 = vrot.lane.b32.xlu0 %v4566, 108
        %v5622 = vpop.permute.xlu0 %5621
        %5623 = vrot.lane.b32.xlu0 %v4560, 108
        %v5624 = vpop.permute.xlu0 %5623
        %5625 = vrot.lane.b32.xlu0 %v4561, 108
        %v5626 = vpop.permute.xlu0 %5625
        %5627 = vrot.lane.b32.xlu0 %v4567, 108
        %v5628 = vpop.permute.xlu0 %5627
        %v5629 = vsel %vm1543, %v5622, %v5624
        %v5630 = vsel %vm1543, %v5624, %v5626
        %v5631 = vsel %vm1543, %v5626, %v5628
        %v5636 = vsel %vm503, %v5617, 0
        %v5639 = vsel %vm503, %v5618, 0
        %v5642 = vsel %vm503, %v5619, 0
        %v5645 = vsel %vm503, %v5620, 0
        %5647 = vmatprep.subr.mxu0 %v5630
        %5648 = vmatpush1.msra.mxu0 %v5629
        %5649 = vmatprep.subr.mxu0 0.0
        %5650 = vmatpush1.msra.mxu0 0.0
        %5651 = vmatprep.subr.mxu0 0.0
        %5652 = vmatpush1.msra.mxu0 0.0
        %5653 = vmatprep.subr.mxu0 0.0
        %5654 = vmatpush1.msra.mxu0 0.0
        %5655 = vmatprep.subr.mxu0 0.0
        %5656 = vmatpush1.msra.mxu0 0.0
        %5657 = vmatprep.subr.mxu0 0.0
        %5658 = vmatpush1.msra.mxu0 0.0
        %5659 = vmatprep.subr.mxu0 0.0
        %5660 = vmatpush1.msra.mxu0 0.0
        %5661 = vmatprep.subr.mxu0 0.0
        %5662 = vmatpush1.msra.mxu0 0.0
        %5663 = vmatprep.subr.mxu0 0.0
        %5664 = vmatpush1.msra.mxu0 0.0
        %5665 = vmatprep.subr.mxu0 0.0
        %5666 = vmatpush1.msra.mxu0 0.0
        %5667 = vmatprep.subr.mxu0 0.0
        %5668 = vmatpush1.msra.mxu0 0.0
        %5669 = vmatprep.subr.mxu0 0.0
        %5670 = vmatpush1.msra.mxu0 0.0
        %5671 = vmatprep.subr.mxu0 0.0
        %5672 = vmatpush1.msra.mxu0 0.0
        %5673 = vmatprep.subr.mxu0 0.0
        %5674 = vmatpush1.msra.mxu0 0.0
        %5675 = vmatprep.subr.mxu0 0.0
        %5676 = vmatpush1.msra.mxu0 0.0
        %5677 = vmatprep.subr.mxu0 0.0
        %5678 = vmatpush1.msra.mxu0 0.0
        %5679 = vmatprep.subr.mxu0 0.0
        %5680 = vmatpush1.msra.mxu0 0.0
        %5681 = vmatprep.subr.mxu0 0.0
        %5682 = vmatpush1.msra.mxu0 0.0
        %5683 = vmatprep.subr.mxu0 0.0
        %5684 = vmatpush1.msra.mxu0 0.0
        %5685 = vmatprep.subr.mxu0 0.0
        %5686 = vmatpush1.msra.mxu0 0.0
        %5687 = vmatprep.subr.mxu0 0.0
        %5688 = vmatpush1.msra.mxu0 0.0
        %5689 = vmatprep.subr.mxu0 0.0
        %5690 = vmatpush1.msra.mxu0 0.0
        %5691 = vmatprep.subr.mxu0 0.0
        %5692 = vmatpush1.msra.mxu0 0.0
        %5693 = vmatprep.subr.mxu0 0.0
        %5694 = vmatpush1.msra.mxu0 0.0
        %5695 = vmatprep.subr.mxu0 0.0
        %5696 = vmatpush1.msra.mxu0 0.0
        %5697 = vmatprep.subr.mxu0 0.0
        %5698 = vmatpush1.msra.mxu0 0.0
        %5699 = vmatprep.subr.mxu0 0.0
        %5700 = vmatpush1.msra.mxu0 0.0
        %5701 = vmatprep.subr.mxu0 0.0
        %5702 = vmatpush1.msra.mxu0 0.0
        %5703 = vmatprep.subr.mxu0 0.0
        %5704 = vmatpush1.msra.mxu0 0.0
        %5705 = vmatprep.subr.mxu0 0.0
        %5706 = vmatpush1.msra.mxu0 0.0
        %5707 = vmatprep.subr.mxu0 0.0
        %5708 = vmatpush1.msra.mxu0 0.0
        %5709 = vmatprep.subr.mxu0 0.0
        %5710 = vmatpush1.msra.mxu0 0.0
        %5711 = vmatprep.mubr.f32.mxu0 0.0
        %5712 = vmatmul.mubr.f32.gmra.mrb[0].mxu0 %v5636
        %v5713 = vpop.f32.mrb[0].mxu0
        %v5714 = vadd.f32 0.0, %v5713
        %v5715 = vpop.f32.mrb[0].mxu0
        %v5716 = vadd.f32 0.0, %v5715
        %5717 = vmatprep.mubr.f32.mxu0 0.0
        %5718 = vmatmul.mubr.f32.gmra.mrb[0].mxu0 %v5639
        %v5719 = vpop.f32.mrb[0].mxu0
        %v5720 = vadd.f32 0.0, %v5719
        %v5721 = vpop.f32.mrb[0].mxu0
        %v5722 = vadd.f32 0.0, %v5721
        %5723 = vmatprep.mubr.f32.mxu0 0.0
        %5724 = vmatmul.mubr.f32.gmra.mrb[0].mxu0 %v5642
        %v5725 = vpop.f32.mrb[0].mxu0
        %v5726 = vadd.f32 0.0, %v5725
        %v5727 = vpop.f32.mrb[0].mxu0
        %v5728 = vadd.f32 0.0, %v5727
        %5729 = vmatprep.mubr.f32.mxu0 0.0
        %5730 = vmatmul.mubr.f32.gmra.mrb[0].mxu0 %v5645
        %v5731 = vpop.f32.mrb[0].mxu0
        %v5732 = vadd.f32 0.0, %v5731
        %v5733 = vpop.f32.mrb[0].mxu0
        %v5734 = vadd.f32 0.0, %v5733
        %5735 = vdwg.mxu0
        %5736 = vmatprep.subr.mxu0 0.0
        %5737 = vmatpush1.msra.mxu0 %v5631
        %5738 = vmatprep.subr.mxu0 0.0
        %5739 = vmatpush1.msra.mxu0 0.0
        %5740 = vmatprep.subr.mxu0 0.0
        %5741 = vmatpush1.msra.mxu0 0.0
        %5742 = vmatprep.subr.mxu0 0.0
        %5743 = vmatpush1.msra.mxu0 0.0
        %5744 = vmatprep.subr.mxu0 0.0
        %5745 = vmatpush1.msra.mxu0 0.0
        %5746 = vmatprep.subr.mxu0 0.0
        %5747 = vmatpush1.msra.mxu0 0.0
        %5748 = vmatprep.subr.mxu0 0.0
        %5749 = vmatpush1.msra.mxu0 0.0
        %5750 = vmatprep.subr.mxu0 0.0
        %5751 = vmatpush1.msra.mxu0 0.0
        %5752 = vmatprep.subr.mxu0 0.0
        %5753 = vmatpush1.msra.mxu0 0.0
        %5754 = vmatprep.subr.mxu0 0.0
        %5755 = vmatpush1.msra.mxu0 0.0
        %5756 = vmatprep.subr.mxu0 0.0
        %5757 = vmatpush1.msra.mxu0 0.0
        %5758 = vmatprep.subr.mxu0 0.0
        %5759 = vmatpush1.msra.mxu0 0.0
        %5760 = vmatprep.subr.mxu0 0.0
        %5761 = vmatpush1.msra.mxu0 0.0
        %5762 = vmatprep.subr.mxu0 0.0
        %5763 = vmatpush1.msra.mxu0 0.0
        %5764 = vmatprep.subr.mxu0 0.0
        %5765 = vmatpush1.msra.mxu0 0.0
        %5766 = vmatprep.subr.mxu0 0.0
        %5767 = vmatpush1.msra.mxu0 0.0
        %5768 = vmatprep.subr.mxu0 0.0
        %5769 = vmatpush1.msra.mxu0 0.0
        %5770 = vmatprep.subr.mxu0 0.0
        %5771 = vmatpush1.msra.mxu0 0.0
        %5772 = vmatprep.subr.mxu0 0.0
        %5773 = vmatpush1.msra.mxu0 0.0
        %5774 = vmatprep.subr.mxu0 0.0
        %5775 = vmatpush1.msra.mxu0 0.0
        %5776 = vmatprep.subr.mxu0 0.0
        %5777 = vmatpush1.msra.mxu0 0.0
        %5778 = vmatprep.subr.mxu0 0.0
        %5779 = vmatpush1.msra.mxu0 0.0
        %5780 = vmatprep.subr.mxu0 0.0
        %5781 = vmatpush1.msra.mxu0 0.0
        %5782 = vmatprep.subr.mxu0 0.0
        %5783 = vmatpush1.msra.mxu0 0.0
        %5784 = vmatprep.subr.mxu0 0.0
        %5785 = vmatpush1.msra.mxu0 0.0
        %5786 = vmatprep.subr.mxu0 0.0
        %5787 = vmatpush1.msra.mxu0 0.0
        %5788 = vmatprep.subr.mxu0 0.0
        %5789 = vmatpush1.msra.mxu0 0.0
        %5790 = vmatprep.subr.mxu0 0.0
        %5791 = vmatpush1.msra.mxu0 0.0
        %5792 = vmatprep.subr.mxu0 0.0
        %5793 = vmatpush1.msra.mxu0 0.0
        %5794 = vmatprep.subr.mxu0 0.0
        %5795 = vmatpush1.msra.mxu0 0.0
        %5796 = vmatprep.subr.mxu0 0.0
        %5797 = vmatpush1.msra.mxu0 0.0
        %5798 = vmatprep.subr.mxu0 0.0
        %5799 = vmatpush1.msra.mxu0 0.0
        %5800 = vmatprep.mubr.f32.mxu0 0.0
        %5801 = vmatmul.mubr.f32.gmra.mrb[0].mxu0 %v5636
        %v5802 = vpop.f32.mrb[0].mxu0
        %v5803 = vadd.f32 0.0, %v5802
        %v5804 = vpop.f32.mrb[0].mxu0
        %5805 = vmatprep.mubr.f32.mxu0 0.0
        %5806 = vmatmul.mubr.f32.gmra.mrb[0].mxu0 %v5639
        %v5807 = vpop.f32.mrb[0].mxu0
        %v5808 = vadd.f32 0.0, %v5807
        %v5809 = vpop.f32.mrb[0].mxu0
        %5810 = vmatprep.mubr.f32.mxu0 0.0
        %5811 = vmatmul.mubr.f32.gmra.mrb[0].mxu0 %v5642
        %v5812 = vpop.f32.mrb[0].mxu0
        %v5813 = vadd.f32 0.0, %v5812
        %v5814 = vpop.f32.mrb[0].mxu0
        %5815 = vmatprep.mubr.f32.mxu0 0.0
        %5816 = vmatmul.mubr.f32.gmra.mrb[0].mxu0 %v5645
        %v5817 = vpop.f32.mrb[0].mxu0
        %v5818 = vadd.f32 0.0, %v5817
        %v5819 = vpop.f32.mrb[0].mxu0
        %5820 = vdwg.mxu0
        %v5821 = vadd.f32 %v5604, %v5714
        %v5822 = vadd.f32 %v5605, %v5716
        %v5823 = vadd.f32 %v5606, %v5803
        %v5824 = vadd.f32 %v5607, %v5720
        %v5825 = vadd.f32 %v5608, %v5722
        %v5826 = vadd.f32 %v5609, %v5808
        %v5827 = vadd.f32 %v5610, %v5726
        %v5828 = vadd.f32 %v5611, %v5728
        %v5829 = vadd.f32 %v5612, %v5813
        %v5830 = vadd.f32 %v5613, %v5732
        %v5831 = vadd.f32 %v5614, %v5734
        %v5832 = vadd.f32 %v5615, %v5818
        %s5833 = scalar_lea.vmem %s3, 192
        %v5834 = vld [vmem:[%s5833] sm:$0xff]
        %v5835 = vld [vmem:[%s5833 + $0x8] sm:$0xff]
        %v5836 = vld [vmem:[%s5833 + $0x10] sm:$0xff]
        %v5837 = vld [vmem:[%s5833 + $0x18] sm:$0xff]
        %5838 = vrot.lane.b32.xlu0 %v4566, 92
        %v5839 = vpop.permute.xlu0 %5838
        %5840 = vrot.lane.b32.xlu0 %v4560, 92
        %v5841 = vpop.permute.xlu0 %5840
        %5842 = vrot.lane.b32.xlu0 %v4561, 92
        %v5843 = vpop.permute.xlu0 %5842
        %5844 = vrot.lane.b32.xlu0 %v4567, 92
        %v5845 = vpop.permute.xlu0 %5844
        %v5846 = vsel %vm1761, %v5839, %v5841
        %v5847 = vsel %vm1761, %v5841, %v5843
        %v5848 = vsel %vm1761, %v5843, %v5845
        %v5853 = vsel %vm503, %v5834, 0
        %v5856 = vsel %vm503, %v5835, 0
        %v5859 = vsel %vm503, %v5836, 0
        %v5862 = vsel %vm503, %v5837, 0
        %5864 = vmatprep.subr.mxu0 %v5847
        %5865 = vmatpush1.msra.mxu0 %v5846
        %5866 = vmatprep.subr.mxu0 0.0
        %5867 = vmatpush1.msra.mxu0 0.0
        %5868 = vmatprep.subr.mxu0 0.0
        %5869 = vmatpush1.msra.mxu0 0.0
        %5870 = vmatprep.subr.mxu0 0.0
        %5871 = vmatpush1.msra.mxu0 0.0
        %5872 = vmatprep.subr.mxu0 0.0
        %5873 = vmatpush1.msra.mxu0 0.0
        %5874 = vmatprep.subr.mxu0 0.0
        %5875 = vmatpush1.msra.mxu0 0.0
        %5876 = vmatprep.subr.mxu0 0.0
        %5877 = vmatpush1.msra.mxu0 0.0
        %5878 = vmatprep.subr.mxu0 0.0
        %5879 = vmatpush1.msra.mxu0 0.0
        %5880 = vmatprep.subr.mxu0 0.0
        %5881 = vmatpush1.msra.mxu0 0.0
        %5882 = vmatprep.subr.mxu0 0.0
        %5883 = vmatpush1.msra.mxu0 0.0
        %5884 = vmatprep.subr.mxu0 0.0
        %5885 = vmatpush1.msra.mxu0 0.0
        %5886 = vmatprep.subr.mxu0 0.0
        %5887 = vmatpush1.msra.mxu0 0.0
        %5888 = vmatprep.subr.mxu0 0.0
        %5889 = vmatpush1.msra.mxu0 0.0
        %5890 = vmatprep.subr.mxu0 0.0
        %5891 = vmatpush1.msra.mxu0 0.0
        %5892 = vmatprep.subr.mxu0 0.0
        %5893 = vmatpush1.msra.mxu0 0.0
        %5894 = vmatprep.subr.mxu0 0.0
        %5895 = vmatpush1.msra.mxu0 0.0
        %5896 = vmatprep.subr.mxu0 0.0
        %5897 = vmatpush1.msra.mxu0 0.0
        %5898 = vmatprep.subr.mxu0 0.0
        %5899 = vmatpush1.msra.mxu0 0.0
        %5900 = vmatprep.subr.mxu0 0.0
        %5901 = vmatpush1.msra.mxu0 0.0
        %5902 = vmatprep.subr.mxu0 0.0
        %5903 = vmatpush1.msra.mxu0 0.0
        %5904 = vmatprep.subr.mxu0 0.0
        %5905 = vmatpush1.msra.mxu0 0.0
        %5906 = vmatprep.subr.mxu0 0.0
        %5907 = vmatpush1.msra.mxu0 0.0
        %5908 = vmatprep.subr.mxu0 0.0
        %5909 = vmatpush1.msra.mxu0 0.0
        %5910 = vmatprep.subr.mxu0 0.0
        %5911 = vmatpush1.msra.mxu0 0.0
        %5912 = vmatprep.subr.mxu0 0.0
        %5913 = vmatpush1.msra.mxu0 0.0
        %5914 = vmatprep.subr.mxu0 0.0
        %5915 = vmatpush1.msra.mxu0 0.0
        %5916 = vmatprep.subr.mxu0 0.0
        %5917 = vmatpush1.msra.mxu0 0.0
        %5918 = vmatprep.subr.mxu0 0.0
        %5919 = vmatpush1.msra.mxu0 0.0
        %5920 = vmatprep.subr.mxu0 0.0
        %5921 = vmatpush1.msra.mxu0 0.0
        %5922 = vmatprep.subr.mxu0 0.0
        %5923 = vmatpush1.msra.mxu0 0.0
        %5924 = vmatprep.subr.mxu0 0.0
        %5925 = vmatpush1.msra.mxu0 0.0
        %5926 = vmatprep.subr.mxu0 0.0
        %5927 = vmatpush1.msra.mxu0 0.0
        %5928 = vmatprep.mubr.f32.mxu0 0.0
        %5929 = vmatmul.mubr.f32.gmra.mrb[0].mxu0 %v5853
        %v5930 = vpop.f32.mrb[0].mxu0
        %v5931 = vadd.f32 0.0, %v5930
        %v5932 = vpop.f32.mrb[0].mxu0
        %v5933 = vadd.f32 0.0, %v5932
        %5934 = vmatprep.mubr.f32.mxu0 0.0
        %5935 = vmatmul.mubr.f32.gmra.mrb[0].mxu0 %v5856
        %v5936 = vpop.f32.mrb[0].mxu0
        %v5937 = vadd.f32 0.0, %v5936
        %v5938 = vpop.f32.mrb[0].mxu0
        %v5939 = vadd.f32 0.0, %v5938
        %5940 = vmatprep.mubr.f32.mxu0 0.0
        %5941 = vmatmul.mubr.f32.gmra.mrb[0].mxu0 %v5859
        %v5942 = vpop.f32.mrb[0].mxu0
        %v5943 = vadd.f32 0.0, %v5942
        %v5944 = vpop.f32.mrb[0].mxu0
        %v5945 = vadd.f32 0.0, %v5944
        %5946 = vmatprep.mubr.f32.mxu0 0.0
        %5947 = vmatmul.mubr.f32.gmra.mrb[0].mxu0 %v5862
        %v5948 = vpop.f32.mrb[0].mxu0
        %v5949 = vadd.f32 0.0, %v5948
        %v5950 = vpop.f32.mrb[0].mxu0
        %v5951 = vadd.f32 0.0, %v5950
        %5952 = vdwg.mxu0
        %5953 = vmatprep.subr.mxu0 0.0
        %5954 = vmatpush1.msra.mxu0 %v5848
        %5955 = vmatprep.subr.mxu0 0.0
        %5956 = vmatpush1.msra.mxu0 0.0
        %5957 = vmatprep.subr.mxu0 0.0
        %5958 = vmatpush1.msra.mxu0 0.0
        %5959 = vmatprep.subr.mxu0 0.0
        %5960 = vmatpush1.msra.mxu0 0.0
        %5961 = vmatprep.subr.mxu0 0.0
        %5962 = vmatpush1.msra.mxu0 0.0
        %5963 = vmatprep.subr.mxu0 0.0
        %5964 = vmatpush1.msra.mxu0 0.0
        %5965 = vmatprep.subr.mxu0 0.0
        %5966 = vmatpush1.msra.mxu0 0.0
        %5967 = vmatprep.subr.mxu0 0.0
        %5968 = vmatpush1.msra.mxu0 0.0
        %5969 = vmatprep.subr.mxu0 0.0
        %5970 = vmatpush1.msra.mxu0 0.0
        %5971 = vmatprep.subr.mxu0 0.0
        %5972 = vmatpush1.msra.mxu0 0.0
        %5973 = vmatprep.subr.mxu0 0.0
        %5974 = vmatpush1.msra.mxu0 0.0
        %5975 = vmatprep.subr.mxu0 0.0
        %5976 = vmatpush1.msra.mxu0 0.0
        %5977 = vmatprep.subr.mxu0 0.0
        %5978 = vmatpush1.msra.mxu0 0.0
        %5979 = vmatprep.subr.mxu0 0.0
        %5980 = vmatpush1.msra.mxu0 0.0
        %5981 = vmatprep.subr.mxu0 0.0
        %5982 = vmatpush1.msra.mxu0 0.0
        %5983 = vmatprep.subr.mxu0 0.0
        %5984 = vmatpush1.msra.mxu0 0.0
        %5985 = vmatprep.subr.mxu0 0.0
        %5986 = vmatpush1.msra.mxu0 0.0
        %5987 = vmatprep.subr.mxu0 0.0
        %5988 = vmatpush1.msra.mxu0 0.0
        %5989 = vmatprep.subr.mxu0 0.0
        %5990 = vmatpush1.msra.mxu0 0.0
        %5991 = vmatprep.subr.mxu0 0.0
        %5992 = vmatpush1.msra.mxu0 0.0
        %5993 = vmatprep.subr.mxu0 0.0
        %5994 = vmatpush1.msra.mxu0 0.0
        %5995 = vmatprep.subr.mxu0 0.0
        %5996 = vmatpush1.msra.mxu0 0.0
        %5997 = vmatprep.subr.mxu0 0.0
        %5998 = vmatpush1.msra.mxu0 0.0
        %5999 = vmatprep.subr.mxu0 0.0
        %6000 = vmatpush1.msra.mxu0 0.0
        %6001 = vmatprep.subr.mxu0 0.0
        %6002 = vmatpush1.msra.mxu0 0.0
        %6003 = vmatprep.subr.mxu0 0.0
        %6004 = vmatpush1.msra.mxu0 0.0
        %6005 = vmatprep.subr.mxu0 0.0
        %6006 = vmatpush1.msra.mxu0 0.0
        %6007 = vmatprep.subr.mxu0 0.0
        %6008 = vmatpush1.msra.mxu0 0.0
        %6009 = vmatprep.subr.mxu0 0.0
        %6010 = vmatpush1.msra.mxu0 0.0
        %6011 = vmatprep.subr.mxu0 0.0
        %6012 = vmatpush1.msra.mxu0 0.0
        %6013 = vmatprep.subr.mxu0 0.0
        %6014 = vmatpush1.msra.mxu0 0.0
        %6015 = vmatprep.subr.mxu0 0.0
        %6016 = vmatpush1.msra.mxu0 0.0
        %6017 = vmatprep.mubr.f32.mxu0 0.0
        %6018 = vmatmul.mubr.f32.gmra.mrb[0].mxu0 %v5853
        %v6019 = vpop.f32.mrb[0].mxu0
        %v6020 = vadd.f32 0.0, %v6019
        %v6021 = vpop.f32.mrb[0].mxu0
        %6022 = vmatprep.mubr.f32.mxu0 0.0
        %6023 = vmatmul.mubr.f32.gmra.mrb[0].mxu0 %v5856
        %v6024 = vpop.f32.mrb[0].mxu0
        %v6025 = vadd.f32 0.0, %v6024
        %v6026 = vpop.f32.mrb[0].mxu0
        %6027 = vmatprep.mubr.f32.mxu0 0.0
        %6028 = vmatmul.mubr.f32.gmra.mrb[0].mxu0 %v5859
        %v6029 = vpop.f32.mrb[0].mxu0
        %v6030 = vadd.f32 0.0, %v6029
        %v6031 = vpop.f32.mrb[0].mxu0
        %6032 = vmatprep.mubr.f32.mxu0 0.0
        %6033 = vmatmul.mubr.f32.gmra.mrb[0].mxu0 %v5862
        %v6034 = vpop.f32.mrb[0].mxu0
        %v6035 = vadd.f32 0.0, %v6034
        %v6036 = vpop.f32.mrb[0].mxu0
        %6037 = vdwg.mxu0
        %v6038 = vadd.f32 %v5821, %v5931
        %v6039 = vadd.f32 %v5822, %v5933
        %v6040 = vadd.f32 %v5823, %v6020
        %v6041 = vadd.f32 %v5824, %v5937
        %v6042 = vadd.f32 %v5825, %v5939
        %v6043 = vadd.f32 %v5826, %v6025
        %v6044 = vadd.f32 %v5827, %v5943
        %v6045 = vadd.f32 %v5828, %v5945
        %v6046 = vadd.f32 %v5829, %v6030
        %v6047 = vadd.f32 %v5830, %v5949
        %v6048 = vadd.f32 %v5831, %v5951
        %v6049 = vadd.f32 %v5832, %v6035
        %s6050 = scalar_lea.vmem %s3, 224
        %v6051 = vld [vmem:[%s6050] sm:$0xff]
        %v6052 = vld [vmem:[%s6050 + $0x8] sm:$0xff]
        %v6053 = vld [vmem:[%s6050 + $0x10] sm:$0xff]
        %v6054 = vld [vmem:[%s6050 + $0x18] sm:$0xff]
        %6055 = vrot.lane.b32.xlu0 %v4566, 91
        %v6056 = vpop.permute.xlu0 %6055
        %6057 = vrot.lane.b32.xlu0 %v4560, 91
        %v6058 = vpop.permute.xlu0 %6057
        %6059 = vrot.lane.b32.xlu0 %v4561, 91
        %v6060 = vpop.permute.xlu0 %6059
        %6061 = vrot.lane.b32.xlu0 %v4567, 91
        %v6062 = vpop.permute.xlu0 %6061
        %v6063 = vsel %vm1979, %v6056, %v6058
        %v6064 = vsel %vm1979, %v6058, %v6060
        %v6065 = vsel %vm1979, %v6060, %v6062
        %v6070 = vsel %vm503, %v6051, 0
        %v6073 = vsel %vm503, %v6052, 0
        %v6076 = vsel %vm503, %v6053, 0
        %v6079 = vsel %vm503, %v6054, 0
        %6081 = vmatprep.subr.mxu0 %v6064
        %6082 = vmatpush1.msra.mxu0 %v6063
        %6083 = vmatprep.subr.mxu0 0.0
        %6084 = vmatpush1.msra.mxu0 0.0
        %6085 = vmatprep.subr.mxu0 0.0
        %6086 = vmatpush1.msra.mxu0 0.0
        %6087 = vmatprep.subr.mxu0 0.0
        %6088 = vmatpush1.msra.mxu0 0.0
        %6089 = vmatprep.subr.mxu0 0.0
        %6090 = vmatpush1.msra.mxu0 0.0
        %6091 = vmatprep.subr.mxu0 0.0
        %6092 = vmatpush1.msra.mxu0 0.0
        %6093 = vmatprep.subr.mxu0 0.0
        %6094 = vmatpush1.msra.mxu0 0.0
        %6095 = vmatprep.subr.mxu0 0.0
        %6096 = vmatpush1.msra.mxu0 0.0
        %6097 = vmatprep.subr.mxu0 0.0
        %6098 = vmatpush1.msra.mxu0 0.0
        %6099 = vmatprep.subr.mxu0 0.0
        %6100 = vmatpush1.msra.mxu0 0.0
        %6101 = vmatprep.subr.mxu0 0.0
        %6102 = vmatpush1.msra.mxu0 0.0
        %6103 = vmatprep.subr.mxu0 0.0
        %6104 = vmatpush1.msra.mxu0 0.0
        %6105 = vmatprep.subr.mxu0 0.0
        %6106 = vmatpush1.msra.mxu0 0.0
        %6107 = vmatprep.subr.mxu0 0.0
        %6108 = vmatpush1.msra.mxu0 0.0
        %6109 = vmatprep.subr.mxu0 0.0
        %6110 = vmatpush1.msra.mxu0 0.0
        %6111 = vmatprep.subr.mxu0 0.0
        %6112 = vmatpush1.msra.mxu0 0.0
        %6113 = vmatprep.subr.mxu0 0.0
        %6114 = vmatpush1.msra.mxu0 0.0
        %6115 = vmatprep.subr.mxu0 0.0
        %6116 = vmatpush1.msra.mxu0 0.0
        %6117 = vmatprep.subr.mxu0 0.0
        %6118 = vmatpush1.msra.mxu0 0.0
        %6119 = vmatprep.subr.mxu0 0.0
        %6120 = vmatpush1.msra.mxu0 0.0
        %6121 = vmatprep.subr.mxu0 0.0
        %6122 = vmatpush1.msra.mxu0 0.0
        %6123 = vmatprep.subr.mxu0 0.0
        %6124 = vmatpush1.msra.mxu0 0.0
        %6125 = vmatprep.subr.mxu0 0.0
        %6126 = vmatpush1.msra.mxu0 0.0
        %6127 = vmatprep.subr.mxu0 0.0
        %6128 = vmatpush1.msra.mxu0 0.0
        %6129 = vmatprep.subr.mxu0 0.0
        %6130 = vmatpush1.msra.mxu0 0.0
        %6131 = vmatprep.subr.mxu0 0.0
        %6132 = vmatpush1.msra.mxu0 0.0
        %6133 = vmatprep.subr.mxu0 0.0
        %6134 = vmatpush1.msra.mxu0 0.0
        %6135 = vmatprep.subr.mxu0 0.0
        %6136 = vmatpush1.msra.mxu0 0.0
        %6137 = vmatprep.subr.mxu0 0.0
        %6138 = vmatpush1.msra.mxu0 0.0
        %6139 = vmatprep.subr.mxu0 0.0
        %6140 = vmatpush1.msra.mxu0 0.0
        %6141 = vmatprep.subr.mxu0 0.0
        %6142 = vmatpush1.msra.mxu0 0.0
        %6143 = vmatprep.subr.mxu0 0.0
        %6144 = vmatpush1.msra.mxu0 0.0
        %6145 = vmatprep.mubr.f32.mxu0 0.0
        %6146 = vmatmul.mubr.f32.gmra.mrb[0].mxu0 %v6070
        %v6147 = vpop.f32.mrb[0].mxu0
        %v6148 = vadd.f32 0.0, %v6147
        %v6149 = vpop.f32.mrb[0].mxu0
        %v6150 = vadd.f32 0.0, %v6149
        %6151 = vmatprep.mubr.f32.mxu0 0.0
        %6152 = vmatmul.mubr.f32.gmra.mrb[0].mxu0 %v6073
        %v6153 = vpop.f32.mrb[0].mxu0
        %v6154 = vadd.f32 0.0, %v6153
        %v6155 = vpop.f32.mrb[0].mxu0
        %v6156 = vadd.f32 0.0, %v6155
        %6157 = vmatprep.mubr.f32.mxu0 0.0
        %6158 = vmatmul.mubr.f32.gmra.mrb[0].mxu0 %v6076
        %v6159 = vpop.f32.mrb[0].mxu0
        %v6160 = vadd.f32 0.0, %v6159
        %v6161 = vpop.f32.mrb[0].mxu0
        %v6162 = vadd.f32 0.0, %v6161
        %6163 = vmatprep.mubr.f32.mxu0 0.0
        %6164 = vmatmul.mubr.f32.gmra.mrb[0].mxu0 %v6079
        %v6165 = vpop.f32.mrb[0].mxu0
        %v6166 = vadd.f32 0.0, %v6165
        %v6167 = vpop.f32.mrb[0].mxu0
        %v6168 = vadd.f32 0.0, %v6167
        %6169 = vdwg.mxu0
        %6170 = vmatprep.subr.mxu0 0.0
        %6171 = vmatpush1.msra.mxu0 %v6065
        %6172 = vmatprep.subr.mxu0 0.0
        %6173 = vmatpush1.msra.mxu0 0.0
        %6174 = vmatprep.subr.mxu0 0.0
        %6175 = vmatpush1.msra.mxu0 0.0
        %6176 = vmatprep.subr.mxu0 0.0
        %6177 = vmatpush1.msra.mxu0 0.0
        %6178 = vmatprep.subr.mxu0 0.0
        %6179 = vmatpush1.msra.mxu0 0.0
        %6180 = vmatprep.subr.mxu0 0.0
        %6181 = vmatpush1.msra.mxu0 0.0
        %6182 = vmatprep.subr.mxu0 0.0
        %6183 = vmatpush1.msra.mxu0 0.0
        %6184 = vmatprep.subr.mxu0 0.0
        %6185 = vmatpush1.msra.mxu0 0.0
        %6186 = vmatprep.subr.mxu0 0.0
        %6187 = vmatpush1.msra.mxu0 0.0
        %6188 = vmatprep.subr.mxu0 0.0
        %6189 = vmatpush1.msra.mxu0 0.0
        %6190 = vmatprep.subr.mxu0 0.0
        %6191 = vmatpush1.msra.mxu0 0.0
        %6192 = vmatprep.subr.mxu0 0.0
        %6193 = vmatpush1.msra.mxu0 0.0
        %6194 = vmatprep.subr.mxu0 0.0
        %6195 = vmatpush1.msra.mxu0 0.0
        %6196 = vmatprep.subr.mxu0 0.0
        %6197 = vmatpush1.msra.mxu0 0.0
        %6198 = vmatprep.subr.mxu0 0.0
        %6199 = vmatpush1.msra.mxu0 0.0
        %6200 = vmatprep.subr.mxu0 0.0
        %6201 = vmatpush1.msra.mxu0 0.0
        %6202 = vmatprep.subr.mxu0 0.0
        %6203 = vmatpush1.msra.mxu0 0.0
        %6204 = vmatprep.subr.mxu0 0.0
        %6205 = vmatpush1.msra.mxu0 0.0
        %6206 = vmatprep.subr.mxu0 0.0
        %6207 = vmatpush1.msra.mxu0 0.0
        %6208 = vmatprep.subr.mxu0 0.0
        %6209 = vmatpush1.msra.mxu0 0.0
        %6210 = vmatprep.subr.mxu0 0.0
        %6211 = vmatpush1.msra.mxu0 0.0
        %6212 = vmatprep.subr.mxu0 0.0
        %6213 = vmatpush1.msra.mxu0 0.0
        %6214 = vmatprep.subr.mxu0 0.0
        %6215 = vmatpush1.msra.mxu0 0.0
        %6216 = vmatprep.subr.mxu0 0.0
        %6217 = vmatpush1.msra.mxu0 0.0
        %6218 = vmatprep.subr.mxu0 0.0
        %6219 = vmatpush1.msra.mxu0 0.0
        %6220 = vmatprep.subr.mxu0 0.0
        %6221 = vmatpush1.msra.mxu0 0.0
        %6222 = vmatprep.subr.mxu0 0.0
        %6223 = vmatpush1.msra.mxu0 0.0
        %6224 = vmatprep.subr.mxu0 0.0
        %6225 = vmatpush1.msra.mxu0 0.0
        %6226 = vmatprep.subr.mxu0 0.0
        %6227 = vmatpush1.msra.mxu0 0.0
        %6228 = vmatprep.subr.mxu0 0.0
        %6229 = vmatpush1.msra.mxu0 0.0
        %6230 = vmatprep.subr.mxu0 0.0
        %6231 = vmatpush1.msra.mxu0 0.0
        %6232 = vmatprep.subr.mxu0 0.0
        %6233 = vmatpush1.msra.mxu0 0.0
        %6234 = vmatprep.mubr.f32.mxu0 0.0
        %6235 = vmatmul.mubr.f32.gmra.mrb[0].mxu0 %v6070
        %v6236 = vpop.f32.mrb[0].mxu0
        %v6237 = vadd.f32 0.0, %v6236
        %v6238 = vpop.f32.mrb[0].mxu0
        %6239 = vmatprep.mubr.f32.mxu0 0.0
        %6240 = vmatmul.mubr.f32.gmra.mrb[0].mxu0 %v6073
        %v6241 = vpop.f32.mrb[0].mxu0
        %v6242 = vadd.f32 0.0, %v6241
        %v6243 = vpop.f32.mrb[0].mxu0
        %6244 = vmatprep.mubr.f32.mxu0 0.0
        %6245 = vmatmul.mubr.f32.gmra.mrb[0].mxu0 %v6076
        %v6246 = vpop.f32.mrb[0].mxu0
        %v6247 = vadd.f32 0.0, %v6246
        %v6248 = vpop.f32.mrb[0].mxu0
        %6249 = vmatprep.mubr.f32.mxu0 0.0
        %6250 = vmatmul.mubr.f32.gmra.mrb[0].mxu0 %v6079
        %v6251 = vpop.f32.mrb[0].mxu0
        %v6252 = vadd.f32 0.0, %v6251
        %v6253 = vpop.f32.mrb[0].mxu0
        %6254 = vdwg.mxu0
        %v6255 = vadd.f32 %v6038, %v6148
        %v6256 = vadd.f32 %v6039, %v6150
        %v6257 = vadd.f32 %v6040, %v6237
        %v6258 = vadd.f32 %v6041, %v6154
        %v6259 = vadd.f32 %v6042, %v6156
        %v6260 = vadd.f32 %v6043, %v6242
        %v6261 = vadd.f32 %v6044, %v6160
        %v6262 = vadd.f32 %v6045, %v6162
        %v6263 = vadd.f32 %v6046, %v6247
        %v6264 = vadd.f32 %v6047, %v6166
        %v6265 = vadd.f32 %v6048, %v6168
        %v6266 = vadd.f32 %v6049, %v6252
        %s6267 = scalar_lea.vmem %s3, 256
        %v6268 = vld [vmem:[%s6267] sm:$0xff]
        %v6269 = vld [vmem:[%s6267 + $0x8] sm:$0xff]
        %v6270 = vld [vmem:[%s6267 + $0x10] sm:$0xff]
        %v6271 = vld [vmem:[%s6267 + $0x18] sm:$0xff]
        %6272 = vrot.lane.b32.xlu0 %v4566, 90
        %v6273 = vpop.permute.xlu0 %6272
        %6274 = vrot.lane.b32.xlu0 %v4560, 90
        %v6275 = vpop.permute.xlu0 %6274
        %6276 = vrot.lane.b32.xlu0 %v4561, 90
        %v6277 = vpop.permute.xlu0 %6276
        %6278 = vrot.lane.b32.xlu0 %v4567, 90
        %v6279 = vpop.permute.xlu0 %6278
        %v6280 = vsel %vm2197, %v6273, %v6275
        %v6281 = vsel %vm2197, %v6275, %v6277
        %v6282 = vsel %vm2197, %v6277, %v6279
        %v6287 = vsel %vm503, %v6268, 0
        %v6290 = vsel %vm503, %v6269, 0
        %v6293 = vsel %vm503, %v6270, 0
        %v6296 = vsel %vm503, %v6271, 0
        %6298 = vmatprep.subr.mxu0 %v6281
        %6299 = vmatpush1.msra.mxu0 %v6280
        %6300 = vmatprep.subr.mxu0 0.0
        %6301 = vmatpush1.msra.mxu0 0.0
        %6302 = vmatprep.subr.mxu0 0.0
        %6303 = vmatpush1.msra.mxu0 0.0
        %6304 = vmatprep.subr.mxu0 0.0
        %6305 = vmatpush1.msra.mxu0 0.0
        %6306 = vmatprep.subr.mxu0 0.0
        %6307 = vmatpush1.msra.mxu0 0.0
        %6308 = vmatprep.subr.mxu0 0.0
        %6309 = vmatpush1.msra.mxu0 0.0
        %6310 = vmatprep.subr.mxu0 0.0
        %6311 = vmatpush1.msra.mxu0 0.0
        %6312 = vmatprep.subr.mxu0 0.0
        %6313 = vmatpush1.msra.mxu0 0.0
        %6314 = vmatprep.subr.mxu0 0.0
        %6315 = vmatpush1.msra.mxu0 0.0
        %6316 = vmatprep.subr.mxu0 0.0
        %6317 = vmatpush1.msra.mxu0 0.0
        %6318 = vmatprep.subr.mxu0 0.0
        %6319 = vmatpush1.msra.mxu0 0.0
        %6320 = vmatprep.subr.mxu0 0.0
        %6321 = vmatpush1.msra.mxu0 0.0
        %6322 = vmatprep.subr.mxu0 0.0
        %6323 = vmatpush1.msra.mxu0 0.0
        %6324 = vmatprep.subr.mxu0 0.0
        %6325 = vmatpush1.msra.mxu0 0.0
        %6326 = vmatprep.subr.mxu0 0.0
        %6327 = vmatpush1.msra.mxu0 0.0
        %6328 = vmatprep.subr.mxu0 0.0
        %6329 = vmatpush1.msra.mxu0 0.0
        %6330 = vmatprep.subr.mxu0 0.0
        %6331 = vmatpush1.msra.mxu0 0.0
        %6332 = vmatprep.subr.mxu0 0.0
        %6333 = vmatpush1.msra.mxu0 0.0
        %6334 = vmatprep.subr.mxu0 0.0
        %6335 = vmatpush1.msra.mxu0 0.0
        %6336 = vmatprep.subr.mxu0 0.0
        %6337 = vmatpush1.msra.mxu0 0.0
        %6338 = vmatprep.subr.mxu0 0.0
        %6339 = vmatpush1.msra.mxu0 0.0
        %6340 = vmatprep.subr.mxu0 0.0
        %6341 = vmatpush1.msra.mxu0 0.0
        %6342 = vmatprep.subr.mxu0 0.0
        %6343 = vmatpush1.msra.mxu0 0.0
        %6344 = vmatprep.subr.mxu0 0.0
        %6345 = vmatpush1.msra.mxu0 0.0
        %6346 = vmatprep.subr.mxu0 0.0
        %6347 = vmatpush1.msra.mxu0 0.0
        %6348 = vmatprep.subr.mxu0 0.0
        %6349 = vmatpush1.msra.mxu0 0.0
        %6350 = vmatprep.subr.mxu0 0.0
        %6351 = vmatpush1.msra.mxu0 0.0
        %6352 = vmatprep.subr.mxu0 0.0
        %6353 = vmatpush1.msra.mxu0 0.0
        %6354 = vmatprep.subr.mxu0 0.0
        %6355 = vmatpush1.msra.mxu0 0.0
        %6356 = vmatprep.subr.mxu0 0.0
        %6357 = vmatpush1.msra.mxu0 0.0
        %6358 = vmatprep.subr.mxu0 0.0
        %6359 = vmatpush1.msra.mxu0 0.0
        %6360 = vmatprep.subr.mxu0 0.0
        %6361 = vmatpush1.msra.mxu0 0.0
        %6362 = vmatprep.mubr.f32.mxu0 0.0
        %6363 = vmatmul.mubr.f32.gmra.mrb[0].mxu0 %v6287
        %v6364 = vpop.f32.mrb[0].mxu0
        %v6365 = vadd.f32 0.0, %v6364
        %v6366 = vpop.f32.mrb[0].mxu0
        %v6367 = vadd.f32 0.0, %v6366
        %6368 = vmatprep.mubr.f32.mxu0 0.0
        %6369 = vmatmul.mubr.f32.gmra.mrb[0].mxu0 %v6290
        %v6370 = vpop.f32.mrb[0].mxu0
        %v6371 = vadd.f32 0.0, %v6370
        %v6372 = vpop.f32.mrb[0].mxu0
        %v6373 = vadd.f32 0.0, %v6372
        %6374 = vmatprep.mubr.f32.mxu0 0.0
        %6375 = vmatmul.mubr.f32.gmra.mrb[0].mxu0 %v6293
        %v6376 = vpop.f32.mrb[0].mxu0
        %v6377 = vadd.f32 0.0, %v6376
        %v6378 = vpop.f32.mrb[0].mxu0
        %v6379 = vadd.f32 0.0, %v6378
        %6380 = vmatprep.mubr.f32.mxu0 0.0
        %6381 = vmatmul.mubr.f32.gmra.mrb[0].mxu0 %v6296
        %v6382 = vpop.f32.mrb[0].mxu0
        %v6383 = vadd.f32 0.0, %v6382
        %v6384 = vpop.f32.mrb[0].mxu0
        %v6385 = vadd.f32 0.0, %v6384
        %6386 = vdwg.mxu0
        %6387 = vmatprep.subr.mxu0 0.0
        %6388 = vmatpush1.msra.mxu0 %v6282
        %6389 = vmatprep.subr.mxu0 0.0
        %6390 = vmatpush1.msra.mxu0 0.0
        %6391 = vmatprep.subr.mxu0 0.0
        %6392 = vmatpush1.msra.mxu0 0.0
        %6393 = vmatprep.subr.mxu0 0.0
        %6394 = vmatpush1.msra.mxu0 0.0
        %6395 = vmatprep.subr.mxu0 0.0
        %6396 = vmatpush1.msra.mxu0 0.0
        %6397 = vmatprep.subr.mxu0 0.0
        %6398 = vmatpush1.msra.mxu0 0.0
        %6399 = vmatprep.subr.mxu0 0.0
        %6400 = vmatpush1.msra.mxu0 0.0
        %6401 = vmatprep.subr.mxu0 0.0
        %6402 = vmatpush1.msra.mxu0 0.0
        %6403 = vmatprep.subr.mxu0 0.0
        %6404 = vmatpush1.msra.mxu0 0.0
        %6405 = vmatprep.subr.mxu0 0.0
        %6406 = vmatpush1.msra.mxu0 0.0
        %6407 = vmatprep.subr.mxu0 0.0
        %6408 = vmatpush1.msra.mxu0 0.0
        %6409 = vmatprep.subr.mxu0 0.0
        %6410 = vmatpush1.msra.mxu0 0.0
        %6411 = vmatprep.subr.mxu0 0.0
        %6412 = vmatpush1.msra.mxu0 0.0
        %6413 = vmatprep.subr.mxu0 0.0
        %6414 = vmatpush1.msra.mxu0 0.0
        %6415 = vmatprep.subr.mxu0 0.0
        %6416 = vmatpush1.msra.mxu0 0.0
        %6417 = vmatprep.subr.mxu0 0.0
        %6418 = vmatpush1.msra.mxu0 0.0
        %6419 = vmatprep.subr.mxu0 0.0
        %6420 = vmatpush1.msra.mxu0 0.0
        %6421 = vmatprep.subr.mxu0 0.0
        %6422 = vmatpush1.msra.mxu0 0.0
        %6423 = vmatprep.subr.mxu0 0.0
        %6424 = vmatpush1.msra.mxu0 0.0
        %6425 = vmatprep.subr.mxu0 0.0
        %6426 = vmatpush1.msra.mxu0 0.0
        %6427 = vmatprep.subr.mxu0 0.0
        %6428 = vmatpush1.msra.mxu0 0.0
        %6429 = vmatprep.subr.mxu0 0.0
        %6430 = vmatpush1.msra.mxu0 0.0
        %6431 = vmatprep.subr.mxu0 0.0
        %6432 = vmatpush1.msra.mxu0 0.0
        %6433 = vmatprep.subr.mxu0 0.0
        %6434 = vmatpush1.msra.mxu0 0.0
        %6435 = vmatprep.subr.mxu0 0.0
        %6436 = vmatpush1.msra.mxu0 0.0
        %6437 = vmatprep.subr.mxu0 0.0
        %6438 = vmatpush1.msra.mxu0 0.0
        %6439 = vmatprep.subr.mxu0 0.0
        %6440 = vmatpush1.msra.mxu0 0.0
        %6441 = vmatprep.subr.mxu0 0.0
        %6442 = vmatpush1.msra.mxu0 0.0
        %6443 = vmatprep.subr.mxu0 0.0
        %6444 = vmatpush1.msra.mxu0 0.0
        %6445 = vmatprep.subr.mxu0 0.0
        %6446 = vmatpush1.msra.mxu0 0.0
        %6447 = vmatprep.subr.mxu0 0.0
        %6448 = vmatpush1.msra.mxu0 0.0
        %6449 = vmatprep.subr.mxu0 0.0
        %6450 = vmatpush1.msra.mxu0 0.0
        %6451 = vmatprep.mubr.f32.mxu0 0.0
        %6452 = vmatmul.mubr.f32.gmra.mrb[0].mxu0 %v6287
        %v6453 = vpop.f32.mrb[0].mxu0
        %v6454 = vadd.f32 0.0, %v6453
        %v6455 = vpop.f32.mrb[0].mxu0
        %6456 = vmatprep.mubr.f32.mxu0 0.0
        %6457 = vmatmul.mubr.f32.gmra.mrb[0].mxu0 %v6290
        %v6458 = vpop.f32.mrb[0].mxu0
        %v6459 = vadd.f32 0.0, %v6458
        %v6460 = vpop.f32.mrb[0].mxu0
        %6461 = vmatprep.mubr.f32.mxu0 0.0
        %6462 = vmatmul.mubr.f32.gmra.mrb[0].mxu0 %v6293
        %v6463 = vpop.f32.mrb[0].mxu0
        %v6464 = vadd.f32 0.0, %v6463
        %v6465 = vpop.f32.mrb[0].mxu0
        %6466 = vmatprep.mubr.f32.mxu0 0.0
        %6467 = vmatmul.mubr.f32.gmra.mrb[0].mxu0 %v6296
        %v6468 = vpop.f32.mrb[0].mxu0
        %v6469 = vadd.f32 0.0, %v6468
        %v6470 = vpop.f32.mrb[0].mxu0
        %6471 = vdwg.mxu0
        %v6472 = vadd.f32 %v6255, %v6365
        %v6473 = vadd.f32 %v6256, %v6367
        %v6474 = vadd.f32 %v6257, %v6454
        %v6475 = vadd.f32 %v6258, %v6371
        %v6476 = vadd.f32 %v6259, %v6373
        %v6477 = vadd.f32 %v6260, %v6459
        %v6478 = vadd.f32 %v6261, %v6377
        %v6479 = vadd.f32 %v6262, %v6379
        %v6480 = vadd.f32 %v6263, %v6464
        %v6481 = vadd.f32 %v6264, %v6383
        %v6482 = vadd.f32 %v6265, %v6385
        %v6483 = vadd.f32 %v6266, %v6469
        %v6484 = vld [vmem:[%s8] sm:$0xff]
        %v6485 = vld [vmem:[%s8 + $0x8] sm:$0xff]
        %v6486 = vld [vmem:[%s8 + $0x10] sm:$0xff]
        %v6487 = vld [vmem:[%s8 + $0x18] sm:$0xff]
        %6489 = vset.pattern.permute.xlu0 0
        %6490 = vperm.xlu0 %6489, %v6484
        %v6491 = vpop.permute.xlu0 %6490
        %6494 = vset.pattern.permute.xlu0 0
        %6495 = vperm.xlu0 %6494, %v6485
        %v6496 = vpop.permute.xlu0 %6495
        %6499 = vset.pattern.permute.xlu0 0
        %6500 = vperm.xlu0 %6499, %v6486
        %v6501 = vpop.permute.xlu0 %6500
        %6504 = vset.pattern.permute.xlu0 0
        %6505 = vperm.xlu0 %6504, %v6487
        %v6506 = vpop.permute.xlu0 %6505
        %v6508 = vadd.f32 %v6472, %v6491
        %v6509 = vadd.f32 %v6473, %v6491
        %v6510 = vadd.f32 %v6474, %v6491
        %v6511 = vadd.f32 %v6475, %v6496
        %v6512 = vadd.f32 %v6476, %v6496
        %v6513 = vadd.f32 %v6477, %v6496
        %v6514 = vadd.f32 %v6478, %v6501
        %v6515 = vadd.f32 %v6479, %v6501
        %v6516 = vadd.f32 %v6480, %v6501
        %v6517 = vadd.f32 %v6481, %v6506
        %v6518 = vadd.f32 %v6482, %v6506
        %v6519 = vadd.f32 %v6483, %v6506
        %s6520 = sld [smem:[#allocation2 + $0x2]]
        %vm6521 = vcmp.gt.f32.partialorder %v6508, 0.0
        %vm6522 = vcmp.gt.f32.partialorder %v6509, 0.0
        %vm6523 = vcmp.gt.f32.partialorder %v6510, 0.0
        %vm6524 = vcmp.gt.f32.partialorder %v6511, 0.0
        %vm6525 = vcmp.gt.f32.partialorder %v6512, 0.0
        %vm6526 = vcmp.gt.f32.partialorder %v6513, 0.0
        %vm6527 = vcmp.gt.f32.partialorder %v6514, 0.0
        %vm6528 = vcmp.gt.f32.partialorder %v6515, 0.0
        %vm6529 = vcmp.gt.f32.partialorder %v6516, 0.0
        %vm6530 = vcmp.gt.f32.partialorder %v6517, 0.0
        %vm6531 = vcmp.gt.f32.partialorder %v6518, 0.0
        %vm6532 = vcmp.gt.f32.partialorder %v6519, 0.0
        %v6533 = vstv %s6520
        %v6534 = vmul.f32 %v6533, %v6508
        %v6535 = vmul.f32 %v6533, %v6509
        %v6536 = vmul.f32 %v6533, %v6510
        %v6537 = vmul.f32 %v6533, %v6511
        %v6538 = vmul.f32 %v6533, %v6512
        %v6539 = vmul.f32 %v6533, %v6513
        %v6540 = vmul.f32 %v6533, %v6514
        %v6541 = vmul.f32 %v6533, %v6515
        %v6542 = vmul.f32 %v6533, %v6516
        %v6543 = vmul.f32 %v6533, %v6517
        %v6544 = vmul.f32 %v6533, %v6518
        %v6545 = vmul.f32 %v6533, %v6519
        %v6546 = vsel %vm6521, %v6508, %v6534
        %v6547 = vsel %vm6522, %v6509, %v6535
        %v6548 = vsel %vm6523, %v6510, %v6536
        %v6549 = vsel %vm6524, %v6511, %v6537
        %v6550 = vsel %vm6525, %v6512, %v6538
        %v6551 = vsel %vm6526, %v6513, %v6539
        %v6552 = vsel %vm6527, %v6514, %v6540
        %v6553 = vsel %vm6528, %v6515, %v6541
        %v6554 = vsel %vm6529, %v6516, %v6542
        %v6555 = vsel %vm6530, %v6517, %v6543
        %v6556 = vsel %vm6531, %v6518, %v6544
        %v6557 = vsel %vm6532, %v6519, %v6545
        %v6558 = vld [vmem:[%s5] sm:$0xff]
        %v6559 = vld [vmem:[%s5 + $0x8] sm:$0xff]
        %v6560 = vld [vmem:[%s5 + $0x10] sm:$0xff]
        %v6561 = vld [vmem:[%s5 + $0x18] sm:$0xff]
        %v6562 = vld [vmem:[%s10] sm:$0xff]
        %v6563 = vld [vmem:[%s10 + $0x8] sm:$0xff]
        %v6564 = vld [vmem:[%s10 + $0x10] sm:$0xff]
        %v6565 = vld [vmem:[%s10 + $0x18] sm:$0xff]
        %6567 = vset.pattern.permute.xlu0 0
        %6568 = vperm.xlu0 %6567, %v6562
        %v6569 = vpop.permute.xlu0 %6568
        %6572 = vset.pattern.permute.xlu0 0
        %6573 = vperm.xlu0 %6572, %v6563
        %v6574 = vpop.permute.xlu0 %6573
        %6577 = vset.pattern.permute.xlu0 0
        %6578 = vperm.xlu0 %6577, %v6564
        %v6579 = vpop.permute.xlu0 %6578
        %6582 = vset.pattern.permute.xlu0 0
        %6583 = vperm.xlu0 %6582, %v6565
        %v6584 = vpop.permute.xlu0 %6583
        %v6587 = vsel %vm2639, %v6558, 0
        %v6590 = vsel %vm2639, %v6559, 0
        %v6593 = vsel %vm2639, %v6560, 0
        %v6596 = vsel %vm2639, %v6561, 0
        %6598 = vmatprep.subr.mxu0 %v2493
        %6599 = vmatpush1.msra.mxu0 %v2492
        %6600 = vmatprep.subr.mxu0 %v2496
        %6601 = vmatpush1.msra.mxu0 %v2495
        %6602 = vmatprep.subr.mxu0 %v2499
        %6603 = vmatpush1.msra.mxu0 %v2498
        %6604 = vmatprep.subr.mxu0 %v2502
        %6605 = vmatpush1.msra.mxu0 %v2501
        %6606 = vmatprep.subr.mxu0 0.0
        %6607 = vmatpush1.msra.mxu0 0.0
        %6608 = vmatprep.subr.mxu0 0.0
        %6609 = vmatpush1.msra.mxu0 0.0
        %6610 = vmatprep.subr.mxu0 0.0
        %6611 = vmatpush1.msra.mxu0 0.0
        %6612 = vmatprep.subr.mxu0 0.0
        %6613 = vmatpush1.msra.mxu0 0.0
        %6614 = vmatprep.subr.mxu0 0.0
        %6615 = vmatpush1.msra.mxu0 0.0
        %6616 = vmatprep.subr.mxu0 0.0
        %6617 = vmatpush1.msra.mxu0 0.0
        %6618 = vmatprep.subr.mxu0 0.0
        %6619 = vmatpush1.msra.mxu0 0.0
        %6620 = vmatprep.subr.mxu0 0.0
        %6621 = vmatpush1.msra.mxu0 0.0
        %6622 = vmatprep.subr.mxu0 0.0
        %6623 = vmatpush1.msra.mxu0 0.0
        %6624 = vmatprep.subr.mxu0 0.0
        %6625 = vmatpush1.msra.mxu0 0.0
        %6626 = vmatprep.subr.mxu0 0.0
        %6627 = vmatpush1.msra.mxu0 0.0
        %6628 = vmatprep.subr.mxu0 0.0
        %6629 = vmatpush1.msra.mxu0 0.0
        %6630 = vmatprep.subr.mxu0 0.0
        %6631 = vmatpush1.msra.mxu0 0.0
        %6632 = vmatprep.subr.mxu0 0.0
        %6633 = vmatpush1.msra.mxu0 0.0
        %6634 = vmatprep.subr.mxu0 0.0
        %6635 = vmatpush1.msra.mxu0 0.0
        %6636 = vmatprep.subr.mxu0 0.0
        %6637 = vmatpush1.msra.mxu0 0.0
        %6638 = vmatprep.subr.mxu0 0.0
        %6639 = vmatpush1.msra.mxu0 0.0
        %6640 = vmatprep.subr.mxu0 0.0
        %6641 = vmatpush1.msra.mxu0 0.0
        %6642 = vmatprep.subr.mxu0 0.0
        %6643 = vmatpush1.msra.mxu0 0.0
        %6644 = vmatprep.subr.mxu0 0.0
        %6645 = vmatpush1.msra.mxu0 0.0
        %6646 = vmatprep.subr.mxu0 0.0
        %6647 = vmatpush1.msra.mxu0 0.0
        %6648 = vmatprep.subr.mxu0 0.0
        %6649 = vmatpush1.msra.mxu0 0.0
        %6650 = vmatprep.subr.mxu0 0.0
        %6651 = vmatpush1.msra.mxu0 0.0
        %6652 = vmatprep.subr.mxu0 0.0
        %6653 = vmatpush1.msra.mxu0 0.0
        %6654 = vmatprep.subr.mxu0 0.0
        %6655 = vmatpush1.msra.mxu0 0.0
        %6656 = vmatprep.subr.mxu0 0.0
        %6657 = vmatpush1.msra.mxu0 0.0
        %6658 = vmatprep.subr.mxu0 0.0
        %6659 = vmatpush1.msra.mxu0 0.0
        %6660 = vmatprep.subr.mxu0 0.0
        %6661 = vmatpush1.msra.mxu0 0.0
        %6662 = vmatprep.mubr.f32.mxu0 0.0
        %6663 = vmatmul.mubr.f32.gmra.mrb[0].mxu0 %v6587
        %v6664 = vpop.f32.mrb[0].mxu0
        %v6665 = vadd.f32 %v6569, %v6664
        %v6666 = vpop.f32.mrb[0].mxu0
        %v6667 = vadd.f32 %v6569, %v6666
        %6668 = vmatprep.mubr.f32.mxu0 0.0
        %6669 = vmatmul.mubr.f32.gmra.mrb[0].mxu0 %v6590
        %v6670 = vpop.f32.mrb[0].mxu0
        %v6671 = vadd.f32 %v6574, %v6670
        %v6672 = vpop.f32.mrb[0].mxu0
        %v6673 = vadd.f32 %v6574, %v6672
        %6674 = vmatprep.mubr.f32.mxu0 0.0
        %6675 = vmatmul.mubr.f32.gmra.mrb[0].mxu0 %v6593
        %v6676 = vpop.f32.mrb[0].mxu0
        %v6677 = vadd.f32 %v6579, %v6676
        %v6678 = vpop.f32.mrb[0].mxu0
        %v6679 = vadd.f32 %v6579, %v6678
        %6680 = vmatprep.mubr.f32.mxu0 0.0
        %6681 = vmatmul.mubr.f32.gmra.mrb[0].mxu0 %v6596
        %v6682 = vpop.f32.mrb[0].mxu0
        %v6683 = vadd.f32 %v6584, %v6682
        %v6684 = vpop.f32.mrb[0].mxu0
        %v6685 = vadd.f32 %v6584, %v6684
        %6686 = vdwg.mxu0
        %6687 = vmatprep.subr.mxu0 0.0
        %6688 = vmatpush1.msra.mxu0 %v2494
        %6689 = vmatprep.subr.mxu0 0.0
        %6690 = vmatpush1.msra.mxu0 %v2497
        %6691 = vmatprep.subr.mxu0 0.0
        %6692 = vmatpush1.msra.mxu0 %v2500
        %6693 = vmatprep.subr.mxu0 0.0
        %6694 = vmatpush1.msra.mxu0 %v2503
        %6695 = vmatprep.subr.mxu0 0.0
        %6696 = vmatpush1.msra.mxu0 0.0
        %6697 = vmatprep.subr.mxu0 0.0
        %6698 = vmatpush1.msra.mxu0 0.0
        %6699 = vmatprep.subr.mxu0 0.0
        %6700 = vmatpush1.msra.mxu0 0.0
        %6701 = vmatprep.subr.mxu0 0.0
        %6702 = vmatpush1.msra.mxu0 0.0
        %6703 = vmatprep.subr.mxu0 0.0
        %6704 = vmatpush1.msra.mxu0 0.0
        %6705 = vmatprep.subr.mxu0 0.0
        %6706 = vmatpush1.msra.mxu0 0.0
        %6707 = vmatprep.subr.mxu0 0.0
        %6708 = vmatpush1.msra.mxu0 0.0
        %6709 = vmatprep.subr.mxu0 0.0
        %6710 = vmatpush1.msra.mxu0 0.0
        %6711 = vmatprep.subr.mxu0 0.0
        %6712 = vmatpush1.msra.mxu0 0.0
        %6713 = vmatprep.subr.mxu0 0.0
        %6714 = vmatpush1.msra.mxu0 0.0
        %6715 = vmatprep.subr.mxu0 0.0
        %6716 = vmatpush1.msra.mxu0 0.0
        %6717 = vmatprep.subr.mxu0 0.0
        %6718 = vmatpush1.msra.mxu0 0.0
        %6719 = vmatprep.subr.mxu0 0.0
        %6720 = vmatpush1.msra.mxu0 0.0
        %6721 = vmatprep.subr.mxu0 0.0
        %6722 = vmatpush1.msra.mxu0 0.0
        %6723 = vmatprep.subr.mxu0 0.0
        %6724 = vmatpush1.msra.mxu0 0.0
        %6725 = vmatprep.subr.mxu0 0.0
        %6726 = vmatpush1.msra.mxu0 0.0
        %6727 = vmatprep.subr.mxu0 0.0
        %6728 = vmatpush1.msra.mxu0 0.0
        %6729 = vmatprep.subr.mxu0 0.0
        %6730 = vmatpush1.msra.mxu0 0.0
        %6731 = vmatprep.subr.mxu0 0.0
        %6732 = vmatpush1.msra.mxu0 0.0
        %6733 = vmatprep.subr.mxu0 0.0
        %6734 = vmatpush1.msra.mxu0 0.0
        %6735 = vmatprep.subr.mxu0 0.0
        %6736 = vmatpush1.msra.mxu0 0.0
        %6737 = vmatprep.subr.mxu0 0.0
        %6738 = vmatpush1.msra.mxu0 0.0
        %6739 = vmatprep.subr.mxu0 0.0
        %6740 = vmatpush1.msra.mxu0 0.0
        %6741 = vmatprep.subr.mxu0 0.0
        %6742 = vmatpush1.msra.mxu0 0.0
        %6743 = vmatprep.subr.mxu0 0.0
        %6744 = vmatpush1.msra.mxu0 0.0
        %6745 = vmatprep.subr.mxu0 0.0
        %6746 = vmatpush1.msra.mxu0 0.0
        %6747 = vmatprep.subr.mxu0 0.0
        %6748 = vmatpush1.msra.mxu0 0.0
        %6749 = vmatprep.subr.mxu0 0.0
        %6750 = vmatpush1.msra.mxu0 0.0
        %6751 = vmatprep.mubr.f32.mxu0 0.0
        %6752 = vmatmul.mubr.f32.gmra.mrb[0].mxu0 %v6587
        %v6753 = vpop.f32.mrb[0].mxu0
        %v6754 = vadd.f32 %v6569, %v6753
        %v6755 = vpop.f32.mrb[0].mxu0
        %6756 = vmatprep.mubr.f32.mxu0 0.0
        %6757 = vmatmul.mubr.f32.gmra.mrb[0].mxu0 %v6590
        %v6758 = vpop.f32.mrb[0].mxu0
        %v6759 = vadd.f32 %v6574, %v6758
        %v6760 = vpop.f32.mrb[0].mxu0
        %6761 = vmatprep.mubr.f32.mxu0 0.0
        %6762 = vmatmul.mubr.f32.gmra.mrb[0].mxu0 %v6593
        %v6763 = vpop.f32.mrb[0].mxu0
        %v6764 = vadd.f32 %v6579, %v6763
        %v6765 = vpop.f32.mrb[0].mxu0
        %6766 = vmatprep.mubr.f32.mxu0 0.0
        %6767 = vmatmul.mubr.f32.gmra.mrb[0].mxu0 %v6596
        %v6768 = vpop.f32.mrb[0].mxu0
        %v6769 = vadd.f32 %v6584, %v6768
        %v6770 = vpop.f32.mrb[0].mxu0
        %6771 = vdwg.mxu0
        %s6772 = sld [smem:[#allocation2 + $0x4]]
        %vm6773 = vcmp.gt.f32.partialorder %v6665, 0.0
        %vm6774 = vcmp.gt.f32.partialorder %v6667, 0.0
        %vm6775 = vcmp.gt.f32.partialorder %v6754, 0.0
        %vm6776 = vcmp.gt.f32.partialorder %v6671, 0.0
        %vm6777 = vcmp.gt.f32.partialorder %v6673, 0.0
        %vm6778 = vcmp.gt.f32.partialorder %v6759, 0.0
        %vm6779 = vcmp.gt.f32.partialorder %v6677, 0.0
        %vm6780 = vcmp.gt.f32.partialorder %v6679, 0.0
        %vm6781 = vcmp.gt.f32.partialorder %v6764, 0.0
        %vm6782 = vcmp.gt.f32.partialorder %v6683, 0.0
        %vm6783 = vcmp.gt.f32.partialorder %v6685, 0.0
        %vm6784 = vcmp.gt.f32.partialorder %v6769, 0.0
        %v6785 = vstv %s6772
        %v6786 = vmul.f32 %v6785, %v6665
        %v6787 = vmul.f32 %v6785, %v6667
        %v6788 = vmul.f32 %v6785, %v6754
        %v6789 = vmul.f32 %v6785, %v6671
        %v6790 = vmul.f32 %v6785, %v6673
        %v6791 = vmul.f32 %v6785, %v6759
        %v6792 = vmul.f32 %v6785, %v6677
        %v6793 = vmul.f32 %v6785, %v6679
        %v6794 = vmul.f32 %v6785, %v6764
        %v6795 = vmul.f32 %v6785, %v6683
        %v6796 = vmul.f32 %v6785, %v6685
        %v6797 = vmul.f32 %v6785, %v6769
        %v6798 = vsel %vm6773, %v6665, %v6786
        %v6799 = vsel %vm6774, %v6667, %v6787
        %v6800 = vsel %vm6775, %v6754, %v6788
        %v6801 = vsel %vm6776, %v6671, %v6789
        %v6802 = vsel %vm6777, %v6673, %v6790
        %v6803 = vsel %vm6778, %v6759, %v6791
        %v6804 = vsel %vm6779, %v6677, %v6792
        %v6805 = vsel %vm6780, %v6679, %v6793
        %v6806 = vsel %vm6781, %v6764, %v6794
        %v6807 = vsel %vm6782, %v6683, %v6795
        %v6808 = vsel %vm6783, %v6685, %v6796
        %v6809 = vsel %vm6784, %v6769, %v6797
        %v6810 = vadd.f32 %v6798, %v6546
        %v6811 = vadd.f32 %v6799, %v6547
        %v6812 = vadd.f32 %v6800, %v6548
        %v6813 = vadd.f32 %v6801, %v6549
        %v6814 = vadd.f32 %v6802, %v6550
        %v6815 = vadd.f32 %v6803, %v6551
        %v6816 = vadd.f32 %v6804, %v6552
        %v6817 = vadd.f32 %v6805, %v6553
        %v6818 = vadd.f32 %v6806, %v6554
        %v6819 = vadd.f32 %v6807, %v6555
        %v6820 = vadd.f32 %v6808, %v6556
        %v6821 = vadd.f32 %v6809, %v6557
        %6822 = vst [vmem:[%s454] sm:$0xff] %v6810
        %6823 = vst [vmem:[%s454 + $0x8] sm:$0xff] %v6811
        %6824 = vst [vmem:[%s454 + $0x10] sm:$0xff] %v6812
        %6825 = vst [vmem:[%s454 + $0x18] sm:$0xff] %v6813
        %6826 = vst [vmem:[%s454 + $0x20] sm:$0xff] %v6814
        %6827 = vst [vmem:[%s454 + $0x28] sm:$0xff] %v6815
        %6828 = vst [vmem:[%s454 + $0x30] sm:$0xff] %v6816
        %6829 = vst [vmem:[%s454 + $0x38] sm:$0xff] %v6817
        %6830 = vst [vmem:[%s454 + $0x40] sm:$0xff] %v6818
        %6831 = vst [vmem:[%s454 + $0x48] sm:$0xff] %v6819
        %6832 = vst [vmem:[%s454 + $0x50] sm:$0xff] %v6820
        %6833 = vst [vmem:[%s454 + $0x58] sm:$0xff] %v6821
        %p6834 = scmp.lt.s32.totalorder %s25, 1
        %s6835 = scalar_select %p6834, %s25, 1
        %s6836 = smul.addr %s6835, 12
        %s6837 = smul.addr %s6836, 8
        %s6838 = scalar_lea.vmem %s13, %s6837
        // Predicated region
        $region77: #{upblock_forward.1} parent=71 // pred_check
          %p6839 = pneg %p321
        $region78: #{upblock_forward.1} parent=71 // pred_check_branch
          %6841 = sbr.rel (%p6839) target = $region80
        $region79: #{upblock_forward.1} parent=71 // pred_region
          _
        $region80: #{upblock_forward.1} parent=71 // pred_fallthru
          _
      $region72: #{upblock_forward.1} parent=5 // pred_fallthru
        _
      %p6842 = scmp.le.s32.totalorder 2, %s20
      // Predicated region
      $region81: #{upblock_forward.1} parent=5 // pred_check
        %p6843 = pneg %p6842
      $region82: #{upblock_forward.1} parent=5 // pred_check_branch
        %6845 = sbr.rel (%p6843) target = $region84
      $region83: #{upblock_forward.1} parent=5 // pred_region
        %s6846 = ssub.s32 %s20, 2
        // Predicated region
        $region85: #{upblock_forward.1} parent=83 // pred_check
          %p6847 = pneg %p327
        $region86: #{upblock_forward.1} parent=83 // pred_check_branch
          %6849 = sbr.rel (%p6847) target = $region88
        $region87: #{upblock_forward.1} parent=83 // pred_region
          %p6850 = scmp.lt.s32.totalorder %s26, 1
          %s6851 = scalar_select %p6850, %s26, 1
          %s6852 = smul.addr %s6851, 12
          %s6853 = smul.addr %s6852, 8
          %s6854 = scalar_lea.vmem %s13, %s6853
        $region88: #{upblock_forward.1} parent=83 // pred_fallthru
          _
      $region84: #{upblock_forward.1} parent=5 // pred_fallthru
        _
    $region6: #{upblock_forward.1} parent=1 // loop_footer
      %s24 = sadd.s32 1, %s20
    $region7: #{upblock_forward.1} parent=1 // loop_footer_branch
      %19 = sbr.rel target = $region3
    $region8: #{upblock_forward.1} parent=1 // loop_exit
      _
    %6855 = vsyncpa [#allocation3], 1
    %s6856 = scalar_lea.sflag [#allocation3], 1
    %6857 = vsyncpa %s6856, 1

</llo_original>
